<compile_context>
chip_gen: v7x
topology: tpu7x:2x2x1
jax: 0.10.0
libtpu: 0.0.40
codegen_flags: <defaults>
</compile_context>

<pallas_src>
import functools

import jax
import jax.numpy as jnp
from jax import lax
from jax.experimental import pallas as pl
from jax.experimental.pallas import tpu as pltpu

_LANE = 128
_SUBLANE = 8
# bf16 inputs to the hoisted input-projection GEMM (f32 accumulation on the MXU).
# Set to jnp.float32 to restore bit-exact nn.LSTM input-projection numerics.
_MATMUL_DTYPE = jnp.bfloat16


def _round_up(x, m):
    return ((x + m - 1) // m) * m


def _vmem_capacity_bytes():
    try:
        info = pltpu.get_tpu_info()
        cap = getattr(info, "vmem_capacity_bytes", None)
        if cap:
            return int(cap)
    except Exception:
        pass
    return 64 * 1024 * 1024          # conservative (v7x-sized) fallback


# ----------------------------------------------------------------------------
# Pallas kernels
# ----------------------------------------------------------------------------
def _make_layer_kernel(*, Tc, Hp, T, nchunks, two_streams, fuse_cls):
    """Build one bi-LSTM layer kernel, specialized on static structure flags.

    two_streams: layer input is (prev fwd outputs, prev bwd outputs) kept separate
                 (non-first layers); otherwise a single embedding stream.
    fuse_cls:    last layer + whole sequence in one chunk -> emit logits directly.
    """
    chunked = nchunks > 1
    ragged = chunked and (nchunks * Tc != T)
    Gp = 4 * Hp
    n_x = (2 if two_streams else 1) * (2 if chunked else 1)

    def kernel(*refs):
        pos = 0
        xs = refs[pos:pos + n_x]
        pos += n_x
        if two_streams:
            a_cur, b_cur = xs[0], xs[1]                      # fwd-direction chunk
            a_rev, b_rev = (xs[2], xs[3]) if chunked else (xs[0], xs[1])
        else:
            a_cur, b_cur = xs[0], None
            a_rev = xs[1] if chunked else xs[0]
            b_rev = None
        (wih_f_ref, whh_f_ref, b_f_ref,
         wih_b_ref, whh_b_ref, b_b_ref) = refs[pos:pos + 6]
        pos += 6
        if fuse_cls:
            wcf_ref, wcb_ref, bc_ref = refs[pos:pos + 3]
            pos += 3
            logit_ref = refs[pos]
            pos += 1
        else:
            out_f_ref, out_b_ref = refs[pos:pos + 2]
            pos += 2
        gf_ref, gb_ref, hf_ref, cf_ref, hb_ref, cb_ref = refs[pos:pos + 6]
        pos += 6
        if fuse_cls:
            hs_f_ref, hs_b_ref = refs[pos:pos + 2]

        _, Bb, _ = a_cur.shape
        it = pl.program_id(1)                                # time-chunk axis

        @pl.when(it == 0)
        def _():
            hf_ref[...] = jnp.zeros_like(hf_ref)
            cf_ref[...] = jnp.zeros_like(cf_ref)
            hb_ref[...] = jnp.zeros_like(hb_ref)
            cb_ref[...] = jnp.zeros_like(cb_ref)

        # Hoisted input projection: one (or two, for split fwd/bwd streams) large
        # bf16 MXU GEMM(s) per direction per chunk, bias folded in.
        def in_proj(x1_ref, x2_ref, wih_ref, bias_ref):
            x1 = x1_ref[...].reshape(Tc * Bb, Hp).astype(_MATMUL_DTYPE)
            w = wih_ref[...]
            if x2_ref is None:
                g = jnp.dot(x1, w, preferred_element_type=jnp.float32)
            else:
                x2 = x2_ref[...].reshape(Tc * Bb, Hp).astype(_MATMUL_DTYPE)
                g = (jnp.dot(x1, w[:Hp], preferred_element_type=jnp.float32)
                     + jnp.dot(x2, w[Hp:], preferred_element_type=jnp.float32))
            return (g + bias_ref[...]).reshape(Tc, Bb, Gp)

        gf_ref[...] = in_proj(a_cur, b_cur, wih_f_ref, b_f_ref)
        gb_ref[...] = in_proj(a_rev, b_rev, wih_b_ref, b_b_ref)

        whh_f = whh_f_ref[...]
        whh_b = whh_b_ref[...]

        def cell(gates, c):
            # Gate order i, f, g, o (PyTorch); each slice is a full 128-lane block.
            i_g = jax.nn.sigmoid(gates[:, 0 * Hp:1 * Hp])
            f_g = jax.nn.sigmoid(gates[:, 1 * Hp:2 * Hp])
            g_g = jnp.tanh(gates[:, 2 * Hp:3 * Hp])
            o_g = jax.nn.sigmoid(gates[:, 3 * Hp:4 * Hp])
            c_new = f_g * c + i_g * g_g
            h_new = o_g * jnp.tanh(c_new)
            return h_new, c_new

        def step(s, carry):
            h_f, c_f, h_b, c_b = carry
            tb = Tc - 1 - s
            # Only the small recurrent matmuls remain serial; the two directions
            # are interleaved so MXU / EUP / VPU work overlaps.
            gates_f = gf_ref[s] + jnp.dot(h_f, whh_f,
                                          preferred_element_type=jnp.float32)
            gates_b = gb_ref[tb] + jnp.dot(h_b, whh_b,
                                           preferred_element_type=jnp.float32)
            h_f_new, c_f_new = cell(gates_f, c_f)
            h_b_new, c_b_new = cell(gates_b, c_b)
            if fuse_cls:
                hs_f_ref[s] = h_f_new
                hs_b_ref[tb] = h_b_new
            else:
                out_f_ref[s] = h_f_new                      # lane-dense (Bb, Hp)
                out_b_ref[tb] = h_b_new
            if ragged:
                # Masked ragged chunk: steps past the real T never update the
                # carries (so the backward direction starts at the last *real*
                # step, matching nn.LSTM), garbage stores are sliced/masked later.
                f_ok = (it * Tc + s) < T
                b_ok = ((nchunks - 1 - it) * Tc + tb) < T
                h_f = jnp.where(f_ok, h_f_new, h_f)
                c_f = jnp.where(f_ok, c_f_new, c_f)
                h_b = jnp.where(b_ok, h_b_new, h_b)
                c_b = jnp.where(b_ok, c_b_new, c_b)
            else:
                h_f, c_f, h_b, c_b = h_f_new, c_f_new, h_b_new, c_b_new
            return h_f, c_f, h_b, c_b

        carry0 = (hf_ref[...], cf_ref[...], hb_ref[...], cb_ref[...])
        unroll = True if Tc <= 16 else 4
        h_f, c_f, h_b, c_b = lax.fori_loop(0, Tc, step, carry0, unroll=unroll)

        hf_ref[...] = h_f
        cf_ref[...] = c_f
        hb_ref[...] = h_b
        cb_ref[...] = c_b

        if fuse_cls:
            # Fused classifier epilogue: logits = h_f @ Wf + h_b @ Wb + b,
            # written straight to HBM — the hidden sequence never leaves VMEM.
            Cp = bc_ref.shape[1]
            hf_seq = hs_f_ref[...].reshape(Tc * Bb, Hp)
            hb_seq = hs_b_ref[...].reshape(Tc * Bb, Hp)
            logits = (jnp.dot(hf_seq, wcf_ref[...],
                              preferred_element_type=jnp.float32)
                      + jnp.dot(hb_seq, wcb_ref[...],
                                preferred_element_type=jnp.float32)
                      + bc_ref[...])
            logit_ref[...] = logits.reshape(Tc, Bb, Cp)

    return kernel


def _classify_kernel(hf_ref, hb_ref, wf_ref, wb_ref, b_ref, out_ref):
    """Fallback classifier tile (long-T path): out = h_f @ Wf + h_b @ Wb + b."""
    out_ref[...] = (jnp.dot(hf_ref[...], wf_ref[...],
                            preferred_element_type=jnp.float32)
                    + jnp.dot(hb_ref[...], wb_ref[...],
                              preferred_element_type=jnp.float32)
                    + b_ref[...])


# ----------------------------------------------------------------------------
# Wrappers
# ----------------------------------------------------------------------------
def _plan_time_chunk(T, Bb, Hp, Gp, Cp, num_layers):
    """Pick the time chunk so *everything* resident in VMEM fits the budget."""
    cap = _vmem_capacity_bytes()
    budget = int(cap * 0.5)            # leave room for compiler temporaries
    limit = int(cap * 0.8)             # vmem_limit_bytes passed to Mosaic
    two_streams = num_layers > 1
    din_worst = 2 * Hp if two_streams else Hp
    f32 = 4

    def usage(tc, chunked, fuse):
        n_x = (2 if two_streams else 1) * (2 if chunked else 1)
        u = n_x * 2 * tc * Bb * Hp * f32                 # x streams, dbl-buffered
        u += 2 * tc * Bb * Gp * f32                       # gate scratch (2 dirs)
        u += 4 * Bb * Hp * f32                            # h/c carries
        u += 2 * 2 * din_worst * Gp * 2                   # Wih (bf16), dbl-buffered
        u += 2 * 2 * Hp * Gp * f32                        # Whh
        u += 2 * 2 * Gp * f32                             # biases
        if fuse:
            u += 2 * tc * Bb * Cp * f32                   # logits out, dbl-buffered
            u += 2 * tc * Bb * Hp * f32                   # h-sequence scratch
            u += 2 * (2 * Hp * Cp + Cp) * f32             # classifier weights
        else:
            u += 2 * 2 * tc * Bb * Hp * f32               # out_f/out_b, dbl-buffered
        return u

    # Whole sequence in one chunk (enables classifier fusion, single x read).
    if max(usage(T, False, True), usage(T, False, False)) <= budget:
        return T, 1, limit

    # Chunked: biggest Tc that fits; no divisibility requirement (ragged chunk
    # is masked in-kernel), so no Tc=1 perf cliff for awkward T.
    tc_pick = 8
    for cand in (1024, 768, 512, 384, 256, 192, 128, 96, 64, 48, 32, 24, 16, 8):
        if cand >= T:
            continue
        if usage(cand, True, False) <= budget:
            tc_pick = cand
            break
    nchunks = (T + tc_pick - 1) // tc_pick
    return tc_pick, nchunks, limit


def bilstm_layer(x_streams, lp, *, Tc, nchunks, nb, T_real, fuse_cls, cls,
                 vmem_limit):
    """One bidirectional LSTM layer.

    x_streams: (x,) for the first layer or (out_f, out_b) of the previous layer,
               each of shape (T_pad, Bp, Hp) float32.
    Returns (out_f, out_b) or, when fuse_cls, the logits (T_pad, Bp, Cp).
    """
    two_streams = len(x_streams) == 2
    chunked = nchunks > 1
    T_pad, Bp, _ = x_streams[0].shape
    Bb = Bp // nb
    Hp = lp["whh_f"].shape[0]
    Gp = lp["whh_f"].shape[1]
    din_p = lp["wih_f"].shape[0]

    fwd_map = lambda b, i: (i, b, 0)
    bwd_map = lambda b, i: (nchunks - 1 - i, b, 0)
    wmap = lambda b, i: (0, 0)

    operands, in_specs = [], []
    for xs in x_streams:                                  # fwd-direction chunks
        operands.append(xs)
        in_specs.append(pl.BlockSpec((Tc, Bb, Hp), fwd_map))
    if chunked:                                           # bwd-direction chunks
        for xs in x_streams:
            operands.append(xs)
            in_specs.append(pl.BlockSpec((Tc, Bb, Hp), bwd_map))
    # TODO(synk): single-buffer these resident weights (pipeline_mode=pl.Buffered(1))
    # to reclaim the redundant second pipeline buffer once that path is verified.
    for arr, shape in ((lp["wih_f"], (din_p, Gp)), (lp["whh_f"], (Hp, Gp)),
                       (lp["b_f"], (1, Gp)),
                       (lp["wih_b"], (din_p, Gp)), (lp["whh_b"], (Hp, Gp)),
                       (lp["b_b"], (1, Gp))):
        operands.append(arr)
        in_specs.append(pl.BlockSpec(shape, wmap))
    if fuse_cls:
        Cp = cls["b"].shape[1]
        for arr, shape in ((cls["w_f"], (Hp, Cp)), (cls["w_b"], (Hp, Cp)),
                           (cls["b"], (1, Cp))):
            operands.append(arr)
            in_specs.append(pl.BlockSpec(shape, wmap))
        out_shape = jax.ShapeDtypeStruct((T_pad, Bp, Cp), jnp.float32)
        out_specs = pl.BlockSpec((Tc, Bb, Cp), fwd_map)
    else:
        out_shape = (jax.ShapeDtypeStruct((T_pad, Bp, Hp), jnp.float32),
                     jax.ShapeDtypeStruct((T_pad, Bp, Hp), jnp.float32))
        out_specs = (pl.BlockSpec((Tc, Bb, Hp), fwd_map),
                     pl.BlockSpec((Tc, Bb, Hp), bwd_map))

    scratch = [pltpu.VMEM((Tc, Bb, Gp), jnp.float32),     # gates fwd
               pltpu.VMEM((Tc, Bb, Gp), jnp.float32),     # gates bwd
               pltpu.VMEM((Bb, Hp), jnp.float32),         # h fwd
               pltpu.VMEM((Bb, Hp), jnp.float32),         # c fwd
               pltpu.VMEM((Bb, Hp), jnp.float32),         # h bwd
               pltpu.VMEM((Bb, Hp), jnp.float32)]         # c bwd
    if fuse_cls:
        scratch += [pltpu.VMEM((Tc, Bb, Hp), jnp.float32),   # h-seq fwd
                    pltpu.VMEM((Tc, Bb, Hp), jnp.float32)]   # h-seq bwd

    kernel = _make_layer_kernel(Tc=Tc, Hp=Hp, T=T_real, nchunks=nchunks,
                                two_streams=two_streams, fuse_cls=fuse_cls)

    return pl.pallas_call(
        kernel,
        out_shape=out_shape,
        grid=(nb, nchunks),
        in_specs=in_specs,
        out_specs=out_specs,
        scratch_shapes=scratch,
        compiler_params=pltpu.CompilerParams(
            # batch axis "parallel" -> v7x megacore splits it across the 2 TCs
            # when nb == 2; time axis carries h/c, hence "arbitrary".
            dimension_semantics=("parallel", "arbitrary"),
            vmem_limit_bytes=vmem_limit),
    )(*operands)


def classify_split(h_f, h_b, w_f, w_b, b, vmem_limit):
    """Long-T fallback classifier: no fwd/bwd concat, cdiv+pad row tiling."""
    N, Hp = h_f.shape
    Cp = w_f.shape[1]
    bn = min(512, N)
    n_pad = _round_up(N, bn)
    if n_pad != N:
        h_f = jnp.pad(h_f, ((0, n_pad - N), (0, 0)))
        h_b = jnp.pad(h_b, ((0, n_pad - N), (0, 0)))
    out = pl.pallas_call(
        _classify_kernel,
        out_shape=jax.ShapeDtypeStruct((n_pad, Cp), jnp.float32),
        grid=(n_pad // bn,),
        in_specs=[pl.BlockSpec((bn, Hp), lambda i: (i, 0)),
                  pl.BlockSpec((bn, Hp), lambda i: (i, 0)),
                  pl.BlockSpec((Hp, Cp), lambda i: (0, 0)),
                  pl.BlockSpec((Hp, Cp), lambda i: (0, 0)),
                  pl.BlockSpec((1, Cp), lambda i: (0, 0))],
        out_specs=pl.BlockSpec((bn, Cp), lambda i: (i, 0)),
        compiler_params=pltpu.CompilerParams(
            dimension_semantics=("parallel",),
            vmem_limit_bytes=vmem_limit),
    )(h_f, h_b, w_f, w_b, b)
    return out[:N]


@functools.partial(jax.jit, static_argnames=("class_num",))
def torch_model_forward(x_ids, params, class_num):
    """Equivalent of TorchModel.forward(x) with model_type != 'bert',
    target=None, use_crf=False -> returns predict logits (B, T, class_num)."""
    B, T = x_ids.shape
    Bp = _round_up(B, _SUBLANE)
    Hp = params["lstm_layers"][0]["whh_f"].shape[0]
    Gp = 4 * Hp
    Cp = params["b_cls"].shape[1]
    num_layers = len(params["lstm_layers"])

    # Batch padding + time-major embedding gather (the gather absorbs the
    # (B,T)->(T,B) transpose; padding_idx=0 row and padded cols are zero).
    ids = jnp.pad(x_ids, ((0, Bp - B), (0, 0)))            # (Bp, T), pad id 0
    x = jnp.take(params["embedding"], ids.T, axis=0)        # (T, Bp, Hp) f32

    nb = 2 if (Bp >= 16 and Bp % 16 == 0) else 1            # v7x megacore split
    Bb = Bp // nb
    Tc, nchunks, vmem_limit = _plan_time_chunk(T, Bb, Hp, Gp, Cp, num_layers)
    T_pad = Tc * nchunks
    if T_pad != T:
        x = jnp.pad(x, ((0, T_pad - T), (0, 0), (0, 0)))     # masked in-kernel

    fuse_cls = (nchunks == 1)
    cls = {"w_f": params["wcls_f"], "w_b": params["wcls_b"], "b": params["b_cls"]}

    streams = (x,)
    logits_tm = None
    for li, lp in enumerate(params["lstm_layers"]):
        last = (li == num_layers - 1)
        if last and fuse_cls:
            logits_tm = bilstm_layer(streams, lp, Tc=Tc, nchunks=nchunks, nb=nb,
                                     T_real=T, fuse_cls=True, cls=cls,
                                     vmem_limit=vmem_limit)
        else:
            out_f, out_b = bilstm_layer(streams, lp, Tc=Tc, nchunks=nchunks,
                                        nb=nb, T_real=T, fuse_cls=False,
                                        cls=None, vmem_limit=vmem_limit)
            streams = (out_f, out_b)

    if fuse_cls:
        logits = jnp.transpose(logits_tm, (1, 0, 2))          # (Bp, T, Cp)
    else:
        out_f, out_b = streams
        flat = classify_split(out_f.reshape(T_pad * Bp, Hp),
                              out_b.reshape(T_pad * Bp, Hp),
                              params["wcls_f"], params["wcls_b"],
                              params["b_cls"], vmem_limit)
        logits = jnp.transpose(flat.reshape(T_pad, Bp, Cp), (1, 0, 2))
    return logits[:B, :T, :class_num]                         # (B, T, class_num)


# ----------------------------------------------------------------------------
# Parameters: PyTorch-shaped init + kernel-layout preparation (pad + transpose)
# ----------------------------------------------------------------------------
def init_params(key, vocab_size, hidden_size, class_num, num_layers):
    """PyTorch-shaped parameters (same shapes as the nn.Module)."""
    H = hidden_size
    bound = 1.0 / jnp.sqrt(jnp.float32(H))

    def uniform(k, shape):
        return jax.random.uniform(k, shape, jnp.float32, -bound, bound)

    keys = jax.random.split(key, 4 + num_layers)

    # nn.Embedding(vocab_size + 1, H, padding_idx=0)
    emb = jax.random.normal(keys[0], (vocab_size + 1, H), jnp.float32)
    emb = emb.at[0].set(0.0)

    lstm_layers = []
    for layer in range(num_layers):
        din = H if layer == 0 else 2 * H
        lk = jax.random.split(keys[1 + layer], 8)
        lstm_layers.append({
            "wih_f": uniform(lk[0], (4 * H, din)),
            "whh_f": uniform(lk[1], (4 * H, H)),
            "b_f": uniform(lk[2], (1, 4 * H)) + uniform(lk[3], (1, 4 * H)),
            "wih_b": uniform(lk[4], (4 * H, din)),
            "whh_b": uniform(lk[5], (4 * H, H)),
            "b_b": uniform(lk[6], (1, 4 * H)) + uniform(lk[7], (1, 4 * H)),
        })

    w_cls = uniform(keys[1 + num_layers], (class_num, 2 * H))
    b_cls = uniform(keys[2 + num_layers], (1, class_num))

    return {"embedding": emb, "lstm_layers": lstm_layers,
            "w_cls": w_cls, "b_cls": b_cls}


def prepare_params(raw, hidden_size, class_num):
    """Pre-transpose and lane-pad everything once (free at init time).

    Padded hidden units provably stay zero through the recurrence (zero rows /
    cols / bias => padded-lane gates 0 => c stays 0, h stays 0), so results are
    exact on the real H / class_num slices.  Classifier weights are split into
    fwd/bwd halves so fwd/bwd hidden streams never need concatenating.
    """
    H = hidden_size
    Hp = _round_up(H, _LANE)
    Gp = 4 * Hp
    C = class_num
    Cp = _round_up(C, _LANE)

    emb = raw["embedding"]                                  # (V, H)
    V = emb.shape[0]
    emb_p = jnp.zeros((V, Hp), jnp.float32).at[:, :H].set(emb)

    def pack_wih(w, first_layer):
        w_t = w.T                                           # (din, 4H)
        din_p = Hp if first_layer else 2 * Hp
        out = jnp.zeros((din_p, Gp), jnp.float32)
        for g in range(4):
            blk = w_t[:, g * H:(g + 1) * H]                 # (din, H)
            out = out.at[:H, g * Hp:g * Hp + H].set(blk[:H])
            if not first_layer:
                out = out.at[Hp:Hp + H, g * Hp:g * Hp + H].set(blk[H:])
        return out.astype(_MATMUL_DTYPE)                    # bf16 weights

    def pack_whh(w):
        w_t = w.T                                           # (H, 4H)
        out = jnp.zeros((Hp, Gp), jnp.float32)
        for g in range(4):
            out = out.at[:H, g * Hp:g * Hp + H].set(w_t[:, g * H:(g + 1) * H])
        return out                                          # keep recurrent f32

    def pack_bias(b):
        out = jnp.zeros((1, Gp), jnp.float32)
        for g in range(4):
            out = out.at[:, g * Hp:g * Hp + H].set(b[:, g * H:(g + 1) * H])
        return out

    layers = []
    for li, lp in enumerate(raw["lstm_layers"]):
        first = (li == 0)
        layers.append({
            "wih_f": pack_wih(lp["wih_f"], first),
            "whh_f": pack_whh(lp["whh_f"]),
            "b_f": pack_bias(lp["b_f"]),
            "wih_b": pack_wih(lp["wih_b"], first),
            "whh_b": pack_whh(lp["whh_b"]),
            "b_b": pack_bias(lp["b_b"]),
        })

    # nn.Linear(2H, C): y = x @ W.T + b -> pre-transposed, split fwd/bwd halves.
    w_t = raw["w_cls"].T                                    # (2H, C)
    wcls_f = jnp.zeros((Hp, Cp), jnp.float32).at[:H, :C].set(w_t[:H])
    wcls_b = jnp.zeros((Hp, Cp), jnp.float32).at[:H, :C].set(w_t[H:])
    b_cls = jnp.zeros((1, Cp), jnp.float32).at[:, :C].set(raw["b_cls"])

    return {"embedding": emb_p, "lstm_layers": layers,
            "wcls_f": wcls_f, "wcls_b": wcls_b, "b_cls": b_cls}


# TODO(synk): CRF decode / CRF loss and CrossEntropy training-loss branches (and
# the BERT encoder path) are not implemented; this reproduces the inference
# `predict` output path of the non-BERT model.

if __name__ == "__main__":
    config = {
        "hidden_size": 32,
        "vocab_size": 30,      # embedding table is vocab_size + 1 = 31 rows
        "max_length": 8,
        "class_num": 9,
        "num_layers": 2,
        "model_type": "lstm",
        "use_crf": False,
    }
    batch = 2

    root = jax.random.PRNGKey(0)
    k_param, k_ids = jax.random.split(root)
    raw_params = init_params(k_param,
                             vocab_size=config["vocab_size"],
                             hidden_size=config["hidden_size"],
                             class_num=config["class_num"],
                             num_layers=config["num_layers"])
    params = prepare_params(raw_params,
                            hidden_size=config["hidden_size"],
                            class_num=config["class_num"])

    x_ids = jax.random.randint(
        k_ids, (batch, config["max_length"]), 0, config["vocab_size"] + 1,
        dtype=jnp.int32)

    predict = torch_model_forward(x_ids, params, class_num=config["class_num"])
    predict = jax.block_until_ready(predict)

    assert predict.shape == (batch, config["max_length"], config["class_num"])
    assert predict.dtype == jnp.float32
    assert bool(jnp.all(jnp.isfinite(predict)))
    print("KERNEL_OK")
</pallas_src>

<mosaic_0001>
module attributes {stable_mosaic.version = 11 : i64} {
  func.func @kernel(%arg0: i32, %arg1: i32, %arg2: memref<8x8x128xf32, #tpu.memory_space<vmem>>, %arg3: memref<128x512xbf16, #tpu.memory_space<vmem>>, %arg4: memref<128x512xf32, #tpu.memory_space<vmem>>, %arg5: memref<1x512xf32, #tpu.memory_space<vmem>>, %arg6: memref<128x512xbf16, #tpu.memory_space<vmem>>, %arg7: memref<128x512xf32, #tpu.memory_space<vmem>>, %arg8: memref<1x512xf32, #tpu.memory_space<vmem>>, %arg9: memref<8x8x128xf32, #tpu.memory_space<vmem>>, %arg10: memref<8x8x128xf32, #tpu.memory_space<vmem>>, %arg11: memref<8x8x512xf32, #tpu.memory_space<vmem>>, %arg12: memref<8x8x512xf32, #tpu.memory_space<vmem>>, %arg13: memref<8x128xf32, #tpu.memory_space<vmem>>, %arg14: memref<8x128xf32, #tpu.memory_space<vmem>>, %arg15: memref<8x128xf32, #tpu.memory_space<vmem>>, %arg16: memref<8x128xf32, #tpu.memory_space<vmem>>) attributes {dimension_semantics = [#tpu.dimension_semantics<parallel>, #tpu.dimension_semantics<arbitrary>], iteration_bounds = array<i64: 1, 1>, scalar_prefetch = 0 : i64, scratch_operands = 6 : i64, tpu.core_type = #tpu.core_type<tc>, window_params = [{transform_indices = @transform_0, window_bounds = array<i64: 8, 8, 128>}, {pipeline_mode = #tpu.pipeline_mode<synchronous>, transform_indices = @transform_1, window_bounds = array<i64: 128, 512>}, {pipeline_mode = #tpu.pipeline_mode<synchronous>, transform_indices = @transform_2, window_bounds = array<i64: 128, 512>}, {pipeline_mode = #tpu.pipeline_mode<synchronous>, transform_indices = @transform_3, window_bounds = array<i64: 1, 512>}, {pipeline_mode = #tpu.pipeline_mode<synchronous>, transform_indices = @transform_4, window_bounds = array<i64: 128, 512>}, {pipeline_mode = #tpu.pipeline_mode<synchronous>, transform_indices = @transform_5, window_bounds = array<i64: 128, 512>}, {pipeline_mode = #tpu.pipeline_mode<synchronous>, transform_indices = @transform_6, window_bounds = array<i64: 1, 512>}, {transform_indices = @transform_7, window_bounds = array<i64: 8, 8, 128>}, {transform_indices = @transform_8, window_bounds = array<i64: 8, 8, 128>}]} {
    %c0_i32 = arith.constant 0 : i32
    %0 = arith.cmpi eq, %arg1, %c0_i32 : i32
    %1 = arith.extui %0 : i1 to i32
    %c0_i32_0 = arith.constant 0 : i32
    %2 = arith.cmpi ne, %1, %c0_i32_0 : i32
    scf.if %2 {
      %cst_178 = arith.constant 0.000000e+00 : f32
      %585 = vector.broadcast %cst_178 : f32 to vector<8x128xf32>
      %c0_179 = arith.constant 0 : index
      %c0_180 = arith.constant 0 : index
      %586 = vector.load %arg13[%c0_179, %c0_180] : memref<8x128xf32, #tpu.memory_space<vmem>>, vector<8x128xf32>
      tpu.vector_store %arg13[%c0_179, %c0_180], %585 {strides = array<i32>} : memref<8x128xf32, #tpu.memory_space<vmem>>, vector<8x128xf32>,
      %cst_181 = arith.constant 0.000000e+00 : f32
      %587 = vector.broadcast %cst_181 : f32 to vector<8x128xf32>
      %c0_182 = arith.constant 0 : index
      %c0_183 = arith.constant 0 : index
      %588 = vector.load %arg14[%c0_182, %c0_183] : memref<8x128xf32, #tpu.memory_space<vmem>>, vector<8x128xf32>
      tpu.vector_store %arg14[%c0_182, %c0_183], %587 {strides = array<i32>} : memref<8x128xf32, #tpu.memory_space<vmem>>, vector<8x128xf32>,
      %cst_184 = arith.constant 0.000000e+00 : f32
      %589 = vector.broadcast %cst_184 : f32 to vector<8x128xf32>
      %c0_185 = arith.constant 0 : index
      %c0_186 = arith.constant 0 : index
      %590 = vector.load %arg15[%c0_185, %c0_186] : memref<8x128xf32, #tpu.memory_space<vmem>>, vector<8x128xf32>
      tpu.vector_store %arg15[%c0_185, %c0_186], %589 {strides = array<i32>} : memref<8x128xf32, #tpu.memory_space<vmem>>, vector<8x128xf32>,
      %cst_187 = arith.constant 0.000000e+00 : f32
      %591 = vector.broadcast %cst_187 : f32 to vector<8x128xf32>
      %c0_188 = arith.constant 0 : index
      %c0_189 = arith.constant 0 : index
      %592 = vector.load %arg16[%c0_188, %c0_189] : memref<8x128xf32, #tpu.memory_space<vmem>>, vector<8x128xf32>
      tpu.vector_store %arg16[%c0_188, %c0_189], %591 {strides = array<i32>} : memref<8x128xf32, #tpu.memory_space<vmem>>, vector<8x128xf32>,
    } else {
    }
    %c0 = arith.constant 0 : index
    %c0_1 = arith.constant 0 : index
    %c0_2 = arith.constant 0 : index
    %3 = vector.load %arg2[%c0, %c0_1, %c0_2] : memref<8x8x128xf32, #tpu.memory_space<vmem>>, vector<8x8x128xf32>
    %4 = vector.shape_cast %3 : vector<8x8x128xf32> to vector<64x128xf32>
    %5 = arith.truncf %4 : vector<64x128xf32> to vector<64x128xbf16>
    %c0_3 = arith.constant 0 : index
    %c0_4 = arith.constant 0 : index
    %6 = vector.load %arg3[%c0_3, %c0_4] : memref<128x512xbf16, #tpu.memory_space<vmem>>, vector<128x512xbf16>
    %cst = arith.constant dense<0.000000e+00> : vector<64x512xf32>
    %7 = tpu.matmul %5, %6, %cst {dimension_numbers = #tpu.dot_dimension_numbers<[1], [0], [0], [1], [0, 0, 1, 1], [], []>} : vector<64x128xbf16>, vector<128x512xbf16>, vector<64x512xf32> -> vector<64x512xf32>
    %c0_5 = arith.constant 0 : index
    %c0_6 = arith.constant 0 : index
    %8 = vector.load %arg5[%c0_5, %c0_6] : memref<1x512xf32, #tpu.memory_space<vmem>>, vector<1x512xf32>
    %9 = vector.broadcast %8 : vector<1x512xf32> to vector<64x512xf32>
    %10 = arith.addf %7, %9 : vector<64x512xf32>
    %11 = vector.shape_cast %10 : vector<64x512xf32> to vector<8x8x512xf32>
    %c0_7 = arith.constant 0 : index
    %c0_8 = arith.constant 0 : index
    %c0_9 = arith.constant 0 : index
    %12 = vector.load %arg11[%c0_7, %c0_8, %c0_9] : memref<8x8x512xf32, #tpu.memory_space<vmem>>, vector<8x8x512xf32>
    tpu.vector_store %arg11[%c0_7, %c0_8, %c0_9], %11 {strides = array<i32>} : memref<8x8x512xf32, #tpu.memory_space<vmem>>, vector<8x8x512xf32>,
    %c0_10 = arith.constant 0 : index
    %c0_11 = arith.constant 0 : index
    %c0_12 = arith.constant 0 : index
    %13 = vector.load %arg2[%c0_10, %c0_11, %c0_12] : memref<8x8x128xf32, #tpu.memory_space<vmem>>, vector<8x8x128xf32>
    %14 = vector.shape_cast %13 : vector<8x8x128xf32> to vector<64x128xf32>
    %15 = arith.truncf %14 : vector<64x128xf32> to vector<64x128xbf16>
    %c0_13 = arith.constant 0 : index
    %c0_14 = arith.constant 0 : index
    %16 = vector.load %arg6[%c0_13, %c0_14] : memref<128x512xbf16, #tpu.memory_space<vmem>>, vector<128x512xbf16>
    %cst_15 = arith.constant dense<0.000000e+00> : vector<64x512xf32>
    %17 = tpu.matmul %15, %16, %cst_15 {dimension_numbers = #tpu.dot_dimension_numbers<[1], [0], [0], [1], [0, 0, 1, 1], [], []>} : vector<64x128xbf16>, vector<128x512xbf16>, vector<64x512xf32> -> vector<64x512xf32>
    %c0_16 = arith.constant 0 : index
    %c0_17 = arith.constant 0 : index
    %18 = vector.load %arg8[%c0_16, %c0_17] : memref<1x512xf32, #tpu.memory_space<vmem>>, vector<1x512xf32>
    %19 = vector.broadcast %18 : vector<1x512xf32> to vector<64x512xf32>
    %20 = arith.addf %17, %19 : vector<64x512xf32>
    %21 = vector.shape_cast %20 : vector<64x512xf32> to vector<8x8x512xf32>
    %c0_18 = arith.constant 0 : index
    %c0_19 = arith.constant 0 : index
    %c0_20 = arith.constant 0 : index
    %22 = vector.load %arg12[%c0_18, %c0_19, %c0_20] : memref<8x8x512xf32, #tpu.memory_space<vmem>>, vector<8x8x512xf32>
    tpu.vector_store %arg12[%c0_18, %c0_19, %c0_20], %21 {strides = array<i32>} : memref<8x8x512xf32, #tpu.memory_space<vmem>>, vector<8x8x512xf32>,
    %c0_21 = arith.constant 0 : index
    %c0_22 = arith.constant 0 : index
    %23 = vector.load %arg4[%c0_21, %c0_22] : memref<128x512xf32, #tpu.memory_space<vmem>>, vector<128x512xf32>
    %c0_23 = arith.constant 0 : index
    %c0_24 = arith.constant 0 : index
    %24 = vector.load %arg7[%c0_23, %c0_24] : memref<128x512xf32, #tpu.memory_space<vmem>>, vector<128x512xf32>
    %c0_25 = arith.constant 0 : index
    %c0_26 = arith.constant 0 : index
    %25 = vector.load %arg13[%c0_25, %c0_26] : memref<8x128xf32, #tpu.memory_space<vmem>>, vector<8x128xf32>
    %c0_27 = arith.constant 0 : index
    %c0_28 = arith.constant 0 : index
    %26 = vector.load %arg14[%c0_27, %c0_28] : memref<8x128xf32, #tpu.memory_space<vmem>>, vector<8x128xf32>
    %c0_29 = arith.constant 0 : index
    %c0_30 = arith.constant 0 : index
    %27 = vector.load %arg15[%c0_29, %c0_30] : memref<8x128xf32, #tpu.memory_space<vmem>>, vector<8x128xf32>
    %c0_31 = arith.constant 0 : index
    %c0_32 = arith.constant 0 : index
    %28 = vector.load %arg16[%c0_31, %c0_32] : memref<8x128xf32, #tpu.memory_space<vmem>>, vector<8x128xf32>
    %c0_i32_33 = arith.constant 0 : i32
    %c7_i32 = arith.constant 7 : i32
    %29 = arith.subi %c7_i32, %c0_i32_33 : i32
    %30 = arith.index_cast %c0_i32_33 : i32 to index
    %c0_34 = arith.constant 0 : index
    %c0_35 = arith.constant 0 : index
    %31 = vector.load %arg11[%30, %c0_34, %c0_35] : memref<8x8x512xf32, #tpu.memory_space<vmem>>, vector<1x8x512xf32>
    %32 = vector.shape_cast %31 : vector<1x8x512xf32> to vector<8x512xf32>
    %cst_36 = arith.constant dense<0.000000e+00> : vector<8x512xf32>
    %33 = tpu.matmul %25, %23, %cst_36 {dimension_numbers = #tpu.dot_dimension_numbers<[1], [0], [0], [1], [0, 0, 1, 1], [], []>} : vector<8x128xf32>, vector<128x512xf32>, vector<8x512xf32> -> vector<8x512xf32>
    %34 = arith.addf %32, %33 : vector<8x512xf32>
    %35 = arith.index_cast %29 : i32 to index
    %c0_37 = arith.constant 0 : index
    %c0_38 = arith.constant 0 : index
    %36 = vector.load %arg12[%35, %c0_37, %c0_38] : memref<8x8x512xf32, #tpu.memory_space<vmem>>, vector<1x8x512xf32>
    %37 = vector.shape_cast %36 : vector<1x8x512xf32> to vector<8x512xf32>
    %cst_39 = arith.constant dense<0.000000e+00> : vector<8x512xf32>
    %38 = tpu.matmul %27, %24, %cst_39 {dimension_numbers = #tpu.dot_dimension_numbers<[1], [0], [0], [1], [0, 0, 1, 1], [], []>} : vector<8x128xf32>, vector<128x512xf32>, vector<8x512xf32> -> vector<8x512xf32>
    %39 = arith.addf %37, %38 : vector<8x512xf32>
    %40 = vector.extract_strided_slice %34 {offsets = [0, 0], sizes = [8, 128], strides = [1, 1]} : vector<8x512xf32> to vector<8x128xf32>
    %41 = arith.negf %40 : vector<8x128xf32>
    %42 = math.exp %41 : vector<8x128xf32>
    %cst_40 = arith.constant 1.000000e+00 : f32
    %43 = vector.broadcast %cst_40 : f32 to vector<8x128xf32>
    %44 = arith.addf %43, %42 : vector<8x128xf32>
    %45 = arith.divf %43, %44 : vector<8x128xf32>
    %46 = vector.extract_strided_slice %34 {offsets = [0, 128], sizes = [8, 128], strides = [1, 1]} : vector<8x512xf32> to vector<8x128xf32>
    %47 = arith.negf %46 : vector<8x128xf32>
    %48 = math.exp %47 : vector<8x128xf32>
    %cst_41 = arith.constant 1.000000e+00 : f32
    %49 = vector.broadcast %cst_41 : f32 to vector<8x128xf32>
    %50 = arith.addf %49, %48 : vector<8x128xf32>
    %51 = arith.divf %49, %50 : vector<8x128xf32>
    %52 = vector.extract_strided_slice %34 {offsets = [0, 256], sizes = [8, 128], strides = [1, 1]} : vector<8x512xf32> to vector<8x128xf32>
    %53 = math.tanh %52 : vector<8x128xf32>
    %54 = vector.extract_strided_slice %34 {offsets = [0, 384], sizes = [8, 128], strides = [1, 1]} : vector<8x512xf32> to vector<8x128xf32>
    %55 = arith.negf %54 : vector<8x128xf32>
    %56 = math.exp %55 : vector<8x128xf32>
    %cst_42 = arith.constant 1.000000e+00 : f32
    %57 = vector.broadcast %cst_42 : f32 to vector<8x128xf32>
    %58 = arith.addf %57, %56 : vector<8x128xf32>
    %59 = arith.divf %57, %58 : vector<8x128xf32>
    %60 = arith.mulf %51, %26 : vector<8x128xf32>
    %61 = arith.mulf %45, %53 : vector<8x128xf32>
    %62 = arith.addf %60, %61 : vector<8x128xf32>
    %63 = math.tanh %62 : vector<8x128xf32>
    %64 = arith.mulf %59, %63 : vector<8x128xf32>
    %65 = vector.extract_strided_slice %39 {offsets = [0, 0], sizes = [8, 128], strides = [1, 1]} : vector<8x512xf32> to vector<8x128xf32>
    %66 = arith.negf %65 : vector<8x128xf32>
    %67 = math.exp %66 : vector<8x128xf32>
    %cst_43 = arith.constant 1.000000e+00 : f32
    %68 = vector.broadcast %cst_43 : f32 to vector<8x128xf32>
    %69 = arith.addf %68, %67 : vector<8x128xf32>
    %70 = arith.divf %68, %69 : vector<8x128xf32>
    %71 = vector.extract_strided_slice %39 {offsets = [0, 128], sizes = [8, 128], strides = [1, 1]} : vector<8x512xf32> to vector<8x128xf32>
    %72 = arith.negf %71 : vector<8x128xf32>
    %73 = math.exp %72 : vector<8x128xf32>
    %cst_44 = arith.constant 1.000000e+00 : f32
    %74 = vector.broadcast %cst_44 : f32 to vector<8x128xf32>
    %75 = arith.addf %74, %73 : vector<8x128xf32>
    %76 = arith.divf %74, %75 : vector<8x128xf32>
    %77 = vector.extract_strided_slice %39 {offsets = [0, 256], sizes = [8, 128], strides = [1, 1]} : vector<8x512xf32> to vector<8x128xf32>
    %78 = math.tanh %77 : vector<8x128xf32>
    %79 = vector.extract_strided_slice %39 {offsets = [0, 384], sizes = [8, 128], strides = [1, 1]} : vector<8x512xf32> to vector<8x128xf32>
    %80 = arith.negf %79 : vector<8x128xf32>
    %81 = math.exp %80 : vector<8x128xf32>
    %cst_45 = arith.constant 1.000000e+00 : f32
    %82 = vector.broadcast %cst_45 : f32 to vector<8x128xf32>
    %83 = arith.addf %82, %81 : vector<8x128xf32>
    %84 = arith.divf %82, %83 : vector<8x128xf32>
    %85 = arith.mulf %76, %28 : vector<8x128xf32>
    %86 = arith.mulf %70, %78 : vector<8x128xf32>
    %87 = arith.addf %85, %86 : vector<8x128xf32>
    %88 = math.tanh %87 : vector<8x128xf32>
    %89 = arith.mulf %84, %88 : vector<8x128xf32>
    %90 = arith.index_cast %c0_i32_33 : i32 to index
    %c0_46 = arith.constant 0 : index
    %c0_47 = arith.constant 0 : index
    %91 = vector.load %arg9[%90, %c0_46, %c0_47] : memref<8x8x128xf32, #tpu.memory_space<vmem>>, vector<1x8x128xf32>
    %92 = vector.shape_cast %91 : vector<1x8x128xf32> to vector<8x128xf32>
    %93 = vector.shape_cast %64 : vector<8x128xf32> to vector<1x8x128xf32>
    tpu.vector_store %arg9[%90, %c0_46, %c0_47], %93 {strides = array<i32>} : memref<8x8x128xf32, #tpu.memory_space<vmem>>, vector<1x8x128xf32>,
    %94 = arith.index_cast %29 : i32 to index
    %c0_48 = arith.constant 0 : index
    %c0_49 = arith.constant 0 : index
    %95 = vector.load %arg10[%94, %c0_48, %c0_49] : memref<8x8x128xf32, #tpu.memory_space<vmem>>, vector<1x8x128xf32>
    %96 = vector.shape_cast %95 : vector<1x8x128xf32> to vector<8x128xf32>
    %97 = vector.shape_cast %89 : vector<8x128xf32> to vector<1x8x128xf32>
    tpu.vector_store %arg10[%94, %c0_48, %c0_49], %97 {strides = array<i32>} : memref<8x8x128xf32, #tpu.memory_space<vmem>>, vector<1x8x128xf32>,
    %c1_i32 = arith.constant 1 : i32
    %c7_i32_50 = arith.constant 7 : i32
    %98 = arith.subi %c7_i32_50, %c1_i32 : i32
    %99 = arith.index_cast %c1_i32 : i32 to index
    %c0_51 = arith.constant 0 : index
    %c0_52 = arith.constant 0 : index
    %100 = vector.load %arg11[%99, %c0_51, %c0_52] : memref<8x8x512xf32, #tpu.memory_space<vmem>>, vector<1x8x512xf32>
    %101 = vector.shape_cast %100 : vector<1x8x512xf32> to vector<8x512xf32>
    %cst_53 = arith.constant dense<0.000000e+00> : vector<8x512xf32>
    %102 = tpu.matmul %64, %23, %cst_53 {dimension_numbers = #tpu.dot_dimension_numbers<[1], [0], [0], [1], [0, 0, 1, 1], [], []>} : vector<8x128xf32>, vector<128x512xf32>, vector<8x512xf32> -> vector<8x512xf32>
    %103 = arith.addf %101, %102 : vector<8x512xf32>
    %104 = arith.index_cast %98 : i32 to index
    %c0_54 = arith.constant 0 : index
    %c0_55 = arith.constant 0 : index
    %105 = vector.load %arg12[%104, %c0_54, %c0_55] : memref<8x8x512xf32, #tpu.memory_space<vmem>>, vector<1x8x512xf32>
    %106 = vector.shape_cast %105 : vector<1x8x512xf32> to vector<8x512xf32>
    %cst_56 = arith.constant dense<0.000000e+00> : vector<8x512xf32>
    %107 = tpu.matmul %89, %24, %cst_56 {dimension_numbers = #tpu.dot_dimension_numbers<[1], [0], [0], [1], [0, 0, 1, 1], [], []>} : vector<8x128xf32>, vector<128x512xf32>, vector<8x512xf32> -> vector<8x512xf32>
    %108 = arith.addf %106, %107 : vector<8x512xf32>
    %109 = vector.extract_strided_slice %103 {offsets = [0, 0], sizes = [8, 128], strides = [1, 1]} : vector<8x512xf32> to vector<8x128xf32>
    %110 = arith.negf %109 : vector<8x128xf32>
    %111 = math.exp %110 : vector<8x128xf32>
    %cst_57 = arith.constant 1.000000e+00 : f32
    %112 = vector.broadcast %cst_57 : f32 to vector<8x128xf32>
    %113 = arith.addf %112, %111 : vector<8x128xf32>
    %114 = arith.divf %112, %113 : vector<8x128xf32>
    %115 = vector.extract_strided_slice %103 {offsets = [0, 128], sizes = [8, 128], strides = [1, 1]} : vector<8x512xf32> to vector<8x128xf32>
    %116 = arith.negf %115 : vector<8x128xf32>
    %117 = math.exp %116 : vector<8x128xf32>
    %cst_58 = arith.constant 1.000000e+00 : f32
    %118 = vector.broadcast %cst_58 : f32 to vector<8x128xf32>
    %119 = arith.addf %118, %117 : vector<8x128xf32>
    %120 = arith.divf %118, %119 : vector<8x128xf32>
    %121 = vector.extract_strided_slice %103 {offsets = [0, 256], sizes = [8, 128], strides = [1, 1]} : vector<8x512xf32> to vector<8x128xf32>
    %122 = math.tanh %121 : vector<8x128xf32>
    %123 = vector.extract_strided_slice %103 {offsets = [0, 384], sizes = [8, 128], strides = [1, 1]} : vector<8x512xf32> to vector<8x128xf32>
    %124 = arith.negf %123 : vector<8x128xf32>
    %125 = math.exp %124 : vector<8x128xf32>
    %cst_59 = arith.constant 1.000000e+00 : f32
    %126 = vector.broadcast %cst_59 : f32 to vector<8x128xf32>
    %127 = arith.addf %126, %125 : vector<8x128xf32>
    %128 = arith.divf %126, %127 : vector<8x128xf32>
    %129 = arith.mulf %120, %62 : vector<8x128xf32>
    %130 = arith.mulf %114, %122 : vector<8x128xf32>
    %131 = arith.addf %129, %130 : vector<8x128xf32>
    %132 = math.tanh %131 : vector<8x128xf32>
    %133 = arith.mulf %128, %132 : vector<8x128xf32>
    %134 = vector.extract_strided_slice %108 {offsets = [0, 0], sizes = [8, 128], strides = [1, 1]} : vector<8x512xf32> to vector<8x128xf32>
    %135 = arith.negf %134 : vector<8x128xf32>
    %136 = math.exp %135 : vector<8x128xf32>
    %cst_60 = arith.constant 1.000000e+00 : f32
    %137 = vector.broadcast %cst_60 : f32 to vector<8x128xf32>
    %138 = arith.addf %137, %136 : vector<8x128xf32>
    %139 = arith.divf %137, %138 : vector<8x128xf32>
    %140 = vector.extract_strided_slice %108 {offsets = [0, 128], sizes = [8, 128], strides = [1, 1]} : vector<8x512xf32> to vector<8x128xf32>
    %141 = arith.negf %140 : vector<8x128xf32>
    %142 = math.exp %141 : vector<8x128xf32>
    %cst_61 = arith.constant 1.000000e+00 : f32
    %143 = vector.broadcast %cst_61 : f32 to vector<8x128xf32>
    %144 = arith.addf %143, %142 : vector<8x128xf32>
    %145 = arith.divf %143, %144 : vector<8x128xf32>
    %146 = vector.extract_strided_slice %108 {offsets = [0, 256], sizes = [8, 128], strides = [1, 1]} : vector<8x512xf32> to vector<8x128xf32>
    %147 = math.tanh %146 : vector<8x128xf32>
    %148 = vector.extract_strided_slice %108 {offsets = [0, 384], sizes = [8, 128], strides = [1, 1]} : vector<8x512xf32> to vector<8x128xf32>
    %149 = arith.negf %148 : vector<8x128xf32>
    %150 = math.exp %149 : vector<8x128xf32>
    %cst_62 = arith.constant 1.000000e+00 : f32
    %151 = vector.broadcast %cst_62 : f32 to vector<8x128xf32>
    %152 = arith.addf %151, %150 : vector<8x128xf32>
    %153 = arith.divf %151, %152 : vector<8x128xf32>
    %154 = arith.mulf %145, %87 : vector<8x128xf32>
    %155 = arith.mulf %139, %147 : vector<8x128xf32>
    %156 = arith.addf %154, %155 : vector<8x128xf32>
    %157 = math.tanh %156 : vector<8x128xf32>
    %158 = arith.mulf %153, %157 : vector<8x128xf32>
    %159 = arith.index_cast %c1_i32 : i32 to index
    %c0_63 = arith.constant 0 : index
    %c0_64 = arith.constant 0 : index
    %160 = vector.load %arg9[%159, %c0_63, %c0_64] : memref<8x8x128xf32, #tpu.memory_space<vmem>>, vector<1x8x128xf32>
    %161 = vector.shape_cast %160 : vector<1x8x128xf32> to vector<8x128xf32>
    %162 = vector.shape_cast %133 : vector<8x128xf32> to vector<1x8x128xf32>
    tpu.vector_store %arg9[%159, %c0_63, %c0_64], %162 {strides = array<i32>} : memref<8x8x128xf32, #tpu.memory_space<vmem>>, vector<1x8x128xf32>,
    %163 = arith.index_cast %98 : i32 to index
    %c0_65 = arith.constant 0 : index
    %c0_66 = arith.constant 0 : index
    %164 = vector.load %arg10[%163, %c0_65, %c0_66] : memref<8x8x128xf32, #tpu.memory_space<vmem>>, vector<1x8x128xf32>
    %165 = vector.shape_cast %164 : vector<1x8x128xf32> to vector<8x128xf32>
    %166 = vector.shape_cast %158 : vector<8x128xf32> to vector<1x8x128xf32>
    tpu.vector_store %arg10[%163, %c0_65, %c0_66], %166 {strides = array<i32>} : memref<8x8x128xf32, #tpu.memory_space<vmem>>, vector<1x8x128xf32>,
    %c2_i32 = arith.constant 2 : i32
    %c7_i32_67 = arith.constant 7 : i32
    %167 = arith.subi %c7_i32_67, %c2_i32 : i32
    %168 = arith.index_cast %c2_i32 : i32 to index
    %c0_68 = arith.constant 0 : index
    %c0_69 = arith.constant 0 : index
    %169 = vector.load %arg11[%168, %c0_68, %c0_69] : memref<8x8x512xf32, #tpu.memory_space<vmem>>, vector<1x8x512xf32>
    %170 = vector.shape_cast %169 : vector<1x8x512xf32> to vector<8x512xf32>
    %cst_70 = arith.constant dense<0.000000e+00> : vector<8x512xf32>
    %171 = tpu.matmul %133, %23, %cst_70 {dimension_numbers = #tpu.dot_dimension_numbers<[1], [0], [0], [1], [0, 0, 1, 1], [], []>} : vector<8x128xf32>, vector<128x512xf32>, vector<8x512xf32> -> vector<8x512xf32>
    %172 = arith.addf %170, %171 : vector<8x512xf32>
    %173 = arith.index_cast %167 : i32 to index
    %c0_71 = arith.constant 0 : index
    %c0_72 = arith.constant 0 : index
    %174 = vector.load %arg12[%173, %c0_71, %c0_72] : memref<8x8x512xf32, #tpu.memory_space<vmem>>, vector<1x8x512xf32>
    %175 = vector.shape_cast %174 : vector<1x8x512xf32> to vector<8x512xf32>
    %cst_73 = arith.constant dense<0.000000e+00> : vector<8x512xf32>
    %176 = tpu.matmul %158, %24, %cst_73 {dimension_numbers = #tpu.dot_dimension_numbers<[1], [0], [0], [1], [0, 0, 1, 1], [], []>} : vector<8x128xf32>, vector<128x512xf32>, vector<8x512xf32> -> vector<8x512xf32>
    %177 = arith.addf %175, %176 : vector<8x512xf32>
    %178 = vector.extract_strided_slice %172 {offsets = [0, 0], sizes = [8, 128], strides = [1, 1]} : vector<8x512xf32> to vector<8x128xf32>
    %179 = arith.negf %178 : vector<8x128xf32>
    %180 = math.exp %179 : vector<8x128xf32>
    %cst_74 = arith.constant 1.000000e+00 : f32
    %181 = vector.broadcast %cst_74 : f32 to vector<8x128xf32>
    %182 = arith.addf %181, %180 : vector<8x128xf32>
    %183 = arith.divf %181, %182 : vector<8x128xf32>
    %184 = vector.extract_strided_slice %172 {offsets = [0, 128], sizes = [8, 128], strides = [1, 1]} : vector<8x512xf32> to vector<8x128xf32>
    %185 = arith.negf %184 : vector<8x128xf32>
    %186 = math.exp %185 : vector<8x128xf32>
    %cst_75 = arith.constant 1.000000e+00 : f32
    %187 = vector.broadcast %cst_75 : f32 to vector<8x128xf32>
    %188 = arith.addf %187, %186 : vector<8x128xf32>
    %189 = arith.divf %187, %188 : vector<8x128xf32>
    %190 = vector.extract_strided_slice %172 {offsets = [0, 256], sizes = [8, 128], strides = [1, 1]} : vector<8x512xf32> to vector<8x128xf32>
    %191 = math.tanh %190 : vector<8x128xf32>
    %192 = vector.extract_strided_slice %172 {offsets = [0, 384], sizes = [8, 128], strides = [1, 1]} : vector<8x512xf32> to vector<8x128xf32>
    %193 = arith.negf %192 : vector<8x128xf32>
    %194 = math.exp %193 : vector<8x128xf32>
    %cst_76 = arith.constant 1.000000e+00 : f32
    %195 = vector.broadcast %cst_76 : f32 to vector<8x128xf32>
    %196 = arith.addf %195, %194 : vector<8x128xf32>
    %197 = arith.divf %195, %196 : vector<8x128xf32>
    %198 = arith.mulf %189, %131 : vector<8x128xf32>
    %199 = arith.mulf %183, %191 : vector<8x128xf32>
    %200 = arith.addf %198, %199 : vector<8x128xf32>
    %201 = math.tanh %200 : vector<8x128xf32>
    %202 = arith.mulf %197, %201 : vector<8x128xf32>
    %203 = vector.extract_strided_slice %177 {offsets = [0, 0], sizes = [8, 128], strides = [1, 1]} : vector<8x512xf32> to vector<8x128xf32>
    %204 = arith.negf %203 : vector<8x128xf32>
    %205 = math.exp %204 : vector<8x128xf32>
    %cst_77 = arith.constant 1.000000e+00 : f32
    %206 = vector.broadcast %cst_77 : f32 to vector<8x128xf32>
    %207 = arith.addf %206, %205 : vector<8x128xf32>
    %208 = arith.divf %206, %207 : vector<8x128xf32>
    %209 = vector.extract_strided_slice %177 {offsets = [0, 128], sizes = [8, 128], strides = [1, 1]} : vector<8x512xf32> to vector<8x128xf32>
    %210 = arith.negf %209 : vector<8x128xf32>
    %211 = math.exp %210 : vector<8x128xf32>
    %cst_78 = arith.constant 1.000000e+00 : f32
    %212 = vector.broadcast %cst_78 : f32 to vector<8x128xf32>
    %213 = arith.addf %212, %211 : vector<8x128xf32>
    %214 = arith.divf %212, %213 : vector<8x128xf32>
    %215 = vector.extract_strided_slice %177 {offsets = [0, 256], sizes = [8, 128], strides = [1, 1]} : vector<8x512xf32> to vector<8x128xf32>
    %216 = math.tanh %215 : vector<8x128xf32>
    %217 = vector.extract_strided_slice %177 {offsets = [0, 384], sizes = [8, 128], strides = [1, 1]} : vector<8x512xf32> to vector<8x128xf32>
    %218 = arith.negf %217 : vector<8x128xf32>
    %219 = math.exp %218 : vector<8x128xf32>
    %cst_79 = arith.constant 1.000000e+00 : f32
    %220 = vector.broadcast %cst_79 : f32 to vector<8x128xf32>
    %221 = arith.addf %220, %219 : vector<8x128xf32>
    %222 = arith.divf %220, %221 : vector<8x128xf32>
    %223 = arith.mulf %214, %156 : vector<8x128xf32>
    %224 = arith.mulf %208, %216 : vector<8x128xf32>
    %225 = arith.addf %223, %224 : vector<8x128xf32>
    %226 = math.tanh %225 : vector<8x128xf32>
    %227 = arith.mulf %222, %226 : vector<8x128xf32>
    %228 = arith.index_cast %c2_i32 : i32 to index
    %c0_80 = arith.constant 0 : index
    %c0_81 = arith.constant 0 : index
    %229 = vector.load %arg9[%228, %c0_80, %c0_81] : memref<8x8x128xf32, #tpu.memory_space<vmem>>, vector<1x8x128xf32>
    %230 = vector.shape_cast %229 : vector<1x8x128xf32> to vector<8x128xf32>
    %231 = vector.shape_cast %202 : vector<8x128xf32> to vector<1x8x128xf32>
    tpu.vector_store %arg9[%228, %c0_80, %c0_81], %231 {strides = array<i32>} : memref<8x8x128xf32, #tpu.memory_space<vmem>>, vector<1x8x128xf32>,
    %232 = arith.index_cast %167 : i32 to index
    %c0_82 = arith.constant 0 : index
    %c0_83 = arith.constant 0 : index
    %233 = vector.load %arg10[%232, %c0_82, %c0_83] : memref<8x8x128xf32, #tpu.memory_space<vmem>>, vector<1x8x128xf32>
    %234 = vector.shape_cast %233 : vector<1x8x128xf32> to vector<8x128xf32>
    %235 = vector.shape_cast %227 : vector<8x128xf32> to vector<1x8x128xf32>
    tpu.vector_store %arg10[%232, %c0_82, %c0_83], %235 {strides = array<i32>} : memref<8x8x128xf32, #tpu.memory_space<vmem>>, vector<1x8x128xf32>,
    %c3_i32 = arith.constant 3 : i32
    %c7_i32_84 = arith.constant 7 : i32
    %236 = arith.subi %c7_i32_84, %c3_i32 : i32
    %237 = arith.index_cast %c3_i32 : i32 to index
    %c0_85 = arith.constant 0 : index
    %c0_86 = arith.constant 0 : index
    %238 = vector.load %arg11[%237, %c0_85, %c0_86] : memref<8x8x512xf32, #tpu.memory_space<vmem>>, vector<1x8x512xf32>
    %239 = vector.shape_cast %238 : vector<1x8x512xf32> to vector<8x512xf32>
    %cst_87 = arith.constant dense<0.000000e+00> : vector<8x512xf32>
    %240 = tpu.matmul %202, %23, %cst_87 {dimension_numbers = #tpu.dot_dimension_numbers<[1], [0], [0], [1], [0, 0, 1, 1], [], []>} : vector<8x128xf32>, vector<128x512xf32>, vector<8x512xf32> -> vector<8x512xf32>
    %241 = arith.addf %239, %240 : vector<8x512xf32>
    %242 = arith.index_cast %236 : i32 to index
    %c0_88 = arith.constant 0 : index
    %c0_89 = arith.constant 0 : index
    %243 = vector.load %arg12[%242, %c0_88, %c0_89] : memref<8x8x512xf32, #tpu.memory_space<vmem>>, vector<1x8x512xf32>
    %244 = vector.shape_cast %243 : vector<1x8x512xf32> to vector<8x512xf32>
    %cst_90 = arith.constant dense<0.000000e+00> : vector<8x512xf32>
    %245 = tpu.matmul %227, %24, %cst_90 {dimension_numbers = #tpu.dot_dimension_numbers<[1], [0], [0], [1], [0, 0, 1, 1], [], []>} : vector<8x128xf32>, vector<128x512xf32>, vector<8x512xf32> -> vector<8x512xf32>
    %246 = arith.addf %244, %245 : vector<8x512xf32>
    %247 = vector.extract_strided_slice %241 {offsets = [0, 0], sizes = [8, 128], strides = [1, 1]} : vector<8x512xf32> to vector<8x128xf32>
    %248 = arith.negf %247 : vector<8x128xf32>
    %249 = math.exp %248 : vector<8x128xf32>
    %cst_91 = arith.constant 1.000000e+00 : f32
    %250 = vector.broadcast %cst_91 : f32 to vector<8x128xf32>
    %251 = arith.addf %250, %249 : vector<8x128xf32>
    %252 = arith.divf %250, %251 : vector<8x128xf32>
    %253 = vector.extract_strided_slice %241 {offsets = [0, 128], sizes = [8, 128], strides = [1, 1]} : vector<8x512xf32> to vector<8x128xf32>
    %254 = arith.negf %253 : vector<8x128xf32>
    %255 = math.exp %254 : vector<8x128xf32>
    %cst_92 = arith.constant 1.000000e+00 : f32
    %256 = vector.broadcast %cst_92 : f32 to vector<8x128xf32>
    %257 = arith.addf %256, %255 : vector<8x128xf32>
    %258 = arith.divf %256, %257 : vector<8x128xf32>
    %259 = vector.extract_strided_slice %241 {offsets = [0, 256], sizes = [8, 128], strides = [1, 1]} : vector<8x512xf32> to vector<8x128xf32>
    %260 = math.tanh %259 : vector<8x128xf32>
    %261 = vector.extract_strided_slice %241 {offsets = [0, 384], sizes = [8, 128], strides = [1, 1]} : vector<8x512xf32> to vector<8x128xf32>
    %262 = arith.negf %261 : vector<8x128xf32>
    %263 = math.exp %262 : vector<8x128xf32>
    %cst_93 = arith.constant 1.000000e+00 : f32
    %264 = vector.broadcast %cst_93 : f32 to vector<8x128xf32>
    %265 = arith.addf %264, %263 : vector<8x128xf32>
    %266 = arith.divf %264, %265 : vector<8x128xf32>
    %267 = arith.mulf %258, %200 : vector<8x128xf32>
    %268 = arith.mulf %252, %260 : vector<8x128xf32>
    %269 = arith.addf %267, %268 : vector<8x128xf32>
    %270 = math.tanh %269 : vector<8x128xf32>
    %271 = arith.mulf %266, %270 : vector<8x128xf32>
    %272 = vector.extract_strided_slice %246 {offsets = [0, 0], sizes = [8, 128], strides = [1, 1]} : vector<8x512xf32> to vector<8x128xf32>
    %273 = arith.negf %272 : vector<8x128xf32>
    %274 = math.exp %273 : vector<8x128xf32>
    %cst_94 = arith.constant 1.000000e+00 : f32
    %275 = vector.broadcast %cst_94 : f32 to vector<8x128xf32>
    %276 = arith.addf %275, %274 : vector<8x128xf32>
    %277 = arith.divf %275, %276 : vector<8x128xf32>
    %278 = vector.extract_strided_slice %246 {offsets = [0, 128], sizes = [8, 128], strides = [1, 1]} : vector<8x512xf32> to vector<8x128xf32>
    %279 = arith.negf %278 : vector<8x128xf32>
    %280 = math.exp %279 : vector<8x128xf32>
    %cst_95 = arith.constant 1.000000e+00 : f32
    %281 = vector.broadcast %cst_95 : f32 to vector<8x128xf32>
    %282 = arith.addf %281, %280 : vector<8x128xf32>
    %283 = arith.divf %281, %282 : vector<8x128xf32>
    %284 = vector.extract_strided_slice %246 {offsets = [0, 256], sizes = [8, 128], strides = [1, 1]} : vector<8x512xf32> to vector<8x128xf32>
    %285 = math.tanh %284 : vector<8x128xf32>
    %286 = vector.extract_strided_slice %246 {offsets = [0, 384], sizes = [8, 128], strides = [1, 1]} : vector<8x512xf32> to vector<8x128xf32>
    %287 = arith.negf %286 : vector<8x128xf32>
    %288 = math.exp %287 : vector<8x128xf32>
    %cst_96 = arith.constant 1.000000e+00 : f32
    %289 = vector.broadcast %cst_96 : f32 to vector<8x128xf32>
    %290 = arith.addf %289, %288 : vector<8x128xf32>
    %291 = arith.divf %289, %290 : vector<8x128xf32>
    %292 = arith.mulf %283, %225 : vector<8x128xf32>
    %293 = arith.mulf %277, %285 : vector<8x128xf32>
    %294 = arith.addf %292, %293 : vector<8x128xf32>
    %295 = math.tanh %294 : vector<8x128xf32>
    %296 = arith.mulf %291, %295 : vector<8x128xf32>
    %297 = arith.index_cast %c3_i32 : i32 to index
    %c0_97 = arith.constant 0 : index
    %c0_98 = arith.constant 0 : index
    %298 = vector.load %arg9[%297, %c0_97, %c0_98] : memref<8x8x128xf32, #tpu.memory_space<vmem>>, vector<1x8x128xf32>
    %299 = vector.shape_cast %298 : vector<1x8x128xf32> to vector<8x128xf32>
    %300 = vector.shape_cast %271 : vector<8x128xf32> to vector<1x8x128xf32>
    tpu.vector_store %arg9[%297, %c0_97, %c0_98], %300 {strides = array<i32>} : memref<8x8x128xf32, #tpu.memory_space<vmem>>, vector<1x8x128xf32>,
    %301 = arith.index_cast %236 : i32 to index
    %c0_99 = arith.constant 0 : index
    %c0_100 = arith.constant 0 : index
    %302 = vector.load %arg10[%301, %c0_99, %c0_100] : memref<8x8x128xf32, #tpu.memory_space<vmem>>, vector<1x8x128xf32>
    %303 = vector.shape_cast %302 : vector<1x8x128xf32> to vector<8x128xf32>
    %304 = vector.shape_cast %296 : vector<8x128xf32> to vector<1x8x128xf32>
    tpu.vector_store %arg10[%301, %c0_99, %c0_100], %304 {strides = array<i32>} : memref<8x8x128xf32, #tpu.memory_space<vmem>>, vector<1x8x128xf32>,
    %c4_i32 = arith.constant 4 : i32
    %c7_i32_101 = arith.constant 7 : i32
    %305 = arith.subi %c7_i32_101, %c4_i32 : i32
    %306 = arith.index_cast %c4_i32 : i32 to index
    %c0_102 = arith.constant 0 : index
    %c0_103 = arith.constant 0 : index
    %307 = vector.load %arg11[%306, %c0_102, %c0_103] : memref<8x8x512xf32, #tpu.memory_space<vmem>>, vector<1x8x512xf32>
    %308 = vector.shape_cast %307 : vector<1x8x512xf32> to vector<8x512xf32>
    %cst_104 = arith.constant dense<0.000000e+00> : vector<8x512xf32>
    %309 = tpu.matmul %271, %23, %cst_104 {dimension_numbers = #tpu.dot_dimension_numbers<[1], [0], [0], [1], [0, 0, 1, 1], [], []>} : vector<8x128xf32>, vector<128x512xf32>, vector<8x512xf32> -> vector<8x512xf32>
    %310 = arith.addf %308, %309 : vector<8x512xf32>
    %311 = arith.index_cast %305 : i32 to index
    %c0_105 = arith.constant 0 : index
    %c0_106 = arith.constant 0 : index
    %312 = vector.load %arg12[%311, %c0_105, %c0_106] : memref<8x8x512xf32, #tpu.memory_space<vmem>>, vector<1x8x512xf32>
    %313 = vector.shape_cast %312 : vector<1x8x512xf32> to vector<8x512xf32>
    %cst_107 = arith.constant dense<0.000000e+00> : vector<8x512xf32>
    %314 = tpu.matmul %296, %24, %cst_107 {dimension_numbers = #tpu.dot_dimension_numbers<[1], [0], [0], [1], [0, 0, 1, 1], [], []>} : vector<8x128xf32>, vector<128x512xf32>, vector<8x512xf32> -> vector<8x512xf32>
    %315 = arith.addf %313, %314 : vector<8x512xf32>
    %316 = vector.extract_strided_slice %310 {offsets = [0, 0], sizes = [8, 128], strides = [1, 1]} : vector<8x512xf32> to vector<8x128xf32>
    %317 = arith.negf %316 : vector<8x128xf32>
    %318 = math.exp %317 : vector<8x128xf32>
    %cst_108 = arith.constant 1.000000e+00 : f32
    %319 = vector.broadcast %cst_108 : f32 to vector<8x128xf32>
    %320 = arith.addf %319, %318 : vector<8x128xf32>
    %321 = arith.divf %319, %320 : vector<8x128xf32>
    %322 = vector.extract_strided_slice %310 {offsets = [0, 128], sizes = [8, 128], strides = [1, 1]} : vector<8x512xf32> to vector<8x128xf32>
    %323 = arith.negf %322 : vector<8x128xf32>
    %324 = math.exp %323 : vector<8x128xf32>
    %cst_109 = arith.constant 1.000000e+00 : f32
    %325 = vector.broadcast %cst_109 : f32 to vector<8x128xf32>
    %326 = arith.addf %325, %324 : vector<8x128xf32>
    %327 = arith.divf %325, %326 : vector<8x128xf32>
    %328 = vector.extract_strided_slice %310 {offsets = [0, 256], sizes = [8, 128], strides = [1, 1]} : vector<8x512xf32> to vector<8x128xf32>
    %329 = math.tanh %328 : vector<8x128xf32>
    %330 = vector.extract_strided_slice %310 {offsets = [0, 384], sizes = [8, 128], strides = [1, 1]} : vector<8x512xf32> to vector<8x128xf32>
    %331 = arith.negf %330 : vector<8x128xf32>
    %332 = math.exp %331 : vector<8x128xf32>
    %cst_110 = arith.constant 1.000000e+00 : f32
    %333 = vector.broadcast %cst_110 : f32 to vector<8x128xf32>
    %334 = arith.addf %333, %332 : vector<8x128xf32>
    %335 = arith.divf %333, %334 : vector<8x128xf32>
    %336 = arith.mulf %327, %269 : vector<8x128xf32>
    %337 = arith.mulf %321, %329 : vector<8x128xf32>
    %338 = arith.addf %336, %337 : vector<8x128xf32>
    %339 = math.tanh %338 : vector<8x128xf32>
    %340 = arith.mulf %335, %339 : vector<8x128xf32>
    %341 = vector.extract_strided_slice %315 {offsets = [0, 0], sizes = [8, 128], strides = [1, 1]} : vector<8x512xf32> to vector<8x128xf32>
    %342 = arith.negf %341 : vector<8x128xf32>
    %343 = math.exp %342 : vector<8x128xf32>
    %cst_111 = arith.constant 1.000000e+00 : f32
    %344 = vector.broadcast %cst_111 : f32 to vector<8x128xf32>
    %345 = arith.addf %344, %343 : vector<8x128xf32>
    %346 = arith.divf %344, %345 : vector<8x128xf32>
    %347 = vector.extract_strided_slice %315 {offsets = [0, 128], sizes = [8, 128], strides = [1, 1]} : vector<8x512xf32> to vector<8x128xf32>
    %348 = arith.negf %347 : vector<8x128xf32>
    %349 = math.exp %348 : vector<8x128xf32>
    %cst_112 = arith.constant 1.000000e+00 : f32
    %350 = vector.broadcast %cst_112 : f32 to vector<8x128xf32>
    %351 = arith.addf %350, %349 : vector<8x128xf32>
    %352 = arith.divf %350, %351 : vector<8x128xf32>
    %353 = vector.extract_strided_slice %315 {offsets = [0, 256], sizes = [8, 128], strides = [1, 1]} : vector<8x512xf32> to vector<8x128xf32>
    %354 = math.tanh %353 : vector<8x128xf32>
    %355 = vector.extract_strided_slice %315 {offsets = [0, 384], sizes = [8, 128], strides = [1, 1]} : vector<8x512xf32> to vector<8x128xf32>
    %356 = arith.negf %355 : vector<8x128xf32>
    %357 = math.exp %356 : vector<8x128xf32>
    %cst_113 = arith.constant 1.000000e+00 : f32
    %358 = vector.broadcast %cst_113 : f32 to vector<8x128xf32>
    %359 = arith.addf %358, %357 : vector<8x128xf32>
    %360 = arith.divf %358, %359 : vector<8x128xf32>
    %361 = arith.mulf %352, %294 : vector<8x128xf32>
    %362 = arith.mulf %346, %354 : vector<8x128xf32>
    %363 = arith.addf %361, %362 : vector<8x128xf32>
    %364 = math.tanh %363 : vector<8x128xf32>
    %365 = arith.mulf %360, %364 : vector<8x128xf32>
    %366 = arith.index_cast %c4_i32 : i32 to index
    %c0_114 = arith.constant 0 : index
    %c0_115 = arith.constant 0 : index
    %367 = vector.load %arg9[%366, %c0_114, %c0_115] : memref<8x8x128xf32, #tpu.memory_space<vmem>>, vector<1x8x128xf32>
    %368 = vector.shape_cast %367 : vector<1x8x128xf32> to vector<8x128xf32>
    %369 = vector.shape_cast %340 : vector<8x128xf32> to vector<1x8x128xf32>
    tpu.vector_store %arg9[%366, %c0_114, %c0_115], %369 {strides = array<i32>} : memref<8x8x128xf32, #tpu.memory_space<vmem>>, vector<1x8x128xf32>,
    %370 = arith.index_cast %305 : i32 to index
    %c0_116 = arith.constant 0 : index
    %c0_117 = arith.constant 0 : index
    %371 = vector.load %arg10[%370, %c0_116, %c0_117] : memref<8x8x128xf32, #tpu.memory_space<vmem>>, vector<1x8x128xf32>
    %372 = vector.shape_cast %371 : vector<1x8x128xf32> to vector<8x128xf32>
    %373 = vector.shape_cast %365 : vector<8x128xf32> to vector<1x8x128xf32>
    tpu.vector_store %arg10[%370, %c0_116, %c0_117], %373 {strides = array<i32>} : memref<8x8x128xf32, #tpu.memory_space<vmem>>, vector<1x8x128xf32>,
    %c5_i32 = arith.constant 5 : i32
    %c7_i32_118 = arith.constant 7 : i32
    %374 = arith.subi %c7_i32_118, %c5_i32 : i32
    %375 = arith.index_cast %c5_i32 : i32 to index
    %c0_119 = arith.constant 0 : index
    %c0_120 = arith.constant 0 : index
    %376 = vector.load %arg11[%375, %c0_119, %c0_120] : memref<8x8x512xf32, #tpu.memory_space<vmem>>, vector<1x8x512xf32>
    %377 = vector.shape_cast %376 : vector<1x8x512xf32> to vector<8x512xf32>
    %cst_121 = arith.constant dense<0.000000e+00> : vector<8x512xf32>
    %378 = tpu.matmul %340, %23, %cst_121 {dimension_numbers = #tpu.dot_dimension_numbers<[1], [0], [0], [1], [0, 0, 1, 1], [], []>} : vector<8x128xf32>, vector<128x512xf32>, vector<8x512xf32> -> vector<8x512xf32>
    %379 = arith.addf %377, %378 : vector<8x512xf32>
    %380 = arith.index_cast %374 : i32 to index
    %c0_122 = arith.constant 0 : index
    %c0_123 = arith.constant 0 : index
    %381 = vector.load %arg12[%380, %c0_122, %c0_123] : memref<8x8x512xf32, #tpu.memory_space<vmem>>, vector<1x8x512xf32>
    %382 = vector.shape_cast %381 : vector<1x8x512xf32> to vector<8x512xf32>
    %cst_124 = arith.constant dense<0.000000e+00> : vector<8x512xf32>
    %383 = tpu.matmul %365, %24, %cst_124 {dimension_numbers = #tpu.dot_dimension_numbers<[1], [0], [0], [1], [0, 0, 1, 1], [], []>} : vector<8x128xf32>, vector<128x512xf32>, vector<8x512xf32> -> vector<8x512xf32>
    %384 = arith.addf %382, %383 : vector<8x512xf32>
    %385 = vector.extract_strided_slice %379 {offsets = [0, 0], sizes = [8, 128], strides = [1, 1]} : vector<8x512xf32> to vector<8x128xf32>
    %386 = arith.negf %385 : vector<8x128xf32>
    %387 = math.exp %386 : vector<8x128xf32>
    %cst_125 = arith.constant 1.000000e+00 : f32
    %388 = vector.broadcast %cst_125 : f32 to vector<8x128xf32>
    %389 = arith.addf %388, %387 : vector<8x128xf32>
    %390 = arith.divf %388, %389 : vector<8x128xf32>
    %391 = vector.extract_strided_slice %379 {offsets = [0, 128], sizes = [8, 128], strides = [1, 1]} : vector<8x512xf32> to vector<8x128xf32>
    %392 = arith.negf %391 : vector<8x128xf32>
    %393 = math.exp %392 : vector<8x128xf32>
    %cst_126 = arith.constant 1.000000e+00 : f32
    %394 = vector.broadcast %cst_126 : f32 to vector<8x128xf32>
    %395 = arith.addf %394, %393 : vector<8x128xf32>
    %396 = arith.divf %394, %395 : vector<8x128xf32>
    %397 = vector.extract_strided_slice %379 {offsets = [0, 256], sizes = [8, 128], strides = [1, 1]} : vector<8x512xf32> to vector<8x128xf32>
    %398 = math.tanh %397 : vector<8x128xf32>
    %399 = vector.extract_strided_slice %379 {offsets = [0, 384], sizes = [8, 128], strides = [1, 1]} : vector<8x512xf32> to vector<8x128xf32>
    %400 = arith.negf %399 : vector<8x128xf32>
    %401 = math.exp %400 : vector<8x128xf32>
    %cst_127 = arith.constant 1.000000e+00 : f32
    %402 = vector.broadcast %cst_127 : f32 to vector<8x128xf32>
    %403 = arith.addf %402, %401 : vector<8x128xf32>
    %404 = arith.divf %402, %403 : vector<8x128xf32>
    %405 = arith.mulf %396, %338 : vector<8x128xf32>
    %406 = arith.mulf %390, %398 : vector<8x128xf32>
    %407 = arith.addf %405, %406 : vector<8x128xf32>
    %408 = math.tanh %407 : vector<8x128xf32>
    %409 = arith.mulf %404, %408 : vector<8x128xf32>
    %410 = vector.extract_strided_slice %384 {offsets = [0, 0], sizes = [8, 128], strides = [1, 1]} : vector<8x512xf32> to vector<8x128xf32>
    %411 = arith.negf %410 : vector<8x128xf32>
    %412 = math.exp %411 : vector<8x128xf32>
    %cst_128 = arith.constant 1.000000e+00 : f32
    %413 = vector.broadcast %cst_128 : f32 to vector<8x128xf32>
    %414 = arith.addf %413, %412 : vector<8x128xf32>
    %415 = arith.divf %413, %414 : vector<8x128xf32>
    %416 = vector.extract_strided_slice %384 {offsets = [0, 128], sizes = [8, 128], strides = [1, 1]} : vector<8x512xf32> to vector<8x128xf32>
    %417 = arith.negf %416 : vector<8x128xf32>
    %418 = math.exp %417 : vector<8x128xf32>
    %cst_129 = arith.constant 1.000000e+00 : f32
    %419 = vector.broadcast %cst_129 : f32 to vector<8x128xf32>
    %420 = arith.addf %419, %418 : vector<8x128xf32>
    %421 = arith.divf %419, %420 : vector<8x128xf32>
    %422 = vector.extract_strided_slice %384 {offsets = [0, 256], sizes = [8, 128], strides = [1, 1]} : vector<8x512xf32> to vector<8x128xf32>
    %423 = math.tanh %422 : vector<8x128xf32>
    %424 = vector.extract_strided_slice %384 {offsets = [0, 384], sizes = [8, 128], strides = [1, 1]} : vector<8x512xf32> to vector<8x128xf32>
    %425 = arith.negf %424 : vector<8x128xf32>
    %426 = math.exp %425 : vector<8x128xf32>
    %cst_130 = arith.constant 1.000000e+00 : f32
    %427 = vector.broadcast %cst_130 : f32 to vector<8x128xf32>
    %428 = arith.addf %427, %426 : vector<8x128xf32>
    %429 = arith.divf %427, %428 : vector<8x128xf32>
    %430 = arith.mulf %421, %363 : vector<8x128xf32>
    %431 = arith.mulf %415, %423 : vector<8x128xf32>
    %432 = arith.addf %430, %431 : vector<8x128xf32>
    %433 = math.tanh %432 : vector<8x128xf32>
    %434 = arith.mulf %429, %433 : vector<8x128xf32>
    %435 = arith.index_cast %c5_i32 : i32 to index
    %c0_131 = arith.constant 0 : index
    %c0_132 = arith.constant 0 : index
    %436 = vector.load %arg9[%435, %c0_131, %c0_132] : memref<8x8x128xf32, #tpu.memory_space<vmem>>, vector<1x8x128xf32>
    %437 = vector.shape_cast %436 : vector<1x8x128xf32> to vector<8x128xf32>
    %438 = vector.shape_cast %409 : vector<8x128xf32> to vector<1x8x128xf32>
    tpu.vector_store %arg9[%435, %c0_131, %c0_132], %438 {strides = array<i32>} : memref<8x8x128xf32, #tpu.memory_space<vmem>>, vector<1x8x128xf32>,
    %439 = arith.index_cast %374 : i32 to index
    %c0_133 = arith.constant 0 : index
    %c0_134 = arith.constant 0 : index
    %440 = vector.load %arg10[%439, %c0_133, %c0_134] : memref<8x8x128xf32, #tpu.memory_space<vmem>>, vector<1x8x128xf32>
    %441 = vector.shape_cast %440 : vector<1x8x128xf32> to vector<8x128xf32>
    %442 = vector.shape_cast %434 : vector<8x128xf32> to vector<1x8x128xf32>
    tpu.vector_store %arg10[%439, %c0_133, %c0_134], %442 {strides = array<i32>} : memref<8x8x128xf32, #tpu.memory_space<vmem>>, vector<1x8x128xf32>,
    %c6_i32 = arith.constant 6 : i32
    %c7_i32_135 = arith.constant 7 : i32
    %443 = arith.subi %c7_i32_135, %c6_i32 : i32
    %444 = arith.index_cast %c6_i32 : i32 to index
    %c0_136 = arith.constant 0 : index
    %c0_137 = arith.constant 0 : index
    %445 = vector.load %arg11[%444, %c0_136, %c0_137] : memref<8x8x512xf32, #tpu.memory_space<vmem>>, vector<1x8x512xf32>
    %446 = vector.shape_cast %445 : vector<1x8x512xf32> to vector<8x512xf32>
    %cst_138 = arith.constant dense<0.000000e+00> : vector<8x512xf32>
    %447 = tpu.matmul %409, %23, %cst_138 {dimension_numbers = #tpu.dot_dimension_numbers<[1], [0], [0], [1], [0, 0, 1, 1], [], []>} : vector<8x128xf32>, vector<128x512xf32>, vector<8x512xf32> -> vector<8x512xf32>
    %448 = arith.addf %446, %447 : vector<8x512xf32>
    %449 = arith.index_cast %443 : i32 to index
    %c0_139 = arith.constant 0 : index
    %c0_140 = arith.constant 0 : index
    %450 = vector.load %arg12[%449, %c0_139, %c0_140] : memref<8x8x512xf32, #tpu.memory_space<vmem>>, vector<1x8x512xf32>
    %451 = vector.shape_cast %450 : vector<1x8x512xf32> to vector<8x512xf32>
    %cst_141 = arith.constant dense<0.000000e+00> : vector<8x512xf32>
    %452 = tpu.matmul %434, %24, %cst_141 {dimension_numbers = #tpu.dot_dimension_numbers<[1], [0], [0], [1], [0, 0, 1, 1], [], []>} : vector<8x128xf32>, vector<128x512xf32>, vector<8x512xf32> -> vector<8x512xf32>
    %453 = arith.addf %451, %452 : vector<8x512xf32>
    %454 = vector.extract_strided_slice %448 {offsets = [0, 0], sizes = [8, 128], strides = [1, 1]} : vector<8x512xf32> to vector<8x128xf32>
    %455 = arith.negf %454 : vector<8x128xf32>
    %456 = math.exp %455 : vector<8x128xf32>
    %cst_142 = arith.constant 1.000000e+00 : f32
    %457 = vector.broadcast %cst_142 : f32 to vector<8x128xf32>
    %458 = arith.addf %457, %456 : vector<8x128xf32>
    %459 = arith.divf %457, %458 : vector<8x128xf32>
    %460 = vector.extract_strided_slice %448 {offsets = [0, 128], sizes = [8, 128], strides = [1, 1]} : vector<8x512xf32> to vector<8x128xf32>
    %461 = arith.negf %460 : vector<8x128xf32>
    %462 = math.exp %461 : vector<8x128xf32>
    %cst_143 = arith.constant 1.000000e+00 : f32
    %463 = vector.broadcast %cst_143 : f32 to vector<8x128xf32>
    %464 = arith.addf %463, %462 : vector<8x128xf32>
    %465 = arith.divf %463, %464 : vector<8x128xf32>
    %466 = vector.extract_strided_slice %448 {offsets = [0, 256], sizes = [8, 128], strides = [1, 1]} : vector<8x512xf32> to vector<8x128xf32>
    %467 = math.tanh %466 : vector<8x128xf32>
    %468 = vector.extract_strided_slice %448 {offsets = [0, 384], sizes = [8, 128], strides = [1, 1]} : vector<8x512xf32> to vector<8x128xf32>
    %469 = arith.negf %468 : vector<8x128xf32>
    %470 = math.exp %469 : vector<8x128xf32>
    %cst_144 = arith.constant 1.000000e+00 : f32
    %471 = vector.broadcast %cst_144 : f32 to vector<8x128xf32>
    %472 = arith.addf %471, %470 : vector<8x128xf32>
    %473 = arith.divf %471, %472 : vector<8x128xf32>
    %474 = arith.mulf %465, %407 : vector<8x128xf32>
    %475 = arith.mulf %459, %467 : vector<8x128xf32>
    %476 = arith.addf %474, %475 : vector<8x128xf32>
    %477 = math.tanh %476 : vector<8x128xf32>
    %478 = arith.mulf %473, %477 : vector<8x128xf32>
    %479 = vector.extract_strided_slice %453 {offsets = [0, 0], sizes = [8, 128], strides = [1, 1]} : vector<8x512xf32> to vector<8x128xf32>
    %480 = arith.negf %479 : vector<8x128xf32>
    %481 = math.exp %480 : vector<8x128xf32>
    %cst_145 = arith.constant 1.000000e+00 : f32
    %482 = vector.broadcast %cst_145 : f32 to vector<8x128xf32>
    %483 = arith.addf %482, %481 : vector<8x128xf32>
    %484 = arith.divf %482, %483 : vector<8x128xf32>
    %485 = vector.extract_strided_slice %453 {offsets = [0, 128], sizes = [8, 128], strides = [1, 1]} : vector<8x512xf32> to vector<8x128xf32>
    %486 = arith.negf %485 : vector<8x128xf32>
    %487 = math.exp %486 : vector<8x128xf32>
    %cst_146 = arith.constant 1.000000e+00 : f32
    %488 = vector.broadcast %cst_146 : f32 to vector<8x128xf32>
    %489 = arith.addf %488, %487 : vector<8x128xf32>
    %490 = arith.divf %488, %489 : vector<8x128xf32>
    %491 = vector.extract_strided_slice %453 {offsets = [0, 256], sizes = [8, 128], strides = [1, 1]} : vector<8x512xf32> to vector<8x128xf32>
    %492 = math.tanh %491 : vector<8x128xf32>
    %493 = vector.extract_strided_slice %453 {offsets = [0, 384], sizes = [8, 128], strides = [1, 1]} : vector<8x512xf32> to vector<8x128xf32>
    %494 = arith.negf %493 : vector<8x128xf32>
    %495 = math.exp %494 : vector<8x128xf32>
    %cst_147 = arith.constant 1.000000e+00 : f32
    %496 = vector.broadcast %cst_147 : f32 to vector<8x128xf32>
    %497 = arith.addf %496, %495 : vector<8x128xf32>
    %498 = arith.divf %496, %497 : vector<8x128xf32>
    %499 = arith.mulf %490, %432 : vector<8x128xf32>
    %500 = arith.mulf %484, %492 : vector<8x128xf32>
    %501 = arith.addf %499, %500 : vector<8x128xf32>
    %502 = math.tanh %501 : vector<8x128xf32>
    %503 = arith.mulf %498, %502 : vector<8x128xf32>
    %504 = arith.index_cast %c6_i32 : i32 to index
    %c0_148 = arith.constant 0 : index
    %c0_149 = arith.constant 0 : index
    %505 = vector.load %arg9[%504, %c0_148, %c0_149] : memref<8x8x128xf32, #tpu.memory_space<vmem>>, vector<1x8x128xf32>
    %506 = vector.shape_cast %505 : vector<1x8x128xf32> to vector<8x128xf32>
    %507 = vector.shape_cast %478 : vector<8x128xf32> to vector<1x8x128xf32>
    tpu.vector_store %arg9[%504, %c0_148, %c0_149], %507 {strides = array<i32>} : memref<8x8x128xf32, #tpu.memory_space<vmem>>, vector<1x8x128xf32>,
    %508 = arith.index_cast %443 : i32 to index
    %c0_150 = arith.constant 0 : index
    %c0_151 = arith.constant 0 : index
    %509 = vector.load %arg10[%508, %c0_150, %c0_151] : memref<8x8x128xf32, #tpu.memory_space<vmem>>, vector<1x8x128xf32>
    %510 = vector.shape_cast %509 : vector<1x8x128xf32> to vector<8x128xf32>
    %511 = vector.shape_cast %503 : vector<8x128xf32> to vector<1x8x128xf32>
    tpu.vector_store %arg10[%508, %c0_150, %c0_151], %511 {strides = array<i32>} : memref<8x8x128xf32, #tpu.memory_space<vmem>>, vector<1x8x128xf32>,
    %c7_i32_152 = arith.constant 7 : i32
    %c7_i32_153 = arith.constant 7 : i32
    %512 = arith.subi %c7_i32_153, %c7_i32_152 : i32
    %513 = arith.index_cast %c7_i32_152 : i32 to index
    %c0_154 = arith.constant 0 : index
    %c0_155 = arith.constant 0 : index
    %514 = vector.load %arg11[%513, %c0_154, %c0_155] : memref<8x8x512xf32, #tpu.memory_space<vmem>>, vector<1x8x512xf32>
    %515 = vector.shape_cast %514 : vector<1x8x512xf32> to vector<8x512xf32>
    %cst_156 = arith.constant dense<0.000000e+00> : vector<8x512xf32>
    %516 = tpu.matmul %478, %23, %cst_156 {dimension_numbers = #tpu.dot_dimension_numbers<[1], [0], [0], [1], [0, 0, 1, 1], [], []>} : vector<8x128xf32>, vector<128x512xf32>, vector<8x512xf32> -> vector<8x512xf32>
    %517 = arith.addf %515, %516 : vector<8x512xf32>
    %518 = arith.index_cast %512 : i32 to index
    %c0_157 = arith.constant 0 : index
    %c0_158 = arith.constant 0 : index
    %519 = vector.load %arg12[%518, %c0_157, %c0_158] : memref<8x8x512xf32, #tpu.memory_space<vmem>>, vector<1x8x512xf32>
    %520 = vector.shape_cast %519 : vector<1x8x512xf32> to vector<8x512xf32>
    %cst_159 = arith.constant dense<0.000000e+00> : vector<8x512xf32>
    %521 = tpu.matmul %503, %24, %cst_159 {dimension_numbers = #tpu.dot_dimension_numbers<[1], [0], [0], [1], [0, 0, 1, 1], [], []>} : vector<8x128xf32>, vector<128x512xf32>, vector<8x512xf32> -> vector<8x512xf32>
    %522 = arith.addf %520, %521 : vector<8x512xf32>
    %523 = vector.extract_strided_slice %517 {offsets = [0, 0], sizes = [8, 128], strides = [1, 1]} : vector<8x512xf32> to vector<8x128xf32>
    %524 = arith.negf %523 : vector<8x128xf32>
    %525 = math.exp %524 : vector<8x128xf32>
    %cst_160 = arith.constant 1.000000e+00 : f32
    %526 = vector.broadcast %cst_160 : f32 to vector<8x128xf32>
    %527 = arith.addf %526, %525 : vector<8x128xf32>
    %528 = arith.divf %526, %527 : vector<8x128xf32>
    %529 = vector.extract_strided_slice %517 {offsets = [0, 128], sizes = [8, 128], strides = [1, 1]} : vector<8x512xf32> to vector<8x128xf32>
    %530 = arith.negf %529 : vector<8x128xf32>
    %531 = math.exp %530 : vector<8x128xf32>
    %cst_161 = arith.constant 1.000000e+00 : f32
    %532 = vector.broadcast %cst_161 : f32 to vector<8x128xf32>
    %533 = arith.addf %532, %531 : vector<8x128xf32>
    %534 = arith.divf %532, %533 : vector<8x128xf32>
    %535 = vector.extract_strided_slice %517 {offsets = [0, 256], sizes = [8, 128], strides = [1, 1]} : vector<8x512xf32> to vector<8x128xf32>
    %536 = math.tanh %535 : vector<8x128xf32>
    %537 = vector.extract_strided_slice %517 {offsets = [0, 384], sizes = [8, 128], strides = [1, 1]} : vector<8x512xf32> to vector<8x128xf32>
    %538 = arith.negf %537 : vector<8x128xf32>
    %539 = math.exp %538 : vector<8x128xf32>
    %cst_162 = arith.constant 1.000000e+00 : f32
    %540 = vector.broadcast %cst_162 : f32 to vector<8x128xf32>
    %541 = arith.addf %540, %539 : vector<8x128xf32>
    %542 = arith.divf %540, %541 : vector<8x128xf32>
    %543 = arith.mulf %534, %476 : vector<8x128xf32>
    %544 = arith.mulf %528, %536 : vector<8x128xf32>
    %545 = arith.addf %543, %544 : vector<8x128xf32>
    %546 = math.tanh %545 : vector<8x128xf32>
    %547 = arith.mulf %542, %546 : vector<8x128xf32>
    %548 = vector.extract_strided_slice %522 {offsets = [0, 0], sizes = [8, 128], strides = [1, 1]} : vector<8x512xf32> to vector<8x128xf32>
    %549 = arith.negf %548 : vector<8x128xf32>
    %550 = math.exp %549 : vector<8x128xf32>
    %cst_163 = arith.constant 1.000000e+00 : f32
    %551 = vector.broadcast %cst_163 : f32 to vector<8x128xf32>
    %552 = arith.addf %551, %550 : vector<8x128xf32>
    %553 = arith.divf %551, %552 : vector<8x128xf32>
    %554 = vector.extract_strided_slice %522 {offsets = [0, 128], sizes = [8, 128], strides = [1, 1]} : vector<8x512xf32> to vector<8x128xf32>
    %555 = arith.negf %554 : vector<8x128xf32>
    %556 = math.exp %555 : vector<8x128xf32>
    %cst_164 = arith.constant 1.000000e+00 : f32
    %557 = vector.broadcast %cst_164 : f32 to vector<8x128xf32>
    %558 = arith.addf %557, %556 : vector<8x128xf32>
    %559 = arith.divf %557, %558 : vector<8x128xf32>
    %560 = vector.extract_strided_slice %522 {offsets = [0, 256], sizes = [8, 128], strides = [1, 1]} : vector<8x512xf32> to vector<8x128xf32>
    %561 = math.tanh %560 : vector<8x128xf32>
    %562 = vector.extract_strided_slice %522 {offsets = [0, 384], sizes = [8, 128], strides = [1, 1]} : vector<8x512xf32> to vector<8x128xf32>
    %563 = arith.negf %562 : vector<8x128xf32>
    %564 = math.exp %563 : vector<8x128xf32>
    %cst_165 = arith.constant 1.000000e+00 : f32
    %565 = vector.broadcast %cst_165 : f32 to vector<8x128xf32>
    %566 = arith.addf %565, %564 : vector<8x128xf32>
    %567 = arith.divf %565, %566 : vector<8x128xf32>
    %568 = arith.mulf %559, %501 : vector<8x128xf32>
    %569 = arith.mulf %553, %561 : vector<8x128xf32>
    %570 = arith.addf %568, %569 : vector<8x128xf32>
    %571 = math.tanh %570 : vector<8x128xf32>
    %572 = arith.mulf %567, %571 : vector<8x128xf32>
    %573 = arith.index_cast %c7_i32_152 : i32 to index
    %c0_166 = arith.constant 0 : index
    %c0_167 = arith.constant 0 : index
    %574 = vector.load %arg9[%573, %c0_166, %c0_167] : memref<8x8x128xf32, #tpu.memory_space<vmem>>, vector<1x8x128xf32>
    %575 = vector.shape_cast %574 : vector<1x8x128xf32> to vector<8x128xf32>
    %576 = vector.shape_cast %547 : vector<8x128xf32> to vector<1x8x128xf32>
    tpu.vector_store %arg9[%573, %c0_166, %c0_167], %576 {strides = array<i32>} : memref<8x8x128xf32, #tpu.memory_space<vmem>>, vector<1x8x128xf32>,
    %577 = arith.index_cast %512 : i32 to index
    %c0_168 = arith.constant 0 : index
    %c0_169 = arith.constant 0 : index
    %578 = vector.load %arg10[%577, %c0_168, %c0_169] : memref<8x8x128xf32, #tpu.memory_space<vmem>>, vector<1x8x128xf32>
    %579 = vector.shape_cast %578 : vector<1x8x128xf32> to vector<8x128xf32>
    %580 = vector.shape_cast %572 : vector<8x128xf32> to vector<1x8x128xf32>
    tpu.vector_store %arg10[%577, %c0_168, %c0_169], %580 {strides = array<i32>} : memref<8x8x128xf32, #tpu.memory_space<vmem>>, vector<1x8x128xf32>,
    %c8_i32 = arith.constant 8 : i32
    %c0_170 = arith.constant 0 : index
    %c0_171 = arith.constant 0 : index
    %581 = vector.load %arg13[%c0_170, %c0_171] : memref<8x128xf32, #tpu.memory_space<vmem>>, vector<8x128xf32>
    tpu.vector_store %arg13[%c0_170, %c0_171], %547 {strides = array<i32>} : memref<8x128xf32, #tpu.memory_space<vmem>>, vector<8x128xf32>,
    %c0_172 = arith.constant 0 : index
    %c0_173 = arith.constant 0 : index
    %582 = vector.load %arg14[%c0_172, %c0_173] : memref<8x128xf32, #tpu.memory_space<vmem>>, vector<8x128xf32>
    tpu.vector_store %arg14[%c0_172, %c0_173], %545 {strides = array<i32>} : memref<8x128xf32, #tpu.memory_space<vmem>>, vector<8x128xf32>,
    %c0_174 = arith.constant 0 : index
    %c0_175 = arith.constant 0 : index
    %583 = vector.load %arg15[%c0_174, %c0_175] : memref<8x128xf32, #tpu.memory_space<vmem>>, vector<8x128xf32>
    tpu.vector_store %arg15[%c0_174, %c0_175], %572 {strides = array<i32>} : memref<8x128xf32, #tpu.memory_space<vmem>>, vector<8x128xf32>,
    %c0_176 = arith.constant 0 : index
    %c0_177 = arith.constant 0 : index
    %584 = vector.load %arg16[%c0_176, %c0_177] : memref<8x128xf32, #tpu.memory_space<vmem>>, vector<8x128xf32>
    tpu.vector_store %arg16[%c0_176, %c0_177], %570 {strides = array<i32>} : memref<8x128xf32, #tpu.memory_space<vmem>>, vector<8x128xf32>,
    return
  }
  func.func @transform_0(%arg0: i32, %arg1: i32) -> (i32, i32, i32) {
    %c0_i32 = arith.constant 0 : i32
    %c0_i32_0 = arith.constant 0 : i32
    return %arg1, %arg0, %c0_i32 : i32, i32, i32
  }
  func.func @transform_1(%arg0: i32, %arg1: i32) -> (i32, i32) {
    %c0_i32 = arith.constant 0 : i32
    %c0_i32_0 = arith.constant 0 : i32
    %c0_i32_1 = arith.constant 0 : i32
    return %c0_i32, %c0_i32_0 : i32, i32
  }
  func.func @transform_2(%arg0: i32, %arg1: i32) -> (i32, i32) {
    %c0_i32 = arith.constant 0 : i32
    %c0_i32_0 = arith.constant 0 : i32
    %c0_i32_1 = arith.constant 0 : i32
    return %c0_i32, %c0_i32_0 : i32, i32
  }
  func.func @transform_3(%arg0: i32, %arg1: i32) -> (i32, i32) {
    %c0_i32 = arith.constant 0 : i32
    %c0_i32_0 = arith.constant 0 : i32
    %c0_i32_1 = arith.constant 0 : i32
    return %c0_i32, %c0_i32_0 : i32, i32
  }
  func.func @transform_4(%arg0: i32, %arg1: i32) -> (i32, i32) {
    %c0_i32 = arith.constant 0 : i32
    %c0_i32_0 = arith.constant 0 : i32
    %c0_i32_1 = arith.constant 0 : i32
    return %c0_i32, %c0_i32_0 : i32, i32
  }
  func.func @transform_5(%arg0: i32, %arg1: i32) -> (i32, i32) {
    %c0_i32 = arith.constant 0 : i32
    %c0_i32_0 = arith.constant 0 : i32
    %c0_i32_1 = arith.constant 0 : i32
    return %c0_i32, %c0_i32_0 : i32, i32
  }
  func.func @transform_6(%arg0: i32, %arg1: i32) -> (i32, i32) {
    %c0_i32 = arith.constant 0 : i32
    %c0_i32_0 = arith.constant 0 : i32
    %c0_i32_1 = arith.constant 0 : i32
    return %c0_i32, %c0_i32_0 : i32, i32
  }
  func.func @transform_7(%arg0: i32, %arg1: i32) -> (i32, i32, i32) {
    %c0_i32 = arith.constant 0 : i32
    %c0_i32_0 = arith.constant 0 : i32
    return %arg1, %arg0, %c0_i32 : i32, i32, i32
  }
  func.func @transform_8(%arg0: i32, %arg1: i32) -> (i32, i32, i32) {
    %c0_i32 = arith.constant 0 : i32
    %0 = arith.subi %c0_i32, %arg1 : i32
    %c0_i32_0 = arith.constant 0 : i32
    %c0_i32_1 = arith.constant 0 : i32
    return %0, %arg0, %c0_i32_0 : i32, i32, i32
  }
}

module attributes {stable_mosaic.version = 11 : i64} {
  func.func @kernel(%arg0: i32, %arg1: i32, %arg2: memref<8x8x128xf32, #tpu.memory_space<vmem>>, %arg3: memref<8x8x128xf32, #tpu.memory_space<vmem>>, %arg4: memref<256x512xbf16, #tpu.memory_space<vmem>>, %arg5: memref<128x512xf32, #tpu.memory_space<vmem>>, %arg6: memref<1x512xf32, #tpu.memory_space<vmem>>, %arg7: memref<256x512xbf16, #tpu.memory_space<vmem>>, %arg8: memref<128x512xf32, #tpu.memory_space<vmem>>, %arg9: memref<1x512xf32, #tpu.memory_space<vmem>>, %arg10: memref<128x128xf32, #tpu.memory_space<vmem>>, %arg11: memref<128x128xf32, #tpu.memory_space<vmem>>, %arg12: memref<1x128xf32, #tpu.memory_space<vmem>>, %arg13: memref<8x8x128xf32, #tpu.memory_space<vmem>>, %arg14: memref<8x8x512xf32, #tpu.memory_space<vmem>>, %arg15: memref<8x8x512xf32, #tpu.memory_space<vmem>>, %arg16: memref<8x128xf32, #tpu.memory_space<vmem>>, %arg17: memref<8x128xf32, #tpu.memory_space<vmem>>, %arg18: memref<8x128xf32, #tpu.memory_space<vmem>>, %arg19: memref<8x128xf32, #tpu.memory_space<vmem>>, %arg20: memref<8x8x128xf32, #tpu.memory_space<vmem>>, %arg21: memref<8x8x128xf32, #tpu.memory_space<vmem>>) attributes {dimension_semantics = [#tpu.dimension_semantics<parallel>, #tpu.dimension_semantics<arbitrary>], iteration_bounds = array<i64: 1, 1>, scalar_prefetch = 0 : i64, scratch_operands = 8 : i64, tpu.core_type = #tpu.core_type<tc>, window_params = [{transform_indices = @transform_0, window_bounds = array<i64: 8, 8, 128>}, {transform_indices = @transform_1, window_bounds = array<i64: 8, 8, 128>}, {pipeline_mode = #tpu.pipeline_mode<synchronous>, transform_indices = @transform_2, window_bounds = array<i64: 256, 512>}, {pipeline_mode = #tpu.pipeline_mode<synchronous>, transform_indices = @transform_3, window_bounds = array<i64: 128, 512>}, {pipeline_mode = #tpu.pipeline_mode<synchronous>, transform_indices = @transform_4, window_bounds = array<i64: 1, 512>}, {pipeline_mode = #tpu.pipeline_mode<synchronous>, transform_indices = @transform_5, window_bounds = array<i64: 256, 512>}, {pipeline_mode = #tpu.pipeline_mode<synchronous>, transform_indices = @transform_6, window_bounds = array<i64: 128, 512>}, {pipeline_mode = #tpu.pipeline_mode<synchronous>, transform_indices = @transform_7, window_bounds = array<i64: 1, 512>}, {pipeline_mode = #tpu.pipeline_mode<synchronous>, transform_indices = @transform_8, window_bounds = array<i64: 128, 128>}, {pipeline_mode = #tpu.pipeline_mode<synchronous>, transform_indices = @transform_9, window_bounds = array<i64: 128, 128>}, {pipeline_mode = #tpu.pipeline_mode<synchronous>, transform_indices = @transform_10, window_bounds = array<i64: 1, 128>}, {transform_indices = @transform_11, window_bounds = array<i64: 8, 8, 128>}]} {
    %c0_i32 = arith.constant 0 : i32
    %0 = arith.cmpi eq, %arg1, %c0_i32 : i32
    %1 = arith.extui %0 : i1 to i32
    %c0_i32_0 = arith.constant 0 : i32
    %2 = arith.cmpi ne, %1, %c0_i32_0 : i32
    scf.if %2 {
      %cst_203 = arith.constant 0.000000e+00 : f32
      %613 = vector.broadcast %cst_203 : f32 to vector<8x128xf32>
      %c0_204 = arith.constant 0 : index
      %c0_205 = arith.constant 0 : index
      %614 = vector.load %arg16[%c0_204, %c0_205] : memref<8x128xf32, #tpu.memory_space<vmem>>, vector<8x128xf32>
      tpu.vector_store %arg16[%c0_204, %c0_205], %613 {strides = array<i32>} : memref<8x128xf32, #tpu.memory_space<vmem>>, vector<8x128xf32>,
      %cst_206 = arith.constant 0.000000e+00 : f32
      %615 = vector.broadcast %cst_206 : f32 to vector<8x128xf32>
      %c0_207 = arith.constant 0 : index
      %c0_208 = arith.constant 0 : index
      %616 = vector.load %arg17[%c0_207, %c0_208] : memref<8x128xf32, #tpu.memory_space<vmem>>, vector<8x128xf32>
      tpu.vector_store %arg17[%c0_207, %c0_208], %615 {strides = array<i32>} : memref<8x128xf32, #tpu.memory_space<vmem>>, vector<8x128xf32>,
      %cst_209 = arith.constant 0.000000e+00 : f32
      %617 = vector.broadcast %cst_209 : f32 to vector<8x128xf32>
      %c0_210 = arith.constant 0 : index
      %c0_211 = arith.constant 0 : index
      %618 = vector.load %arg18[%c0_210, %c0_211] : memref<8x128xf32, #tpu.memory_space<vmem>>, vector<8x128xf32>
      tpu.vector_store %arg18[%c0_210, %c0_211], %617 {strides = array<i32>} : memref<8x128xf32, #tpu.memory_space<vmem>>, vector<8x128xf32>,
      %cst_212 = arith.constant 0.000000e+00 : f32
      %619 = vector.broadcast %cst_212 : f32 to vector<8x128xf32>
      %c0_213 = arith.constant 0 : index
      %c0_214 = arith.constant 0 : index
      %620 = vector.load %arg19[%c0_213, %c0_214] : memref<8x128xf32, #tpu.memory_space<vmem>>, vector<8x128xf32>
      tpu.vector_store %arg19[%c0_213, %c0_214], %619 {strides = array<i32>} : memref<8x128xf32, #tpu.memory_space<vmem>>, vector<8x128xf32>,
    } else {
    }
    %c0 = arith.constant 0 : index
    %c0_1 = arith.constant 0 : index
    %c0_2 = arith.constant 0 : index
    %3 = vector.load %arg2[%c0, %c0_1, %c0_2] : memref<8x8x128xf32, #tpu.memory_space<vmem>>, vector<8x8x128xf32>
    %4 = vector.shape_cast %3 : vector<8x8x128xf32> to vector<64x128xf32>
    %5 = arith.truncf %4 : vector<64x128xf32> to vector<64x128xbf16>
    %c0_3 = arith.constant 0 : index
    %c0_4 = arith.constant 0 : index
    %6 = vector.load %arg4[%c0_3, %c0_4] : memref<256x512xbf16, #tpu.memory_space<vmem>>, vector<256x512xbf16>
    %c0_5 = arith.constant 0 : index
    %c0_6 = arith.constant 0 : index
    %c0_7 = arith.constant 0 : index
    %7 = vector.load %arg3[%c0_5, %c0_6, %c0_7] : memref<8x8x128xf32, #tpu.memory_space<vmem>>, vector<8x8x128xf32>
    %8 = vector.shape_cast %7 : vector<8x8x128xf32> to vector<64x128xf32>
    %9 = arith.truncf %8 : vector<64x128xf32> to vector<64x128xbf16>
    %10 = vector.extract_strided_slice %6 {offsets = [0, 0], sizes = [128, 512], strides = [1, 1]} : vector<256x512xbf16> to vector<128x512xbf16>
    %cst = arith.constant dense<0.000000e+00> : vector<64x512xf32>
    %11 = tpu.matmul %5, %10, %cst {dimension_numbers = #tpu.dot_dimension_numbers<[1], [0], [0], [1], [0, 0, 1, 1], [], []>} : vector<64x128xbf16>, vector<128x512xbf16>, vector<64x512xf32> -> vector<64x512xf32>
    %12 = vector.extract_strided_slice %6 {offsets = [128, 0], sizes = [128, 512], strides = [1, 1]} : vector<256x512xbf16> to vector<128x512xbf16>
    %cst_8 = arith.constant dense<0.000000e+00> : vector<64x512xf32>
    %13 = tpu.matmul %9, %12, %cst_8 {dimension_numbers = #tpu.dot_dimension_numbers<[1], [0], [0], [1], [0, 0, 1, 1], [], []>} : vector<64x128xbf16>, vector<128x512xbf16>, vector<64x512xf32> -> vector<64x512xf32>
    %14 = arith.addf %11, %13 : vector<64x512xf32>
    %c0_9 = arith.constant 0 : index
    %c0_10 = arith.constant 0 : index
    %15 = vector.load %arg6[%c0_9, %c0_10] : memref<1x512xf32, #tpu.memory_space<vmem>>, vector<1x512xf32>
    %16 = vector.broadcast %15 : vector<1x512xf32> to vector<64x512xf32>
    %17 = arith.addf %14, %16 : vector<64x512xf32>
    %18 = vector.shape_cast %17 : vector<64x512xf32> to vector<8x8x512xf32>
    %c0_11 = arith.constant 0 : index
    %c0_12 = arith.constant 0 : index
    %c0_13 = arith.constant 0 : index
    %19 = vector.load %arg14[%c0_11, %c0_12, %c0_13] : memref<8x8x512xf32, #tpu.memory_space<vmem>>, vector<8x8x512xf32>
    tpu.vector_store %arg14[%c0_11, %c0_12, %c0_13], %18 {strides = array<i32>} : memref<8x8x512xf32, #tpu.memory_space<vmem>>, vector<8x8x512xf32>,
    %c0_14 = arith.constant 0 : index
    %c0_15 = arith.constant 0 : index
    %c0_16 = arith.constant 0 : index
    %20 = vector.load %arg2[%c0_14, %c0_15, %c0_16] : memref<8x8x128xf32, #tpu.memory_space<vmem>>, vector<8x8x128xf32>
    %21 = vector.shape_cast %20 : vector<8x8x128xf32> to vector<64x128xf32>
    %22 = arith.truncf %21 : vector<64x128xf32> to vector<64x128xbf16>
    %c0_17 = arith.constant 0 : index
    %c0_18 = arith.constant 0 : index
    %23 = vector.load %arg7[%c0_17, %c0_18] : memref<256x512xbf16, #tpu.memory_space<vmem>>, vector<256x512xbf16>
    %c0_19 = arith.constant 0 : index
    %c0_20 = arith.constant 0 : index
    %c0_21 = arith.constant 0 : index
    %24 = vector.load %arg3[%c0_19, %c0_20, %c0_21] : memref<8x8x128xf32, #tpu.memory_space<vmem>>, vector<8x8x128xf32>
    %25 = vector.shape_cast %24 : vector<8x8x128xf32> to vector<64x128xf32>
    %26 = arith.truncf %25 : vector<64x128xf32> to vector<64x128xbf16>
    %27 = vector.extract_strided_slice %23 {offsets = [0, 0], sizes = [128, 512], strides = [1, 1]} : vector<256x512xbf16> to vector<128x512xbf16>
    %cst_22 = arith.constant dense<0.000000e+00> : vector<64x512xf32>
    %28 = tpu.matmul %22, %27, %cst_22 {dimension_numbers = #tpu.dot_dimension_numbers<[1], [0], [0], [1], [0, 0, 1, 1], [], []>} : vector<64x128xbf16>, vector<128x512xbf16>, vector<64x512xf32> -> vector<64x512xf32>
    %29 = vector.extract_strided_slice %23 {offsets = [128, 0], sizes = [128, 512], strides = [1, 1]} : vector<256x512xbf16> to vector<128x512xbf16>
    %cst_23 = arith.constant dense<0.000000e+00> : vector<64x512xf32>
    %30 = tpu.matmul %26, %29, %cst_23 {dimension_numbers = #tpu.dot_dimension_numbers<[1], [0], [0], [1], [0, 0, 1, 1], [], []>} : vector<64x128xbf16>, vector<128x512xbf16>, vector<64x512xf32> -> vector<64x512xf32>
    %31 = arith.addf %28, %30 : vector<64x512xf32>
    %c0_24 = arith.constant 0 : index
    %c0_25 = arith.constant 0 : index
    %32 = vector.load %arg9[%c0_24, %c0_25] : memref<1x512xf32, #tpu.memory_space<vmem>>, vector<1x512xf32>
    %33 = vector.broadcast %32 : vector<1x512xf32> to vector<64x512xf32>
    %34 = arith.addf %31, %33 : vector<64x512xf32>
    %35 = vector.shape_cast %34 : vector<64x512xf32> to vector<8x8x512xf32>
    %c0_26 = arith.constant 0 : index
    %c0_27 = arith.constant 0 : index
    %c0_28 = arith.constant 0 : index
    %36 = vector.load %arg15[%c0_26, %c0_27, %c0_28] : memref<8x8x512xf32, #tpu.memory_space<vmem>>, vector<8x8x512xf32>
    tpu.vector_store %arg15[%c0_26, %c0_27, %c0_28], %35 {strides = array<i32>} : memref<8x8x512xf32, #tpu.memory_space<vmem>>, vector<8x8x512xf32>,
    %c0_29 = arith.constant 0 : index
    %c0_30 = arith.constant 0 : index
    %37 = vector.load %arg5[%c0_29, %c0_30] : memref<128x512xf32, #tpu.memory_space<vmem>>, vector<128x512xf32>
    %c0_31 = arith.constant 0 : index
    %c0_32 = arith.constant 0 : index
    %38 = vector.load %arg8[%c0_31, %c0_32] : memref<128x512xf32, #tpu.memory_space<vmem>>, vector<128x512xf32>
    %c0_33 = arith.constant 0 : index
    %c0_34 = arith.constant 0 : index
    %39 = vector.load %arg16[%c0_33, %c0_34] : memref<8x128xf32, #tpu.memory_space<vmem>>, vector<8x128xf32>
    %c0_35 = arith.constant 0 : index
    %c0_36 = arith.constant 0 : index
    %40 = vector.load %arg17[%c0_35, %c0_36] : memref<8x128xf32, #tpu.memory_space<vmem>>, vector<8x128xf32>
    %c0_37 = arith.constant 0 : index
    %c0_38 = arith.constant 0 : index
    %41 = vector.load %arg18[%c0_37, %c0_38] : memref<8x128xf32, #tpu.memory_space<vmem>>, vector<8x128xf32>
    %c0_39 = arith.constant 0 : index
    %c0_40 = arith.constant 0 : index
    %42 = vector.load %arg19[%c0_39, %c0_40] : memref<8x128xf32, #tpu.memory_space<vmem>>, vector<8x128xf32>
    %c0_i32_41 = arith.constant 0 : i32
    %c7_i32 = arith.constant 7 : i32
    %43 = arith.subi %c7_i32, %c0_i32_41 : i32
    %44 = arith.index_cast %c0_i32_41 : i32 to index
    %c0_42 = arith.constant 0 : index
    %c0_43 = arith.constant 0 : index
    %45 = vector.load %arg14[%44, %c0_42, %c0_43] : memref<8x8x512xf32, #tpu.memory_space<vmem>>, vector<1x8x512xf32>
    %46 = vector.shape_cast %45 : vector<1x8x512xf32> to vector<8x512xf32>
    %cst_44 = arith.constant dense<0.000000e+00> : vector<8x512xf32>
    %47 = tpu.matmul %39, %37, %cst_44 {dimension_numbers = #tpu.dot_dimension_numbers<[1], [0], [0], [1], [0, 0, 1, 1], [], []>} : vector<8x128xf32>, vector<128x512xf32>, vector<8x512xf32> -> vector<8x512xf32>
    %48 = arith.addf %46, %47 : vector<8x512xf32>
    %49 = arith.index_cast %43 : i32 to index
    %c0_45 = arith.constant 0 : index
    %c0_46 = arith.constant 0 : index
    %50 = vector.load %arg15[%49, %c0_45, %c0_46] : memref<8x8x512xf32, #tpu.memory_space<vmem>>, vector<1x8x512xf32>
    %51 = vector.shape_cast %50 : vector<1x8x512xf32> to vector<8x512xf32>
    %cst_47 = arith.constant dense<0.000000e+00> : vector<8x512xf32>
    %52 = tpu.matmul %41, %38, %cst_47 {dimension_numbers = #tpu.dot_dimension_numbers<[1], [0], [0], [1], [0, 0, 1, 1], [], []>} : vector<8x128xf32>, vector<128x512xf32>, vector<8x512xf32> -> vector<8x512xf32>
    %53 = arith.addf %51, %52 : vector<8x512xf32>
    %54 = vector.extract_strided_slice %48 {offsets = [0, 0], sizes = [8, 128], strides = [1, 1]} : vector<8x512xf32> to vector<8x128xf32>
    %55 = arith.negf %54 : vector<8x128xf32>
    %56 = math.exp %55 : vector<8x128xf32>
    %cst_48 = arith.constant 1.000000e+00 : f32
    %57 = vector.broadcast %cst_48 : f32 to vector<8x128xf32>
    %58 = arith.addf %57, %56 : vector<8x128xf32>
    %59 = arith.divf %57, %58 : vector<8x128xf32>
    %60 = vector.extract_strided_slice %48 {offsets = [0, 128], sizes = [8, 128], strides = [1, 1]} : vector<8x512xf32> to vector<8x128xf32>
    %61 = arith.negf %60 : vector<8x128xf32>
    %62 = math.exp %61 : vector<8x128xf32>
    %cst_49 = arith.constant 1.000000e+00 : f32
    %63 = vector.broadcast %cst_49 : f32 to vector<8x128xf32>
    %64 = arith.addf %63, %62 : vector<8x128xf32>
    %65 = arith.divf %63, %64 : vector<8x128xf32>
    %66 = vector.extract_strided_slice %48 {offsets = [0, 256], sizes = [8, 128], strides = [1, 1]} : vector<8x512xf32> to vector<8x128xf32>
    %67 = math.tanh %66 : vector<8x128xf32>
    %68 = vector.extract_strided_slice %48 {offsets = [0, 384], sizes = [8, 128], strides = [1, 1]} : vector<8x512xf32> to vector<8x128xf32>
    %69 = arith.negf %68 : vector<8x128xf32>
    %70 = math.exp %69 : vector<8x128xf32>
    %cst_50 = arith.constant 1.000000e+00 : f32
    %71 = vector.broadcast %cst_50 : f32 to vector<8x128xf32>
    %72 = arith.addf %71, %70 : vector<8x128xf32>
    %73 = arith.divf %71, %72 : vector<8x128xf32>
    %74 = arith.mulf %65, %40 : vector<8x128xf32>
    %75 = arith.mulf %59, %67 : vector<8x128xf32>
    %76 = arith.addf %74, %75 : vector<8x128xf32>
    %77 = math.tanh %76 : vector<8x128xf32>
    %78 = arith.mulf %73, %77 : vector<8x128xf32>
    %79 = vector.extract_strided_slice %53 {offsets = [0, 0], sizes = [8, 128], strides = [1, 1]} : vector<8x512xf32> to vector<8x128xf32>
    %80 = arith.negf %79 : vector<8x128xf32>
    %81 = math.exp %80 : vector<8x128xf32>
    %cst_51 = arith.constant 1.000000e+00 : f32
    %82 = vector.broadcast %cst_51 : f32 to vector<8x128xf32>
    %83 = arith.addf %82, %81 : vector<8x128xf32>
    %84 = arith.divf %82, %83 : vector<8x128xf32>
    %85 = vector.extract_strided_slice %53 {offsets = [0, 128], sizes = [8, 128], strides = [1, 1]} : vector<8x512xf32> to vector<8x128xf32>
    %86 = arith.negf %85 : vector<8x128xf32>
    %87 = math.exp %86 : vector<8x128xf32>
    %cst_52 = arith.constant 1.000000e+00 : f32
    %88 = vector.broadcast %cst_52 : f32 to vector<8x128xf32>
    %89 = arith.addf %88, %87 : vector<8x128xf32>
    %90 = arith.divf %88, %89 : vector<8x128xf32>
    %91 = vector.extract_strided_slice %53 {offsets = [0, 256], sizes = [8, 128], strides = [1, 1]} : vector<8x512xf32> to vector<8x128xf32>
    %92 = math.tanh %91 : vector<8x128xf32>
    %93 = vector.extract_strided_slice %53 {offsets = [0, 384], sizes = [8, 128], strides = [1, 1]} : vector<8x512xf32> to vector<8x128xf32>
    %94 = arith.negf %93 : vector<8x128xf32>
    %95 = math.exp %94 : vector<8x128xf32>
    %cst_53 = arith.constant 1.000000e+00 : f32
    %96 = vector.broadcast %cst_53 : f32 to vector<8x128xf32>
    %97 = arith.addf %96, %95 : vector<8x128xf32>
    %98 = arith.divf %96, %97 : vector<8x128xf32>
    %99 = arith.mulf %90, %42 : vector<8x128xf32>
    %100 = arith.mulf %84, %92 : vector<8x128xf32>
    %101 = arith.addf %99, %100 : vector<8x128xf32>
    %102 = math.tanh %101 : vector<8x128xf32>
    %103 = arith.mulf %98, %102 : vector<8x128xf32>
    %104 = arith.index_cast %c0_i32_41 : i32 to index
    %c0_54 = arith.constant 0 : index
    %c0_55 = arith.constant 0 : index
    %105 = vector.load %arg20[%104, %c0_54, %c0_55] : memref<8x8x128xf32, #tpu.memory_space<vmem>>, vector<1x8x128xf32>
    %106 = vector.shape_cast %105 : vector<1x8x128xf32> to vector<8x128xf32>
    %107 = vector.shape_cast %78 : vector<8x128xf32> to vector<1x8x128xf32>
    tpu.vector_store %arg20[%104, %c0_54, %c0_55], %107 {strides = array<i32>} : memref<8x8x128xf32, #tpu.memory_space<vmem>>, vector<1x8x128xf32>,
    %108 = arith.index_cast %43 : i32 to index
    %c0_56 = arith.constant 0 : index
    %c0_57 = arith.constant 0 : index
    %109 = vector.load %arg21[%108, %c0_56, %c0_57] : memref<8x8x128xf32, #tpu.memory_space<vmem>>, vector<1x8x128xf32>
    %110 = vector.shape_cast %109 : vector<1x8x128xf32> to vector<8x128xf32>
    %111 = vector.shape_cast %103 : vector<8x128xf32> to vector<1x8x128xf32>
    tpu.vector_store %arg21[%108, %c0_56, %c0_57], %111 {strides = array<i32>} : memref<8x8x128xf32, #tpu.memory_space<vmem>>, vector<1x8x128xf32>,
    %c1_i32 = arith.constant 1 : i32
    %c7_i32_58 = arith.constant 7 : i32
    %112 = arith.subi %c7_i32_58, %c1_i32 : i32
    %113 = arith.index_cast %c1_i32 : i32 to index
    %c0_59 = arith.constant 0 : index
    %c0_60 = arith.constant 0 : index
    %114 = vector.load %arg14[%113, %c0_59, %c0_60] : memref<8x8x512xf32, #tpu.memory_space<vmem>>, vector<1x8x512xf32>
    %115 = vector.shape_cast %114 : vector<1x8x512xf32> to vector<8x512xf32>
    %cst_61 = arith.constant dense<0.000000e+00> : vector<8x512xf32>
    %116 = tpu.matmul %78, %37, %cst_61 {dimension_numbers = #tpu.dot_dimension_numbers<[1], [0], [0], [1], [0, 0, 1, 1], [], []>} : vector<8x128xf32>, vector<128x512xf32>, vector<8x512xf32> -> vector<8x512xf32>
    %117 = arith.addf %115, %116 : vector<8x512xf32>
    %118 = arith.index_cast %112 : i32 to index
    %c0_62 = arith.constant 0 : index
    %c0_63 = arith.constant 0 : index
    %119 = vector.load %arg15[%118, %c0_62, %c0_63] : memref<8x8x512xf32, #tpu.memory_space<vmem>>, vector<1x8x512xf32>
    %120 = vector.shape_cast %119 : vector<1x8x512xf32> to vector<8x512xf32>
    %cst_64 = arith.constant dense<0.000000e+00> : vector<8x512xf32>
    %121 = tpu.matmul %103, %38, %cst_64 {dimension_numbers = #tpu.dot_dimension_numbers<[1], [0], [0], [1], [0, 0, 1, 1], [], []>} : vector<8x128xf32>, vector<128x512xf32>, vector<8x512xf32> -> vector<8x512xf32>
    %122 = arith.addf %120, %121 : vector<8x512xf32>
    %123 = vector.extract_strided_slice %117 {offsets = [0, 0], sizes = [8, 128], strides = [1, 1]} : vector<8x512xf32> to vector<8x128xf32>
    %124 = arith.negf %123 : vector<8x128xf32>
    %125 = math.exp %124 : vector<8x128xf32>
    %cst_65 = arith.constant 1.000000e+00 : f32
    %126 = vector.broadcast %cst_65 : f32 to vector<8x128xf32>
    %127 = arith.addf %126, %125 : vector<8x128xf32>
    %128 = arith.divf %126, %127 : vector<8x128xf32>
    %129 = vector.extract_strided_slice %117 {offsets = [0, 128], sizes = [8, 128], strides = [1, 1]} : vector<8x512xf32> to vector<8x128xf32>
    %130 = arith.negf %129 : vector<8x128xf32>
    %131 = math.exp %130 : vector<8x128xf32>
    %cst_66 = arith.constant 1.000000e+00 : f32
    %132 = vector.broadcast %cst_66 : f32 to vector<8x128xf32>
    %133 = arith.addf %132, %131 : vector<8x128xf32>
    %134 = arith.divf %132, %133 : vector<8x128xf32>
    %135 = vector.extract_strided_slice %117 {offsets = [0, 256], sizes = [8, 128], strides = [1, 1]} : vector<8x512xf32> to vector<8x128xf32>
    %136 = math.tanh %135 : vector<8x128xf32>
    %137 = vector.extract_strided_slice %117 {offsets = [0, 384], sizes = [8, 128], strides = [1, 1]} : vector<8x512xf32> to vector<8x128xf32>
    %138 = arith.negf %137 : vector<8x128xf32>
    %139 = math.exp %138 : vector<8x128xf32>
    %cst_67 = arith.constant 1.000000e+00 : f32
    %140 = vector.broadcast %cst_67 : f32 to vector<8x128xf32>
    %141 = arith.addf %140, %139 : vector<8x128xf32>
    %142 = arith.divf %140, %141 : vector<8x128xf32>
    %143 = arith.mulf %134, %76 : vector<8x128xf32>
    %144 = arith.mulf %128, %136 : vector<8x128xf32>
    %145 = arith.addf %143, %144 : vector<8x128xf32>
    %146 = math.tanh %145 : vector<8x128xf32>
    %147 = arith.mulf %142, %146 : vector<8x128xf32>
    %148 = vector.extract_strided_slice %122 {offsets = [0, 0], sizes = [8, 128], strides = [1, 1]} : vector<8x512xf32> to vector<8x128xf32>
    %149 = arith.negf %148 : vector<8x128xf32>
    %150 = math.exp %149 : vector<8x128xf32>
    %cst_68 = arith.constant 1.000000e+00 : f32
    %151 = vector.broadcast %cst_68 : f32 to vector<8x128xf32>
    %152 = arith.addf %151, %150 : vector<8x128xf32>
    %153 = arith.divf %151, %152 : vector<8x128xf32>
    %154 = vector.extract_strided_slice %122 {offsets = [0, 128], sizes = [8, 128], strides = [1, 1]} : vector<8x512xf32> to vector<8x128xf32>
    %155 = arith.negf %154 : vector<8x128xf32>
    %156 = math.exp %155 : vector<8x128xf32>
    %cst_69 = arith.constant 1.000000e+00 : f32
    %157 = vector.broadcast %cst_69 : f32 to vector<8x128xf32>
    %158 = arith.addf %157, %156 : vector<8x128xf32>
    %159 = arith.divf %157, %158 : vector<8x128xf32>
    %160 = vector.extract_strided_slice %122 {offsets = [0, 256], sizes = [8, 128], strides = [1, 1]} : vector<8x512xf32> to vector<8x128xf32>
    %161 = math.tanh %160 : vector<8x128xf32>
    %162 = vector.extract_strided_slice %122 {offsets = [0, 384], sizes = [8, 128], strides = [1, 1]} : vector<8x512xf32> to vector<8x128xf32>
    %163 = arith.negf %162 : vector<8x128xf32>
    %164 = math.exp %163 : vector<8x128xf32>
    %cst_70 = arith.constant 1.000000e+00 : f32
    %165 = vector.broadcast %cst_70 : f32 to vector<8x128xf32>
    %166 = arith.addf %165, %164 : vector<8x128xf32>
    %167 = arith.divf %165, %166 : vector<8x128xf32>
    %168 = arith.mulf %159, %101 : vector<8x128xf32>
    %169 = arith.mulf %153, %161 : vector<8x128xf32>
    %170 = arith.addf %168, %169 : vector<8x128xf32>
    %171 = math.tanh %170 : vector<8x128xf32>
    %172 = arith.mulf %167, %171 : vector<8x128xf32>
    %173 = arith.index_cast %c1_i32 : i32 to index
    %c0_71 = arith.constant 0 : index
    %c0_72 = arith.constant 0 : index
    %174 = vector.load %arg20[%173, %c0_71, %c0_72] : memref<8x8x128xf32, #tpu.memory_space<vmem>>, vector<1x8x128xf32>
    %175 = vector.shape_cast %174 : vector<1x8x128xf32> to vector<8x128xf32>
    %176 = vector.shape_cast %147 : vector<8x128xf32> to vector<1x8x128xf32>
    tpu.vector_store %arg20[%173, %c0_71, %c0_72], %176 {strides = array<i32>} : memref<8x8x128xf32, #tpu.memory_space<vmem>>, vector<1x8x128xf32>,
    %177 = arith.index_cast %112 : i32 to index
    %c0_73 = arith.constant 0 : index
    %c0_74 = arith.constant 0 : index
    %178 = vector.load %arg21[%177, %c0_73, %c0_74] : memref<8x8x128xf32, #tpu.memory_space<vmem>>, vector<1x8x128xf32>
    %179 = vector.shape_cast %178 : vector<1x8x128xf32> to vector<8x128xf32>
    %180 = vector.shape_cast %172 : vector<8x128xf32> to vector<1x8x128xf32>
    tpu.vector_store %arg21[%177, %c0_73, %c0_74], %180 {strides = array<i32>} : memref<8x8x128xf32, #tpu.memory_space<vmem>>, vector<1x8x128xf32>,
    %c2_i32 = arith.constant 2 : i32
    %c7_i32_75 = arith.constant 7 : i32
    %181 = arith.subi %c7_i32_75, %c2_i32 : i32
    %182 = arith.index_cast %c2_i32 : i32 to index
    %c0_76 = arith.constant 0 : index
    %c0_77 = arith.constant 0 : index
    %183 = vector.load %arg14[%182, %c0_76, %c0_77] : memref<8x8x512xf32, #tpu.memory_space<vmem>>, vector<1x8x512xf32>
    %184 = vector.shape_cast %183 : vector<1x8x512xf32> to vector<8x512xf32>
    %cst_78 = arith.constant dense<0.000000e+00> : vector<8x512xf32>
    %185 = tpu.matmul %147, %37, %cst_78 {dimension_numbers = #tpu.dot_dimension_numbers<[1], [0], [0], [1], [0, 0, 1, 1], [], []>} : vector<8x128xf32>, vector<128x512xf32>, vector<8x512xf32> -> vector<8x512xf32>
    %186 = arith.addf %184, %185 : vector<8x512xf32>
    %187 = arith.index_cast %181 : i32 to index
    %c0_79 = arith.constant 0 : index
    %c0_80 = arith.constant 0 : index
    %188 = vector.load %arg15[%187, %c0_79, %c0_80] : memref<8x8x512xf32, #tpu.memory_space<vmem>>, vector<1x8x512xf32>
    %189 = vector.shape_cast %188 : vector<1x8x512xf32> to vector<8x512xf32>
    %cst_81 = arith.constant dense<0.000000e+00> : vector<8x512xf32>
    %190 = tpu.matmul %172, %38, %cst_81 {dimension_numbers = #tpu.dot_dimension_numbers<[1], [0], [0], [1], [0, 0, 1, 1], [], []>} : vector<8x128xf32>, vector<128x512xf32>, vector<8x512xf32> -> vector<8x512xf32>
    %191 = arith.addf %189, %190 : vector<8x512xf32>
    %192 = vector.extract_strided_slice %186 {offsets = [0, 0], sizes = [8, 128], strides = [1, 1]} : vector<8x512xf32> to vector<8x128xf32>
    %193 = arith.negf %192 : vector<8x128xf32>
    %194 = math.exp %193 : vector<8x128xf32>
    %cst_82 = arith.constant 1.000000e+00 : f32
    %195 = vector.broadcast %cst_82 : f32 to vector<8x128xf32>
    %196 = arith.addf %195, %194 : vector<8x128xf32>
    %197 = arith.divf %195, %196 : vector<8x128xf32>
    %198 = vector.extract_strided_slice %186 {offsets = [0, 128], sizes = [8, 128], strides = [1, 1]} : vector<8x512xf32> to vector<8x128xf32>
    %199 = arith.negf %198 : vector<8x128xf32>
    %200 = math.exp %199 : vector<8x128xf32>
    %cst_83 = arith.constant 1.000000e+00 : f32
    %201 = vector.broadcast %cst_83 : f32 to vector<8x128xf32>
    %202 = arith.addf %201, %200 : vector<8x128xf32>
    %203 = arith.divf %201, %202 : vector<8x128xf32>
    %204 = vector.extract_strided_slice %186 {offsets = [0, 256], sizes = [8, 128], strides = [1, 1]} : vector<8x512xf32> to vector<8x128xf32>
    %205 = math.tanh %204 : vector<8x128xf32>
    %206 = vector.extract_strided_slice %186 {offsets = [0, 384], sizes = [8, 128], strides = [1, 1]} : vector<8x512xf32> to vector<8x128xf32>
    %207 = arith.negf %206 : vector<8x128xf32>
    %208 = math.exp %207 : vector<8x128xf32>
    %cst_84 = arith.constant 1.000000e+00 : f32
    %209 = vector.broadcast %cst_84 : f32 to vector<8x128xf32>
    %210 = arith.addf %209, %208 : vector<8x128xf32>
    %211 = arith.divf %209, %210 : vector<8x128xf32>
    %212 = arith.mulf %203, %145 : vector<8x128xf32>
    %213 = arith.mulf %197, %205 : vector<8x128xf32>
    %214 = arith.addf %212, %213 : vector<8x128xf32>
    %215 = math.tanh %214 : vector<8x128xf32>
    %216 = arith.mulf %211, %215 : vector<8x128xf32>
    %217 = vector.extract_strided_slice %191 {offsets = [0, 0], sizes = [8, 128], strides = [1, 1]} : vector<8x512xf32> to vector<8x128xf32>
    %218 = arith.negf %217 : vector<8x128xf32>
    %219 = math.exp %218 : vector<8x128xf32>
    %cst_85 = arith.constant 1.000000e+00 : f32
    %220 = vector.broadcast %cst_85 : f32 to vector<8x128xf32>
    %221 = arith.addf %220, %219 : vector<8x128xf32>
    %222 = arith.divf %220, %221 : vector<8x128xf32>
    %223 = vector.extract_strided_slice %191 {offsets = [0, 128], sizes = [8, 128], strides = [1, 1]} : vector<8x512xf32> to vector<8x128xf32>
    %224 = arith.negf %223 : vector<8x128xf32>
    %225 = math.exp %224 : vector<8x128xf32>
    %cst_86 = arith.constant 1.000000e+00 : f32
    %226 = vector.broadcast %cst_86 : f32 to vector<8x128xf32>
    %227 = arith.addf %226, %225 : vector<8x128xf32>
    %228 = arith.divf %226, %227 : vector<8x128xf32>
    %229 = vector.extract_strided_slice %191 {offsets = [0, 256], sizes = [8, 128], strides = [1, 1]} : vector<8x512xf32> to vector<8x128xf32>
    %230 = math.tanh %229 : vector<8x128xf32>
    %231 = vector.extract_strided_slice %191 {offsets = [0, 384], sizes = [8, 128], strides = [1, 1]} : vector<8x512xf32> to vector<8x128xf32>
    %232 = arith.negf %231 : vector<8x128xf32>
    %233 = math.exp %232 : vector<8x128xf32>
    %cst_87 = arith.constant 1.000000e+00 : f32
    %234 = vector.broadcast %cst_87 : f32 to vector<8x128xf32>
    %235 = arith.addf %234, %233 : vector<8x128xf32>
    %236 = arith.divf %234, %235 : vector<8x128xf32>
    %237 = arith.mulf %228, %170 : vector<8x128xf32>
    %238 = arith.mulf %222, %230 : vector<8x128xf32>
    %239 = arith.addf %237, %238 : vector<8x128xf32>
    %240 = math.tanh %239 : vector<8x128xf32>
    %241 = arith.mulf %236, %240 : vector<8x128xf32>
    %242 = arith.index_cast %c2_i32 : i32 to index
    %c0_88 = arith.constant 0 : index
    %c0_89 = arith.constant 0 : index
    %243 = vector.load %arg20[%242, %c0_88, %c0_89] : memref<8x8x128xf32, #tpu.memory_space<vmem>>, vector<1x8x128xf32>
    %244 = vector.shape_cast %243 : vector<1x8x128xf32> to vector<8x128xf32>
    %245 = vector.shape_cast %216 : vector<8x128xf32> to vector<1x8x128xf32>
    tpu.vector_store %arg20[%242, %c0_88, %c0_89], %245 {strides = array<i32>} : memref<8x8x128xf32, #tpu.memory_space<vmem>>, vector<1x8x128xf32>,
    %246 = arith.index_cast %181 : i32 to index
    %c0_90 = arith.constant 0 : index
    %c0_91 = arith.constant 0 : index
    %247 = vector.load %arg21[%246, %c0_90, %c0_91] : memref<8x8x128xf32, #tpu.memory_space<vmem>>, vector<1x8x128xf32>
    %248 = vector.shape_cast %247 : vector<1x8x128xf32> to vector<8x128xf32>
    %249 = vector.shape_cast %241 : vector<8x128xf32> to vector<1x8x128xf32>
    tpu.vector_store %arg21[%246, %c0_90, %c0_91], %249 {strides = array<i32>} : memref<8x8x128xf32, #tpu.memory_space<vmem>>, vector<1x8x128xf32>,
    %c3_i32 = arith.constant 3 : i32
    %c7_i32_92 = arith.constant 7 : i32
    %250 = arith.subi %c7_i32_92, %c3_i32 : i32
    %251 = arith.index_cast %c3_i32 : i32 to index
    %c0_93 = arith.constant 0 : index
    %c0_94 = arith.constant 0 : index
    %252 = vector.load %arg14[%251, %c0_93, %c0_94] : memref<8x8x512xf32, #tpu.memory_space<vmem>>, vector<1x8x512xf32>
    %253 = vector.shape_cast %252 : vector<1x8x512xf32> to vector<8x512xf32>
    %cst_95 = arith.constant dense<0.000000e+00> : vector<8x512xf32>
    %254 = tpu.matmul %216, %37, %cst_95 {dimension_numbers = #tpu.dot_dimension_numbers<[1], [0], [0], [1], [0, 0, 1, 1], [], []>} : vector<8x128xf32>, vector<128x512xf32>, vector<8x512xf32> -> vector<8x512xf32>
    %255 = arith.addf %253, %254 : vector<8x512xf32>
    %256 = arith.index_cast %250 : i32 to index
    %c0_96 = arith.constant 0 : index
    %c0_97 = arith.constant 0 : index
    %257 = vector.load %arg15[%256, %c0_96, %c0_97] : memref<8x8x512xf32, #tpu.memory_space<vmem>>, vector<1x8x512xf32>
    %258 = vector.shape_cast %257 : vector<1x8x512xf32> to vector<8x512xf32>
    %cst_98 = arith.constant dense<0.000000e+00> : vector<8x512xf32>
    %259 = tpu.matmul %241, %38, %cst_98 {dimension_numbers = #tpu.dot_dimension_numbers<[1], [0], [0], [1], [0, 0, 1, 1], [], []>} : vector<8x128xf32>, vector<128x512xf32>, vector<8x512xf32> -> vector<8x512xf32>
    %260 = arith.addf %258, %259 : vector<8x512xf32>
    %261 = vector.extract_strided_slice %255 {offsets = [0, 0], sizes = [8, 128], strides = [1, 1]} : vector<8x512xf32> to vector<8x128xf32>
    %262 = arith.negf %261 : vector<8x128xf32>
    %263 = math.exp %262 : vector<8x128xf32>
    %cst_99 = arith.constant 1.000000e+00 : f32
    %264 = vector.broadcast %cst_99 : f32 to vector<8x128xf32>
    %265 = arith.addf %264, %263 : vector<8x128xf32>
    %266 = arith.divf %264, %265 : vector<8x128xf32>
    %267 = vector.extract_strided_slice %255 {offsets = [0, 128], sizes = [8, 128], strides = [1, 1]} : vector<8x512xf32> to vector<8x128xf32>
    %268 = arith.negf %267 : vector<8x128xf32>
    %269 = math.exp %268 : vector<8x128xf32>
    %cst_100 = arith.constant 1.000000e+00 : f32
    %270 = vector.broadcast %cst_100 : f32 to vector<8x128xf32>
    %271 = arith.addf %270, %269 : vector<8x128xf32>
    %272 = arith.divf %270, %271 : vector<8x128xf32>
    %273 = vector.extract_strided_slice %255 {offsets = [0, 256], sizes = [8, 128], strides = [1, 1]} : vector<8x512xf32> to vector<8x128xf32>
    %274 = math.tanh %273 : vector<8x128xf32>
    %275 = vector.extract_strided_slice %255 {offsets = [0, 384], sizes = [8, 128], strides = [1, 1]} : vector<8x512xf32> to vector<8x128xf32>
    %276 = arith.negf %275 : vector<8x128xf32>
    %277 = math.exp %276 : vector<8x128xf32>
    %cst_101 = arith.constant 1.000000e+00 : f32
    %278 = vector.broadcast %cst_101 : f32 to vector<8x128xf32>
    %279 = arith.addf %278, %277 : vector<8x128xf32>
    %280 = arith.divf %278, %279 : vector<8x128xf32>
    %281 = arith.mulf %272, %214 : vector<8x128xf32>
    %282 = arith.mulf %266, %274 : vector<8x128xf32>
    %283 = arith.addf %281, %282 : vector<8x128xf32>
    %284 = math.tanh %283 : vector<8x128xf32>
    %285 = arith.mulf %280, %284 : vector<8x128xf32>
    %286 = vector.extract_strided_slice %260 {offsets = [0, 0], sizes = [8, 128], strides = [1, 1]} : vector<8x512xf32> to vector<8x128xf32>
    %287 = arith.negf %286 : vector<8x128xf32>
    %288 = math.exp %287 : vector<8x128xf32>
    %cst_102 = arith.constant 1.000000e+00 : f32
    %289 = vector.broadcast %cst_102 : f32 to vector<8x128xf32>
    %290 = arith.addf %289, %288 : vector<8x128xf32>
    %291 = arith.divf %289, %290 : vector<8x128xf32>
    %292 = vector.extract_strided_slice %260 {offsets = [0, 128], sizes = [8, 128], strides = [1, 1]} : vector<8x512xf32> to vector<8x128xf32>
    %293 = arith.negf %292 : vector<8x128xf32>
    %294 = math.exp %293 : vector<8x128xf32>
    %cst_103 = arith.constant 1.000000e+00 : f32
    %295 = vector.broadcast %cst_103 : f32 to vector<8x128xf32>
    %296 = arith.addf %295, %294 : vector<8x128xf32>
    %297 = arith.divf %295, %296 : vector<8x128xf32>
    %298 = vector.extract_strided_slice %260 {offsets = [0, 256], sizes = [8, 128], strides = [1, 1]} : vector<8x512xf32> to vector<8x128xf32>
    %299 = math.tanh %298 : vector<8x128xf32>
    %300 = vector.extract_strided_slice %260 {offsets = [0, 384], sizes = [8, 128], strides = [1, 1]} : vector<8x512xf32> to vector<8x128xf32>
    %301 = arith.negf %300 : vector<8x128xf32>
    %302 = math.exp %301 : vector<8x128xf32>
    %cst_104 = arith.constant 1.000000e+00 : f32
    %303 = vector.broadcast %cst_104 : f32 to vector<8x128xf32>
    %304 = arith.addf %303, %302 : vector<8x128xf32>
    %305 = arith.divf %303, %304 : vector<8x128xf32>
    %306 = arith.mulf %297, %239 : vector<8x128xf32>
    %307 = arith.mulf %291, %299 : vector<8x128xf32>
    %308 = arith.addf %306, %307 : vector<8x128xf32>
    %309 = math.tanh %308 : vector<8x128xf32>
    %310 = arith.mulf %305, %309 : vector<8x128xf32>
    %311 = arith.index_cast %c3_i32 : i32 to index
    %c0_105 = arith.constant 0 : index
    %c0_106 = arith.constant 0 : index
    %312 = vector.load %arg20[%311, %c0_105, %c0_106] : memref<8x8x128xf32, #tpu.memory_space<vmem>>, vector<1x8x128xf32>
    %313 = vector.shape_cast %312 : vector<1x8x128xf32> to vector<8x128xf32>
    %314 = vector.shape_cast %285 : vector<8x128xf32> to vector<1x8x128xf32>
    tpu.vector_store %arg20[%311, %c0_105, %c0_106], %314 {strides = array<i32>} : memref<8x8x128xf32, #tpu.memory_space<vmem>>, vector<1x8x128xf32>,
    %315 = arith.index_cast %250 : i32 to index
    %c0_107 = arith.constant 0 : index
    %c0_108 = arith.constant 0 : index
    %316 = vector.load %arg21[%315, %c0_107, %c0_108] : memref<8x8x128xf32, #tpu.memory_space<vmem>>, vector<1x8x128xf32>
    %317 = vector.shape_cast %316 : vector<1x8x128xf32> to vector<8x128xf32>
    %318 = vector.shape_cast %310 : vector<8x128xf32> to vector<1x8x128xf32>
    tpu.vector_store %arg21[%315, %c0_107, %c0_108], %318 {strides = array<i32>} : memref<8x8x128xf32, #tpu.memory_space<vmem>>, vector<1x8x128xf32>,
    %c4_i32 = arith.constant 4 : i32
    %c7_i32_109 = arith.constant 7 : i32
    %319 = arith.subi %c7_i32_109, %c4_i32 : i32
    %320 = arith.index_cast %c4_i32 : i32 to index
    %c0_110 = arith.constant 0 : index
    %c0_111 = arith.constant 0 : index
    %321 = vector.load %arg14[%320, %c0_110, %c0_111] : memref<8x8x512xf32, #tpu.memory_space<vmem>>, vector<1x8x512xf32>
    %322 = vector.shape_cast %321 : vector<1x8x512xf32> to vector<8x512xf32>
    %cst_112 = arith.constant dense<0.000000e+00> : vector<8x512xf32>
    %323 = tpu.matmul %285, %37, %cst_112 {dimension_numbers = #tpu.dot_dimension_numbers<[1], [0], [0], [1], [0, 0, 1, 1], [], []>} : vector<8x128xf32>, vector<128x512xf32>, vector<8x512xf32> -> vector<8x512xf32>
    %324 = arith.addf %322, %323 : vector<8x512xf32>
    %325 = arith.index_cast %319 : i32 to index
    %c0_113 = arith.constant 0 : index
    %c0_114 = arith.constant 0 : index
    %326 = vector.load %arg15[%325, %c0_113, %c0_114] : memref<8x8x512xf32, #tpu.memory_space<vmem>>, vector<1x8x512xf32>
    %327 = vector.shape_cast %326 : vector<1x8x512xf32> to vector<8x512xf32>
    %cst_115 = arith.constant dense<0.000000e+00> : vector<8x512xf32>
    %328 = tpu.matmul %310, %38, %cst_115 {dimension_numbers = #tpu.dot_dimension_numbers<[1], [0], [0], [1], [0, 0, 1, 1], [], []>} : vector<8x128xf32>, vector<128x512xf32>, vector<8x512xf32> -> vector<8x512xf32>
    %329 = arith.addf %327, %328 : vector<8x512xf32>
    %330 = vector.extract_strided_slice %324 {offsets = [0, 0], sizes = [8, 128], strides = [1, 1]} : vector<8x512xf32> to vector<8x128xf32>
    %331 = arith.negf %330 : vector<8x128xf32>
    %332 = math.exp %331 : vector<8x128xf32>
    %cst_116 = arith.constant 1.000000e+00 : f32
    %333 = vector.broadcast %cst_116 : f32 to vector<8x128xf32>
    %334 = arith.addf %333, %332 : vector<8x128xf32>
    %335 = arith.divf %333, %334 : vector<8x128xf32>
    %336 = vector.extract_strided_slice %324 {offsets = [0, 128], sizes = [8, 128], strides = [1, 1]} : vector<8x512xf32> to vector<8x128xf32>
    %337 = arith.negf %336 : vector<8x128xf32>
    %338 = math.exp %337 : vector<8x128xf32>
    %cst_117 = arith.constant 1.000000e+00 : f32
    %339 = vector.broadcast %cst_117 : f32 to vector<8x128xf32>
    %340 = arith.addf %339, %338 : vector<8x128xf32>
    %341 = arith.divf %339, %340 : vector<8x128xf32>
    %342 = vector.extract_strided_slice %324 {offsets = [0, 256], sizes = [8, 128], strides = [1, 1]} : vector<8x512xf32> to vector<8x128xf32>
    %343 = math.tanh %342 : vector<8x128xf32>
    %344 = vector.extract_strided_slice %324 {offsets = [0, 384], sizes = [8, 128], strides = [1, 1]} : vector<8x512xf32> to vector<8x128xf32>
    %345 = arith.negf %344 : vector<8x128xf32>
    %346 = math.exp %345 : vector<8x128xf32>
    %cst_118 = arith.constant 1.000000e+00 : f32
    %347 = vector.broadcast %cst_118 : f32 to vector<8x128xf32>
    %348 = arith.addf %347, %346 : vector<8x128xf32>
    %349 = arith.divf %347, %348 : vector<8x128xf32>
    %350 = arith.mulf %341, %283 : vector<8x128xf32>
    %351 = arith.mulf %335, %343 : vector<8x128xf32>
    %352 = arith.addf %350, %351 : vector<8x128xf32>
    %353 = math.tanh %352 : vector<8x128xf32>
    %354 = arith.mulf %349, %353 : vector<8x128xf32>
    %355 = vector.extract_strided_slice %329 {offsets = [0, 0], sizes = [8, 128], strides = [1, 1]} : vector<8x512xf32> to vector<8x128xf32>
    %356 = arith.negf %355 : vector<8x128xf32>
    %357 = math.exp %356 : vector<8x128xf32>
    %cst_119 = arith.constant 1.000000e+00 : f32
    %358 = vector.broadcast %cst_119 : f32 to vector<8x128xf32>
    %359 = arith.addf %358, %357 : vector<8x128xf32>
    %360 = arith.divf %358, %359 : vector<8x128xf32>
    %361 = vector.extract_strided_slice %329 {offsets = [0, 128], sizes = [8, 128], strides = [1, 1]} : vector<8x512xf32> to vector<8x128xf32>
    %362 = arith.negf %361 : vector<8x128xf32>
    %363 = math.exp %362 : vector<8x128xf32>
    %cst_120 = arith.constant 1.000000e+00 : f32
    %364 = vector.broadcast %cst_120 : f32 to vector<8x128xf32>
    %365 = arith.addf %364, %363 : vector<8x128xf32>
    %366 = arith.divf %364, %365 : vector<8x128xf32>
    %367 = vector.extract_strided_slice %329 {offsets = [0, 256], sizes = [8, 128], strides = [1, 1]} : vector<8x512xf32> to vector<8x128xf32>
    %368 = math.tanh %367 : vector<8x128xf32>
    %369 = vector.extract_strided_slice %329 {offsets = [0, 384], sizes = [8, 128], strides = [1, 1]} : vector<8x512xf32> to vector<8x128xf32>
    %370 = arith.negf %369 : vector<8x128xf32>
    %371 = math.exp %370 : vector<8x128xf32>
    %cst_121 = arith.constant 1.000000e+00 : f32
    %372 = vector.broadcast %cst_121 : f32 to vector<8x128xf32>
    %373 = arith.addf %372, %371 : vector<8x128xf32>
    %374 = arith.divf %372, %373 : vector<8x128xf32>
    %375 = arith.mulf %366, %308 : vector<8x128xf32>
    %376 = arith.mulf %360, %368 : vector<8x128xf32>
    %377 = arith.addf %375, %376 : vector<8x128xf32>
    %378 = math.tanh %377 : vector<8x128xf32>
    %379 = arith.mulf %374, %378 : vector<8x128xf32>
    %380 = arith.index_cast %c4_i32 : i32 to index
    %c0_122 = arith.constant 0 : index
    %c0_123 = arith.constant 0 : index
    %381 = vector.load %arg20[%380, %c0_122, %c0_123] : memref<8x8x128xf32, #tpu.memory_space<vmem>>, vector<1x8x128xf32>
    %382 = vector.shape_cast %381 : vector<1x8x128xf32> to vector<8x128xf32>
    %383 = vector.shape_cast %354 : vector<8x128xf32> to vector<1x8x128xf32>
    tpu.vector_store %arg20[%380, %c0_122, %c0_123], %383 {strides = array<i32>} : memref<8x8x128xf32, #tpu.memory_space<vmem>>, vector<1x8x128xf32>,
    %384 = arith.index_cast %319 : i32 to index
    %c0_124 = arith.constant 0 : index
    %c0_125 = arith.constant 0 : index
    %385 = vector.load %arg21[%384, %c0_124, %c0_125] : memref<8x8x128xf32, #tpu.memory_space<vmem>>, vector<1x8x128xf32>
    %386 = vector.shape_cast %385 : vector<1x8x128xf32> to vector<8x128xf32>
    %387 = vector.shape_cast %379 : vector<8x128xf32> to vector<1x8x128xf32>
    tpu.vector_store %arg21[%384, %c0_124, %c0_125], %387 {strides = array<i32>} : memref<8x8x128xf32, #tpu.memory_space<vmem>>, vector<1x8x128xf32>,
    %c5_i32 = arith.constant 5 : i32
    %c7_i32_126 = arith.constant 7 : i32
    %388 = arith.subi %c7_i32_126, %c5_i32 : i32
    %389 = arith.index_cast %c5_i32 : i32 to index
    %c0_127 = arith.constant 0 : index
    %c0_128 = arith.constant 0 : index
    %390 = vector.load %arg14[%389, %c0_127, %c0_128] : memref<8x8x512xf32, #tpu.memory_space<vmem>>, vector<1x8x512xf32>
    %391 = vector.shape_cast %390 : vector<1x8x512xf32> to vector<8x512xf32>
    %cst_129 = arith.constant dense<0.000000e+00> : vector<8x512xf32>
    %392 = tpu.matmul %354, %37, %cst_129 {dimension_numbers = #tpu.dot_dimension_numbers<[1], [0], [0], [1], [0, 0, 1, 1], [], []>} : vector<8x128xf32>, vector<128x512xf32>, vector<8x512xf32> -> vector<8x512xf32>
    %393 = arith.addf %391, %392 : vector<8x512xf32>
    %394 = arith.index_cast %388 : i32 to index
    %c0_130 = arith.constant 0 : index
    %c0_131 = arith.constant 0 : index
    %395 = vector.load %arg15[%394, %c0_130, %c0_131] : memref<8x8x512xf32, #tpu.memory_space<vmem>>, vector<1x8x512xf32>
    %396 = vector.shape_cast %395 : vector<1x8x512xf32> to vector<8x512xf32>
    %cst_132 = arith.constant dense<0.000000e+00> : vector<8x512xf32>
    %397 = tpu.matmul %379, %38, %cst_132 {dimension_numbers = #tpu.dot_dimension_numbers<[1], [0], [0], [1], [0, 0, 1, 1], [], []>} : vector<8x128xf32>, vector<128x512xf32>, vector<8x512xf32> -> vector<8x512xf32>
    %398 = arith.addf %396, %397 : vector<8x512xf32>
    %399 = vector.extract_strided_slice %393 {offsets = [0, 0], sizes = [8, 128], strides = [1, 1]} : vector<8x512xf32> to vector<8x128xf32>
    %400 = arith.negf %399 : vector<8x128xf32>
    %401 = math.exp %400 : vector<8x128xf32>
    %cst_133 = arith.constant 1.000000e+00 : f32
    %402 = vector.broadcast %cst_133 : f32 to vector<8x128xf32>
    %403 = arith.addf %402, %401 : vector<8x128xf32>
    %404 = arith.divf %402, %403 : vector<8x128xf32>
    %405 = vector.extract_strided_slice %393 {offsets = [0, 128], sizes = [8, 128], strides = [1, 1]} : vector<8x512xf32> to vector<8x128xf32>
    %406 = arith.negf %405 : vector<8x128xf32>
    %407 = math.exp %406 : vector<8x128xf32>
    %cst_134 = arith.constant 1.000000e+00 : f32
    %408 = vector.broadcast %cst_134 : f32 to vector<8x128xf32>
    %409 = arith.addf %408, %407 : vector<8x128xf32>
    %410 = arith.divf %408, %409 : vector<8x128xf32>
    %411 = vector.extract_strided_slice %393 {offsets = [0, 256], sizes = [8, 128], strides = [1, 1]} : vector<8x512xf32> to vector<8x128xf32>
    %412 = math.tanh %411 : vector<8x128xf32>
    %413 = vector.extract_strided_slice %393 {offsets = [0, 384], sizes = [8, 128], strides = [1, 1]} : vector<8x512xf32> to vector<8x128xf32>
    %414 = arith.negf %413 : vector<8x128xf32>
    %415 = math.exp %414 : vector<8x128xf32>
    %cst_135 = arith.constant 1.000000e+00 : f32
    %416 = vector.broadcast %cst_135 : f32 to vector<8x128xf32>
    %417 = arith.addf %416, %415 : vector<8x128xf32>
    %418 = arith.divf %416, %417 : vector<8x128xf32>
    %419 = arith.mulf %410, %352 : vector<8x128xf32>
    %420 = arith.mulf %404, %412 : vector<8x128xf32>
    %421 = arith.addf %419, %420 : vector<8x128xf32>
    %422 = math.tanh %421 : vector<8x128xf32>
    %423 = arith.mulf %418, %422 : vector<8x128xf32>
    %424 = vector.extract_strided_slice %398 {offsets = [0, 0], sizes = [8, 128], strides = [1, 1]} : vector<8x512xf32> to vector<8x128xf32>
    %425 = arith.negf %424 : vector<8x128xf32>
    %426 = math.exp %425 : vector<8x128xf32>
    %cst_136 = arith.constant 1.000000e+00 : f32
    %427 = vector.broadcast %cst_136 : f32 to vector<8x128xf32>
    %428 = arith.addf %427, %426 : vector<8x128xf32>
    %429 = arith.divf %427, %428 : vector<8x128xf32>
    %430 = vector.extract_strided_slice %398 {offsets = [0, 128], sizes = [8, 128], strides = [1, 1]} : vector<8x512xf32> to vector<8x128xf32>
    %431 = arith.negf %430 : vector<8x128xf32>
    %432 = math.exp %431 : vector<8x128xf32>
    %cst_137 = arith.constant 1.000000e+00 : f32
    %433 = vector.broadcast %cst_137 : f32 to vector<8x128xf32>
    %434 = arith.addf %433, %432 : vector<8x128xf32>
    %435 = arith.divf %433, %434 : vector<8x128xf32>
    %436 = vector.extract_strided_slice %398 {offsets = [0, 256], sizes = [8, 128], strides = [1, 1]} : vector<8x512xf32> to vector<8x128xf32>
    %437 = math.tanh %436 : vector<8x128xf32>
    %438 = vector.extract_strided_slice %398 {offsets = [0, 384], sizes = [8, 128], strides = [1, 1]} : vector<8x512xf32> to vector<8x128xf32>
    %439 = arith.negf %438 : vector<8x128xf32>
    %440 = math.exp %439 : vector<8x128xf32>
    %cst_138 = arith.constant 1.000000e+00 : f32
    %441 = vector.broadcast %cst_138 : f32 to vector<8x128xf32>
    %442 = arith.addf %441, %440 : vector<8x128xf32>
    %443 = arith.divf %441, %442 : vector<8x128xf32>
    %444 = arith.mulf %435, %377 : vector<8x128xf32>
    %445 = arith.mulf %429, %437 : vector<8x128xf32>
    %446 = arith.addf %444, %445 : vector<8x128xf32>
    %447 = math.tanh %446 : vector<8x128xf32>
    %448 = arith.mulf %443, %447 : vector<8x128xf32>
    %449 = arith.index_cast %c5_i32 : i32 to index
    %c0_139 = arith.constant 0 : index
    %c0_140 = arith.constant 0 : index
    %450 = vector.load %arg20[%449, %c0_139, %c0_140] : memref<8x8x128xf32, #tpu.memory_space<vmem>>, vector<1x8x128xf32>
    %451 = vector.shape_cast %450 : vector<1x8x128xf32> to vector<8x128xf32>
    %452 = vector.shape_cast %423 : vector<8x128xf32> to vector<1x8x128xf32>
    tpu.vector_store %arg20[%449, %c0_139, %c0_140], %452 {strides = array<i32>} : memref<8x8x128xf32, #tpu.memory_space<vmem>>, vector<1x8x128xf32>,
    %453 = arith.index_cast %388 : i32 to index
    %c0_141 = arith.constant 0 : index
    %c0_142 = arith.constant 0 : index
    %454 = vector.load %arg21[%453, %c0_141, %c0_142] : memref<8x8x128xf32, #tpu.memory_space<vmem>>, vector<1x8x128xf32>
    %455 = vector.shape_cast %454 : vector<1x8x128xf32> to vector<8x128xf32>
    %456 = vector.shape_cast %448 : vector<8x128xf32> to vector<1x8x128xf32>
    tpu.vector_store %arg21[%453, %c0_141, %c0_142], %456 {strides = array<i32>} : memref<8x8x128xf32, #tpu.memory_space<vmem>>, vector<1x8x128xf32>,
    %c6_i32 = arith.constant 6 : i32
    %c7_i32_143 = arith.constant 7 : i32
    %457 = arith.subi %c7_i32_143, %c6_i32 : i32
    %458 = arith.index_cast %c6_i32 : i32 to index
    %c0_144 = arith.constant 0 : index
    %c0_145 = arith.constant 0 : index
    %459 = vector.load %arg14[%458, %c0_144, %c0_145] : memref<8x8x512xf32, #tpu.memory_space<vmem>>, vector<1x8x512xf32>
    %460 = vector.shape_cast %459 : vector<1x8x512xf32> to vector<8x512xf32>
    %cst_146 = arith.constant dense<0.000000e+00> : vector<8x512xf32>
    %461 = tpu.matmul %423, %37, %cst_146 {dimension_numbers = #tpu.dot_dimension_numbers<[1], [0], [0], [1], [0, 0, 1, 1], [], []>} : vector<8x128xf32>, vector<128x512xf32>, vector<8x512xf32> -> vector<8x512xf32>
    %462 = arith.addf %460, %461 : vector<8x512xf32>
    %463 = arith.index_cast %457 : i32 to index
    %c0_147 = arith.constant 0 : index
    %c0_148 = arith.constant 0 : index
    %464 = vector.load %arg15[%463, %c0_147, %c0_148] : memref<8x8x512xf32, #tpu.memory_space<vmem>>, vector<1x8x512xf32>
    %465 = vector.shape_cast %464 : vector<1x8x512xf32> to vector<8x512xf32>
    %cst_149 = arith.constant dense<0.000000e+00> : vector<8x512xf32>
    %466 = tpu.matmul %448, %38, %cst_149 {dimension_numbers = #tpu.dot_dimension_numbers<[1], [0], [0], [1], [0, 0, 1, 1], [], []>} : vector<8x128xf32>, vector<128x512xf32>, vector<8x512xf32> -> vector<8x512xf32>
    %467 = arith.addf %465, %466 : vector<8x512xf32>
    %468 = vector.extract_strided_slice %462 {offsets = [0, 0], sizes = [8, 128], strides = [1, 1]} : vector<8x512xf32> to vector<8x128xf32>
    %469 = arith.negf %468 : vector<8x128xf32>
    %470 = math.exp %469 : vector<8x128xf32>
    %cst_150 = arith.constant 1.000000e+00 : f32
    %471 = vector.broadcast %cst_150 : f32 to vector<8x128xf32>
    %472 = arith.addf %471, %470 : vector<8x128xf32>
    %473 = arith.divf %471, %472 : vector<8x128xf32>
    %474 = vector.extract_strided_slice %462 {offsets = [0, 128], sizes = [8, 128], strides = [1, 1]} : vector<8x512xf32> to vector<8x128xf32>
    %475 = arith.negf %474 : vector<8x128xf32>
    %476 = math.exp %475 : vector<8x128xf32>
    %cst_151 = arith.constant 1.000000e+00 : f32
    %477 = vector.broadcast %cst_151 : f32 to vector<8x128xf32>
    %478 = arith.addf %477, %476 : vector<8x128xf32>
    %479 = arith.divf %477, %478 : vector<8x128xf32>
    %480 = vector.extract_strided_slice %462 {offsets = [0, 256], sizes = [8, 128], strides = [1, 1]} : vector<8x512xf32> to vector<8x128xf32>
    %481 = math.tanh %480 : vector<8x128xf32>
    %482 = vector.extract_strided_slice %462 {offsets = [0, 384], sizes = [8, 128], strides = [1, 1]} : vector<8x512xf32> to vector<8x128xf32>
    %483 = arith.negf %482 : vector<8x128xf32>
    %484 = math.exp %483 : vector<8x128xf32>
    %cst_152 = arith.constant 1.000000e+00 : f32
    %485 = vector.broadcast %cst_152 : f32 to vector<8x128xf32>
    %486 = arith.addf %485, %484 : vector<8x128xf32>
    %487 = arith.divf %485, %486 : vector<8x128xf32>
    %488 = arith.mulf %479, %421 : vector<8x128xf32>
    %489 = arith.mulf %473, %481 : vector<8x128xf32>
    %490 = arith.addf %488, %489 : vector<8x128xf32>
    %491 = math.tanh %490 : vector<8x128xf32>
    %492 = arith.mulf %487, %491 : vector<8x128xf32>
    %493 = vector.extract_strided_slice %467 {offsets = [0, 0], sizes = [8, 128], strides = [1, 1]} : vector<8x512xf32> to vector<8x128xf32>
    %494 = arith.negf %493 : vector<8x128xf32>
    %495 = math.exp %494 : vector<8x128xf32>
    %cst_153 = arith.constant 1.000000e+00 : f32
    %496 = vector.broadcast %cst_153 : f32 to vector<8x128xf32>
    %497 = arith.addf %496, %495 : vector<8x128xf32>
    %498 = arith.divf %496, %497 : vector<8x128xf32>
    %499 = vector.extract_strided_slice %467 {offsets = [0, 128], sizes = [8, 128], strides = [1, 1]} : vector<8x512xf32> to vector<8x128xf32>
    %500 = arith.negf %499 : vector<8x128xf32>
    %501 = math.exp %500 : vector<8x128xf32>
    %cst_154 = arith.constant 1.000000e+00 : f32
    %502 = vector.broadcast %cst_154 : f32 to vector<8x128xf32>
    %503 = arith.addf %502, %501 : vector<8x128xf32>
    %504 = arith.divf %502, %503 : vector<8x128xf32>
    %505 = vector.extract_strided_slice %467 {offsets = [0, 256], sizes = [8, 128], strides = [1, 1]} : vector<8x512xf32> to vector<8x128xf32>
    %506 = math.tanh %505 : vector<8x128xf32>
    %507 = vector.extract_strided_slice %467 {offsets = [0, 384], sizes = [8, 128], strides = [1, 1]} : vector<8x512xf32> to vector<8x128xf32>
    %508 = arith.negf %507 : vector<8x128xf32>
    %509 = math.exp %508 : vector<8x128xf32>
    %cst_155 = arith.constant 1.000000e+00 : f32
    %510 = vector.broadcast %cst_155 : f32 to vector<8x128xf32>
    %511 = arith.addf %510, %509 : vector<8x128xf32>
    %512 = arith.divf %510, %511 : vector<8x128xf32>
    %513 = arith.mulf %504, %446 : vector<8x128xf32>
    %514 = arith.mulf %498, %506 : vector<8x128xf32>
    %515 = arith.addf %513, %514 : vector<8x128xf32>
    %516 = math.tanh %515 : vector<8x128xf32>
    %517 = arith.mulf %512, %516 : vector<8x128xf32>
    %518 = arith.index_cast %c6_i32 : i32 to index
    %c0_156 = arith.constant 0 : index
    %c0_157 = arith.constant 0 : index
    %519 = vector.load %arg20[%518, %c0_156, %c0_157] : memref<8x8x128xf32, #tpu.memory_space<vmem>>, vector<1x8x128xf32>
    %520 = vector.shape_cast %519 : vector<1x8x128xf32> to vector<8x128xf32>
    %521 = vector.shape_cast %492 : vector<8x128xf32> to vector<1x8x128xf32>
    tpu.vector_store %arg20[%518, %c0_156, %c0_157], %521 {strides = array<i32>} : memref<8x8x128xf32, #tpu.memory_space<vmem>>, vector<1x8x128xf32>,
    %522 = arith.index_cast %457 : i32 to index
    %c0_158 = arith.constant 0 : index
    %c0_159 = arith.constant 0 : index
    %523 = vector.load %arg21[%522, %c0_158, %c0_159] : memref<8x8x128xf32, #tpu.memory_space<vmem>>, vector<1x8x128xf32>
    %524 = vector.shape_cast %523 : vector<1x8x128xf32> to vector<8x128xf32>
    %525 = vector.shape_cast %517 : vector<8x128xf32> to vector<1x8x128xf32>
    tpu.vector_store %arg21[%522, %c0_158, %c0_159], %525 {strides = array<i32>} : memref<8x8x128xf32, #tpu.memory_space<vmem>>, vector<1x8x128xf32>,
    %c7_i32_160 = arith.constant 7 : i32
    %c7_i32_161 = arith.constant 7 : i32
    %526 = arith.subi %c7_i32_161, %c7_i32_160 : i32
    %527 = arith.index_cast %c7_i32_160 : i32 to index
    %c0_162 = arith.constant 0 : index
    %c0_163 = arith.constant 0 : index
    %528 = vector.load %arg14[%527, %c0_162, %c0_163] : memref<8x8x512xf32, #tpu.memory_space<vmem>>, vector<1x8x512xf32>
    %529 = vector.shape_cast %528 : vector<1x8x512xf32> to vector<8x512xf32>
    %cst_164 = arith.constant dense<0.000000e+00> : vector<8x512xf32>
    %530 = tpu.matmul %492, %37, %cst_164 {dimension_numbers = #tpu.dot_dimension_numbers<[1], [0], [0], [1], [0, 0, 1, 1], [], []>} : vector<8x128xf32>, vector<128x512xf32>, vector<8x512xf32> -> vector<8x512xf32>
    %531 = arith.addf %529, %530 : vector<8x512xf32>
    %532 = arith.index_cast %526 : i32 to index
    %c0_165 = arith.constant 0 : index
    %c0_166 = arith.constant 0 : index
    %533 = vector.load %arg15[%532, %c0_165, %c0_166] : memref<8x8x512xf32, #tpu.memory_space<vmem>>, vector<1x8x512xf32>
    %534 = vector.shape_cast %533 : vector<1x8x512xf32> to vector<8x512xf32>
    %cst_167 = arith.constant dense<0.000000e+00> : vector<8x512xf32>
    %535 = tpu.matmul %517, %38, %cst_167 {dimension_numbers = #tpu.dot_dimension_numbers<[1], [0], [0], [1], [0, 0, 1, 1], [], []>} : vector<8x128xf32>, vector<128x512xf32>, vector<8x512xf32> -> vector<8x512xf32>
    %536 = arith.addf %534, %535 : vector<8x512xf32>
    %537 = vector.extract_strided_slice %531 {offsets = [0, 0], sizes = [8, 128], strides = [1, 1]} : vector<8x512xf32> to vector<8x128xf32>
    %538 = arith.negf %537 : vector<8x128xf32>
    %539 = math.exp %538 : vector<8x128xf32>
    %cst_168 = arith.constant 1.000000e+00 : f32
    %540 = vector.broadcast %cst_168 : f32 to vector<8x128xf32>
    %541 = arith.addf %540, %539 : vector<8x128xf32>
    %542 = arith.divf %540, %541 : vector<8x128xf32>
    %543 = vector.extract_strided_slice %531 {offsets = [0, 128], sizes = [8, 128], strides = [1, 1]} : vector<8x512xf32> to vector<8x128xf32>
    %544 = arith.negf %543 : vector<8x128xf32>
    %545 = math.exp %544 : vector<8x128xf32>
    %cst_169 = arith.constant 1.000000e+00 : f32
    %546 = vector.broadcast %cst_169 : f32 to vector<8x128xf32>
    %547 = arith.addf %546, %545 : vector<8x128xf32>
    %548 = arith.divf %546, %547 : vector<8x128xf32>
    %549 = vector.extract_strided_slice %531 {offsets = [0, 256], sizes = [8, 128], strides = [1, 1]} : vector<8x512xf32> to vector<8x128xf32>
    %550 = math.tanh %549 : vector<8x128xf32>
    %551 = vector.extract_strided_slice %531 {offsets = [0, 384], sizes = [8, 128], strides = [1, 1]} : vector<8x512xf32> to vector<8x128xf32>
    %552 = arith.negf %551 : vector<8x128xf32>
    %553 = math.exp %552 : vector<8x128xf32>
    %cst_170 = arith.constant 1.000000e+00 : f32
    %554 = vector.broadcast %cst_170 : f32 to vector<8x128xf32>
    %555 = arith.addf %554, %553 : vector<8x128xf32>
    %556 = arith.divf %554, %555 : vector<8x128xf32>
    %557 = arith.mulf %548, %490 : vector<8x128xf32>
    %558 = arith.mulf %542, %550 : vector<8x128xf32>
    %559 = arith.addf %557, %558 : vector<8x128xf32>
    %560 = math.tanh %559 : vector<8x128xf32>
    %561 = arith.mulf %556, %560 : vector<8x128xf32>
    %562 = vector.extract_strided_slice %536 {offsets = [0, 0], sizes = [8, 128], strides = [1, 1]} : vector<8x512xf32> to vector<8x128xf32>
    %563 = arith.negf %562 : vector<8x128xf32>
    %564 = math.exp %563 : vector<8x128xf32>
    %cst_171 = arith.constant 1.000000e+00 : f32
    %565 = vector.broadcast %cst_171 : f32 to vector<8x128xf32>
    %566 = arith.addf %565, %564 : vector<8x128xf32>
    %567 = arith.divf %565, %566 : vector<8x128xf32>
    %568 = vector.extract_strided_slice %536 {offsets = [0, 128], sizes = [8, 128], strides = [1, 1]} : vector<8x512xf32> to vector<8x128xf32>
    %569 = arith.negf %568 : vector<8x128xf32>
    %570 = math.exp %569 : vector<8x128xf32>
    %cst_172 = arith.constant 1.000000e+00 : f32
    %571 = vector.broadcast %cst_172 : f32 to vector<8x128xf32>
    %572 = arith.addf %571, %570 : vector<8x128xf32>
    %573 = arith.divf %571, %572 : vector<8x128xf32>
    %574 = vector.extract_strided_slice %536 {offsets = [0, 256], sizes = [8, 128], strides = [1, 1]} : vector<8x512xf32> to vector<8x128xf32>
    %575 = math.tanh %574 : vector<8x128xf32>
    %576 = vector.extract_strided_slice %536 {offsets = [0, 384], sizes = [8, 128], strides = [1, 1]} : vector<8x512xf32> to vector<8x128xf32>
    %577 = arith.negf %576 : vector<8x128xf32>
    %578 = math.exp %577 : vector<8x128xf32>
    %cst_173 = arith.constant 1.000000e+00 : f32
    %579 = vector.broadcast %cst_173 : f32 to vector<8x128xf32>
    %580 = arith.addf %579, %578 : vector<8x128xf32>
    %581 = arith.divf %579, %580 : vector<8x128xf32>
    %582 = arith.mulf %573, %515 : vector<8x128xf32>
    %583 = arith.mulf %567, %575 : vector<8x128xf32>
    %584 = arith.addf %582, %583 : vector<8x128xf32>
    %585 = math.tanh %584 : vector<8x128xf32>
    %586 = arith.mulf %581, %585 : vector<8x128xf32>
    %587 = arith.index_cast %c7_i32_160 : i32 to index
    %c0_174 = arith.constant 0 : index
    %c0_175 = arith.constant 0 : index
    %588 = vector.load %arg20[%587, %c0_174, %c0_175] : memref<8x8x128xf32, #tpu.memory_space<vmem>>, vector<1x8x128xf32>
    %589 = vector.shape_cast %588 : vector<1x8x128xf32> to vector<8x128xf32>
    %590 = vector.shape_cast %561 : vector<8x128xf32> to vector<1x8x128xf32>
    tpu.vector_store %arg20[%587, %c0_174, %c0_175], %590 {strides = array<i32>} : memref<8x8x128xf32, #tpu.memory_space<vmem>>, vector<1x8x128xf32>,
    %591 = arith.index_cast %526 : i32 to index
    %c0_176 = arith.constant 0 : index
    %c0_177 = arith.constant 0 : index
    %592 = vector.load %arg21[%591, %c0_176, %c0_177] : memref<8x8x128xf32, #tpu.memory_space<vmem>>, vector<1x8x128xf32>
    %593 = vector.shape_cast %592 : vector<1x8x128xf32> to vector<8x128xf32>
    %594 = vector.shape_cast %586 : vector<8x128xf32> to vector<1x8x128xf32>
    tpu.vector_store %arg21[%591, %c0_176, %c0_177], %594 {strides = array<i32>} : memref<8x8x128xf32, #tpu.memory_space<vmem>>, vector<1x8x128xf32>,
    %c8_i32 = arith.constant 8 : i32
    %c0_178 = arith.constant 0 : index
    %c0_179 = arith.constant 0 : index
    %595 = vector.load %arg16[%c0_178, %c0_179] : memref<8x128xf32, #tpu.memory_space<vmem>>, vector<8x128xf32>
    tpu.vector_store %arg16[%c0_178, %c0_179], %561 {strides = array<i32>} : memref<8x128xf32, #tpu.memory_space<vmem>>, vector<8x128xf32>,
    %c0_180 = arith.constant 0 : index
    %c0_181 = arith.constant 0 : index
    %596 = vector.load %arg17[%c0_180, %c0_181] : memref<8x128xf32, #tpu.memory_space<vmem>>, vector<8x128xf32>
    tpu.vector_store %arg17[%c0_180, %c0_181], %559 {strides = array<i32>} : memref<8x128xf32, #tpu.memory_space<vmem>>, vector<8x128xf32>,
    %c0_182 = arith.constant 0 : index
    %c0_183 = arith.constant 0 : index
    %597 = vector.load %arg18[%c0_182, %c0_183] : memref<8x128xf32, #tpu.memory_space<vmem>>, vector<8x128xf32>
    tpu.vector_store %arg18[%c0_182, %c0_183], %586 {strides = array<i32>} : memref<8x128xf32, #tpu.memory_space<vmem>>, vector<8x128xf32>,
    %c0_184 = arith.constant 0 : index
    %c0_185 = arith.constant 0 : index
    %598 = vector.load %arg19[%c0_184, %c0_185] : memref<8x128xf32, #tpu.memory_space<vmem>>, vector<8x128xf32>
    tpu.vector_store %arg19[%c0_184, %c0_185], %584 {strides = array<i32>} : memref<8x128xf32, #tpu.memory_space<vmem>>, vector<8x128xf32>,
    %c0_186 = arith.constant 0 : index
    %c0_187 = arith.constant 0 : index
    %c0_188 = arith.constant 0 : index
    %599 = vector.load %arg20[%c0_186, %c0_187, %c0_188] : memref<8x8x128xf32, #tpu.memory_space<vmem>>, vector<8x8x128xf32>
    %600 = vector.shape_cast %599 : vector<8x8x128xf32> to vector<64x128xf32>
    %c0_189 = arith.constant 0 : index
    %c0_190 = arith.constant 0 : index
    %c0_191 = arith.constant 0 : index
    %601 = vector.load %arg21[%c0_189, %c0_190, %c0_191] : memref<8x8x128xf32, #tpu.memory_space<vmem>>, vector<8x8x128xf32>
    %602 = vector.shape_cast %601 : vector<8x8x128xf32> to vector<64x128xf32>
    %c0_192 = arith.constant 0 : index
    %c0_193 = arith.constant 0 : index
    %603 = vector.load %arg10[%c0_192, %c0_193] : memref<128x128xf32, #tpu.memory_space<vmem>>, vector<128x128xf32>
    %cst_194 = arith.constant dense<0.000000e+00> : vector<64x128xf32>
    %604 = tpu.matmul %600, %603, %cst_194 {dimension_numbers = #tpu.dot_dimension_numbers<[1], [0], [0], [1], [0, 0, 1, 1], [], []>} : vector<64x128xf32>, vector<128x128xf32>, vector<64x128xf32> -> vector<64x128xf32>
    %c0_195 = arith.constant 0 : index
    %c0_196 = arith.constant 0 : index
    %605 = vector.load %arg11[%c0_195, %c0_196] : memref<128x128xf32, #tpu.memory_space<vmem>>, vector<128x128xf32>
    %cst_197 = arith.constant dense<0.000000e+00> : vector<64x128xf32>
    %606 = tpu.matmul %602, %605, %cst_197 {dimension_numbers = #tpu.dot_dimension_numbers<[1], [0], [0], [1], [0, 0, 1, 1], [], []>} : vector<64x128xf32>, vector<128x128xf32>, vector<64x128xf32> -> vector<64x128xf32>
    %607 = arith.addf %604, %606 : vector<64x128xf32>
    %c0_198 = arith.constant 0 : index
    %c0_199 = arith.constant 0 : index
    %608 = vector.load %arg12[%c0_198, %c0_199] : memref<1x128xf32, #tpu.memory_space<vmem>>, vector<1x128xf32>
    %609 = vector.broadcast %608 : vector<1x128xf32> to vector<64x128xf32>
    %610 = arith.addf %607, %609 : vector<64x128xf32>
    %611 = vector.shape_cast %610 : vector<64x128xf32> to vector<8x8x128xf32>
    %c0_200 = arith.constant 0 : index
    %c0_201 = arith.constant 0 : index
    %c0_202 = arith.constant 0 : index
    %612 = vector.load %arg13[%c0_200, %c0_201, %c0_202] : memref<8x8x128xf32, #tpu.memory_space<vmem>>, vector<8x8x128xf32>
    tpu.vector_store %arg13[%c0_200, %c0_201, %c0_202], %611 {strides = array<i32>} : memref<8x8x128xf32, #tpu.memory_space<vmem>>, vector<8x8x128xf32>,
    return
  }
  func.func @transform_0(%arg0: i32, %arg1: i32) -> (i32, i32, i32) {
    %c0_i32 = arith.constant 0 : i32
    %c0_i32_0 = arith.constant 0 : i32
    return %arg1, %arg0, %c0_i32 : i32, i32, i32
  }
  func.func @transform_1(%arg0: i32, %arg1: i32) -> (i32, i32, i32) {
    %c0_i32 = arith.constant 0 : i32
    %c0_i32_0 = arith.constant 0 : i32
    return %arg1, %arg0, %c0_i32 : i32, i32, i32
  }
  func.func @transform_2(%arg0: i32, %arg1: i32) -> (i32, i32) {
    %c0_i32 = arith.constant 0 : i32
    %c0_i32_0 = arith.constant 0 : i32
    %c0_i32_1 = arith.constant 0 : i32
    return %c0_i32, %c0_i32_0 : i32, i32
  }
  func.func @transform_3(%arg0: i32, %arg1: i32) -> (i32, i32) {
    %c0_i32 = arith.constant 0 : i32
    %c0_i32_0 = arith.constant 0 : i32
    %c0_i32_1 = arith.constant 0 : i32
    return %c0_i32, %c0_i32_0 : i32, i32
  }
  func.func @transform_4(%arg0: i32, %arg1: i32) -> (i32, i32) {
    %c0_i32 = arith.constant 0 : i32
    %c0_i32_0 = arith.constant 0 : i32
    %c0_i32_1 = arith.constant 0 : i32
    return %c0_i32, %c0_i32_0 : i32, i32
  }
  func.func @transform_5(%arg0: i32, %arg1: i32) -> (i32, i32) {
    %c0_i32 = arith.constant 0 : i32
    %c0_i32_0 = arith.constant 0 : i32
    %c0_i32_1 = arith.constant 0 : i32
    return %c0_i32, %c0_i32_0 : i32, i32
  }
  func.func @transform_6(%arg0: i32, %arg1: i32) -> (i32, i32) {
    %c0_i32 = arith.constant 0 : i32
    %c0_i32_0 = arith.constant 0 : i32
    %c0_i32_1 = arith.constant 0 : i32
    return %c0_i32, %c0_i32_0 : i32, i32
  }
  func.func @transform_7(%arg0: i32, %arg1: i32) -> (i32, i32) {
    %c0_i32 = arith.constant 0 : i32
    %c0_i32_0 = arith.constant 0 : i32
    %c0_i32_1 = arith.constant 0 : i32
    return %c0_i32, %c0_i32_0 : i32, i32
  }
  func.func @transform_8(%arg0: i32, %arg1: i32) -> (i32, i32) {
    %c0_i32 = arith.constant 0 : i32
    %c0_i32_0 = arith.constant 0 : i32
    %c0_i32_1 = arith.constant 0 : i32
    return %c0_i32, %c0_i32_0 : i32, i32
  }
  func.func @transform_9(%arg0: i32, %arg1: i32) -> (i32, i32) {
    %c0_i32 = arith.constant 0 : i32
    %c0_i32_0 = arith.constant 0 : i32
    %c0_i32_1 = arith.constant 0 : i32
    return %c0_i32, %c0_i32_0 : i32, i32
  }
  func.func @transform_10(%arg0: i32, %arg1: i32) -> (i32, i32) {
    %c0_i32 = arith.constant 0 : i32
    %c0_i32_0 = arith.constant 0 : i32
    %c0_i32_1 = arith.constant 0 : i32
    return %c0_i32, %c0_i32_0 : i32, i32
  }
  func.func @transform_11(%arg0: i32, %arg1: i32) -> (i32, i32, i32) {
    %c0_i32 = arith.constant 0 : i32
    %c0_i32_0 = arith.constant 0 : i32
    return %arg1, %arg0, %c0_i32 : i32, i32, i32
  }
}

</mosaic_0001>

<llo_original>
// kernel: torch_model_forward.2
$region0: #{torch_model_forward.2}
  #allocation0 [shape = 'u32[]', space=smem, size = 0x4, offset = 0x4, fixed_abs, tag = 'smem constant byte address 0x4 - core index']
  #allocation1 [shape = 'u32[144,128]{1,0:T(1,128)}', space=vmem, size = 0x12000, scoped, tag = 'internal scratch']
  #allocation2 [shape = 'f32[8,8,512]{2,1,0:T(8,128)}', space=vmem, size = 0x20000, scoped, tag = 'scratch operand']
  #allocation3 [shape = 'f32[8,8,512]{2,1,0:T(8,128)}', space=vmem, size = 0x20000, scoped, tag = 'scratch operand']
  #allocation4 [shape = 'f32[8,128]{1,0:T(8,128)}', space=vmem, size = 0x1000, scoped, tag = 'scratch operand']
  #allocation5 [shape = 'f32[8,128]{1,0:T(8,128)}', space=vmem, size = 0x1000, scoped, tag = 'scratch operand']
  #allocation6 [shape = 'f32[8,128]{1,0:T(8,128)}', space=vmem, size = 0x1000, scoped, tag = 'scratch operand']
  #allocation7 [shape = 'f32[8,128]{1,0:T(8,128)}', space=vmem, size = 0x1000, scoped, tag = 'scratch operand']
  %s0 = inlined_call_operand.vmem [shape: f32[8,8,128], index: 0, kind: input, shape index: {}]
  %s1 = inlined_call_operand.vmem [shape: bf16[128,512], index: 1, kind: input, shape index: {}]
  %s2 = inlined_call_operand.vmem [shape: f32[128,512], index: 2, kind: input, shape index: {}]
  %s3 = inlined_call_operand.vmem [shape: f32[1,512], index: 3, kind: input, shape index: {}]
  %s4 = inlined_call_operand.hbm [shape: bf16[128,512], index: 4, kind: input, shape index: {}]
  %s5 = inlined_call_operand.hbm [shape: f32[128,512], index: 5, kind: input, shape index: {}]
  %s6 = inlined_call_operand.vmem [shape: f32[1,512], index: 6, kind: input, shape index: {}]
  %s7 = inlined_call_operand.vmem [shape: f32[8,8,128], index: 7, kind: output, shape index: {0}]
  %s8 = inlined_call_operand.vmem [shape: f32[8,8,128], index: 8, kind: output, shape index: {1}]
  %9 = xla_tuple %s7, %s8
  %s10 = sld [smem:[#allocation0]]
  $region58: #{torch_model_forward.2} parent=0
    _
  %s12 = ssub.s32 1, %s10
  %s13 = scalar_select 0, %s12, %s10
  $region1: #{torch_model_forward.2} parent=0
    #allocation8 [shape = 'u8[131072]{0}', space=vmem, size = 0x20000, scoped, tag = 'input window, operand 4, single buffered']
    #allocation9 [shape = 's32[1]{0}', space=sflag, size = 0x4, scoped, tag = 'scoped memory for torch_model_forward.2']
    #allocation10 [shape = 'u8[262144]{0}', space=vmem, size = 0x40000, scoped, tag = 'input window, operand 5, single buffered']
    #allocation11 [shape = 's32[1]{0}', space=sflag, size = 0x4, scoped, tag = 'scoped memory for torch_model_forward.2']
    %14 = vsyncpa [#allocation9], 0
    %15 = vsyncpa [#allocation11], 0
    // Predicated region
    $region2: #{torch_model_forward.2} parent=1 // pred_check
      _
    $region3: #{torch_model_forward.2} parent=1 // pred_check_branch
      %17 = sbr.rel (0) target = $region5
    $region4: #{torch_model_forward.2} parent=1 // pred_region
      _
    $region5: #{torch_model_forward.2} parent=1 // pred_fallthru
      _
    // Predicated region
    $region6: #{torch_model_forward.2} parent=1 // pred_check
      _
    $region7: #{torch_model_forward.2} parent=1 // pred_check_branch
      %19 = sbr.rel (0) target = $region9
    $region8: #{torch_model_forward.2} parent=1 // pred_region
      _
    $region9: #{torch_model_forward.2} parent=1 // pred_fallthru
      _
    // Predicated region
    $region10: #{torch_model_forward.2} parent=1 // pred_check
      _
    $region11: #{torch_model_forward.2} parent=1 // pred_check_branch
      %21 = sbr.rel (0) target = $region13
    $region12: #{torch_model_forward.2} parent=1 // pred_region
      _
    $region13: #{torch_model_forward.2} parent=1 // pred_fallthru
      _
    // Predicated region
    $region14: #{torch_model_forward.2} parent=1 // pred_check
      _
    $region15: #{torch_model_forward.2} parent=1 // pred_check_branch
      %23 = sbr.rel (0) target = $region17
    $region16: #{torch_model_forward.2} parent=1 // pred_region
      _
    $region17: #{torch_model_forward.2} parent=1 // pred_fallthru
      _
    // Predicated region
    $region18: #{torch_model_forward.2} parent=1 // pred_check
      _
    $region19: #{torch_model_forward.2} parent=1 // pred_check_branch
      %25 = sbr.rel (0) target = $region21
    $region20: #{torch_model_forward.2} parent=1 // pred_region
      %s27 = ssub.s32 4096, 4096
      %28 = vsyncadd [#allocation9], %s27
      %s29 = sshll.u32 [#allocation8], 4
      %s30 = int_to_ptr.vmem [resolvable:$true] %s29
      %35 = dma.hbm_to_vmem [thread:$0]  %s4, 4096, %s30, [#allocation9], 256, 256, 16
    $region21: #{torch_model_forward.2} parent=1 // pred_fallthru
      _
    // Predicated region
    $region22: #{torch_model_forward.2} parent=1 // pred_check
      _
    $region23: #{torch_model_forward.2} parent=1 // pred_check_branch
      %37 = sbr.rel (0) target = $region25
    $region24: #{torch_model_forward.2} parent=1 // pred_region
      %s39 = ssub.s32 8192, 8192
      %40 = vsyncadd [#allocation11], %s39
      %s41 = sshll.u32 [#allocation10], 4
      %s42 = int_to_ptr.vmem [resolvable:$true] %s41
      %47 = dma.hbm_to_vmem [thread:$0]  %s5, 8192, %s42, [#allocation11], 512, 512, 32
    $region25: #{torch_model_forward.2} parent=1 // pred_fallthru
      _
    // Predicated region
    $region26: #{torch_model_forward.2} parent=1 // pred_check
      _
    $region27: #{torch_model_forward.2} parent=1 // pred_check_branch
      %49 = sbr.rel (0) target = $region29
    $region28: #{torch_model_forward.2} parent=1 // pred_region
      _
    $region29: #{torch_model_forward.2} parent=1 // pred_fallthru
      _
    // Predicated region
    $region30: #{torch_model_forward.2} parent=1 // pred_check
      _
    $region31: #{torch_model_forward.2} parent=1 // pred_check_branch
      %51 = sbr.rel (0) target = $region33
    $region32: #{torch_model_forward.2} parent=1 // pred_region
      %52 = dma.done [#allocation9], 4096
    $region33: #{torch_model_forward.2} parent=1 // pred_fallthru
      _
    // Predicated region
    $region34: #{torch_model_forward.2} parent=1 // pred_check
      _
    $region35: #{torch_model_forward.2} parent=1 // pred_check_branch
      %54 = sbr.rel (0) target = $region37
    $region36: #{torch_model_forward.2} parent=1 // pred_region
      %55 = dma.done [#allocation11], 8192
    $region37: #{torch_model_forward.2} parent=1 // pred_fallthru
      _
    %s56 = ssub.s32 0, 0
    %s57 = smul.u32 8, %s56
    %p58 = scmp.lt.s32.totalorder %s57, 7
    %s59 = scalar_select %p58, %s57, 7
    %s60 = smul.addr %s59, 8
    %s61 = scalar_lea.vmem %s8, %s60
    %s62 = ssub.s32 0, 0
    %s63 = smul.u32 8, %s62
    %p64 = scmp.lt.s32.totalorder %s63, 7
    %s65 = scalar_select %p64, %s63, 7
    %s66 = smul.addr %s65, 8
    %s67 = scalar_lea.vmem %s8, %s66
    %s68 = ssub.s32 0, 0
    %s69 = smul.u32 8, %s68
    %p71 = scmp.eq.s32.totalorder 0, 0
    // Predicated region
    $region38: #{torch_model_forward.2} parent=1 // pred_check
      %p72 = pneg %p71
    $region39: #{torch_model_forward.2} parent=1 // pred_check_branch
      %74 = sbr.rel (%p72) target = $region41
    $region40: #{torch_model_forward.2} parent=1 // pred_region
      %75 = vst [vmem:[#allocation4] sm:$0xff] 0.0
      %76 = vst [vmem:[#allocation5] sm:$0xff] 0.0
      %77 = vst [vmem:[#allocation6] sm:$0xff] 0.0
      %78 = vst [vmem:[#allocation7] sm:$0xff] 0.0
    $region41: #{torch_model_forward.2} parent=1 // pred_fallthru
      _
    %v79 = vld [vmem:[%s0] sm:$0xff]
    %v80 = vld [vmem:[%s0 + $0x8] sm:$0xff]
    %v81 = vld [vmem:[%s0 + $0x10] sm:$0xff]
    %v82 = vld [vmem:[%s0 + $0x18] sm:$0xff]
    %v83 = vld [vmem:[%s0 + $0x20] sm:$0xff]
    %v84 = vld [vmem:[%s0 + $0x28] sm:$0xff]
    %v85 = vld [vmem:[%s0 + $0x30] sm:$0xff]
    %v86 = vld [vmem:[%s0 + $0x38] sm:$0xff]
    %v87 = vpack.c.bf16 %v80, %v79
    %v88 = vpack.c.bf16 %v82, %v81
    %v89 = vpack.c.bf16 %v84, %v83
    %v90 = vpack.c.bf16 %v86, %v85
    %v91 = vld [vmem:[%s1] sm:$0xff]
    %v92 = vld [vmem:[%s1 + $0x8] sm:$0xff]
    %v93 = vld [vmem:[%s1 + $0x10] sm:$0xff]
    %v94 = vld [vmem:[%s1 + $0x18] sm:$0xff]
    %v95 = vld [vmem:[%s1 + $0x20] sm:$0xff]
    %v96 = vld [vmem:[%s1 + $0x28] sm:$0xff]
    %v97 = vld [vmem:[%s1 + $0x30] sm:$0xff]
    %v98 = vld [vmem:[%s1 + $0x38] sm:$0xff]
    %v99 = vld [vmem:[%s1 + $0x40] sm:$0xff]
    %v100 = vld [vmem:[%s1 + $0x48] sm:$0xff]
    %v101 = vld [vmem:[%s1 + $0x50] sm:$0xff]
    %v102 = vld [vmem:[%s1 + $0x58] sm:$0xff]
    %v103 = vld [vmem:[%s1 + $0x60] sm:$0xff]
    %v104 = vld [vmem:[%s1 + $0x68] sm:$0xff]
    %v105 = vld [vmem:[%s1 + $0x70] sm:$0xff]
    %v106 = vld [vmem:[%s1 + $0x78] sm:$0xff]
    %v107 = vld [vmem:[%s1 + $0x80] sm:$0xff]
    %v108 = vld [vmem:[%s1 + $0x88] sm:$0xff]
    %v109 = vld [vmem:[%s1 + $0x90] sm:$0xff]
    %v110 = vld [vmem:[%s1 + $0x98] sm:$0xff]
    %v111 = vld [vmem:[%s1 + $0xa0] sm:$0xff]
    %v112 = vld [vmem:[%s1 + $0xa8] sm:$0xff]
    %v113 = vld [vmem:[%s1 + $0xb0] sm:$0xff]
    %v114 = vld [vmem:[%s1 + $0xb8] sm:$0xff]
    %v115 = vld [vmem:[%s1 + $0xc0] sm:$0xff]
    %v116 = vld [vmem:[%s1 + $0xc8] sm:$0xff]
    %v117 = vld [vmem:[%s1 + $0xd0] sm:$0xff]
    %v118 = vld [vmem:[%s1 + $0xd8] sm:$0xff]
    %v119 = vld [vmem:[%s1 + $0xe0] sm:$0xff]
    %v120 = vld [vmem:[%s1 + $0xe8] sm:$0xff]
    %v121 = vld [vmem:[%s1 + $0xf0] sm:$0xff]
    %v122 = vld [vmem:[%s1 + $0xf8] sm:$0xff]
    %v123 = vld [vmem:[%s3] sm:$0xf]
    %v125 = vlaneseq
    %v126 = vshrl.u32 %v125, 7
    %v127 = vsub.s32 0, %v126
    %v128 = vrot.slane %v123, %v127
    %v129 = vlaneseq
    %v130 = vshrl.u32 %v129, 7
    %v131 = vsub.s32 1, %v130
    %v132 = vrot.slane %v123, %v131
    %v133 = vlaneseq
    %v134 = vshrl.u32 %v133, 7
    %v135 = vsub.s32 2, %v134
    %v136 = vrot.slane %v123, %v135
    %v137 = vlaneseq
    %v138 = vshrl.u32 %v137, 7
    %v139 = vsub.s32 3, %v138
    %v140 = vrot.slane %v123, %v139
    %v177 = vunpack.c.l.b16 %v91
    %v178 = vunpack.c.h.b16 %v91
    %v179 = vunpack.c.l.b16 %v92
    %v180 = vunpack.c.h.b16 %v92
    %v181 = vunpack.c.l.b16 %v93
    %v182 = vunpack.c.h.b16 %v93
    %v183 = vunpack.c.l.b16 %v94
    %v184 = vunpack.c.h.b16 %v94
    %v185 = vunpack.c.l.b16 %v95
    %v186 = vunpack.c.h.b16 %v95
    %v187 = vunpack.c.l.b16 %v96
    %v188 = vunpack.c.h.b16 %v96
    %v189 = vunpack.c.l.b16 %v97
    %v190 = vunpack.c.h.b16 %v97
    %v191 = vunpack.c.l.b16 %v98
    %v192 = vunpack.c.h.b16 %v98
    %v193 = vunpack.c.l.b16 %v99
    %v194 = vunpack.c.h.b16 %v99
    %v195 = vunpack.c.l.b16 %v100
    %v196 = vunpack.c.h.b16 %v100
    %v197 = vunpack.c.l.b16 %v101
    %v198 = vunpack.c.h.b16 %v101
    %v199 = vunpack.c.l.b16 %v102
    %v200 = vunpack.c.h.b16 %v102
    %v201 = vunpack.c.l.b16 %v103
    %v202 = vunpack.c.h.b16 %v103
    %v203 = vunpack.c.l.b16 %v104
    %v204 = vunpack.c.h.b16 %v104
    %v205 = vunpack.c.l.b16 %v105
    %v206 = vunpack.c.h.b16 %v105
    %v207 = vunpack.c.l.b16 %v106
    %v208 = vunpack.c.h.b16 %v106
    %v209 = vunpack.c.l.b16 %v107
    %v210 = vunpack.c.h.b16 %v107
    %v211 = vunpack.c.l.b16 %v108
    %v212 = vunpack.c.h.b16 %v108
    %v213 = vunpack.c.l.b16 %v109
    %v214 = vunpack.c.h.b16 %v109
    %v215 = vunpack.c.l.b16 %v110
    %v216 = vunpack.c.h.b16 %v110
    %v217 = vunpack.c.l.b16 %v111
    %v218 = vunpack.c.h.b16 %v111
    %v219 = vunpack.c.l.b16 %v112
    %v220 = vunpack.c.h.b16 %v112
    %v221 = vunpack.c.l.b16 %v113
    %v222 = vunpack.c.h.b16 %v113
    %v223 = vunpack.c.l.b16 %v114
    %v224 = vunpack.c.h.b16 %v114
    %v225 = vunpack.c.l.b16 %v115
    %v226 = vunpack.c.h.b16 %v115
    %v227 = vunpack.c.l.b16 %v116
    %v228 = vunpack.c.h.b16 %v116
    %v229 = vunpack.c.l.b16 %v117
    %v230 = vunpack.c.h.b16 %v117
    %v231 = vunpack.c.l.b16 %v118
    %v232 = vunpack.c.h.b16 %v118
    %v233 = vunpack.c.l.b16 %v119
    %v234 = vunpack.c.h.b16 %v119
    %v235 = vunpack.c.l.b16 %v120
    %v236 = vunpack.c.h.b16 %v120
    %v237 = vunpack.c.l.b16 %v121
    %v238 = vunpack.c.h.b16 %v121
    %v239 = vunpack.c.l.b16 %v122
    %v240 = vunpack.c.h.b16 %v122
    %v241 = vpack.c.b16 %v181, %v177
    %v242 = vpack.c.b16 %v182, %v178
    %v243 = vpack.c.b16 %v183, %v179
    %v244 = vpack.c.b16 %v184, %v180
    %v245 = vpack.c.b16 %v189, %v185
    %v246 = vpack.c.b16 %v190, %v186
    %v247 = vpack.c.b16 %v191, %v187
    %v248 = vpack.c.b16 %v192, %v188
    %v249 = vpack.c.b16 %v197, %v193
    %v250 = vpack.c.b16 %v198, %v194
    %v251 = vpack.c.b16 %v199, %v195
    %v252 = vpack.c.b16 %v200, %v196
    %v253 = vpack.c.b16 %v205, %v201
    %v254 = vpack.c.b16 %v206, %v202
    %v255 = vpack.c.b16 %v207, %v203
    %v256 = vpack.c.b16 %v208, %v204
    %v257 = vpack.c.b16 %v213, %v209
    %v258 = vpack.c.b16 %v214, %v210
    %v259 = vpack.c.b16 %v215, %v211
    %v260 = vpack.c.b16 %v216, %v212
    %v261 = vpack.c.b16 %v221, %v217
    %v262 = vpack.c.b16 %v222, %v218
    %v263 = vpack.c.b16 %v223, %v219
    %v264 = vpack.c.b16 %v224, %v220
    %v265 = vpack.c.b16 %v229, %v225
    %v266 = vpack.c.b16 %v230, %v226
    %v267 = vpack.c.b16 %v231, %v227
    %v268 = vpack.c.b16 %v232, %v228
    %v269 = vpack.c.b16 %v237, %v233
    %v270 = vpack.c.b16 %v238, %v234
    %v271 = vpack.c.b16 %v239, %v235
    %v272 = vpack.c.b16 %v240, %v236
    %305 = vmatprep.subr.bf16.mxu0 %v242
    %306 = vmatpush1.bf16.msra.mxu0 %v241
    %307 = vmatprep.subr.bf16.mxu0 %v246
    %308 = vmatpush1.bf16.msra.mxu0 %v245
    %309 = vmatprep.subr.bf16.mxu0 %v250
    %310 = vmatpush1.bf16.msra.mxu0 %v249
    %311 = vmatprep.subr.bf16.mxu0 %v254
    %312 = vmatpush1.bf16.msra.mxu0 %v253
    %313 = vmatprep.subr.bf16.mxu0 %v258
    %314 = vmatpush1.bf16.msra.mxu0 %v257
    %315 = vmatprep.subr.bf16.mxu0 %v262
    %316 = vmatpush1.bf16.msra.mxu0 %v261
    %317 = vmatprep.subr.bf16.mxu0 %v266
    %318 = vmatpush1.bf16.msra.mxu0 %v265
    %319 = vmatprep.subr.bf16.mxu0 %v270
    %320 = vmatpush1.bf16.msra.mxu0 %v269
    %321 = vmatprep.subr.bf16.mxu0 0
    %322 = vmatpush1.bf16.msra.mxu0 0
    %323 = vmatprep.subr.bf16.mxu0 0
    %324 = vmatpush1.bf16.msra.mxu0 0
    %325 = vmatprep.subr.bf16.mxu0 0
    %326 = vmatpush1.bf16.msra.mxu0 0
    %327 = vmatprep.subr.bf16.mxu0 0
    %328 = vmatpush1.bf16.msra.mxu0 0
    %329 = vmatprep.subr.bf16.mxu0 0
    %330 = vmatpush1.bf16.msra.mxu0 0
    %331 = vmatprep.subr.bf16.mxu0 0
    %332 = vmatpush1.bf16.msra.mxu0 0
    %333 = vmatprep.subr.bf16.mxu0 0
    %334 = vmatpush1.bf16.msra.mxu0 0
    %335 = vmatprep.subr.bf16.mxu0 0
    %336 = vmatpush1.bf16.msra.mxu0 0
    %337 = vmatprep.mubr.bf16.mxu0 0
    %338 = vmatmul.mubr.bf16.gmra.mrb[0].mxu0 %v87
    %v339 = vpop.f32.mrb[0].mxu0
    %v340 = vadd.f32 %v128, %v339
    %v341 = vpop.f32.mrb[0].mxu0
    %v342 = vadd.f32 %v132, %v341
    %v343 = vpop.f32.mrb[0].mxu0
    %v344 = vadd.f32 %v128, %v343
    %v345 = vpop.f32.mrb[0].mxu0
    %v346 = vadd.f32 %v132, %v345
    %347 = vmatprep.mubr.bf16.mxu0 0
    %348 = vmatmul.mubr.bf16.gmra.mrb[0].mxu0 %v88
    %v349 = vpop.f32.mrb[0].mxu0
    %v350 = vadd.f32 %v128, %v349
    %v351 = vpop.f32.mrb[0].mxu0
    %v352 = vadd.f32 %v132, %v351
    %v353 = vpop.f32.mrb[0].mxu0
    %v354 = vadd.f32 %v128, %v353
    %v355 = vpop.f32.mrb[0].mxu0
    %v356 = vadd.f32 %v132, %v355
    %357 = vmatprep.mubr.bf16.mxu0 0
    %358 = vmatmul.mubr.bf16.gmra.mrb[0].mxu0 %v89
    %v359 = vpop.f32.mrb[0].mxu0
    %v360 = vadd.f32 %v128, %v359
    %v361 = vpop.f32.mrb[0].mxu0
    %v362 = vadd.f32 %v132, %v361
    %v363 = vpop.f32.mrb[0].mxu0
    %v364 = vadd.f32 %v128, %v363
    %v365 = vpop.f32.mrb[0].mxu0
    %v366 = vadd.f32 %v132, %v365
    %367 = vmatprep.mubr.bf16.mxu0 0
    %368 = vmatmul.mubr.bf16.gmra.mrb[0].mxu0 %v90
    %v369 = vpop.f32.mrb[0].mxu0
    %v370 = vadd.f32 %v128, %v369
    %v371 = vpop.f32.mrb[0].mxu0
    %v372 = vadd.f32 %v132, %v371
    %v373 = vpop.f32.mrb[0].mxu0
    %v374 = vadd.f32 %v128, %v373
    %v375 = vpop.f32.mrb[0].mxu0
    %v376 = vadd.f32 %v132, %v375
    %377 = vdwg.mxu0
    %378 = vmatprep.subr.bf16.mxu0 %v244
    %379 = vmatpush1.bf16.msra.mxu0 %v243
    %380 = vmatprep.subr.bf16.mxu0 %v248
    %381 = vmatpush1.bf16.msra.mxu0 %v247
    %382 = vmatprep.subr.bf16.mxu0 %v252
    %383 = vmatpush1.bf16.msra.mxu0 %v251
    %384 = vmatprep.subr.bf16.mxu0 %v256
    %385 = vmatpush1.bf16.msra.mxu0 %v255
    %386 = vmatprep.subr.bf16.mxu0 %v260
    %387 = vmatpush1.bf16.msra.mxu0 %v259
    %388 = vmatprep.subr.bf16.mxu0 %v264
    %389 = vmatpush1.bf16.msra.mxu0 %v263
    %390 = vmatprep.subr.bf16.mxu0 %v268
    %391 = vmatpush1.bf16.msra.mxu0 %v267
    %392 = vmatprep.subr.bf16.mxu0 %v272
    %393 = vmatpush1.bf16.msra.mxu0 %v271
    %394 = vmatprep.subr.bf16.mxu0 0
    %395 = vmatpush1.bf16.msra.mxu0 0
    %396 = vmatprep.subr.bf16.mxu0 0
    %397 = vmatpush1.bf16.msra.mxu0 0
    %398 = vmatprep.subr.bf16.mxu0 0
    %399 = vmatpush1.bf16.msra.mxu0 0
    %400 = vmatprep.subr.bf16.mxu0 0
    %401 = vmatpush1.bf16.msra.mxu0 0
    %402 = vmatprep.subr.bf16.mxu0 0
    %403 = vmatpush1.bf16.msra.mxu0 0
    %404 = vmatprep.subr.bf16.mxu0 0
    %405 = vmatpush1.bf16.msra.mxu0 0
    %406 = vmatprep.subr.bf16.mxu0 0
    %407 = vmatpush1.bf16.msra.mxu0 0
    %408 = vmatprep.subr.bf16.mxu0 0
    %409 = vmatpush1.bf16.msra.mxu0 0
    %410 = vmatprep.mubr.bf16.mxu0 0
    %411 = vmatmul.mubr.bf16.gmra.mrb[0].mxu0 %v87
    %v412 = vpop.f32.mrb[0].mxu0
    %v413 = vadd.f32 %v136, %v412
    %v414 = vpop.f32.mrb[0].mxu0
    %v415 = vadd.f32 %v140, %v414
    %v416 = vpop.f32.mrb[0].mxu0
    %v417 = vadd.f32 %v136, %v416
    %v418 = vpop.f32.mrb[0].mxu0
    %v419 = vadd.f32 %v140, %v418
    %420 = vmatprep.mubr.bf16.mxu0 0
    %421 = vmatmul.mubr.bf16.gmra.mrb[0].mxu0 %v88
    %v422 = vpop.f32.mrb[0].mxu0
    %v423 = vadd.f32 %v136, %v422
    %v424 = vpop.f32.mrb[0].mxu0
    %v425 = vadd.f32 %v140, %v424
    %v426 = vpop.f32.mrb[0].mxu0
    %v427 = vadd.f32 %v136, %v426
    %v428 = vpop.f32.mrb[0].mxu0
    %v429 = vadd.f32 %v140, %v428
    %430 = vmatprep.mubr.bf16.mxu0 0
    %431 = vmatmul.mubr.bf16.gmra.mrb[0].mxu0 %v89
    %v432 = vpop.f32.mrb[0].mxu0
    %v433 = vadd.f32 %v136, %v432
    %v434 = vpop.f32.mrb[0].mxu0
    %v435 = vadd.f32 %v140, %v434
    %v436 = vpop.f32.mrb[0].mxu0
    %v437 = vadd.f32 %v136, %v436
    %v438 = vpop.f32.mrb[0].mxu0
    %v439 = vadd.f32 %v140, %v438
    %440 = vmatprep.mubr.bf16.mxu0 0
    %441 = vmatmul.mubr.bf16.gmra.mrb[0].mxu0 %v90
    %v442 = vpop.f32.mrb[0].mxu0
    %v443 = vadd.f32 %v136, %v442
    %v444 = vpop.f32.mrb[0].mxu0
    %v445 = vadd.f32 %v140, %v444
    %v446 = vpop.f32.mrb[0].mxu0
    %v447 = vadd.f32 %v136, %v446
    %v448 = vpop.f32.mrb[0].mxu0
    %v449 = vadd.f32 %v140, %v448
    %450 = vdwg.mxu0
    %451 = vst [vmem:[#allocation2] sm:$0xff] %v340
    %452 = vst [vmem:[#allocation2 + $0x8] sm:$0xff] %v342
    %453 = vst [vmem:[#allocation2 + $0x10] sm:$0xff] %v413
    %454 = vst [vmem:[#allocation2 + $0x18] sm:$0xff] %v415
    %455 = vst [vmem:[#allocation2 + $0x20] sm:$0xff] %v344
    %456 = vst [vmem:[#allocation2 + $0x28] sm:$0xff] %v346
    %457 = vst [vmem:[#allocation2 + $0x30] sm:$0xff] %v417
    %458 = vst [vmem:[#allocation2 + $0x38] sm:$0xff] %v419
    %459 = vst [vmem:[#allocation2 + $0x40] sm:$0xff] %v350
    %460 = vst [vmem:[#allocation2 + $0x48] sm:$0xff] %v352
    %461 = vst [vmem:[#allocation2 + $0x50] sm:$0xff] %v423
    %462 = vst [vmem:[#allocation2 + $0x58] sm:$0xff] %v425
    %463 = vst [vmem:[#allocation2 + $0x60] sm:$0xff] %v354
    %464 = vst [vmem:[#allocation2 + $0x68] sm:$0xff] %v356
    %465 = vst [vmem:[#allocation2 + $0x70] sm:$0xff] %v427
    %466 = vst [vmem:[#allocation2 + $0x78] sm:$0xff] %v429
    %467 = vst [vmem:[#allocation2 + $0x80] sm:$0xff] %v360
    %468 = vst [vmem:[#allocation2 + $0x88] sm:$0xff] %v362
    %469 = vst [vmem:[#allocation2 + $0x90] sm:$0xff] %v433
    %470 = vst [vmem:[#allocation2 + $0x98] sm:$0xff] %v435
    %471 = vst [vmem:[#allocation2 + $0xa0] sm:$0xff] %v364
    %472 = vst [vmem:[#allocation2 + $0xa8] sm:$0xff] %v366
    %473 = vst [vmem:[#allocation2 + $0xb0] sm:$0xff] %v437
    %474 = vst [vmem:[#allocation2 + $0xb8] sm:$0xff] %v439
    %475 = vst [vmem:[#allocation2 + $0xc0] sm:$0xff] %v370
    %476 = vst [vmem:[#allocation2 + $0xc8] sm:$0xff] %v372
    %477 = vst [vmem:[#allocation2 + $0xd0] sm:$0xff] %v443
    %478 = vst [vmem:[#allocation2 + $0xd8] sm:$0xff] %v445
    %479 = vst [vmem:[#allocation2 + $0xe0] sm:$0xff] %v374
    %480 = vst [vmem:[#allocation2 + $0xe8] sm:$0xff] %v376
    %481 = vst [vmem:[#allocation2 + $0xf0] sm:$0xff] %v447
    %482 = vst [vmem:[#allocation2 + $0xf8] sm:$0xff] %v449
    %v483 = vld [vmem:[%s0] sm:$0xff]
    %v484 = vld [vmem:[%s0 + $0x8] sm:$0xff]
    %v485 = vld [vmem:[%s0 + $0x10] sm:$0xff]
    %v486 = vld [vmem:[%s0 + $0x18] sm:$0xff]
    %v487 = vld [vmem:[%s0 + $0x20] sm:$0xff]
    %v488 = vld [vmem:[%s0 + $0x28] sm:$0xff]
    %v489 = vld [vmem:[%s0 + $0x30] sm:$0xff]
    %v490 = vld [vmem:[%s0 + $0x38] sm:$0xff]
    %v491 = vpack.c.bf16 %v484, %v483
    %v492 = vpack.c.bf16 %v486, %v485
    %v493 = vpack.c.bf16 %v488, %v487
    %v494 = vpack.c.bf16 %v490, %v489
    %v495 = vld [vmem:[#allocation8] sm:$0xff]
    %v496 = vld [vmem:[#allocation8 + $0x8] sm:$0xff]
    %v497 = vld [vmem:[#allocation8 + $0x10] sm:$0xff]
    %v498 = vld [vmem:[#allocation8 + $0x18] sm:$0xff]
    %v499 = vld [vmem:[#allocation8 + $0x20] sm:$0xff]
    %v500 = vld [vmem:[#allocation8 + $0x28] sm:$0xff]
    %v501 = vld [vmem:[#allocation8 + $0x30] sm:$0xff]
    %v502 = vld [vmem:[#allocation8 + $0x38] sm:$0xff]
    %v503 = vld [vmem:[#allocation8 + $0x40] sm:$0xff]
    %v504 = vld [vmem:[#allocation8 + $0x48] sm:$0xff]
    %v505 = vld [vmem:[#allocation8 + $0x50] sm:$0xff]
    %v506 = vld [vmem:[#allocation8 + $0x58] sm:$0xff]
    %v507 = vld [vmem:[#allocation8 + $0x60] sm:$0xff]
    %v508 = vld [vmem:[#allocation8 + $0x68] sm:$0xff]
    %v509 = vld [vmem:[#allocation8 + $0x70] sm:$0xff]
    %v510 = vld [vmem:[#allocation8 + $0x78] sm:$0xff]
    %v511 = vld [vmem:[#allocation8 + $0x80] sm:$0xff]
    %v512 = vld [vmem:[#allocation8 + $0x88] sm:$0xff]
    %v513 = vld [vmem:[#allocation8 + $0x90] sm:$0xff]
    %v514 = vld [vmem:[#allocation8 + $0x98] sm:$0xff]
    %v515 = vld [vmem:[#allocation8 + $0xa0] sm:$0xff]
    %v516 = vld [vmem:[#allocation8 + $0xa8] sm:$0xff]
    %v517 = vld [vmem:[#allocation8 + $0xb0] sm:$0xff]
    %v518 = vld [vmem:[#allocation8 + $0xb8] sm:$0xff]
    %v519 = vld [vmem:[#allocation8 + $0xc0] sm:$0xff]
    %v520 = vld [vmem:[#allocation8 + $0xc8] sm:$0xff]
    %v521 = vld [vmem:[#allocation8 + $0xd0] sm:$0xff]
    %v522 = vld [vmem:[#allocation8 + $0xd8] sm:$0xff]
    %v523 = vld [vmem:[#allocation8 + $0xe0] sm:$0xff]
    %v524 = vld [vmem:[#allocation8 + $0xe8] sm:$0xff]
    %v525 = vld [vmem:[#allocation8 + $0xf0] sm:$0xff]
    %v526 = vld [vmem:[#allocation8 + $0xf8] sm:$0xff]
    %v527 = vld [vmem:[%s6] sm:$0xf]
    %v529 = vlaneseq
    %v530 = vshrl.u32 %v529, 7
    %v531 = vsub.s32 0, %v530
    %v532 = vrot.slane %v527, %v531
    %v533 = vlaneseq
    %v534 = vshrl.u32 %v533, 7
    %v535 = vsub.s32 1, %v534
    %v536 = vrot.slane %v527, %v535
    %v537 = vlaneseq
    %v538 = vshrl.u32 %v537, 7
    %v539 = vsub.s32 2, %v538
    %v540 = vrot.slane %v527, %v539
    %v541 = vlaneseq
    %v542 = vshrl.u32 %v541, 7
    %v543 = vsub.s32 3, %v542
    %v544 = vrot.slane %v527, %v543
    %v581 = vunpack.c.l.b16 %v495
    %v582 = vunpack.c.h.b16 %v495
    %v583 = vunpack.c.l.b16 %v496
    %v584 = vunpack.c.h.b16 %v496
    %v585 = vunpack.c.l.b16 %v497
    %v586 = vunpack.c.h.b16 %v497
    %v587 = vunpack.c.l.b16 %v498
    %v588 = vunpack.c.h.b16 %v498
    %v589 = vunpack.c.l.b16 %v499
    %v590 = vunpack.c.h.b16 %v499
    %v591 = vunpack.c.l.b16 %v500
    %v592 = vunpack.c.h.b16 %v500
    %v593 = vunpack.c.l.b16 %v501
    %v594 = vunpack.c.h.b16 %v501
    %v595 = vunpack.c.l.b16 %v502
    %v596 = vunpack.c.h.b16 %v502
    %v597 = vunpack.c.l.b16 %v503
    %v598 = vunpack.c.h.b16 %v503
    %v599 = vunpack.c.l.b16 %v504
    %v600 = vunpack.c.h.b16 %v504
    %v601 = vunpack.c.l.b16 %v505
    %v602 = vunpack.c.h.b16 %v505
    %v603 = vunpack.c.l.b16 %v506
    %v604 = vunpack.c.h.b16 %v506
    %v605 = vunpack.c.l.b16 %v507
    %v606 = vunpack.c.h.b16 %v507
    %v607 = vunpack.c.l.b16 %v508
    %v608 = vunpack.c.h.b16 %v508
    %v609 = vunpack.c.l.b16 %v509
    %v610 = vunpack.c.h.b16 %v509
    %v611 = vunpack.c.l.b16 %v510
    %v612 = vunpack.c.h.b16 %v510
    %v613 = vunpack.c.l.b16 %v511
    %v614 = vunpack.c.h.b16 %v511
    %v615 = vunpack.c.l.b16 %v512
    %v616 = vunpack.c.h.b16 %v512
    %v617 = vunpack.c.l.b16 %v513
    %v618 = vunpack.c.h.b16 %v513
    %v619 = vunpack.c.l.b16 %v514
    %v620 = vunpack.c.h.b16 %v514
    %v621 = vunpack.c.l.b16 %v515
    %v622 = vunpack.c.h.b16 %v515
    %v623 = vunpack.c.l.b16 %v516
    %v624 = vunpack.c.h.b16 %v516
    %v625 = vunpack.c.l.b16 %v517
    %v626 = vunpack.c.h.b16 %v517
    %v627 = vunpack.c.l.b16 %v518
    %v628 = vunpack.c.h.b16 %v518
    %v629 = vunpack.c.l.b16 %v519
    %v630 = vunpack.c.h.b16 %v519
    %v631 = vunpack.c.l.b16 %v520
    %v632 = vunpack.c.h.b16 %v520
    %v633 = vunpack.c.l.b16 %v521
    %v634 = vunpack.c.h.b16 %v521
    %v635 = vunpack.c.l.b16 %v522
    %v636 = vunpack.c.h.b16 %v522
    %v637 = vunpack.c.l.b16 %v523
    %v638 = vunpack.c.h.b16 %v523
    %v639 = vunpack.c.l.b16 %v524
    %v640 = vunpack.c.h.b16 %v524
    %v641 = vunpack.c.l.b16 %v525
    %v642 = vunpack.c.h.b16 %v525
    %v643 = vunpack.c.l.b16 %v526
    %v644 = vunpack.c.h.b16 %v526
    %v645 = vpack.c.b16 %v585, %v581
    %v646 = vpack.c.b16 %v586, %v582
    %v647 = vpack.c.b16 %v587, %v583
    %v648 = vpack.c.b16 %v588, %v584
    %v649 = vpack.c.b16 %v593, %v589
    %v650 = vpack.c.b16 %v594, %v590
    %v651 = vpack.c.b16 %v595, %v591
    %v652 = vpack.c.b16 %v596, %v592
    %v653 = vpack.c.b16 %v601, %v597
    %v654 = vpack.c.b16 %v602, %v598
    %v655 = vpack.c.b16 %v603, %v599
    %v656 = vpack.c.b16 %v604, %v600
    %v657 = vpack.c.b16 %v609, %v605
    %v658 = vpack.c.b16 %v610, %v606
    %v659 = vpack.c.b16 %v611, %v607
    %v660 = vpack.c.b16 %v612, %v608
    %v661 = vpack.c.b16 %v617, %v613
    %v662 = vpack.c.b16 %v618, %v614
    %v663 = vpack.c.b16 %v619, %v615
    %v664 = vpack.c.b16 %v620, %v616
    %v665 = vpack.c.b16 %v625, %v621
    %v666 = vpack.c.b16 %v626, %v622
    %v667 = vpack.c.b16 %v627, %v623
    %v668 = vpack.c.b16 %v628, %v624
    %v669 = vpack.c.b16 %v633, %v629
    %v670 = vpack.c.b16 %v634, %v630
    %v671 = vpack.c.b16 %v635, %v631
    %v672 = vpack.c.b16 %v636, %v632
    %v673 = vpack.c.b16 %v641, %v637
    %v674 = vpack.c.b16 %v642, %v638
    %v675 = vpack.c.b16 %v643, %v639
    %v676 = vpack.c.b16 %v644, %v640
    %709 = vmatprep.subr.bf16.mxu0 %v646
    %710 = vmatpush1.bf16.msra.mxu0 %v645
    %711 = vmatprep.subr.bf16.mxu0 %v650
    %712 = vmatpush1.bf16.msra.mxu0 %v649
    %713 = vmatprep.subr.bf16.mxu0 %v654
    %714 = vmatpush1.bf16.msra.mxu0 %v653
    %715 = vmatprep.subr.bf16.mxu0 %v658
    %716 = vmatpush1.bf16.msra.mxu0 %v657
    %717 = vmatprep.subr.bf16.mxu0 %v662
    %718 = vmatpush1.bf16.msra.mxu0 %v661
    %719 = vmatprep.subr.bf16.mxu0 %v666
    %720 = vmatpush1.bf16.msra.mxu0 %v665
    %721 = vmatprep.subr.bf16.mxu0 %v670
    %722 = vmatpush1.bf16.msra.mxu0 %v669
    %723 = vmatprep.subr.bf16.mxu0 %v674
    %724 = vmatpush1.bf16.msra.mxu0 %v673
    %725 = vmatprep.subr.bf16.mxu0 0
    %726 = vmatpush1.bf16.msra.mxu0 0
    %727 = vmatprep.subr.bf16.mxu0 0
    %728 = vmatpush1.bf16.msra.mxu0 0
    %729 = vmatprep.subr.bf16.mxu0 0
    %730 = vmatpush1.bf16.msra.mxu0 0
    %731 = vmatprep.subr.bf16.mxu0 0
    %732 = vmatpush1.bf16.msra.mxu0 0
    %733 = vmatprep.subr.bf16.mxu0 0
    %734 = vmatpush1.bf16.msra.mxu0 0
    %735 = vmatprep.subr.bf16.mxu0 0
    %736 = vmatpush1.bf16.msra.mxu0 0
    %737 = vmatprep.subr.bf16.mxu0 0
    %738 = vmatpush1.bf16.msra.mxu0 0
    %739 = vmatprep.subr.bf16.mxu0 0
    %740 = vmatpush1.bf16.msra.mxu0 0
    %741 = vmatprep.mubr.bf16.mxu0 0
    %742 = vmatmul.mubr.bf16.gmra.mrb[0].mxu0 %v491
    %v743 = vpop.f32.mrb[0].mxu0
    %v744 = vadd.f32 %v532, %v743
    %v745 = vpop.f32.mrb[0].mxu0
    %v746 = vadd.f32 %v536, %v745
    %v747 = vpop.f32.mrb[0].mxu0
    %v748 = vadd.f32 %v532, %v747
    %v749 = vpop.f32.mrb[0].mxu0
    %v750 = vadd.f32 %v536, %v749
    %751 = vmatprep.mubr.bf16.mxu0 0
    %752 = vmatmul.mubr.bf16.gmra.mrb[0].mxu0 %v492
    %v753 = vpop.f32.mrb[0].mxu0
    %v754 = vadd.f32 %v532, %v753
    %v755 = vpop.f32.mrb[0].mxu0
    %v756 = vadd.f32 %v536, %v755
    %v757 = vpop.f32.mrb[0].mxu0
    %v758 = vadd.f32 %v532, %v757
    %v759 = vpop.f32.mrb[0].mxu0
    %v760 = vadd.f32 %v536, %v759
    %761 = vmatprep.mubr.bf16.mxu0 0
    %762 = vmatmul.mubr.bf16.gmra.mrb[0].mxu0 %v493
    %v763 = vpop.f32.mrb[0].mxu0
    %v764 = vadd.f32 %v532, %v763
    %v765 = vpop.f32.mrb[0].mxu0
    %v766 = vadd.f32 %v536, %v765
    %v767 = vpop.f32.mrb[0].mxu0
    %v768 = vadd.f32 %v532, %v767
    %v769 = vpop.f32.mrb[0].mxu0
    %v770 = vadd.f32 %v536, %v769
    %771 = vmatprep.mubr.bf16.mxu0 0
    %772 = vmatmul.mubr.bf16.gmra.mrb[0].mxu0 %v494
    %v773 = vpop.f32.mrb[0].mxu0
    %v774 = vadd.f32 %v532, %v773
    %v775 = vpop.f32.mrb[0].mxu0
    %v776 = vadd.f32 %v536, %v775
    %v777 = vpop.f32.mrb[0].mxu0
    %v778 = vadd.f32 %v532, %v777
    %v779 = vpop.f32.mrb[0].mxu0
    %v780 = vadd.f32 %v536, %v779
    %781 = vdwg.mxu0
    %782 = vmatprep.subr.bf16.mxu0 %v648
    %783 = vmatpush1.bf16.msra.mxu0 %v647
    %784 = vmatprep.subr.bf16.mxu0 %v652
    %785 = vmatpush1.bf16.msra.mxu0 %v651
    %786 = vmatprep.subr.bf16.mxu0 %v656
    %787 = vmatpush1.bf16.msra.mxu0 %v655
    %788 = vmatprep.subr.bf16.mxu0 %v660
    %789 = vmatpush1.bf16.msra.mxu0 %v659
    %790 = vmatprep.subr.bf16.mxu0 %v664
    %791 = vmatpush1.bf16.msra.mxu0 %v663
    %792 = vmatprep.subr.bf16.mxu0 %v668
    %793 = vmatpush1.bf16.msra.mxu0 %v667
    %794 = vmatprep.subr.bf16.mxu0 %v672
    %795 = vmatpush1.bf16.msra.mxu0 %v671
    %796 = vmatprep.subr.bf16.mxu0 %v676
    %797 = vmatpush1.bf16.msra.mxu0 %v675
    %798 = vmatprep.subr.bf16.mxu0 0
    %799 = vmatpush1.bf16.msra.mxu0 0
    %800 = vmatprep.subr.bf16.mxu0 0
    %801 = vmatpush1.bf16.msra.mxu0 0
    %802 = vmatprep.subr.bf16.mxu0 0
    %803 = vmatpush1.bf16.msra.mxu0 0
    %804 = vmatprep.subr.bf16.mxu0 0
    %805 = vmatpush1.bf16.msra.mxu0 0
    %806 = vmatprep.subr.bf16.mxu0 0
    %807 = vmatpush1.bf16.msra.mxu0 0
    %808 = vmatprep.subr.bf16.mxu0 0
    %809 = vmatpush1.bf16.msra.mxu0 0
    %810 = vmatprep.subr.bf16.mxu0 0
    %811 = vmatpush1.bf16.msra.mxu0 0
    %812 = vmatprep.subr.bf16.mxu0 0
    %813 = vmatpush1.bf16.msra.mxu0 0
    %814 = vmatprep.mubr.bf16.mxu0 0
    %815 = vmatmul.mubr.bf16.gmra.mrb[0].mxu0 %v491
    %v816 = vpop.f32.mrb[0].mxu0
    %v817 = vadd.f32 %v540, %v816
    %v818 = vpop.f32.mrb[0].mxu0
    %v819 = vadd.f32 %v544, %v818
    %v820 = vpop.f32.mrb[0].mxu0
    %v821 = vadd.f32 %v540, %v820
    %v822 = vpop.f32.mrb[0].mxu0
    %v823 = vadd.f32 %v544, %v822
    %824 = vmatprep.mubr.bf16.mxu0 0
    %825 = vmatmul.mubr.bf16.gmra.mrb[0].mxu0 %v492
    %v826 = vpop.f32.mrb[0].mxu0
    %v827 = vadd.f32 %v540, %v826
    %v828 = vpop.f32.mrb[0].mxu0
    %v829 = vadd.f32 %v544, %v828
    %v830 = vpop.f32.mrb[0].mxu0
    %v831 = vadd.f32 %v540, %v830
    %v832 = vpop.f32.mrb[0].mxu0
    %v833 = vadd.f32 %v544, %v832
    %834 = vmatprep.mubr.bf16.mxu0 0
    %835 = vmatmul.mubr.bf16.gmra.mrb[0].mxu0 %v493
    %v836 = vpop.f32.mrb[0].mxu0
    %v837 = vadd.f32 %v540, %v836
    %v838 = vpop.f32.mrb[0].mxu0
    %v839 = vadd.f32 %v544, %v838
    %v840 = vpop.f32.mrb[0].mxu0
    %v841 = vadd.f32 %v540, %v840
    %v842 = vpop.f32.mrb[0].mxu0
    %v843 = vadd.f32 %v544, %v842
    %844 = vmatprep.mubr.bf16.mxu0 0
    %845 = vmatmul.mubr.bf16.gmra.mrb[0].mxu0 %v494
    %v846 = vpop.f32.mrb[0].mxu0
    %v847 = vadd.f32 %v540, %v846
    %v848 = vpop.f32.mrb[0].mxu0
    %v849 = vadd.f32 %v544, %v848
    %v850 = vpop.f32.mrb[0].mxu0
    %v851 = vadd.f32 %v540, %v850
    %v852 = vpop.f32.mrb[0].mxu0
    %v853 = vadd.f32 %v544, %v852
    %854 = vdwg.mxu0
    %855 = vst [vmem:[#allocation3] sm:$0xff] %v744
    %856 = vst [vmem:[#allocation3 + $0x8] sm:$0xff] %v746
    %857 = vst [vmem:[#allocation3 + $0x10] sm:$0xff] %v817
    %858 = vst [vmem:[#allocation3 + $0x18] sm:$0xff] %v819
    %859 = vst [vmem:[#allocation3 + $0x20] sm:$0xff] %v748
    %860 = vst [vmem:[#allocation3 + $0x28] sm:$0xff] %v750
    %861 = vst [vmem:[#allocation3 + $0x30] sm:$0xff] %v821
    %862 = vst [vmem:[#allocation3 + $0x38] sm:$0xff] %v823
    %863 = vst [vmem:[#allocation3 + $0x40] sm:$0xff] %v754
    %864 = vst [vmem:[#allocation3 + $0x48] sm:$0xff] %v756
    %865 = vst [vmem:[#allocation3 + $0x50] sm:$0xff] %v827
    %866 = vst [vmem:[#allocation3 + $0x58] sm:$0xff] %v829
    %867 = vst [vmem:[#allocation3 + $0x60] sm:$0xff] %v758
    %868 = vst [vmem:[#allocation3 + $0x68] sm:$0xff] %v760
    %869 = vst [vmem:[#allocation3 + $0x70] sm:$0xff] %v831
    %870 = vst [vmem:[#allocation3 + $0x78] sm:$0xff] %v833
    %871 = vst [vmem:[#allocation3 + $0x80] sm:$0xff] %v764
    %872 = vst [vmem:[#allocation3 + $0x88] sm:$0xff] %v766
    %873 = vst [vmem:[#allocation3 + $0x90] sm:$0xff] %v837
    %874 = vst [vmem:[#allocation3 + $0x98] sm:$0xff] %v839
    %875 = vst [vmem:[#allocation3 + $0xa0] sm:$0xff] %v768
    %876 = vst [vmem:[#allocation3 + $0xa8] sm:$0xff] %v770
    %877 = vst [vmem:[#allocation3 + $0xb0] sm:$0xff] %v841
    %878 = vst [vmem:[#allocation3 + $0xb8] sm:$0xff] %v843
    %879 = vst [vmem:[#allocation3 + $0xc0] sm:$0xff] %v774
    %880 = vst [vmem:[#allocation3 + $0xc8] sm:$0xff] %v776
    %881 = vst [vmem:[#allocation3 + $0xd0] sm:$0xff] %v847
    %882 = vst [vmem:[#allocation3 + $0xd8] sm:$0xff] %v849
    %883 = vst [vmem:[#allocation3 + $0xe0] sm:$0xff] %v778
    %884 = vst [vmem:[#allocation3 + $0xe8] sm:$0xff] %v780
    %885 = vst [vmem:[#allocation3 + $0xf0] sm:$0xff] %v851
    %886 = vst [vmem:[#allocation3 + $0xf8] sm:$0xff] %v853
    %v887 = vld [vmem:[%s2] sm:$0xff]
    %v888 = vld [vmem:[%s2 + $0x8] sm:$0xff]
    %v889 = vld [vmem:[%s2 + $0x10] sm:$0xff]
    %v890 = vld [vmem:[%s2 + $0x18] sm:$0xff]
    %v891 = vld [vmem:[%s2 + $0x20] sm:$0xff]
    %v892 = vld [vmem:[%s2 + $0x28] sm:$0xff]
    %v893 = vld [vmem:[%s2 + $0x30] sm:$0xff]
    %v894 = vld [vmem:[%s2 + $0x38] sm:$0xff]
    %v895 = vld [vmem:[%s2 + $0x40] sm:$0xff]
    %v896 = vld [vmem:[%s2 + $0x48] sm:$0xff]
    %v897 = vld [vmem:[%s2 + $0x50] sm:$0xff]
    %v898 = vld [vmem:[%s2 + $0x58] sm:$0xff]
    %v899 = vld [vmem:[%s2 + $0x60] sm:$0xff]
    %v900 = vld [vmem:[%s2 + $0x68] sm:$0xff]
    %v901 = vld [vmem:[%s2 + $0x70] sm:$0xff]
    %v902 = vld [vmem:[%s2 + $0x78] sm:$0xff]
    %v903 = vld [vmem:[%s2 + $0x80] sm:$0xff]
    %v904 = vld [vmem:[%s2 + $0x88] sm:$0xff]
    %v905 = vld [vmem:[%s2 + $0x90] sm:$0xff]
    %v906 = vld [vmem:[%s2 + $0x98] sm:$0xff]
    %v907 = vld [vmem:[%s2 + $0xa0] sm:$0xff]
    %v908 = vld [vmem:[%s2 + $0xa8] sm:$0xff]
    %v909 = vld [vmem:[%s2 + $0xb0] sm:$0xff]
    %v910 = vld [vmem:[%s2 + $0xb8] sm:$0xff]
    %v911 = vld [vmem:[%s2 + $0xc0] sm:$0xff]
    %v912 = vld [vmem:[%s2 + $0xc8] sm:$0xff]
    %v913 = vld [vmem:[%s2 + $0xd0] sm:$0xff]
    %v914 = vld [vmem:[%s2 + $0xd8] sm:$0xff]
    %v915 = vld [vmem:[%s2 + $0xe0] sm:$0xff]
    %v916 = vld [vmem:[%s2 + $0xe8] sm:$0xff]
    %v917 = vld [vmem:[%s2 + $0xf0] sm:$0xff]
    %v918 = vld [vmem:[%s2 + $0xf8] sm:$0xff]
    %v919 = vld [vmem:[%s2 + $0x100] sm:$0xff]
    %v920 = vld [vmem:[%s2 + $0x108] sm:$0xff]
    %v921 = vld [vmem:[%s2 + $0x110] sm:$0xff]
    %v922 = vld [vmem:[%s2 + $0x118] sm:$0xff]
    %v923 = vld [vmem:[%s2 + $0x120] sm:$0xff]
    %v924 = vld [vmem:[%s2 + $0x128] sm:$0xff]
    %v925 = vld [vmem:[%s2 + $0x130] sm:$0xff]
    %v926 = vld [vmem:[%s2 + $0x138] sm:$0xff]
    %v927 = vld [vmem:[%s2 + $0x140] sm:$0xff]
    %v928 = vld [vmem:[%s2 + $0x148] sm:$0xff]
    %v929 = vld [vmem:[%s2 + $0x150] sm:$0xff]
    %v930 = vld [vmem:[%s2 + $0x158] sm:$0xff]
    %v931 = vld [vmem:[%s2 + $0x160] sm:$0xff]
    %v932 = vld [vmem:[%s2 + $0x168] sm:$0xff]
    %v933 = vld [vmem:[%s2 + $0x170] sm:$0xff]
    %v934 = vld [vmem:[%s2 + $0x178] sm:$0xff]
    %v935 = vld [vmem:[%s2 + $0x180] sm:$0xff]
    %v936 = vld [vmem:[%s2 + $0x188] sm:$0xff]
    %v937 = vld [vmem:[%s2 + $0x190] sm:$0xff]
    %v938 = vld [vmem:[%s2 + $0x198] sm:$0xff]
    %v939 = vld [vmem:[%s2 + $0x1a0] sm:$0xff]
    %v940 = vld [vmem:[%s2 + $0x1a8] sm:$0xff]
    %v941 = vld [vmem:[%s2 + $0x1b0] sm:$0xff]
    %v942 = vld [vmem:[%s2 + $0x1b8] sm:$0xff]
    %v943 = vld [vmem:[%s2 + $0x1c0] sm:$0xff]
    %v944 = vld [vmem:[%s2 + $0x1c8] sm:$0xff]
    %v945 = vld [vmem:[%s2 + $0x1d0] sm:$0xff]
    %v946 = vld [vmem:[%s2 + $0x1d8] sm:$0xff]
    %v947 = vld [vmem:[%s2 + $0x1e0] sm:$0xff]
    %v948 = vld [vmem:[%s2 + $0x1e8] sm:$0xff]
    %v949 = vld [vmem:[%s2 + $0x1f0] sm:$0xff]
    %v950 = vld [vmem:[%s2 + $0x1f8] sm:$0xff]
    %v951 = vld [vmem:[#allocation10] sm:$0xff]
    %v952 = vld [vmem:[#allocation10 + $0x8] sm:$0xff]
    %v953 = vld [vmem:[#allocation10 + $0x10] sm:$0xff]
    %v954 = vld [vmem:[#allocation10 + $0x18] sm:$0xff]
    %v955 = vld [vmem:[#allocation10 + $0x20] sm:$0xff]
    %v956 = vld [vmem:[#allocation10 + $0x28] sm:$0xff]
    %v957 = vld [vmem:[#allocation10 + $0x30] sm:$0xff]
    %v958 = vld [vmem:[#allocation10 + $0x38] sm:$0xff]
    %v959 = vld [vmem:[#allocation10 + $0x40] sm:$0xff]
    %v960 = vld [vmem:[#allocation10 + $0x48] sm:$0xff]
    %v961 = vld [vmem:[#allocation10 + $0x50] sm:$0xff]
    %v962 = vld [vmem:[#allocation10 + $0x58] sm:$0xff]
    %v963 = vld [vmem:[#allocation10 + $0x60] sm:$0xff]
    %v964 = vld [vmem:[#allocation10 + $0x68] sm:$0xff]
    %v965 = vld [vmem:[#allocation10 + $0x70] sm:$0xff]
    %v966 = vld [vmem:[#allocation10 + $0x78] sm:$0xff]
    %v967 = vld [vmem:[#allocation10 + $0x80] sm:$0xff]
    %v968 = vld [vmem:[#allocation10 + $0x88] sm:$0xff]
    %v969 = vld [vmem:[#allocation10 + $0x90] sm:$0xff]
    %v970 = vld [vmem:[#allocation10 + $0x98] sm:$0xff]
    %v971 = vld [vmem:[#allocation10 + $0xa0] sm:$0xff]
    %v972 = vld [vmem:[#allocation10 + $0xa8] sm:$0xff]
    %v973 = vld [vmem:[#allocation10 + $0xb0] sm:$0xff]
    %v974 = vld [vmem:[#allocation10 + $0xb8] sm:$0xff]
    %v975 = vld [vmem:[#allocation10 + $0xc0] sm:$0xff]
    %v976 = vld [vmem:[#allocation10 + $0xc8] sm:$0xff]
    %v977 = vld [vmem:[#allocation10 + $0xd0] sm:$0xff]
    %v978 = vld [vmem:[#allocation10 + $0xd8] sm:$0xff]
    %v979 = vld [vmem:[#allocation10 + $0xe0] sm:$0xff]
    %v980 = vld [vmem:[#allocation10 + $0xe8] sm:$0xff]
    %v981 = vld [vmem:[#allocation10 + $0xf0] sm:$0xff]
    %v982 = vld [vmem:[#allocation10 + $0xf8] sm:$0xff]
    %v983 = vld [vmem:[#allocation10 + $0x100] sm:$0xff]
    %v984 = vld [vmem:[#allocation10 + $0x108] sm:$0xff]
    %v985 = vld [vmem:[#allocation10 + $0x110] sm:$0xff]
    %v986 = vld [vmem:[#allocation10 + $0x118] sm:$0xff]
    %v987 = vld [vmem:[#allocation10 + $0x120] sm:$0xff]
    %v988 = vld [vmem:[#allocation10 + $0x128] sm:$0xff]
    %v989 = vld [vmem:[#allocation10 + $0x130] sm:$0xff]
    %v990 = vld [vmem:[#allocation10 + $0x138] sm:$0xff]
    %v991 = vld [vmem:[#allocation10 + $0x140] sm:$0xff]
    %v992 = vld [vmem:[#allocation10 + $0x148] sm:$0xff]
    %v993 = vld [vmem:[#allocation10 + $0x150] sm:$0xff]
    %v994 = vld [vmem:[#allocation10 + $0x158] sm:$0xff]
    %v995 = vld [vmem:[#allocation10 + $0x160] sm:$0xff]
    %v996 = vld [vmem:[#allocation10 + $0x168] sm:$0xff]
    %v997 = vld [vmem:[#allocation10 + $0x170] sm:$0xff]
    %v998 = vld [vmem:[#allocation10 + $0x178] sm:$0xff]
    %v999 = vld [vmem:[#allocation10 + $0x180] sm:$0xff]
    %v1000 = vld [vmem:[#allocation10 + $0x188] sm:$0xff]
    %v1001 = vld [vmem:[#allocation10 + $0x190] sm:$0xff]
    %v1002 = vld [vmem:[#allocation10 + $0x198] sm:$0xff]
    %v1003 = vld [vmem:[#allocation10 + $0x1a0] sm:$0xff]
    %v1004 = vld [vmem:[#allocation10 + $0x1a8] sm:$0xff]
    %v1005 = vld [vmem:[#allocation10 + $0x1b0] sm:$0xff]
    %v1006 = vld [vmem:[#allocation10 + $0x1b8] sm:$0xff]
    %v1007 = vld [vmem:[#allocation10 + $0x1c0] sm:$0xff]
    %v1008 = vld [vmem:[#allocation10 + $0x1c8] sm:$0xff]
    %v1009 = vld [vmem:[#allocation10 + $0x1d0] sm:$0xff]
    %v1010 = vld [vmem:[#allocation10 + $0x1d8] sm:$0xff]
    %v1011 = vld [vmem:[#allocation10 + $0x1e0] sm:$0xff]
    %v1012 = vld [vmem:[#allocation10 + $0x1e8] sm:$0xff]
    %v1013 = vld [vmem:[#allocation10 + $0x1f0] sm:$0xff]
    %v1014 = vld [vmem:[#allocation10 + $0x1f8] sm:$0xff]
    %v1015 = vld [vmem:[#allocation4] sm:$0xff]
    %v1016 = vld [vmem:[#allocation5] sm:$0xff]
    %v1017 = vld [vmem:[#allocation6] sm:$0xff]
    %v1018 = vld [vmem:[#allocation7] sm:$0xff]
    %v1019 = vld [vmem:[#allocation2] sm:$0xff]
    %v1020 = vld [vmem:[#allocation2 + $0x8] sm:$0xff]
    %v1021 = vld [vmem:[#allocation2 + $0x10] sm:$0xff]
    %v1022 = vld [vmem:[#allocation2 + $0x18] sm:$0xff]
    %1023 = vmatprep.subr.mxu0 %v888
    %1024 = vmatpush1.msra.mxu0 %v887
    %1025 = vmatprep.subr.mxu0 %v892
    %1026 = vmatpush1.msra.mxu0 %v891
    %1027 = vmatprep.subr.mxu0 %v896
    %1028 = vmatpush1.msra.mxu0 %v895
    %1029 = vmatprep.subr.mxu0 %v900
    %1030 = vmatpush1.msra.mxu0 %v899
    %1031 = vmatprep.subr.mxu0 %v904
    %1032 = vmatpush1.msra.mxu0 %v903
    %1033 = vmatprep.subr.mxu0 %v908
    %1034 = vmatpush1.msra.mxu0 %v907
    %1035 = vmatprep.subr.mxu0 %v912
    %1036 = vmatpush1.msra.mxu0 %v911
    %1037 = vmatprep.subr.mxu0 %v916
    %1038 = vmatpush1.msra.mxu0 %v915
    %1039 = vmatprep.subr.mxu0 %v920
    %1040 = vmatpush1.msra.mxu0 %v919
    %1041 = vmatprep.subr.mxu0 %v924
    %1042 = vmatpush1.msra.mxu0 %v923
    %1043 = vmatprep.subr.mxu0 %v928
    %1044 = vmatpush1.msra.mxu0 %v927
    %1045 = vmatprep.subr.mxu0 %v932
    %1046 = vmatpush1.msra.mxu0 %v931
    %1047 = vmatprep.subr.mxu0 %v936
    %1048 = vmatpush1.msra.mxu0 %v935
    %1049 = vmatprep.subr.mxu0 %v940
    %1050 = vmatpush1.msra.mxu0 %v939
    %1051 = vmatprep.subr.mxu0 %v944
    %1052 = vmatpush1.msra.mxu0 %v943
    %1053 = vmatprep.subr.mxu0 %v948
    %1054 = vmatpush1.msra.mxu0 %v947
    %1055 = vmatprep.subr.mxu0 0.0
    %1056 = vmatpush1.msra.mxu0 0.0
    %1057 = vmatprep.subr.mxu0 0.0
    %1058 = vmatpush1.msra.mxu0 0.0
    %1059 = vmatprep.subr.mxu0 0.0
    %1060 = vmatpush1.msra.mxu0 0.0
    %1061 = vmatprep.subr.mxu0 0.0
    %1062 = vmatpush1.msra.mxu0 0.0
    %1063 = vmatprep.subr.mxu0 0.0
    %1064 = vmatpush1.msra.mxu0 0.0
    %1065 = vmatprep.subr.mxu0 0.0
    %1066 = vmatpush1.msra.mxu0 0.0
    %1067 = vmatprep.subr.mxu0 0.0
    %1068 = vmatpush1.msra.mxu0 0.0
    %1069 = vmatprep.subr.mxu0 0.0
    %1070 = vmatpush1.msra.mxu0 0.0
    %1071 = vmatprep.subr.mxu0 0.0
    %1072 = vmatpush1.msra.mxu0 0.0
    %1073 = vmatprep.subr.mxu0 0.0
    %1074 = vmatpush1.msra.mxu0 0.0
    %1075 = vmatprep.subr.mxu0 0.0
    %1076 = vmatpush1.msra.mxu0 0.0
    %1077 = vmatprep.subr.mxu0 0.0
    %1078 = vmatpush1.msra.mxu0 0.0
    %1079 = vmatprep.subr.mxu0 0.0
    %1080 = vmatpush1.msra.mxu0 0.0
    %1081 = vmatprep.subr.mxu0 0.0
    %1082 = vmatpush1.msra.mxu0 0.0
    %1083 = vmatprep.subr.mxu0 0.0
    %1084 = vmatpush1.msra.mxu0 0.0
    %1085 = vmatprep.subr.mxu0 0.0
    %1086 = vmatpush1.msra.mxu0 0.0
    %1087 = vmatprep.mubr.f32.mxu0 0.0
    %1088 = vmatmul.mubr.f32.gmra.mrb[0].mxu0 %v1015
    %v1089 = vpop.f32.mrb[0].mxu0
    %v1090 = vadd.f32 0.0, %v1089
    %v1091 = vpop.f32.mrb[0].mxu0
    %v1092 = vadd.f32 0.0, %v1091
    %1093 = vdwg.mxu0
    %1094 = vmatprep.subr.mxu0 %v890
    %1095 = vmatpush1.msra.mxu0 %v889
    %1096 = vmatprep.subr.mxu0 %v894
    %1097 = vmatpush1.msra.mxu0 %v893
    %1098 = vmatprep.subr.mxu0 %v898
    %1099 = vmatpush1.msra.mxu0 %v897
    %1100 = vmatprep.subr.mxu0 %v902
    %1101 = vmatpush1.msra.mxu0 %v901
    %1102 = vmatprep.subr.mxu0 %v906
    %1103 = vmatpush1.msra.mxu0 %v905
    %1104 = vmatprep.subr.mxu0 %v910
    %1105 = vmatpush1.msra.mxu0 %v909
    %1106 = vmatprep.subr.mxu0 %v914
    %1107 = vmatpush1.msra.mxu0 %v913
    %1108 = vmatprep.subr.mxu0 %v918
    %1109 = vmatpush1.msra.mxu0 %v917
    %1110 = vmatprep.subr.mxu0 %v922
    %1111 = vmatpush1.msra.mxu0 %v921
    %1112 = vmatprep.subr.mxu0 %v926
    %1113 = vmatpush1.msra.mxu0 %v925
    %1114 = vmatprep.subr.mxu0 %v930
    %1115 = vmatpush1.msra.mxu0 %v929
    %1116 = vmatprep.subr.mxu0 %v934
    %1117 = vmatpush1.msra.mxu0 %v933
    %1118 = vmatprep.subr.mxu0 %v938
    %1119 = vmatpush1.msra.mxu0 %v937
    %1120 = vmatprep.subr.mxu0 %v942
    %1121 = vmatpush1.msra.mxu0 %v941
    %1122 = vmatprep.subr.mxu0 %v946
    %1123 = vmatpush1.msra.mxu0 %v945
    %1124 = vmatprep.subr.mxu0 %v950
    %1125 = vmatpush1.msra.mxu0 %v949
    %1126 = vmatprep.subr.mxu0 0.0
    %1127 = vmatpush1.msra.mxu0 0.0
    %1128 = vmatprep.subr.mxu0 0.0
    %1129 = vmatpush1.msra.mxu0 0.0
    %1130 = vmatprep.subr.mxu0 0.0
    %1131 = vmatpush1.msra.mxu0 0.0
    %1132 = vmatprep.subr.mxu0 0.0
    %1133 = vmatpush1.msra.mxu0 0.0
    %1134 = vmatprep.subr.mxu0 0.0
    %1135 = vmatpush1.msra.mxu0 0.0
    %1136 = vmatprep.subr.mxu0 0.0
    %1137 = vmatpush1.msra.mxu0 0.0
    %1138 = vmatprep.subr.mxu0 0.0
    %1139 = vmatpush1.msra.mxu0 0.0
    %1140 = vmatprep.subr.mxu0 0.0
    %1141 = vmatpush1.msra.mxu0 0.0
    %1142 = vmatprep.subr.mxu0 0.0
    %1143 = vmatpush1.msra.mxu0 0.0
    %1144 = vmatprep.subr.mxu0 0.0
    %1145 = vmatpush1.msra.mxu0 0.0
    %1146 = vmatprep.subr.mxu0 0.0
    %1147 = vmatpush1.msra.mxu0 0.0
    %1148 = vmatprep.subr.mxu0 0.0
    %1149 = vmatpush1.msra.mxu0 0.0
    %1150 = vmatprep.subr.mxu0 0.0
    %1151 = vmatpush1.msra.mxu0 0.0
    %1152 = vmatprep.subr.mxu0 0.0
    %1153 = vmatpush1.msra.mxu0 0.0
    %1154 = vmatprep.subr.mxu0 0.0
    %1155 = vmatpush1.msra.mxu0 0.0
    %1156 = vmatprep.subr.mxu0 0.0
    %1157 = vmatpush1.msra.mxu0 0.0
    %1158 = vmatprep.mubr.f32.mxu0 0.0
    %1159 = vmatmul.mubr.f32.gmra.mrb[0].mxu0 %v1015
    %v1160 = vpop.f32.mrb[0].mxu0
    %v1161 = vadd.f32 0.0, %v1160
    %v1162 = vpop.f32.mrb[0].mxu0
    %v1163 = vadd.f32 0.0, %v1162
    %1164 = vdwg.mxu0
    %v1165 = vadd.f32 %v1019, %v1090
    %v1166 = vadd.f32 %v1020, %v1092
    %v1167 = vadd.f32 %v1021, %v1161
    %v1168 = vadd.f32 %v1022, %v1163
    %s1169 = scalar_lea.vmem [#allocation3], 224
    %v1170 = vld [vmem:[%s1169] sm:$0xff]
    %v1171 = vld [vmem:[%s1169 + $0x8] sm:$0xff]
    %v1172 = vld [vmem:[%s1169 + $0x10] sm:$0xff]
    %v1173 = vld [vmem:[%s1169 + $0x18] sm:$0xff]
    %1174 = vmatprep.subr.mxu0 %v952
    %1175 = vmatpush1.msra.mxu0 %v951
    %1176 = vmatprep.subr.mxu0 %v956
    %1177 = vmatpush1.msra.mxu0 %v955
    %1178 = vmatprep.subr.mxu0 %v960
    %1179 = vmatpush1.msra.mxu0 %v959
    %1180 = vmatprep.subr.mxu0 %v964
    %1181 = vmatpush1.msra.mxu0 %v963
    %1182 = vmatprep.subr.mxu0 %v968
    %1183 = vmatpush1.msra.mxu0 %v967
    %1184 = vmatprep.subr.mxu0 %v972
    %1185 = vmatpush1.msra.mxu0 %v971
    %1186 = vmatprep.subr.mxu0 %v976
    %1187 = vmatpush1.msra.mxu0 %v975
    %1188 = vmatprep.subr.mxu0 %v980
    %1189 = vmatpush1.msra.mxu0 %v979
    %1190 = vmatprep.subr.mxu0 %v984
    %1191 = vmatpush1.msra.mxu0 %v983
    %1192 = vmatprep.subr.mxu0 %v988
    %1193 = vmatpush1.msra.mxu0 %v987
    %1194 = vmatprep.subr.mxu0 %v992
    %1195 = vmatpush1.msra.mxu0 %v991
    %1196 = vmatprep.subr.mxu0 %v996
    %1197 = vmatpush1.msra.mxu0 %v995
    %1198 = vmatprep.subr.mxu0 %v1000
    %1199 = vmatpush1.msra.mxu0 %v999
    %1200 = vmatprep.subr.mxu0 %v1004
    %1201 = vmatpush1.msra.mxu0 %v1003
    %1202 = vmatprep.subr.mxu0 %v1008
    %1203 = vmatpush1.msra.mxu0 %v1007
    %1204 = vmatprep.subr.mxu0 %v1012
    %1205 = vmatpush1.msra.mxu0 %v1011
    %1206 = vmatprep.subr.mxu0 0.0
    %1207 = vmatpush1.msra.mxu0 0.0
    %1208 = vmatprep.subr.mxu0 0.0
    %1209 = vmatpush1.msra.mxu0 0.0
    %1210 = vmatprep.subr.mxu0 0.0
    %1211 = vmatpush1.msra.mxu0 0.0
    %1212 = vmatprep.subr.mxu0 0.0
    %1213 = vmatpush1.msra.mxu0 0.0
    %1214 = vmatprep.subr.mxu0 0.0
    %1215 = vmatpush1.msra.mxu0 0.0
    %1216 = vmatprep.subr.mxu0 0.0
    %1217 = vmatpush1.msra.mxu0 0.0
    %1218 = vmatprep.subr.mxu0 0.0
    %1219 = vmatpush1.msra.mxu0 0.0
    %1220 = vmatprep.subr.mxu0 0.0
    %1221 = vmatpush1.msra.mxu0 0.0
    %1222 = vmatprep.subr.mxu0 0.0
    %1223 = vmatpush1.msra.mxu0 0.0
    %1224 = vmatprep.subr.mxu0 0.0
    %1225 = vmatpush1.msra.mxu0 0.0
    %1226 = vmatprep.subr.mxu0 0.0
    %1227 = vmatpush1.msra.mxu0 0.0
    %1228 = vmatprep.subr.mxu0 0.0
    %1229 = vmatpush1.msra.mxu0 0.0
    %1230 = vmatprep.subr.mxu0 0.0
    %1231 = vmatpush1.msra.mxu0 0.0
    %1232 = vmatprep.subr.mxu0 0.0
    %1233 = vmatpush1.msra.mxu0 0.0
    %1234 = vmatprep.subr.mxu0 0.0
    %1235 = vmatpush1.msra.mxu0 0.0
    %1236 = vmatprep.subr.mxu0 0.0
    %1237 = vmatpush1.msra.mxu0 0.0
    %1238 = vmatprep.mubr.f32.mxu0 0.0
    %1239 = vmatmul.mubr.f32.gmra.mrb[0].mxu0 %v1017
    %v1240 = vpop.f32.mrb[0].mxu0
    %v1241 = vadd.f32 0.0, %v1240
    %v1242 = vpop.f32.mrb[0].mxu0
    %v1243 = vadd.f32 0.0, %v1242
    %1244 = vdwg.mxu0
    %1245 = vmatprep.subr.mxu0 %v954
    %1246 = vmatpush1.msra.mxu0 %v953
    %1247 = vmatprep.subr.mxu0 %v958
    %1248 = vmatpush1.msra.mxu0 %v957
    %1249 = vmatprep.subr.mxu0 %v962
    %1250 = vmatpush1.msra.mxu0 %v961
    %1251 = vmatprep.subr.mxu0 %v966
    %1252 = vmatpush1.msra.mxu0 %v965
    %1253 = vmatprep.subr.mxu0 %v970
    %1254 = vmatpush1.msra.mxu0 %v969
    %1255 = vmatprep.subr.mxu0 %v974
    %1256 = vmatpush1.msra.mxu0 %v973
    %1257 = vmatprep.subr.mxu0 %v978
    %1258 = vmatpush1.msra.mxu0 %v977
    %1259 = vmatprep.subr.mxu0 %v982
    %1260 = vmatpush1.msra.mxu0 %v981
    %1261 = vmatprep.subr.mxu0 %v986
    %1262 = vmatpush1.msra.mxu0 %v985
    %1263 = vmatprep.subr.mxu0 %v990
    %1264 = vmatpush1.msra.mxu0 %v989
    %1265 = vmatprep.subr.mxu0 %v994
    %1266 = vmatpush1.msra.mxu0 %v993
    %1267 = vmatprep.subr.mxu0 %v998
    %1268 = vmatpush1.msra.mxu0 %v997
    %1269 = vmatprep.subr.mxu0 %v1002
    %1270 = vmatpush1.msra.mxu0 %v1001
    %1271 = vmatprep.subr.mxu0 %v1006
    %1272 = vmatpush1.msra.mxu0 %v1005
    %1273 = vmatprep.subr.mxu0 %v1010
    %1274 = vmatpush1.msra.mxu0 %v1009
    %1275 = vmatprep.subr.mxu0 %v1014
    %1276 = vmatpush1.msra.mxu0 %v1013
    %1277 = vmatprep.subr.mxu0 0.0
    %1278 = vmatpush1.msra.mxu0 0.0
    %1279 = vmatprep.subr.mxu0 0.0
    %1280 = vmatpush1.msra.mxu0 0.0
    %1281 = vmatprep.subr.mxu0 0.0
    %1282 = vmatpush1.msra.mxu0 0.0
    %1283 = vmatprep.subr.mxu0 0.0
    %1284 = vmatpush1.msra.mxu0 0.0
    %1285 = vmatprep.subr.mxu0 0.0
    %1286 = vmatpush1.msra.mxu0 0.0
    %1287 = vmatprep.subr.mxu0 0.0
    %1288 = vmatpush1.msra.mxu0 0.0
    %1289 = vmatprep.subr.mxu0 0.0
    %1290 = vmatpush1.msra.mxu0 0.0
    %1291 = vmatprep.subr.mxu0 0.0
    %1292 = vmatpush1.msra.mxu0 0.0
    %1293 = vmatprep.subr.mxu0 0.0
    %1294 = vmatpush1.msra.mxu0 0.0
    %1295 = vmatprep.subr.mxu0 0.0
    %1296 = vmatpush1.msra.mxu0 0.0
    %1297 = vmatprep.subr.mxu0 0.0
    %1298 = vmatpush1.msra.mxu0 0.0
    %1299 = vmatprep.subr.mxu0 0.0
    %1300 = vmatpush1.msra.mxu0 0.0
    %1301 = vmatprep.subr.mxu0 0.0
    %1302 = vmatpush1.msra.mxu0 0.0
    %1303 = vmatprep.subr.mxu0 0.0
    %1304 = vmatpush1.msra.mxu0 0.0
    %1305 = vmatprep.subr.mxu0 0.0
    %1306 = vmatpush1.msra.mxu0 0.0
    %1307 = vmatprep.subr.mxu0 0.0
    %1308 = vmatpush1.msra.mxu0 0.0
    %1309 = vmatprep.mubr.f32.mxu0 0.0
    %1310 = vmatmul.mubr.f32.gmra.mrb[0].mxu0 %v1017
    %v1311 = vpop.f32.mrb[0].mxu0
    %v1312 = vadd.f32 0.0, %v1311
    %v1313 = vpop.f32.mrb[0].mxu0
    %v1314 = vadd.f32 0.0, %v1313
    %1315 = vdwg.mxu0
    %v1316 = vadd.f32 %v1170, %v1241
    %v1317 = vadd.f32 %v1171, %v1243
    %v1318 = vadd.f32 %v1172, %v1312
    %v1319 = vadd.f32 %v1173, %v1314
    %v1320 = vxor.u32 %v1165, 2147483648
    %v1321 = vmul.f32 %v1320, 1.442695
    %v1322 = vpow.pop %v1321
    %v1323 = vadd.f32 %v1322, 1.0
    %v1324 = vrcp.pop %v1323
    %v1325 = vmul.f32 1.0, %v1324
    %v1326 = vxor.u32 %v1166, 2147483648
    %v1327 = vmul.f32 %v1326, 1.442695
    %v1328 = vpow.pop %v1327
    %v1329 = vadd.f32 %v1328, 1.0
    %v1330 = vrcp.pop %v1329
    %v1331 = vmul.f32 1.0, %v1330
    %v1332 = vtanh.pop %v1167
    %v1333 = vxor.u32 %v1168, 2147483648
    %v1334 = vmul.f32 %v1333, 1.442695
    %v1335 = vpow.pop %v1334
    %v1336 = vadd.f32 %v1335, 1.0
    %v1337 = vrcp.pop %v1336
    %v1338 = vmul.f32 1.0, %v1337
    %v1339 = vmul.f32 %v1331, %v1016
    %v1340 = vmul.f32 %v1325, %v1332
    %v1341 = vadd.f32 %v1339, %v1340
    %v1342 = vtanh.pop %v1341
    %v1343 = vmul.f32 %v1338, %v1342
    %v1344 = vxor.u32 %v1316, 2147483648
    %v1345 = vmul.f32 %v1344, 1.442695
    %v1346 = vpow.pop %v1345
    %v1347 = vadd.f32 %v1346, 1.0
    %v1348 = vrcp.pop %v1347
    %v1349 = vmul.f32 1.0, %v1348
    %v1350 = vxor.u32 %v1317, 2147483648
    %v1351 = vmul.f32 %v1350, 1.442695
    %v1352 = vpow.pop %v1351
    %v1353 = vadd.f32 %v1352, 1.0
    %v1354 = vrcp.pop %v1353
    %v1355 = vmul.f32 1.0, %v1354
    %v1356 = vtanh.pop %v1318
    %v1357 = vxor.u32 %v1319, 2147483648
    %v1358 = vmul.f32 %v1357, 1.442695
    %v1359 = vpow.pop %v1358
    %v1360 = vadd.f32 %v1359, 1.0
    %v1361 = vrcp.pop %v1360
    %v1362 = vmul.f32 1.0, %v1361
    %v1363 = vmul.f32 %v1355, %v1018
    %v1364 = vmul.f32 %v1349, %v1356
    %v1365 = vadd.f32 %v1363, %v1364
    %v1366 = vtanh.pop %v1365
    %v1367 = vmul.f32 %v1362, %v1366
    %1368 = vst [vmem:[%s7] sm:$0xff] %v1343
    %s1369 = scalar_lea.vmem %s67, 56
    %1370 = vst [vmem:[%s1369] sm:$0xff] %v1367
    %s1371 = scalar_lea.vmem [#allocation2], 32
    %v1372 = vld [vmem:[%s1371] sm:$0xff]
    %v1373 = vld [vmem:[%s1371 + $0x8] sm:$0xff]
    %v1374 = vld [vmem:[%s1371 + $0x10] sm:$0xff]
    %v1375 = vld [vmem:[%s1371 + $0x18] sm:$0xff]
    %1376 = vmatprep.subr.mxu0 %v888
    %1377 = vmatpush1.msra.mxu0 %v887
    %1378 = vmatprep.subr.mxu0 %v892
    %1379 = vmatpush1.msra.mxu0 %v891
    %1380 = vmatprep.subr.mxu0 %v896
    %1381 = vmatpush1.msra.mxu0 %v895
    %1382 = vmatprep.subr.mxu0 %v900
    %1383 = vmatpush1.msra.mxu0 %v899
    %1384 = vmatprep.subr.mxu0 %v904
    %1385 = vmatpush1.msra.mxu0 %v903
    %1386 = vmatprep.subr.mxu0 %v908
    %1387 = vmatpush1.msra.mxu0 %v907
    %1388 = vmatprep.subr.mxu0 %v912
    %1389 = vmatpush1.msra.mxu0 %v911
    %1390 = vmatprep.subr.mxu0 %v916
    %1391 = vmatpush1.msra.mxu0 %v915
    %1392 = vmatprep.subr.mxu0 %v920
    %1393 = vmatpush1.msra.mxu0 %v919
    %1394 = vmatprep.subr.mxu0 %v924
    %1395 = vmatpush1.msra.mxu0 %v923
    %1396 = vmatprep.subr.mxu0 %v928
    %1397 = vmatpush1.msra.mxu0 %v927
    %1398 = vmatprep.subr.mxu0 %v932
    %1399 = vmatpush1.msra.mxu0 %v931
    %1400 = vmatprep.subr.mxu0 %v936
    %1401 = vmatpush1.msra.mxu0 %v935
    %1402 = vmatprep.subr.mxu0 %v940
    %1403 = vmatpush1.msra.mxu0 %v939
    %1404 = vmatprep.subr.mxu0 %v944
    %1405 = vmatpush1.msra.mxu0 %v943
    %1406 = vmatprep.subr.mxu0 %v948
    %1407 = vmatpush1.msra.mxu0 %v947
    %1408 = vmatprep.subr.mxu0 0.0
    %1409 = vmatpush1.msra.mxu0 0.0
    %1410 = vmatprep.subr.mxu0 0.0
    %1411 = vmatpush1.msra.mxu0 0.0
    %1412 = vmatprep.subr.mxu0 0.0
    %1413 = vmatpush1.msra.mxu0 0.0
    %1414 = vmatprep.subr.mxu0 0.0
    %1415 = vmatpush1.msra.mxu0 0.0
    %1416 = vmatprep.subr.mxu0 0.0
    %1417 = vmatpush1.msra.mxu0 0.0
    %1418 = vmatprep.subr.mxu0 0.0
    %1419 = vmatpush1.msra.mxu0 0.0
    %1420 = vmatprep.subr.mxu0 0.0
    %1421 = vmatpush1.msra.mxu0 0.0
    %1422 = vmatprep.subr.mxu0 0.0
    %1423 = vmatpush1.msra.mxu0 0.0
    %1424 = vmatprep.subr.mxu0 0.0
    %1425 = vmatpush1.msra.mxu0 0.0
    %1426 = vmatprep.subr.mxu0 0.0
    %1427 = vmatpush1.msra.mxu0 0.0
    %1428 = vmatprep.subr.mxu0 0.0
    %1429 = vmatpush1.msra.mxu0 0.0
    %1430 = vmatprep.subr.mxu0 0.0
    %1431 = vmatpush1.msra.mxu0 0.0
    %1432 = vmatprep.subr.mxu0 0.0
    %1433 = vmatpush1.msra.mxu0 0.0
    %1434 = vmatprep.subr.mxu0 0.0
    %1435 = vmatpush1.msra.mxu0 0.0
    %1436 = vmatprep.subr.mxu0 0.0
    %1437 = vmatpush1.msra.mxu0 0.0
    %1438 = vmatprep.subr.mxu0 0.0
    %1439 = vmatpush1.msra.mxu0 0.0
    %1440 = vmatprep.mubr.f32.mxu0 0.0
    %1441 = vmatmul.mubr.f32.gmra.mrb[0].mxu0 %v1343
    %v1442 = vpop.f32.mrb[0].mxu0
    %v1443 = vadd.f32 0.0, %v1442
    %v1444 = vpop.f32.mrb[0].mxu0
    %v1445 = vadd.f32 0.0, %v1444
    %1446 = vdwg.mxu0
    %1447 = vmatprep.subr.mxu0 %v890
    %1448 = vmatpush1.msra.mxu0 %v889
    %1449 = vmatprep.subr.mxu0 %v894
    %1450 = vmatpush1.msra.mxu0 %v893
    %1451 = vmatprep.subr.mxu0 %v898
    %1452 = vmatpush1.msra.mxu0 %v897
    %1453 = vmatprep.subr.mxu0 %v902
    %1454 = vmatpush1.msra.mxu0 %v901
    %1455 = vmatprep.subr.mxu0 %v906
    %1456 = vmatpush1.msra.mxu0 %v905
    %1457 = vmatprep.subr.mxu0 %v910
    %1458 = vmatpush1.msra.mxu0 %v909
    %1459 = vmatprep.subr.mxu0 %v914
    %1460 = vmatpush1.msra.mxu0 %v913
    %1461 = vmatprep.subr.mxu0 %v918
    %1462 = vmatpush1.msra.mxu0 %v917
    %1463 = vmatprep.subr.mxu0 %v922
    %1464 = vmatpush1.msra.mxu0 %v921
    %1465 = vmatprep.subr.mxu0 %v926
    %1466 = vmatpush1.msra.mxu0 %v925
    %1467 = vmatprep.subr.mxu0 %v930
    %1468 = vmatpush1.msra.mxu0 %v929
    %1469 = vmatprep.subr.mxu0 %v934
    %1470 = vmatpush1.msra.mxu0 %v933
    %1471 = vmatprep.subr.mxu0 %v938
    %1472 = vmatpush1.msra.mxu0 %v937
    %1473 = vmatprep.subr.mxu0 %v942
    %1474 = vmatpush1.msra.mxu0 %v941
    %1475 = vmatprep.subr.mxu0 %v946
    %1476 = vmatpush1.msra.mxu0 %v945
    %1477 = vmatprep.subr.mxu0 %v950
    %1478 = vmatpush1.msra.mxu0 %v949
    %1479 = vmatprep.subr.mxu0 0.0
    %1480 = vmatpush1.msra.mxu0 0.0
    %1481 = vmatprep.subr.mxu0 0.0
    %1482 = vmatpush1.msra.mxu0 0.0
    %1483 = vmatprep.subr.mxu0 0.0
    %1484 = vmatpush1.msra.mxu0 0.0
    %1485 = vmatprep.subr.mxu0 0.0
    %1486 = vmatpush1.msra.mxu0 0.0
    %1487 = vmatprep.subr.mxu0 0.0
    %1488 = vmatpush1.msra.mxu0 0.0
    %1489 = vmatprep.subr.mxu0 0.0
    %1490 = vmatpush1.msra.mxu0 0.0
    %1491 = vmatprep.subr.mxu0 0.0
    %1492 = vmatpush1.msra.mxu0 0.0
    %1493 = vmatprep.subr.mxu0 0.0
    %1494 = vmatpush1.msra.mxu0 0.0
    %1495 = vmatprep.subr.mxu0 0.0
    %1496 = vmatpush1.msra.mxu0 0.0
    %1497 = vmatprep.subr.mxu0 0.0
    %1498 = vmatpush1.msra.mxu0 0.0
    %1499 = vmatprep.subr.mxu0 0.0
    %1500 = vmatpush1.msra.mxu0 0.0
    %1501 = vmatprep.subr.mxu0 0.0
    %1502 = vmatpush1.msra.mxu0 0.0
    %1503 = vmatprep.subr.mxu0 0.0
    %1504 = vmatpush1.msra.mxu0 0.0
    %1505 = vmatprep.subr.mxu0 0.0
    %1506 = vmatpush1.msra.mxu0 0.0
    %1507 = vmatprep.subr.mxu0 0.0
    %1508 = vmatpush1.msra.mxu0 0.0
    %1509 = vmatprep.subr.mxu0 0.0
    %1510 = vmatpush1.msra.mxu0 0.0
    %1511 = vmatprep.mubr.f32.mxu0 0.0
    %1512 = vmatmul.mubr.f32.gmra.mrb[0].mxu0 %v1343
    %v1513 = vpop.f32.mrb[0].mxu0
    %v1514 = vadd.f32 0.0, %v1513
    %v1515 = vpop.f32.mrb[0].mxu0
    %v1516 = vadd.f32 0.0, %v1515
    %1517 = vdwg.mxu0
    %v1518 = vadd.f32 %v1372, %v1443
    %v1519 = vadd.f32 %v1373, %v1445
    %v1520 = vadd.f32 %v1374, %v1514
    %v1521 = vadd.f32 %v1375, %v1516
    %s1522 = scalar_lea.vmem [#allocation3], 192
    %v1523 = vld [vmem:[%s1522] sm:$0xff]
    %v1524 = vld [vmem:[%s1522 + $0x8] sm:$0xff]
    %v1525 = vld [vmem:[%s1522 + $0x10] sm:$0xff]
    %v1526 = vld [vmem:[%s1522 + $0x18] sm:$0xff]
    %1527 = vmatprep.subr.mxu0 %v952
    %1528 = vmatpush1.msra.mxu0 %v951
    %1529 = vmatprep.subr.mxu0 %v956
    %1530 = vmatpush1.msra.mxu0 %v955
    %1531 = vmatprep.subr.mxu0 %v960
    %1532 = vmatpush1.msra.mxu0 %v959
    %1533 = vmatprep.subr.mxu0 %v964
    %1534 = vmatpush1.msra.mxu0 %v963
    %1535 = vmatprep.subr.mxu0 %v968
    %1536 = vmatpush1.msra.mxu0 %v967
    %1537 = vmatprep.subr.mxu0 %v972
    %1538 = vmatpush1.msra.mxu0 %v971
    %1539 = vmatprep.subr.mxu0 %v976
    %1540 = vmatpush1.msra.mxu0 %v975
    %1541 = vmatprep.subr.mxu0 %v980
    %1542 = vmatpush1.msra.mxu0 %v979
    %1543 = vmatprep.subr.mxu0 %v984
    %1544 = vmatpush1.msra.mxu0 %v983
    %1545 = vmatprep.subr.mxu0 %v988
    %1546 = vmatpush1.msra.mxu0 %v987
    %1547 = vmatprep.subr.mxu0 %v992
    %1548 = vmatpush1.msra.mxu0 %v991
    %1549 = vmatprep.subr.mxu0 %v996
    %1550 = vmatpush1.msra.mxu0 %v995
    %1551 = vmatprep.subr.mxu0 %v1000
    %1552 = vmatpush1.msra.mxu0 %v999
    %1553 = vmatprep.subr.mxu0 %v1004
    %1554 = vmatpush1.msra.mxu0 %v1003
    %1555 = vmatprep.subr.mxu0 %v1008
    %1556 = vmatpush1.msra.mxu0 %v1007
    %1557 = vmatprep.subr.mxu0 %v1012
    %1558 = vmatpush1.msra.mxu0 %v1011
    %1559 = vmatprep.subr.mxu0 0.0
    %1560 = vmatpush1.msra.mxu0 0.0
    %1561 = vmatprep.subr.mxu0 0.0
    %1562 = vmatpush1.msra.mxu0 0.0
    %1563 = vmatprep.subr.mxu0 0.0
    %1564 = vmatpush1.msra.mxu0 0.0
    %1565 = vmatprep.subr.mxu0 0.0
    %1566 = vmatpush1.msra.mxu0 0.0
    %1567 = vmatprep.subr.mxu0 0.0
    %1568 = vmatpush1.msra.mxu0 0.0
    %1569 = vmatprep.subr.mxu0 0.0
    %1570 = vmatpush1.msra.mxu0 0.0
    %1571 = vmatprep.subr.mxu0 0.0
    %1572 = vmatpush1.msra.mxu0 0.0
    %1573 = vmatprep.subr.mxu0 0.0
    %1574 = vmatpush1.msra.mxu0 0.0
    %1575 = vmatprep.subr.mxu0 0.0
    %1576 = vmatpush1.msra.mxu0 0.0
    %1577 = vmatprep.subr.mxu0 0.0
    %1578 = vmatpush1.msra.mxu0 0.0
    %1579 = vmatprep.subr.mxu0 0.0
    %1580 = vmatpush1.msra.mxu0 0.0
    %1581 = vmatprep.subr.mxu0 0.0
    %1582 = vmatpush1.msra.mxu0 0.0
    %1583 = vmatprep.subr.mxu0 0.0
    %1584 = vmatpush1.msra.mxu0 0.0
    %1585 = vmatprep.subr.mxu0 0.0
    %1586 = vmatpush1.msra.mxu0 0.0
    %1587 = vmatprep.subr.mxu0 0.0
    %1588 = vmatpush1.msra.mxu0 0.0
    %1589 = vmatprep.subr.mxu0 0.0
    %1590 = vmatpush1.msra.mxu0 0.0
    %1591 = vmatprep.mubr.f32.mxu0 0.0
    %1592 = vmatmul.mubr.f32.gmra.mrb[0].mxu0 %v1367
    %v1593 = vpop.f32.mrb[0].mxu0
    %v1594 = vadd.f32 0.0, %v1593
    %v1595 = vpop.f32.mrb[0].mxu0
    %v1596 = vadd.f32 0.0, %v1595
    %1597 = vdwg.mxu0
    %1598 = vmatprep.subr.mxu0 %v954
    %1599 = vmatpush1.msra.mxu0 %v953
    %1600 = vmatprep.subr.mxu0 %v958
    %1601 = vmatpush1.msra.mxu0 %v957
    %1602 = vmatprep.subr.mxu0 %v962
    %1603 = vmatpush1.msra.mxu0 %v961
    %1604 = vmatprep.subr.mxu0 %v966
    %1605 = vmatpush1.msra.mxu0 %v965
    %1606 = vmatprep.subr.mxu0 %v970
    %1607 = vmatpush1.msra.mxu0 %v969
    %1608 = vmatprep.subr.mxu0 %v974
    %1609 = vmatpush1.msra.mxu0 %v973
    %1610 = vmatprep.subr.mxu0 %v978
    %1611 = vmatpush1.msra.mxu0 %v977
    %1612 = vmatprep.subr.mxu0 %v982
    %1613 = vmatpush1.msra.mxu0 %v981
    %1614 = vmatprep.subr.mxu0 %v986
    %1615 = vmatpush1.msra.mxu0 %v985
    %1616 = vmatprep.subr.mxu0 %v990
    %1617 = vmatpush1.msra.mxu0 %v989
    %1618 = vmatprep.subr.mxu0 %v994
    %1619 = vmatpush1.msra.mxu0 %v993
    %1620 = vmatprep.subr.mxu0 %v998
    %1621 = vmatpush1.msra.mxu0 %v997
    %1622 = vmatprep.subr.mxu0 %v1002
    %1623 = vmatpush1.msra.mxu0 %v1001
    %1624 = vmatprep.subr.mxu0 %v1006
    %1625 = vmatpush1.msra.mxu0 %v1005
    %1626 = vmatprep.subr.mxu0 %v1010
    %1627 = vmatpush1.msra.mxu0 %v1009
    %1628 = vmatprep.subr.mxu0 %v1014
    %1629 = vmatpush1.msra.mxu0 %v1013
    %1630 = vmatprep.subr.mxu0 0.0
    %1631 = vmatpush1.msra.mxu0 0.0
    %1632 = vmatprep.subr.mxu0 0.0
    %1633 = vmatpush1.msra.mxu0 0.0
    %1634 = vmatprep.subr.mxu0 0.0
    %1635 = vmatpush1.msra.mxu0 0.0
    %1636 = vmatprep.subr.mxu0 0.0
    %1637 = vmatpush1.msra.mxu0 0.0
    %1638 = vmatprep.subr.mxu0 0.0
    %1639 = vmatpush1.msra.mxu0 0.0
    %1640 = vmatprep.subr.mxu0 0.0
    %1641 = vmatpush1.msra.mxu0 0.0
    %1642 = vmatprep.subr.mxu0 0.0
    %1643 = vmatpush1.msra.mxu0 0.0
    %1644 = vmatprep.subr.mxu0 0.0
    %1645 = vmatpush1.msra.mxu0 0.0
    %1646 = vmatprep.subr.mxu0 0.0
    %1647 = vmatpush1.msra.mxu0 0.0
    %1648 = vmatprep.subr.mxu0 0.0
    %1649 = vmatpush1.msra.mxu0 0.0
    %1650 = vmatprep.subr.mxu0 0.0
    %1651 = vmatpush1.msra.mxu0 0.0
    %1652 = vmatprep.subr.mxu0 0.0
    %1653 = vmatpush1.msra.mxu0 0.0
    %1654 = vmatprep.subr.mxu0 0.0
    %1655 = vmatpush1.msra.mxu0 0.0
    %1656 = vmatprep.subr.mxu0 0.0
    %1657 = vmatpush1.msra.mxu0 0.0
    %1658 = vmatprep.subr.mxu0 0.0
    %1659 = vmatpush1.msra.mxu0 0.0
    %1660 = vmatprep.subr.mxu0 0.0
    %1661 = vmatpush1.msra.mxu0 0.0
    %1662 = vmatprep.mubr.f32.mxu0 0.0
    %1663 = vmatmul.mubr.f32.gmra.mrb[0].mxu0 %v1367
    %v1664 = vpop.f32.mrb[0].mxu0
    %v1665 = vadd.f32 0.0, %v1664
    %v1666 = vpop.f32.mrb[0].mxu0
    %v1667 = vadd.f32 0.0, %v1666
    %1668 = vdwg.mxu0
    %v1669 = vadd.f32 %v1523, %v1594
    %v1670 = vadd.f32 %v1524, %v1596
    %v1671 = vadd.f32 %v1525, %v1665
    %v1672 = vadd.f32 %v1526, %v1667
    %v1673 = vxor.u32 %v1518, 2147483648
    %v1674 = vmul.f32 %v1673, 1.442695
    %v1675 = vpow.pop %v1674
    %v1676 = vadd.f32 %v1675, 1.0
    %v1677 = vrcp.pop %v1676
    %v1678 = vmul.f32 1.0, %v1677
    %v1679 = vxor.u32 %v1519, 2147483648
    %v1680 = vmul.f32 %v1679, 1.442695
    %v1681 = vpow.pop %v1680
    %v1682 = vadd.f32 %v1681, 1.0
    %v1683 = vrcp.pop %v1682
    %v1684 = vmul.f32 1.0, %v1683
    %v1685 = vtanh.pop %v1520
    %v1686 = vxor.u32 %v1521, 2147483648
    %v1687 = vmul.f32 %v1686, 1.442695
    %v1688 = vpow.pop %v1687
    %v1689 = vadd.f32 %v1688, 1.0
    %v1690 = vrcp.pop %v1689
    %v1691 = vmul.f32 1.0, %v1690
    %v1692 = vmul.f32 %v1684, %v1341
    %v1693 = vmul.f32 %v1678, %v1685
    %v1694 = vadd.f32 %v1692, %v1693
    %v1695 = vtanh.pop %v1694
    %v1696 = vmul.f32 %v1691, %v1695
    %v1697 = vxor.u32 %v1669, 2147483648
    %v1698 = vmul.f32 %v1697, 1.442695
    %v1699 = vpow.pop %v1698
    %v1700 = vadd.f32 %v1699, 1.0
    %v1701 = vrcp.pop %v1700
    %v1702 = vmul.f32 1.0, %v1701
    %v1703 = vxor.u32 %v1670, 2147483648
    %v1704 = vmul.f32 %v1703, 1.442695
    %v1705 = vpow.pop %v1704
    %v1706 = vadd.f32 %v1705, 1.0
    %v1707 = vrcp.pop %v1706
    %v1708 = vmul.f32 1.0, %v1707
    %v1709 = vtanh.pop %v1671
    %v1710 = vxor.u32 %v1672, 2147483648
    %v1711 = vmul.f32 %v1710, 1.442695
    %v1712 = vpow.pop %v1711
    %v1713 = vadd.f32 %v1712, 1.0
    %v1714 = vrcp.pop %v1713
    %v1715 = vmul.f32 1.0, %v1714
    %v1716 = vmul.f32 %v1708, %v1365
    %v1717 = vmul.f32 %v1702, %v1709
    %v1718 = vadd.f32 %v1716, %v1717
    %v1719 = vtanh.pop %v1718
    %v1720 = vmul.f32 %v1715, %v1719
    %s1721 = scalar_lea.vmem %s7, 8
    %1722 = vst [vmem:[%s1721] sm:$0xff] %v1696
    %s1723 = scalar_lea.vmem %s67, 48
    %1724 = vst [vmem:[%s1723] sm:$0xff] %v1720
    %s1725 = scalar_lea.vmem [#allocation2], 64
    %v1726 = vld [vmem:[%s1725] sm:$0xff]
    %v1727 = vld [vmem:[%s1725 + $0x8] sm:$0xff]
    %v1728 = vld [vmem:[%s1725 + $0x10] sm:$0xff]
    %v1729 = vld [vmem:[%s1725 + $0x18] sm:$0xff]
    %1730 = vmatprep.subr.mxu0 %v888
    %1731 = vmatpush1.msra.mxu0 %v887
    %1732 = vmatprep.subr.mxu0 %v892
    %1733 = vmatpush1.msra.mxu0 %v891
    %1734 = vmatprep.subr.mxu0 %v896
    %1735 = vmatpush1.msra.mxu0 %v895
    %1736 = vmatprep.subr.mxu0 %v900
    %1737 = vmatpush1.msra.mxu0 %v899
    %1738 = vmatprep.subr.mxu0 %v904
    %1739 = vmatpush1.msra.mxu0 %v903
    %1740 = vmatprep.subr.mxu0 %v908
    %1741 = vmatpush1.msra.mxu0 %v907
    %1742 = vmatprep.subr.mxu0 %v912
    %1743 = vmatpush1.msra.mxu0 %v911
    %1744 = vmatprep.subr.mxu0 %v916
    %1745 = vmatpush1.msra.mxu0 %v915
    %1746 = vmatprep.subr.mxu0 %v920
    %1747 = vmatpush1.msra.mxu0 %v919
    %1748 = vmatprep.subr.mxu0 %v924
    %1749 = vmatpush1.msra.mxu0 %v923
    %1750 = vmatprep.subr.mxu0 %v928
    %1751 = vmatpush1.msra.mxu0 %v927
    %1752 = vmatprep.subr.mxu0 %v932
    %1753 = vmatpush1.msra.mxu0 %v931
    %1754 = vmatprep.subr.mxu0 %v936
    %1755 = vmatpush1.msra.mxu0 %v935
    %1756 = vmatprep.subr.mxu0 %v940
    %1757 = vmatpush1.msra.mxu0 %v939
    %1758 = vmatprep.subr.mxu0 %v944
    %1759 = vmatpush1.msra.mxu0 %v943
    %1760 = vmatprep.subr.mxu0 %v948
    %1761 = vmatpush1.msra.mxu0 %v947
    %1762 = vmatprep.subr.mxu0 0.0
    %1763 = vmatpush1.msra.mxu0 0.0
    %1764 = vmatprep.subr.mxu0 0.0
    %1765 = vmatpush1.msra.mxu0 0.0
    %1766 = vmatprep.subr.mxu0 0.0
    %1767 = vmatpush1.msra.mxu0 0.0
    %1768 = vmatprep.subr.mxu0 0.0
    %1769 = vmatpush1.msra.mxu0 0.0
    %1770 = vmatprep.subr.mxu0 0.0
    %1771 = vmatpush1.msra.mxu0 0.0
    %1772 = vmatprep.subr.mxu0 0.0
    %1773 = vmatpush1.msra.mxu0 0.0
    %1774 = vmatprep.subr.mxu0 0.0
    %1775 = vmatpush1.msra.mxu0 0.0
    %1776 = vmatprep.subr.mxu0 0.0
    %1777 = vmatpush1.msra.mxu0 0.0
    %1778 = vmatprep.subr.mxu0 0.0
    %1779 = vmatpush1.msra.mxu0 0.0
    %1780 = vmatprep.subr.mxu0 0.0
    %1781 = vmatpush1.msra.mxu0 0.0
    %1782 = vmatprep.subr.mxu0 0.0
    %1783 = vmatpush1.msra.mxu0 0.0
    %1784 = vmatprep.subr.mxu0 0.0
    %1785 = vmatpush1.msra.mxu0 0.0
    %1786 = vmatprep.subr.mxu0 0.0
    %1787 = vmatpush1.msra.mxu0 0.0
    %1788 = vmatprep.subr.mxu0 0.0
    %1789 = vmatpush1.msra.mxu0 0.0
    %1790 = vmatprep.subr.mxu0 0.0
    %1791 = vmatpush1.msra.mxu0 0.0
    %1792 = vmatprep.subr.mxu0 0.0
    %1793 = vmatpush1.msra.mxu0 0.0
    %1794 = vmatprep.mubr.f32.mxu0 0.0
    %1795 = vmatmul.mubr.f32.gmra.mrb[0].mxu0 %v1696
    %v1796 = vpop.f32.mrb[0].mxu0
    %v1797 = vadd.f32 0.0, %v1796
    %v1798 = vpop.f32.mrb[0].mxu0
    %v1799 = vadd.f32 0.0, %v1798
    %1800 = vdwg.mxu0
    %1801 = vmatprep.subr.mxu0 %v890
    %1802 = vmatpush1.msra.mxu0 %v889
    %1803 = vmatprep.subr.mxu0 %v894
    %1804 = vmatpush1.msra.mxu0 %v893
    %1805 = vmatprep.subr.mxu0 %v898
    %1806 = vmatpush1.msra.mxu0 %v897
    %1807 = vmatprep.subr.mxu0 %v902
    %1808 = vmatpush1.msra.mxu0 %v901
    %1809 = vmatprep.subr.mxu0 %v906
    %1810 = vmatpush1.msra.mxu0 %v905
    %1811 = vmatprep.subr.mxu0 %v910
    %1812 = vmatpush1.msra.mxu0 %v909
    %1813 = vmatprep.subr.mxu0 %v914
    %1814 = vmatpush1.msra.mxu0 %v913
    %1815 = vmatprep.subr.mxu0 %v918
    %1816 = vmatpush1.msra.mxu0 %v917
    %1817 = vmatprep.subr.mxu0 %v922
    %1818 = vmatpush1.msra.mxu0 %v921
    %1819 = vmatprep.subr.mxu0 %v926
    %1820 = vmatpush1.msra.mxu0 %v925
    %1821 = vmatprep.subr.mxu0 %v930
    %1822 = vmatpush1.msra.mxu0 %v929
    %1823 = vmatprep.subr.mxu0 %v934
    %1824 = vmatpush1.msra.mxu0 %v933
    %1825 = vmatprep.subr.mxu0 %v938
    %1826 = vmatpush1.msra.mxu0 %v937
    %1827 = vmatprep.subr.mxu0 %v942
    %1828 = vmatpush1.msra.mxu0 %v941
    %1829 = vmatprep.subr.mxu0 %v946
    %1830 = vmatpush1.msra.mxu0 %v945
    %1831 = vmatprep.subr.mxu0 %v950
    %1832 = vmatpush1.msra.mxu0 %v949
    %1833 = vmatprep.subr.mxu0 0.0
    %1834 = vmatpush1.msra.mxu0 0.0
    %1835 = vmatprep.subr.mxu0 0.0
    %1836 = vmatpush1.msra.mxu0 0.0
    %1837 = vmatprep.subr.mxu0 0.0
    %1838 = vmatpush1.msra.mxu0 0.0
    %1839 = vmatprep.subr.mxu0 0.0
    %1840 = vmatpush1.msra.mxu0 0.0
    %1841 = vmatprep.subr.mxu0 0.0
    %1842 = vmatpush1.msra.mxu0 0.0
    %1843 = vmatprep.subr.mxu0 0.0
    %1844 = vmatpush1.msra.mxu0 0.0
    %1845 = vmatprep.subr.mxu0 0.0
    %1846 = vmatpush1.msra.mxu0 0.0
    %1847 = vmatprep.subr.mxu0 0.0
    %1848 = vmatpush1.msra.mxu0 0.0
    %1849 = vmatprep.subr.mxu0 0.0
    %1850 = vmatpush1.msra.mxu0 0.0
    %1851 = vmatprep.subr.mxu0 0.0
    %1852 = vmatpush1.msra.mxu0 0.0
    %1853 = vmatprep.subr.mxu0 0.0
    %1854 = vmatpush1.msra.mxu0 0.0
    %1855 = vmatprep.subr.mxu0 0.0
    %1856 = vmatpush1.msra.mxu0 0.0
    %1857 = vmatprep.subr.mxu0 0.0
    %1858 = vmatpush1.msra.mxu0 0.0
    %1859 = vmatprep.subr.mxu0 0.0
    %1860 = vmatpush1.msra.mxu0 0.0
    %1861 = vmatprep.subr.mxu0 0.0
    %1862 = vmatpush1.msra.mxu0 0.0
    %1863 = vmatprep.subr.mxu0 0.0
    %1864 = vmatpush1.msra.mxu0 0.0
    %1865 = vmatprep.mubr.f32.mxu0 0.0
    %1866 = vmatmul.mubr.f32.gmra.mrb[0].mxu0 %v1696
    %v1867 = vpop.f32.mrb[0].mxu0
    %v1868 = vadd.f32 0.0, %v1867
    %v1869 = vpop.f32.mrb[0].mxu0
    %v1870 = vadd.f32 0.0, %v1869
    %1871 = vdwg.mxu0
    %v1872 = vadd.f32 %v1726, %v1797
    %v1873 = vadd.f32 %v1727, %v1799
    %v1874 = vadd.f32 %v1728, %v1868
    %v1875 = vadd.f32 %v1729, %v1870
    %s1876 = scalar_lea.vmem [#allocation3], 160
    %v1877 = vld [vmem:[%s1876] sm:$0xff]
    %v1878 = vld [vmem:[%s1876 + $0x8] sm:$0xff]
    %v1879 = vld [vmem:[%s1876 + $0x10] sm:$0xff]
    %v1880 = vld [vmem:[%s1876 + $0x18] sm:$0xff]
    %1881 = vmatprep.subr.mxu0 %v952
    %1882 = vmatpush1.msra.mxu0 %v951
    %1883 = vmatprep.subr.mxu0 %v956
    %1884 = vmatpush1.msra.mxu0 %v955
    %1885 = vmatprep.subr.mxu0 %v960
    %1886 = vmatpush1.msra.mxu0 %v959
    %1887 = vmatprep.subr.mxu0 %v964
    %1888 = vmatpush1.msra.mxu0 %v963
    %1889 = vmatprep.subr.mxu0 %v968
    %1890 = vmatpush1.msra.mxu0 %v967
    %1891 = vmatprep.subr.mxu0 %v972
    %1892 = vmatpush1.msra.mxu0 %v971
    %1893 = vmatprep.subr.mxu0 %v976
    %1894 = vmatpush1.msra.mxu0 %v975
    %1895 = vmatprep.subr.mxu0 %v980
    %1896 = vmatpush1.msra.mxu0 %v979
    %1897 = vmatprep.subr.mxu0 %v984
    %1898 = vmatpush1.msra.mxu0 %v983
    %1899 = vmatprep.subr.mxu0 %v988
    %1900 = vmatpush1.msra.mxu0 %v987
    %1901 = vmatprep.subr.mxu0 %v992
    %1902 = vmatpush1.msra.mxu0 %v991
    %1903 = vmatprep.subr.mxu0 %v996
    %1904 = vmatpush1.msra.mxu0 %v995
    %1905 = vmatprep.subr.mxu0 %v1000
    %1906 = vmatpush1.msra.mxu0 %v999
    %1907 = vmatprep.subr.mxu0 %v1004
    %1908 = vmatpush1.msra.mxu0 %v1003
    %1909 = vmatprep.subr.mxu0 %v1008
    %1910 = vmatpush1.msra.mxu0 %v1007
    %1911 = vmatprep.subr.mxu0 %v1012
    %1912 = vmatpush1.msra.mxu0 %v1011
    %1913 = vmatprep.subr.mxu0 0.0
    %1914 = vmatpush1.msra.mxu0 0.0
    %1915 = vmatprep.subr.mxu0 0.0
    %1916 = vmatpush1.msra.mxu0 0.0
    %1917 = vmatprep.subr.mxu0 0.0
    %1918 = vmatpush1.msra.mxu0 0.0
    %1919 = vmatprep.subr.mxu0 0.0
    %1920 = vmatpush1.msra.mxu0 0.0
    %1921 = vmatprep.subr.mxu0 0.0
    %1922 = vmatpush1.msra.mxu0 0.0
    %1923 = vmatprep.subr.mxu0 0.0
    %1924 = vmatpush1.msra.mxu0 0.0
    %1925 = vmatprep.subr.mxu0 0.0
    %1926 = vmatpush1.msra.mxu0 0.0
    %1927 = vmatprep.subr.mxu0 0.0
    %1928 = vmatpush1.msra.mxu0 0.0
    %1929 = vmatprep.subr.mxu0 0.0
    %1930 = vmatpush1.msra.mxu0 0.0
    %1931 = vmatprep.subr.mxu0 0.0
    %1932 = vmatpush1.msra.mxu0 0.0
    %1933 = vmatprep.subr.mxu0 0.0
    %1934 = vmatpush1.msra.mxu0 0.0
    %1935 = vmatprep.subr.mxu0 0.0
    %1936 = vmatpush1.msra.mxu0 0.0
    %1937 = vmatprep.subr.mxu0 0.0
    %1938 = vmatpush1.msra.mxu0 0.0
    %1939 = vmatprep.subr.mxu0 0.0
    %1940 = vmatpush1.msra.mxu0 0.0
    %1941 = vmatprep.subr.mxu0 0.0
    %1942 = vmatpush1.msra.mxu0 0.0
    %1943 = vmatprep.subr.mxu0 0.0
    %1944 = vmatpush1.msra.mxu0 0.0
    %1945 = vmatprep.mubr.f32.mxu0 0.0
    %1946 = vmatmul.mubr.f32.gmra.mrb[0].mxu0 %v1720
    %v1947 = vpop.f32.mrb[0].mxu0
    %v1948 = vadd.f32 0.0, %v1947
    %v1949 = vpop.f32.mrb[0].mxu0
    %v1950 = vadd.f32 0.0, %v1949
    %1951 = vdwg.mxu0
    %1952 = vmatprep.subr.mxu0 %v954
    %1953 = vmatpush1.msra.mxu0 %v953
    %1954 = vmatprep.subr.mxu0 %v958
    %1955 = vmatpush1.msra.mxu0 %v957
    %1956 = vmatprep.subr.mxu0 %v962
    %1957 = vmatpush1.msra.mxu0 %v961
    %1958 = vmatprep.subr.mxu0 %v966
    %1959 = vmatpush1.msra.mxu0 %v965
    %1960 = vmatprep.subr.mxu0 %v970
    %1961 = vmatpush1.msra.mxu0 %v969
    %1962 = vmatprep.subr.mxu0 %v974
    %1963 = vmatpush1.msra.mxu0 %v973
    %1964 = vmatprep.subr.mxu0 %v978
    %1965 = vmatpush1.msra.mxu0 %v977
    %1966 = vmatprep.subr.mxu0 %v982
    %1967 = vmatpush1.msra.mxu0 %v981
    %1968 = vmatprep.subr.mxu0 %v986
    %1969 = vmatpush1.msra.mxu0 %v985
    %1970 = vmatprep.subr.mxu0 %v990
    %1971 = vmatpush1.msra.mxu0 %v989
    %1972 = vmatprep.subr.mxu0 %v994
    %1973 = vmatpush1.msra.mxu0 %v993
    %1974 = vmatprep.subr.mxu0 %v998
    %1975 = vmatpush1.msra.mxu0 %v997
    %1976 = vmatprep.subr.mxu0 %v1002
    %1977 = vmatpush1.msra.mxu0 %v1001
    %1978 = vmatprep.subr.mxu0 %v1006
    %1979 = vmatpush1.msra.mxu0 %v1005
    %1980 = vmatprep.subr.mxu0 %v1010
    %1981 = vmatpush1.msra.mxu0 %v1009
    %1982 = vmatprep.subr.mxu0 %v1014
    %1983 = vmatpush1.msra.mxu0 %v1013
    %1984 = vmatprep.subr.mxu0 0.0
    %1985 = vmatpush1.msra.mxu0 0.0
    %1986 = vmatprep.subr.mxu0 0.0
    %1987 = vmatpush1.msra.mxu0 0.0
    %1988 = vmatprep.subr.mxu0 0.0
    %1989 = vmatpush1.msra.mxu0 0.0
    %1990 = vmatprep.subr.mxu0 0.0
    %1991 = vmatpush1.msra.mxu0 0.0
    %1992 = vmatprep.subr.mxu0 0.0
    %1993 = vmatpush1.msra.mxu0 0.0
    %1994 = vmatprep.subr.mxu0 0.0
    %1995 = vmatpush1.msra.mxu0 0.0
    %1996 = vmatprep.subr.mxu0 0.0
    %1997 = vmatpush1.msra.mxu0 0.0
    %1998 = vmatprep.subr.mxu0 0.0
    %1999 = vmatpush1.msra.mxu0 0.0
    %2000 = vmatprep.subr.mxu0 0.0
    %2001 = vmatpush1.msra.mxu0 0.0
    %2002 = vmatprep.subr.mxu0 0.0
    %2003 = vmatpush1.msra.mxu0 0.0
    %2004 = vmatprep.subr.mxu0 0.0
    %2005 = vmatpush1.msra.mxu0 0.0
    %2006 = vmatprep.subr.mxu0 0.0
    %2007 = vmatpush1.msra.mxu0 0.0
    %2008 = vmatprep.subr.mxu0 0.0
    %2009 = vmatpush1.msra.mxu0 0.0
    %2010 = vmatprep.subr.mxu0 0.0
    %2011 = vmatpush1.msra.mxu0 0.0
    %2012 = vmatprep.subr.mxu0 0.0
    %2013 = vmatpush1.msra.mxu0 0.0
    %2014 = vmatprep.subr.mxu0 0.0
    %2015 = vmatpush1.msra.mxu0 0.0
    %2016 = vmatprep.mubr.f32.mxu0 0.0
    %2017 = vmatmul.mubr.f32.gmra.mrb[0].mxu0 %v1720
    %v2018 = vpop.f32.mrb[0].mxu0
    %v2019 = vadd.f32 0.0, %v2018
    %v2020 = vpop.f32.mrb[0].mxu0
    %v2021 = vadd.f32 0.0, %v2020
    %2022 = vdwg.mxu0
    %v2023 = vadd.f32 %v1877, %v1948
    %v2024 = vadd.f32 %v1878, %v1950
    %v2025 = vadd.f32 %v1879, %v2019
    %v2026 = vadd.f32 %v1880, %v2021
    %v2027 = vxor.u32 %v1872, 2147483648
    %v2028 = vmul.f32 %v2027, 1.442695
    %v2029 = vpow.pop %v2028
    %v2030 = vadd.f32 %v2029, 1.0
    %v2031 = vrcp.pop %v2030
    %v2032 = vmul.f32 1.0, %v2031
    %v2033 = vxor.u32 %v1873, 2147483648
    %v2034 = vmul.f32 %v2033, 1.442695
    %v2035 = vpow.pop %v2034
    %v2036 = vadd.f32 %v2035, 1.0
    %v2037 = vrcp.pop %v2036
    %v2038 = vmul.f32 1.0, %v2037
    %v2039 = vtanh.pop %v1874
    %v2040 = vxor.u32 %v1875, 2147483648
    %v2041 = vmul.f32 %v2040, 1.442695
    %v2042 = vpow.pop %v2041
    %v2043 = vadd.f32 %v2042, 1.0
    %v2044 = vrcp.pop %v2043
    %v2045 = vmul.f32 1.0, %v2044
    %v2046 = vmul.f32 %v2038, %v1694
    %v2047 = vmul.f32 %v2032, %v2039
    %v2048 = vadd.f32 %v2046, %v2047
    %v2049 = vtanh.pop %v2048
    %v2050 = vmul.f32 %v2045, %v2049
    %v2051 = vxor.u32 %v2023, 2147483648
    %v2052 = vmul.f32 %v2051, 1.442695
    %v2053 = vpow.pop %v2052
    %v2054 = vadd.f32 %v2053, 1.0
    %v2055 = vrcp.pop %v2054
    %v2056 = vmul.f32 1.0, %v2055
    %v2057 = vxor.u32 %v2024, 2147483648
    %v2058 = vmul.f32 %v2057, 1.442695
    %v2059 = vpow.pop %v2058
    %v2060 = vadd.f32 %v2059, 1.0
    %v2061 = vrcp.pop %v2060
    %v2062 = vmul.f32 1.0, %v2061
    %v2063 = vtanh.pop %v2025
    %v2064 = vxor.u32 %v2026, 2147483648
    %v2065 = vmul.f32 %v2064, 1.442695
    %v2066 = vpow.pop %v2065
    %v2067 = vadd.f32 %v2066, 1.0
    %v2068 = vrcp.pop %v2067
    %v2069 = vmul.f32 1.0, %v2068
    %v2070 = vmul.f32 %v2062, %v1718
    %v2071 = vmul.f32 %v2056, %v2063
    %v2072 = vadd.f32 %v2070, %v2071
    %v2073 = vtanh.pop %v2072
    %v2074 = vmul.f32 %v2069, %v2073
    %s2075 = scalar_lea.vmem %s7, 16
    %2076 = vst [vmem:[%s2075] sm:$0xff] %v2050
    %s2077 = scalar_lea.vmem %s67, 40
    %2078 = vst [vmem:[%s2077] sm:$0xff] %v2074
    %s2079 = scalar_lea.vmem [#allocation2], 96
    %v2080 = vld [vmem:[%s2079] sm:$0xff]
    %v2081 = vld [vmem:[%s2079 + $0x8] sm:$0xff]
    %v2082 = vld [vmem:[%s2079 + $0x10] sm:$0xff]
    %v2083 = vld [vmem:[%s2079 + $0x18] sm:$0xff]
    %2084 = vmatprep.subr.mxu0 %v888
    %2085 = vmatpush1.msra.mxu0 %v887
    %2086 = vmatprep.subr.mxu0 %v892
    %2087 = vmatpush1.msra.mxu0 %v891
    %2088 = vmatprep.subr.mxu0 %v896
    %2089 = vmatpush1.msra.mxu0 %v895
    %2090 = vmatprep.subr.mxu0 %v900
    %2091 = vmatpush1.msra.mxu0 %v899
    %2092 = vmatprep.subr.mxu0 %v904
    %2093 = vmatpush1.msra.mxu0 %v903
    %2094 = vmatprep.subr.mxu0 %v908
    %2095 = vmatpush1.msra.mxu0 %v907
    %2096 = vmatprep.subr.mxu0 %v912
    %2097 = vmatpush1.msra.mxu0 %v911
    %2098 = vmatprep.subr.mxu0 %v916
    %2099 = vmatpush1.msra.mxu0 %v915
    %2100 = vmatprep.subr.mxu0 %v920
    %2101 = vmatpush1.msra.mxu0 %v919
    %2102 = vmatprep.subr.mxu0 %v924
    %2103 = vmatpush1.msra.mxu0 %v923
    %2104 = vmatprep.subr.mxu0 %v928
    %2105 = vmatpush1.msra.mxu0 %v927
    %2106 = vmatprep.subr.mxu0 %v932
    %2107 = vmatpush1.msra.mxu0 %v931
    %2108 = vmatprep.subr.mxu0 %v936
    %2109 = vmatpush1.msra.mxu0 %v935
    %2110 = vmatprep.subr.mxu0 %v940
    %2111 = vmatpush1.msra.mxu0 %v939
    %2112 = vmatprep.subr.mxu0 %v944
    %2113 = vmatpush1.msra.mxu0 %v943
    %2114 = vmatprep.subr.mxu0 %v948
    %2115 = vmatpush1.msra.mxu0 %v947
    %2116 = vmatprep.subr.mxu0 0.0
    %2117 = vmatpush1.msra.mxu0 0.0
    %2118 = vmatprep.subr.mxu0 0.0
    %2119 = vmatpush1.msra.mxu0 0.0
    %2120 = vmatprep.subr.mxu0 0.0
    %2121 = vmatpush1.msra.mxu0 0.0
    %2122 = vmatprep.subr.mxu0 0.0
    %2123 = vmatpush1.msra.mxu0 0.0
    %2124 = vmatprep.subr.mxu0 0.0
    %2125 = vmatpush1.msra.mxu0 0.0
    %2126 = vmatprep.subr.mxu0 0.0
    %2127 = vmatpush1.msra.mxu0 0.0
    %2128 = vmatprep.subr.mxu0 0.0
    %2129 = vmatpush1.msra.mxu0 0.0
    %2130 = vmatprep.subr.mxu0 0.0
    %2131 = vmatpush1.msra.mxu0 0.0
    %2132 = vmatprep.subr.mxu0 0.0
    %2133 = vmatpush1.msra.mxu0 0.0
    %2134 = vmatprep.subr.mxu0 0.0
    %2135 = vmatpush1.msra.mxu0 0.0
    %2136 = vmatprep.subr.mxu0 0.0
    %2137 = vmatpush1.msra.mxu0 0.0
    %2138 = vmatprep.subr.mxu0 0.0
    %2139 = vmatpush1.msra.mxu0 0.0
    %2140 = vmatprep.subr.mxu0 0.0
    %2141 = vmatpush1.msra.mxu0 0.0
    %2142 = vmatprep.subr.mxu0 0.0
    %2143 = vmatpush1.msra.mxu0 0.0
    %2144 = vmatprep.subr.mxu0 0.0
    %2145 = vmatpush1.msra.mxu0 0.0
    %2146 = vmatprep.subr.mxu0 0.0
    %2147 = vmatpush1.msra.mxu0 0.0
    %2148 = vmatprep.mubr.f32.mxu0 0.0
    %2149 = vmatmul.mubr.f32.gmra.mrb[0].mxu0 %v2050
    %v2150 = vpop.f32.mrb[0].mxu0
    %v2151 = vadd.f32 0.0, %v2150
    %v2152 = vpop.f32.mrb[0].mxu0
    %v2153 = vadd.f32 0.0, %v2152
    %2154 = vdwg.mxu0
    %2155 = vmatprep.subr.mxu0 %v890
    %2156 = vmatpush1.msra.mxu0 %v889
    %2157 = vmatprep.subr.mxu0 %v894
    %2158 = vmatpush1.msra.mxu0 %v893
    %2159 = vmatprep.subr.mxu0 %v898
    %2160 = vmatpush1.msra.mxu0 %v897
    %2161 = vmatprep.subr.mxu0 %v902
    %2162 = vmatpush1.msra.mxu0 %v901
    %2163 = vmatprep.subr.mxu0 %v906
    %2164 = vmatpush1.msra.mxu0 %v905
    %2165 = vmatprep.subr.mxu0 %v910
    %2166 = vmatpush1.msra.mxu0 %v909
    %2167 = vmatprep.subr.mxu0 %v914
    %2168 = vmatpush1.msra.mxu0 %v913
    %2169 = vmatprep.subr.mxu0 %v918
    %2170 = vmatpush1.msra.mxu0 %v917
    %2171 = vmatprep.subr.mxu0 %v922
    %2172 = vmatpush1.msra.mxu0 %v921
    %2173 = vmatprep.subr.mxu0 %v926
    %2174 = vmatpush1.msra.mxu0 %v925
    %2175 = vmatprep.subr.mxu0 %v930
    %2176 = vmatpush1.msra.mxu0 %v929
    %2177 = vmatprep.subr.mxu0 %v934
    %2178 = vmatpush1.msra.mxu0 %v933
    %2179 = vmatprep.subr.mxu0 %v938
    %2180 = vmatpush1.msra.mxu0 %v937
    %2181 = vmatprep.subr.mxu0 %v942
    %2182 = vmatpush1.msra.mxu0 %v941
    %2183 = vmatprep.subr.mxu0 %v946
    %2184 = vmatpush1.msra.mxu0 %v945
    %2185 = vmatprep.subr.mxu0 %v950
    %2186 = vmatpush1.msra.mxu0 %v949
    %2187 = vmatprep.subr.mxu0 0.0
    %2188 = vmatpush1.msra.mxu0 0.0
    %2189 = vmatprep.subr.mxu0 0.0
    %2190 = vmatpush1.msra.mxu0 0.0
    %2191 = vmatprep.subr.mxu0 0.0
    %2192 = vmatpush1.msra.mxu0 0.0
    %2193 = vmatprep.subr.mxu0 0.0
    %2194 = vmatpush1.msra.mxu0 0.0
    %2195 = vmatprep.subr.mxu0 0.0
    %2196 = vmatpush1.msra.mxu0 0.0
    %2197 = vmatprep.subr.mxu0 0.0
    %2198 = vmatpush1.msra.mxu0 0.0
    %2199 = vmatprep.subr.mxu0 0.0
    %2200 = vmatpush1.msra.mxu0 0.0
    %2201 = vmatprep.subr.mxu0 0.0
    %2202 = vmatpush1.msra.mxu0 0.0
    %2203 = vmatprep.subr.mxu0 0.0
    %2204 = vmatpush1.msra.mxu0 0.0
    %2205 = vmatprep.subr.mxu0 0.0
    %2206 = vmatpush1.msra.mxu0 0.0
    %2207 = vmatprep.subr.mxu0 0.0
    %2208 = vmatpush1.msra.mxu0 0.0
    %2209 = vmatprep.subr.mxu0 0.0
    %2210 = vmatpush1.msra.mxu0 0.0
    %2211 = vmatprep.subr.mxu0 0.0
    %2212 = vmatpush1.msra.mxu0 0.0
    %2213 = vmatprep.subr.mxu0 0.0
    %2214 = vmatpush1.msra.mxu0 0.0
    %2215 = vmatprep.subr.mxu0 0.0
    %2216 = vmatpush1.msra.mxu0 0.0
    %2217 = vmatprep.subr.mxu0 0.0
    %2218 = vmatpush1.msra.mxu0 0.0
    %2219 = vmatprep.mubr.f32.mxu0 0.0
    %2220 = vmatmul.mubr.f32.gmra.mrb[0].mxu0 %v2050
    %v2221 = vpop.f32.mrb[0].mxu0
    %v2222 = vadd.f32 0.0, %v2221
    %v2223 = vpop.f32.mrb[0].mxu0
    %v2224 = vadd.f32 0.0, %v2223
    %2225 = vdwg.mxu0
    %v2226 = vadd.f32 %v2080, %v2151
    %v2227 = vadd.f32 %v2081, %v2153
    %v2228 = vadd.f32 %v2082, %v2222
    %v2229 = vadd.f32 %v2083, %v2224
    %s2230 = scalar_lea.vmem [#allocation3], 128
    %v2231 = vld [vmem:[%s2230] sm:$0xff]
    %v2232 = vld [vmem:[%s2230 + $0x8] sm:$0xff]
    %v2233 = vld [vmem:[%s2230 + $0x10] sm:$0xff]
    %v2234 = vld [vmem:[%s2230 + $0x18] sm:$0xff]
    %2235 = vmatprep.subr.mxu0 %v952
    %2236 = vmatpush1.msra.mxu0 %v951
    %2237 = vmatprep.subr.mxu0 %v956
    %2238 = vmatpush1.msra.mxu0 %v955
    %2239 = vmatprep.subr.mxu0 %v960
    %2240 = vmatpush1.msra.mxu0 %v959
    %2241 = vmatprep.subr.mxu0 %v964
    %2242 = vmatpush1.msra.mxu0 %v963
    %2243 = vmatprep.subr.mxu0 %v968
    %2244 = vmatpush1.msra.mxu0 %v967
    %2245 = vmatprep.subr.mxu0 %v972
    %2246 = vmatpush1.msra.mxu0 %v971
    %2247 = vmatprep.subr.mxu0 %v976
    %2248 = vmatpush1.msra.mxu0 %v975
    %2249 = vmatprep.subr.mxu0 %v980
    %2250 = vmatpush1.msra.mxu0 %v979
    %2251 = vmatprep.subr.mxu0 %v984
    %2252 = vmatpush1.msra.mxu0 %v983
    %2253 = vmatprep.subr.mxu0 %v988
    %2254 = vmatpush1.msra.mxu0 %v987
    %2255 = vmatprep.subr.mxu0 %v992
    %2256 = vmatpush1.msra.mxu0 %v991
    %2257 = vmatprep.subr.mxu0 %v996
    %2258 = vmatpush1.msra.mxu0 %v995
    %2259 = vmatprep.subr.mxu0 %v1000
    %2260 = vmatpush1.msra.mxu0 %v999
    %2261 = vmatprep.subr.mxu0 %v1004
    %2262 = vmatpush1.msra.mxu0 %v1003
    %2263 = vmatprep.subr.mxu0 %v1008
    %2264 = vmatpush1.msra.mxu0 %v1007
    %2265 = vmatprep.subr.mxu0 %v1012
    %2266 = vmatpush1.msra.mxu0 %v1011
    %2267 = vmatprep.subr.mxu0 0.0
    %2268 = vmatpush1.msra.mxu0 0.0
    %2269 = vmatprep.subr.mxu0 0.0
    %2270 = vmatpush1.msra.mxu0 0.0
    %2271 = vmatprep.subr.mxu0 0.0
    %2272 = vmatpush1.msra.mxu0 0.0
    %2273 = vmatprep.subr.mxu0 0.0
    %2274 = vmatpush1.msra.mxu0 0.0
    %2275 = vmatprep.subr.mxu0 0.0
    %2276 = vmatpush1.msra.mxu0 0.0
    %2277 = vmatprep.subr.mxu0 0.0
    %2278 = vmatpush1.msra.mxu0 0.0
    %2279 = vmatprep.subr.mxu0 0.0
    %2280 = vmatpush1.msra.mxu0 0.0
    %2281 = vmatprep.subr.mxu0 0.0
    %2282 = vmatpush1.msra.mxu0 0.0
    %2283 = vmatprep.subr.mxu0 0.0
    %2284 = vmatpush1.msra.mxu0 0.0
    %2285 = vmatprep.subr.mxu0 0.0
    %2286 = vmatpush1.msra.mxu0 0.0
    %2287 = vmatprep.subr.mxu0 0.0
    %2288 = vmatpush1.msra.mxu0 0.0
    %2289 = vmatprep.subr.mxu0 0.0
    %2290 = vmatpush1.msra.mxu0 0.0
    %2291 = vmatprep.subr.mxu0 0.0
    %2292 = vmatpush1.msra.mxu0 0.0
    %2293 = vmatprep.subr.mxu0 0.0
    %2294 = vmatpush1.msra.mxu0 0.0
    %2295 = vmatprep.subr.mxu0 0.0
    %2296 = vmatpush1.msra.mxu0 0.0
    %2297 = vmatprep.subr.mxu0 0.0
    %2298 = vmatpush1.msra.mxu0 0.0
    %2299 = vmatprep.mubr.f32.mxu0 0.0
    %2300 = vmatmul.mubr.f32.gmra.mrb[0].mxu0 %v2074
    %v2301 = vpop.f32.mrb[0].mxu0
    %v2302 = vadd.f32 0.0, %v2301
    %v2303 = vpop.f32.mrb[0].mxu0
    %v2304 = vadd.f32 0.0, %v2303
    %2305 = vdwg.mxu0
    %2306 = vmatprep.subr.mxu0 %v954
    %2307 = vmatpush1.msra.mxu0 %v953
    %2308 = vmatprep.subr.mxu0 %v958
    %2309 = vmatpush1.msra.mxu0 %v957
    %2310 = vmatprep.subr.mxu0 %v962
    %2311 = vmatpush1.msra.mxu0 %v961
    %2312 = vmatprep.subr.mxu0 %v966
    %2313 = vmatpush1.msra.mxu0 %v965
    %2314 = vmatprep.subr.mxu0 %v970
    %2315 = vmatpush1.msra.mxu0 %v969
    %2316 = vmatprep.subr.mxu0 %v974
    %2317 = vmatpush1.msra.mxu0 %v973
    %2318 = vmatprep.subr.mxu0 %v978
    %2319 = vmatpush1.msra.mxu0 %v977
    %2320 = vmatprep.subr.mxu0 %v982
    %2321 = vmatpush1.msra.mxu0 %v981
    %2322 = vmatprep.subr.mxu0 %v986
    %2323 = vmatpush1.msra.mxu0 %v985
    %2324 = vmatprep.subr.mxu0 %v990
    %2325 = vmatpush1.msra.mxu0 %v989
    %2326 = vmatprep.subr.mxu0 %v994
    %2327 = vmatpush1.msra.mxu0 %v993
    %2328 = vmatprep.subr.mxu0 %v998
    %2329 = vmatpush1.msra.mxu0 %v997
    %2330 = vmatprep.subr.mxu0 %v1002
    %2331 = vmatpush1.msra.mxu0 %v1001
    %2332 = vmatprep.subr.mxu0 %v1006
    %2333 = vmatpush1.msra.mxu0 %v1005
    %2334 = vmatprep.subr.mxu0 %v1010
    %2335 = vmatpush1.msra.mxu0 %v1009
    %2336 = vmatprep.subr.mxu0 %v1014
    %2337 = vmatpush1.msra.mxu0 %v1013
    %2338 = vmatprep.subr.mxu0 0.0
    %2339 = vmatpush1.msra.mxu0 0.0
    %2340 = vmatprep.subr.mxu0 0.0
    %2341 = vmatpush1.msra.mxu0 0.0
    %2342 = vmatprep.subr.mxu0 0.0
    %2343 = vmatpush1.msra.mxu0 0.0
    %2344 = vmatprep.subr.mxu0 0.0
    %2345 = vmatpush1.msra.mxu0 0.0
    %2346 = vmatprep.subr.mxu0 0.0
    %2347 = vmatpush1.msra.mxu0 0.0
    %2348 = vmatprep.subr.mxu0 0.0
    %2349 = vmatpush1.msra.mxu0 0.0
    %2350 = vmatprep.subr.mxu0 0.0
    %2351 = vmatpush1.msra.mxu0 0.0
    %2352 = vmatprep.subr.mxu0 0.0
    %2353 = vmatpush1.msra.mxu0 0.0
    %2354 = vmatprep.subr.mxu0 0.0
    %2355 = vmatpush1.msra.mxu0 0.0
    %2356 = vmatprep.subr.mxu0 0.0
    %2357 = vmatpush1.msra.mxu0 0.0
    %2358 = vmatprep.subr.mxu0 0.0
    %2359 = vmatpush1.msra.mxu0 0.0
    %2360 = vmatprep.subr.mxu0 0.0
    %2361 = vmatpush1.msra.mxu0 0.0
    %2362 = vmatprep.subr.mxu0 0.0
    %2363 = vmatpush1.msra.mxu0 0.0
    %2364 = vmatprep.subr.mxu0 0.0
    %2365 = vmatpush1.msra.mxu0 0.0
    %2366 = vmatprep.subr.mxu0 0.0
    %2367 = vmatpush1.msra.mxu0 0.0
    %2368 = vmatprep.subr.mxu0 0.0
    %2369 = vmatpush1.msra.mxu0 0.0
    %2370 = vmatprep.mubr.f32.mxu0 0.0
    %2371 = vmatmul.mubr.f32.gmra.mrb[0].mxu0 %v2074
    %v2372 = vpop.f32.mrb[0].mxu0
    %v2373 = vadd.f32 0.0, %v2372
    %v2374 = vpop.f32.mrb[0].mxu0
    %v2375 = vadd.f32 0.0, %v2374
    %2376 = vdwg.mxu0
    %v2377 = vadd.f32 %v2231, %v2302
    %v2378 = vadd.f32 %v2232, %v2304
    %v2379 = vadd.f32 %v2233, %v2373
    %v2380 = vadd.f32 %v2234, %v2375
    %v2381 = vxor.u32 %v2226, 2147483648
    %v2382 = vmul.f32 %v2381, 1.442695
    %v2383 = vpow.pop %v2382
    %v2384 = vadd.f32 %v2383, 1.0
    %v2385 = vrcp.pop %v2384
    %v2386 = vmul.f32 1.0, %v2385
    %v2387 = vxor.u32 %v2227, 2147483648
    %v2388 = vmul.f32 %v2387, 1.442695
    %v2389 = vpow.pop %v2388
    %v2390 = vadd.f32 %v2389, 1.0
    %v2391 = vrcp.pop %v2390
    %v2392 = vmul.f32 1.0, %v2391
    %v2393 = vtanh.pop %v2228
    %v2394 = vxor.u32 %v2229, 2147483648
    %v2395 = vmul.f32 %v2394, 1.442695
    %v2396 = vpow.pop %v2395
    %v2397 = vadd.f32 %v2396, 1.0
    %v2398 = vrcp.pop %v2397
    %v2399 = vmul.f32 1.0, %v2398
    %v2400 = vmul.f32 %v2392, %v2048
    %v2401 = vmul.f32 %v2386, %v2393
    %v2402 = vadd.f32 %v2400, %v2401
    %v2403 = vtanh.pop %v2402
    %v2404 = vmul.f32 %v2399, %v2403
    %v2405 = vxor.u32 %v2377, 2147483648
    %v2406 = vmul.f32 %v2405, 1.442695
    %v2407 = vpow.pop %v2406
    %v2408 = vadd.f32 %v2407, 1.0
    %v2409 = vrcp.pop %v2408
    %v2410 = vmul.f32 1.0, %v2409
    %v2411 = vxor.u32 %v2378, 2147483648
    %v2412 = vmul.f32 %v2411, 1.442695
    %v2413 = vpow.pop %v2412
    %v2414 = vadd.f32 %v2413, 1.0
    %v2415 = vrcp.pop %v2414
    %v2416 = vmul.f32 1.0, %v2415
    %v2417 = vtanh.pop %v2379
    %v2418 = vxor.u32 %v2380, 2147483648
    %v2419 = vmul.f32 %v2418, 1.442695
    %v2420 = vpow.pop %v2419
    %v2421 = vadd.f32 %v2420, 1.0
    %v2422 = vrcp.pop %v2421
    %v2423 = vmul.f32 1.0, %v2422
    %v2424 = vmul.f32 %v2416, %v2072
    %v2425 = vmul.f32 %v2410, %v2417
    %v2426 = vadd.f32 %v2424, %v2425
    %v2427 = vtanh.pop %v2426
    %v2428 = vmul.f32 %v2423, %v2427
    %s2429 = scalar_lea.vmem %s7, 24
    %2430 = vst [vmem:[%s2429] sm:$0xff] %v2404
    %s2431 = scalar_lea.vmem %s67, 32
    %2432 = vst [vmem:[%s2431] sm:$0xff] %v2428
    %s2433 = scalar_lea.vmem [#allocation2], 128
    %v2434 = vld [vmem:[%s2433] sm:$0xff]
    %v2435 = vld [vmem:[%s2433 + $0x8] sm:$0xff]
    %v2436 = vld [vmem:[%s2433 + $0x10] sm:$0xff]
    %v2437 = vld [vmem:[%s2433 + $0x18] sm:$0xff]
    %2438 = vmatprep.subr.mxu0 %v888
    %2439 = vmatpush1.msra.mxu0 %v887
    %2440 = vmatprep.subr.mxu0 %v892
    %2441 = vmatpush1.msra.mxu0 %v891
    %2442 = vmatprep.subr.mxu0 %v896
    %2443 = vmatpush1.msra.mxu0 %v895
    %2444 = vmatprep.subr.mxu0 %v900
    %2445 = vmatpush1.msra.mxu0 %v899
    %2446 = vmatprep.subr.mxu0 %v904
    %2447 = vmatpush1.msra.mxu0 %v903
    %2448 = vmatprep.subr.mxu0 %v908
    %2449 = vmatpush1.msra.mxu0 %v907
    %2450 = vmatprep.subr.mxu0 %v912
    %2451 = vmatpush1.msra.mxu0 %v911
    %2452 = vmatprep.subr.mxu0 %v916
    %2453 = vmatpush1.msra.mxu0 %v915
    %2454 = vmatprep.subr.mxu0 %v920
    %2455 = vmatpush1.msra.mxu0 %v919
    %2456 = vmatprep.subr.mxu0 %v924
    %2457 = vmatpush1.msra.mxu0 %v923
    %2458 = vmatprep.subr.mxu0 %v928
    %2459 = vmatpush1.msra.mxu0 %v927
    %2460 = vmatprep.subr.mxu0 %v932
    %2461 = vmatpush1.msra.mxu0 %v931
    %2462 = vmatprep.subr.mxu0 %v936
    %2463 = vmatpush1.msra.mxu0 %v935
    %2464 = vmatprep.subr.mxu0 %v940
    %2465 = vmatpush1.msra.mxu0 %v939
    %2466 = vmatprep.subr.mxu0 %v944
    %2467 = vmatpush1.msra.mxu0 %v943
    %2468 = vmatprep.subr.mxu0 %v948
    %2469 = vmatpush1.msra.mxu0 %v947
    %2470 = vmatprep.subr.mxu0 0.0
    %2471 = vmatpush1.msra.mxu0 0.0
    %2472 = vmatprep.subr.mxu0 0.0
    %2473 = vmatpush1.msra.mxu0 0.0
    %2474 = vmatprep.subr.mxu0 0.0
    %2475 = vmatpush1.msra.mxu0 0.0
    %2476 = vmatprep.subr.mxu0 0.0
    %2477 = vmatpush1.msra.mxu0 0.0
    %2478 = vmatprep.subr.mxu0 0.0
    %2479 = vmatpush1.msra.mxu0 0.0
    %2480 = vmatprep.subr.mxu0 0.0
    %2481 = vmatpush1.msra.mxu0 0.0
    %2482 = vmatprep.subr.mxu0 0.0
    %2483 = vmatpush1.msra.mxu0 0.0
    %2484 = vmatprep.subr.mxu0 0.0
    %2485 = vmatpush1.msra.mxu0 0.0
    %2486 = vmatprep.subr.mxu0 0.0
    %2487 = vmatpush1.msra.mxu0 0.0
    %2488 = vmatprep.subr.mxu0 0.0
    %2489 = vmatpush1.msra.mxu0 0.0
    %2490 = vmatprep.subr.mxu0 0.0
    %2491 = vmatpush1.msra.mxu0 0.0
    %2492 = vmatprep.subr.mxu0 0.0
    %2493 = vmatpush1.msra.mxu0 0.0
    %2494 = vmatprep.subr.mxu0 0.0
    %2495 = vmatpush1.msra.mxu0 0.0
    %2496 = vmatprep.subr.mxu0 0.0
    %2497 = vmatpush1.msra.mxu0 0.0
    %2498 = vmatprep.subr.mxu0 0.0
    %2499 = vmatpush1.msra.mxu0 0.0
    %2500 = vmatprep.subr.mxu0 0.0
    %2501 = vmatpush1.msra.mxu0 0.0
    %2502 = vmatprep.mubr.f32.mxu0 0.0
    %2503 = vmatmul.mubr.f32.gmra.mrb[0].mxu0 %v2404
    %v2504 = vpop.f32.mrb[0].mxu0
    %v2505 = vadd.f32 0.0, %v2504
    %v2506 = vpop.f32.mrb[0].mxu0
    %v2507 = vadd.f32 0.0, %v2506
    %2508 = vdwg.mxu0
    %2509 = vmatprep.subr.mxu0 %v890
    %2510 = vmatpush1.msra.mxu0 %v889
    %2511 = vmatprep.subr.mxu0 %v894
    %2512 = vmatpush1.msra.mxu0 %v893
    %2513 = vmatprep.subr.mxu0 %v898
    %2514 = vmatpush1.msra.mxu0 %v897
    %2515 = vmatprep.subr.mxu0 %v902
    %2516 = vmatpush1.msra.mxu0 %v901
    %2517 = vmatprep.subr.mxu0 %v906
    %2518 = vmatpush1.msra.mxu0 %v905
    %2519 = vmatprep.subr.mxu0 %v910
    %2520 = vmatpush1.msra.mxu0 %v909
    %2521 = vmatprep.subr.mxu0 %v914
    %2522 = vmatpush1.msra.mxu0 %v913
    %2523 = vmatprep.subr.mxu0 %v918
    %2524 = vmatpush1.msra.mxu0 %v917
    %2525 = vmatprep.subr.mxu0 %v922
    %2526 = vmatpush1.msra.mxu0 %v921
    %2527 = vmatprep.subr.mxu0 %v926
    %2528 = vmatpush1.msra.mxu0 %v925
    %2529 = vmatprep.subr.mxu0 %v930
    %2530 = vmatpush1.msra.mxu0 %v929
    %2531 = vmatprep.subr.mxu0 %v934
    %2532 = vmatpush1.msra.mxu0 %v933
    %2533 = vmatprep.subr.mxu0 %v938
    %2534 = vmatpush1.msra.mxu0 %v937
    %2535 = vmatprep.subr.mxu0 %v942
    %2536 = vmatpush1.msra.mxu0 %v941
    %2537 = vmatprep.subr.mxu0 %v946
    %2538 = vmatpush1.msra.mxu0 %v945
    %2539 = vmatprep.subr.mxu0 %v950
    %2540 = vmatpush1.msra.mxu0 %v949
    %2541 = vmatprep.subr.mxu0 0.0
    %2542 = vmatpush1.msra.mxu0 0.0
    %2543 = vmatprep.subr.mxu0 0.0
    %2544 = vmatpush1.msra.mxu0 0.0
    %2545 = vmatprep.subr.mxu0 0.0
    %2546 = vmatpush1.msra.mxu0 0.0
    %2547 = vmatprep.subr.mxu0 0.0
    %2548 = vmatpush1.msra.mxu0 0.0
    %2549 = vmatprep.subr.mxu0 0.0
    %2550 = vmatpush1.msra.mxu0 0.0
    %2551 = vmatprep.subr.mxu0 0.0
    %2552 = vmatpush1.msra.mxu0 0.0
    %2553 = vmatprep.subr.mxu0 0.0
    %2554 = vmatpush1.msra.mxu0 0.0
    %2555 = vmatprep.subr.mxu0 0.0
    %2556 = vmatpush1.msra.mxu0 0.0
    %2557 = vmatprep.subr.mxu0 0.0
    %2558 = vmatpush1.msra.mxu0 0.0
    %2559 = vmatprep.subr.mxu0 0.0
    %2560 = vmatpush1.msra.mxu0 0.0
    %2561 = vmatprep.subr.mxu0 0.0
    %2562 = vmatpush1.msra.mxu0 0.0
    %2563 = vmatprep.subr.mxu0 0.0
    %2564 = vmatpush1.msra.mxu0 0.0
    %2565 = vmatprep.subr.mxu0 0.0
    %2566 = vmatpush1.msra.mxu0 0.0
    %2567 = vmatprep.subr.mxu0 0.0
    %2568 = vmatpush1.msra.mxu0 0.0
    %2569 = vmatprep.subr.mxu0 0.0
    %2570 = vmatpush1.msra.mxu0 0.0
    %2571 = vmatprep.subr.mxu0 0.0
    %2572 = vmatpush1.msra.mxu0 0.0
    %2573 = vmatprep.mubr.f32.mxu0 0.0
    %2574 = vmatmul.mubr.f32.gmra.mrb[0].mxu0 %v2404
    %v2575 = vpop.f32.mrb[0].mxu0
    %v2576 = vadd.f32 0.0, %v2575
    %v2577 = vpop.f32.mrb[0].mxu0
    %v2578 = vadd.f32 0.0, %v2577
    %2579 = vdwg.mxu0
    %v2580 = vadd.f32 %v2434, %v2505
    %v2581 = vadd.f32 %v2435, %v2507
    %v2582 = vadd.f32 %v2436, %v2576
    %v2583 = vadd.f32 %v2437, %v2578
    %s2584 = scalar_lea.vmem [#allocation3], 96
    %v2585 = vld [vmem:[%s2584] sm:$0xff]
    %v2586 = vld [vmem:[%s2584 + $0x8] sm:$0xff]
    %v2587 = vld [vmem:[%s2584 + $0x10] sm:$0xff]
    %v2588 = vld [vmem:[%s2584 + $0x18] sm:$0xff]
    %2589 = vmatprep.subr.mxu0 %v952
    %2590 = vmatpush1.msra.mxu0 %v951
    %2591 = vmatprep.subr.mxu0 %v956
    %2592 = vmatpush1.msra.mxu0 %v955
    %2593 = vmatprep.subr.mxu0 %v960
    %2594 = vmatpush1.msra.mxu0 %v959
    %2595 = vmatprep.subr.mxu0 %v964
    %2596 = vmatpush1.msra.mxu0 %v963
    %2597 = vmatprep.subr.mxu0 %v968
    %2598 = vmatpush1.msra.mxu0 %v967
    %2599 = vmatprep.subr.mxu0 %v972
    %2600 = vmatpush1.msra.mxu0 %v971
    %2601 = vmatprep.subr.mxu0 %v976
    %2602 = vmatpush1.msra.mxu0 %v975
    %2603 = vmatprep.subr.mxu0 %v980
    %2604 = vmatpush1.msra.mxu0 %v979
    %2605 = vmatprep.subr.mxu0 %v984
    %2606 = vmatpush1.msra.mxu0 %v983
    %2607 = vmatprep.subr.mxu0 %v988
    %2608 = vmatpush1.msra.mxu0 %v987
    %2609 = vmatprep.subr.mxu0 %v992
    %2610 = vmatpush1.msra.mxu0 %v991
    %2611 = vmatprep.subr.mxu0 %v996
    %2612 = vmatpush1.msra.mxu0 %v995
    %2613 = vmatprep.subr.mxu0 %v1000
    %2614 = vmatpush1.msra.mxu0 %v999
    %2615 = vmatprep.subr.mxu0 %v1004
    %2616 = vmatpush1.msra.mxu0 %v1003
    %2617 = vmatprep.subr.mxu0 %v1008
    %2618 = vmatpush1.msra.mxu0 %v1007
    %2619 = vmatprep.subr.mxu0 %v1012
    %2620 = vmatpush1.msra.mxu0 %v1011
    %2621 = vmatprep.subr.mxu0 0.0
    %2622 = vmatpush1.msra.mxu0 0.0
    %2623 = vmatprep.subr.mxu0 0.0
    %2624 = vmatpush1.msra.mxu0 0.0
    %2625 = vmatprep.subr.mxu0 0.0
    %2626 = vmatpush1.msra.mxu0 0.0
    %2627 = vmatprep.subr.mxu0 0.0
    %2628 = vmatpush1.msra.mxu0 0.0
    %2629 = vmatprep.subr.mxu0 0.0
    %2630 = vmatpush1.msra.mxu0 0.0
    %2631 = vmatprep.subr.mxu0 0.0
    %2632 = vmatpush1.msra.mxu0 0.0
    %2633 = vmatprep.subr.mxu0 0.0
    %2634 = vmatpush1.msra.mxu0 0.0
    %2635 = vmatprep.subr.mxu0 0.0
    %2636 = vmatpush1.msra.mxu0 0.0
    %2637 = vmatprep.subr.mxu0 0.0
    %2638 = vmatpush1.msra.mxu0 0.0
    %2639 = vmatprep.subr.mxu0 0.0
    %2640 = vmatpush1.msra.mxu0 0.0
    %2641 = vmatprep.subr.mxu0 0.0
    %2642 = vmatpush1.msra.mxu0 0.0
    %2643 = vmatprep.subr.mxu0 0.0
    %2644 = vmatpush1.msra.mxu0 0.0
    %2645 = vmatprep.subr.mxu0 0.0
    %2646 = vmatpush1.msra.mxu0 0.0
    %2647 = vmatprep.subr.mxu0 0.0
    %2648 = vmatpush1.msra.mxu0 0.0
    %2649 = vmatprep.subr.mxu0 0.0
    %2650 = vmatpush1.msra.mxu0 0.0
    %2651 = vmatprep.subr.mxu0 0.0
    %2652 = vmatpush1.msra.mxu0 0.0
    %2653 = vmatprep.mubr.f32.mxu0 0.0
    %2654 = vmatmul.mubr.f32.gmra.mrb[0].mxu0 %v2428
    %v2655 = vpop.f32.mrb[0].mxu0
    %v2656 = vadd.f32 0.0, %v2655
    %v2657 = vpop.f32.mrb[0].mxu0
    %v2658 = vadd.f32 0.0, %v2657
    %2659 = vdwg.mxu0
    %2660 = vmatprep.subr.mxu0 %v954
    %2661 = vmatpush1.msra.mxu0 %v953
    %2662 = vmatprep.subr.mxu0 %v958
    %2663 = vmatpush1.msra.mxu0 %v957
    %2664 = vmatprep.subr.mxu0 %v962
    %2665 = vmatpush1.msra.mxu0 %v961
    %2666 = vmatprep.subr.mxu0 %v966
    %2667 = vmatpush1.msra.mxu0 %v965
    %2668 = vmatprep.subr.mxu0 %v970
    %2669 = vmatpush1.msra.mxu0 %v969
    %2670 = vmatprep.subr.mxu0 %v974
    %2671 = vmatpush1.msra.mxu0 %v973
    %2672 = vmatprep.subr.mxu0 %v978
    %2673 = vmatpush1.msra.mxu0 %v977
    %2674 = vmatprep.subr.mxu0 %v982
    %2675 = vmatpush1.msra.mxu0 %v981
    %2676 = vmatprep.subr.mxu0 %v986
    %2677 = vmatpush1.msra.mxu0 %v985
    %2678 = vmatprep.subr.mxu0 %v990
    %2679 = vmatpush1.msra.mxu0 %v989
    %2680 = vmatprep.subr.mxu0 %v994
    %2681 = vmatpush1.msra.mxu0 %v993
    %2682 = vmatprep.subr.mxu0 %v998
    %2683 = vmatpush1.msra.mxu0 %v997
    %2684 = vmatprep.subr.mxu0 %v1002
    %2685 = vmatpush1.msra.mxu0 %v1001
    %2686 = vmatprep.subr.mxu0 %v1006
    %2687 = vmatpush1.msra.mxu0 %v1005
    %2688 = vmatprep.subr.mxu0 %v1010
    %2689 = vmatpush1.msra.mxu0 %v1009
    %2690 = vmatprep.subr.mxu0 %v1014
    %2691 = vmatpush1.msra.mxu0 %v1013
    %2692 = vmatprep.subr.mxu0 0.0
    %2693 = vmatpush1.msra.mxu0 0.0
    %2694 = vmatprep.subr.mxu0 0.0
    %2695 = vmatpush1.msra.mxu0 0.0
    %2696 = vmatprep.subr.mxu0 0.0
    %2697 = vmatpush1.msra.mxu0 0.0
    %2698 = vmatprep.subr.mxu0 0.0
    %2699 = vmatpush1.msra.mxu0 0.0
    %2700 = vmatprep.subr.mxu0 0.0
    %2701 = vmatpush1.msra.mxu0 0.0
    %2702 = vmatprep.subr.mxu0 0.0
    %2703 = vmatpush1.msra.mxu0 0.0
    %2704 = vmatprep.subr.mxu0 0.0
    %2705 = vmatpush1.msra.mxu0 0.0
    %2706 = vmatprep.subr.mxu0 0.0
    %2707 = vmatpush1.msra.mxu0 0.0
    %2708 = vmatprep.subr.mxu0 0.0
    %2709 = vmatpush1.msra.mxu0 0.0
    %2710 = vmatprep.subr.mxu0 0.0
    %2711 = vmatpush1.msra.mxu0 0.0
    %2712 = vmatprep.subr.mxu0 0.0
    %2713 = vmatpush1.msra.mxu0 0.0
    %2714 = vmatprep.subr.mxu0 0.0
    %2715 = vmatpush1.msra.mxu0 0.0
    %2716 = vmatprep.subr.mxu0 0.0
    %2717 = vmatpush1.msra.mxu0 0.0
    %2718 = vmatprep.subr.mxu0 0.0
    %2719 = vmatpush1.msra.mxu0 0.0
    %2720 = vmatprep.subr.mxu0 0.0
    %2721 = vmatpush1.msra.mxu0 0.0
    %2722 = vmatprep.subr.mxu0 0.0
    %2723 = vmatpush1.msra.mxu0 0.0
    %2724 = vmatprep.mubr.f32.mxu0 0.0
    %2725 = vmatmul.mubr.f32.gmra.mrb[0].mxu0 %v2428
    %v2726 = vpop.f32.mrb[0].mxu0
    %v2727 = vadd.f32 0.0, %v2726
    %v2728 = vpop.f32.mrb[0].mxu0
    %v2729 = vadd.f32 0.0, %v2728
    %2730 = vdwg.mxu0
    %v2731 = vadd.f32 %v2585, %v2656
    %v2732 = vadd.f32 %v2586, %v2658
    %v2733 = vadd.f32 %v2587, %v2727
    %v2734 = vadd.f32 %v2588, %v2729
    %v2735 = vxor.u32 %v2580, 2147483648
    %v2736 = vmul.f32 %v2735, 1.442695
    %v2737 = vpow.pop %v2736
    %v2738 = vadd.f32 %v2737, 1.0
    %v2739 = vrcp.pop %v2738
    %v2740 = vmul.f32 1.0, %v2739
    %v2741 = vxor.u32 %v2581, 2147483648
    %v2742 = vmul.f32 %v2741, 1.442695
    %v2743 = vpow.pop %v2742
    %v2744 = vadd.f32 %v2743, 1.0
    %v2745 = vrcp.pop %v2744
    %v2746 = vmul.f32 1.0, %v2745
    %v2747 = vtanh.pop %v2582
    %v2748 = vxor.u32 %v2583, 2147483648
    %v2749 = vmul.f32 %v2748, 1.442695
    %v2750 = vpow.pop %v2749
    %v2751 = vadd.f32 %v2750, 1.0
    %v2752 = vrcp.pop %v2751
    %v2753 = vmul.f32 1.0, %v2752
    %v2754 = vmul.f32 %v2746, %v2402
    %v2755 = vmul.f32 %v2740, %v2747
    %v2756 = vadd.f32 %v2754, %v2755
    %v2757 = vtanh.pop %v2756
    %v2758 = vmul.f32 %v2753, %v2757
    %v2759 = vxor.u32 %v2731, 2147483648
    %v2760 = vmul.f32 %v2759, 1.442695
    %v2761 = vpow.pop %v2760
    %v2762 = vadd.f32 %v2761, 1.0
    %v2763 = vrcp.pop %v2762
    %v2764 = vmul.f32 1.0, %v2763
    %v2765 = vxor.u32 %v2732, 2147483648
    %v2766 = vmul.f32 %v2765, 1.442695
    %v2767 = vpow.pop %v2766
    %v2768 = vadd.f32 %v2767, 1.0
    %v2769 = vrcp.pop %v2768
    %v2770 = vmul.f32 1.0, %v2769
    %v2771 = vtanh.pop %v2733
    %v2772 = vxor.u32 %v2734, 2147483648
    %v2773 = vmul.f32 %v2772, 1.442695
    %v2774 = vpow.pop %v2773
    %v2775 = vadd.f32 %v2774, 1.0
    %v2776 = vrcp.pop %v2775
    %v2777 = vmul.f32 1.0, %v2776
    %v2778 = vmul.f32 %v2770, %v2426
    %v2779 = vmul.f32 %v2764, %v2771
    %v2780 = vadd.f32 %v2778, %v2779
    %v2781 = vtanh.pop %v2780
    %v2782 = vmul.f32 %v2777, %v2781
    %s2783 = scalar_lea.vmem %s7, 32
    %2784 = vst [vmem:[%s2783] sm:$0xff] %v2758
    %s2785 = scalar_lea.vmem %s67, 24
    %2786 = vst [vmem:[%s2785] sm:$0xff] %v2782
    %s2787 = scalar_lea.vmem [#allocation2], 160
    %v2788 = vld [vmem:[%s2787] sm:$0xff]
    %v2789 = vld [vmem:[%s2787 + $0x8] sm:$0xff]
    %v2790 = vld [vmem:[%s2787 + $0x10] sm:$0xff]
    %v2791 = vld [vmem:[%s2787 + $0x18] sm:$0xff]
    %2792 = vmatprep.subr.mxu0 %v888
    %2793 = vmatpush1.msra.mxu0 %v887
    %2794 = vmatprep.subr.mxu0 %v892
    %2795 = vmatpush1.msra.mxu0 %v891
    %2796 = vmatprep.subr.mxu0 %v896
    %2797 = vmatpush1.msra.mxu0 %v895
    %2798 = vmatprep.subr.mxu0 %v900
    %2799 = vmatpush1.msra.mxu0 %v899
    %2800 = vmatprep.subr.mxu0 %v904
    %2801 = vmatpush1.msra.mxu0 %v903
    %2802 = vmatprep.subr.mxu0 %v908
    %2803 = vmatpush1.msra.mxu0 %v907
    %2804 = vmatprep.subr.mxu0 %v912
    %2805 = vmatpush1.msra.mxu0 %v911
    %2806 = vmatprep.subr.mxu0 %v916
    %2807 = vmatpush1.msra.mxu0 %v915
    %2808 = vmatprep.subr.mxu0 %v920
    %2809 = vmatpush1.msra.mxu0 %v919
    %2810 = vmatprep.subr.mxu0 %v924
    %2811 = vmatpush1.msra.mxu0 %v923
    %2812 = vmatprep.subr.mxu0 %v928
    %2813 = vmatpush1.msra.mxu0 %v927
    %2814 = vmatprep.subr.mxu0 %v932
    %2815 = vmatpush1.msra.mxu0 %v931
    %2816 = vmatprep.subr.mxu0 %v936
    %2817 = vmatpush1.msra.mxu0 %v935
    %2818 = vmatprep.subr.mxu0 %v940
    %2819 = vmatpush1.msra.mxu0 %v939
    %2820 = vmatprep.subr.mxu0 %v944
    %2821 = vmatpush1.msra.mxu0 %v943
    %2822 = vmatprep.subr.mxu0 %v948
    %2823 = vmatpush1.msra.mxu0 %v947
    %2824 = vmatprep.subr.mxu0 0.0
    %2825 = vmatpush1.msra.mxu0 0.0
    %2826 = vmatprep.subr.mxu0 0.0
    %2827 = vmatpush1.msra.mxu0 0.0
    %2828 = vmatprep.subr.mxu0 0.0
    %2829 = vmatpush1.msra.mxu0 0.0
    %2830 = vmatprep.subr.mxu0 0.0
    %2831 = vmatpush1.msra.mxu0 0.0
    %2832 = vmatprep.subr.mxu0 0.0
    %2833 = vmatpush1.msra.mxu0 0.0
    %2834 = vmatprep.subr.mxu0 0.0
    %2835 = vmatpush1.msra.mxu0 0.0
    %2836 = vmatprep.subr.mxu0 0.0
    %2837 = vmatpush1.msra.mxu0 0.0
    %2838 = vmatprep.subr.mxu0 0.0
    %2839 = vmatpush1.msra.mxu0 0.0
    %2840 = vmatprep.subr.mxu0 0.0
    %2841 = vmatpush1.msra.mxu0 0.0
    %2842 = vmatprep.subr.mxu0 0.0
    %2843 = vmatpush1.msra.mxu0 0.0
    %2844 = vmatprep.subr.mxu0 0.0
    %2845 = vmatpush1.msra.mxu0 0.0
    %2846 = vmatprep.subr.mxu0 0.0
    %2847 = vmatpush1.msra.mxu0 0.0
    %2848 = vmatprep.subr.mxu0 0.0
    %2849 = vmatpush1.msra.mxu0 0.0
    %2850 = vmatprep.subr.mxu0 0.0
    %2851 = vmatpush1.msra.mxu0 0.0
    %2852 = vmatprep.subr.mxu0 0.0
    %2853 = vmatpush1.msra.mxu0 0.0
    %2854 = vmatprep.subr.mxu0 0.0
    %2855 = vmatpush1.msra.mxu0 0.0
    %2856 = vmatprep.mubr.f32.mxu0 0.0
    %2857 = vmatmul.mubr.f32.gmra.mrb[0].mxu0 %v2758
    %v2858 = vpop.f32.mrb[0].mxu0
    %v2859 = vadd.f32 0.0, %v2858
    %v2860 = vpop.f32.mrb[0].mxu0
    %v2861 = vadd.f32 0.0, %v2860
    %2862 = vdwg.mxu0
    %2863 = vmatprep.subr.mxu0 %v890
    %2864 = vmatpush1.msra.mxu0 %v889
    %2865 = vmatprep.subr.mxu0 %v894
    %2866 = vmatpush1.msra.mxu0 %v893
    %2867 = vmatprep.subr.mxu0 %v898
    %2868 = vmatpush1.msra.mxu0 %v897
    %2869 = vmatprep.subr.mxu0 %v902
    %2870 = vmatpush1.msra.mxu0 %v901
    %2871 = vmatprep.subr.mxu0 %v906
    %2872 = vmatpush1.msra.mxu0 %v905
    %2873 = vmatprep.subr.mxu0 %v910
    %2874 = vmatpush1.msra.mxu0 %v909
    %2875 = vmatprep.subr.mxu0 %v914
    %2876 = vmatpush1.msra.mxu0 %v913
    %2877 = vmatprep.subr.mxu0 %v918
    %2878 = vmatpush1.msra.mxu0 %v917
    %2879 = vmatprep.subr.mxu0 %v922
    %2880 = vmatpush1.msra.mxu0 %v921
    %2881 = vmatprep.subr.mxu0 %v926
    %2882 = vmatpush1.msra.mxu0 %v925
    %2883 = vmatprep.subr.mxu0 %v930
    %2884 = vmatpush1.msra.mxu0 %v929
    %2885 = vmatprep.subr.mxu0 %v934
    %2886 = vmatpush1.msra.mxu0 %v933
    %2887 = vmatprep.subr.mxu0 %v938
    %2888 = vmatpush1.msra.mxu0 %v937
    %2889 = vmatprep.subr.mxu0 %v942
    %2890 = vmatpush1.msra.mxu0 %v941
    %2891 = vmatprep.subr.mxu0 %v946
    %2892 = vmatpush1.msra.mxu0 %v945
    %2893 = vmatprep.subr.mxu0 %v950
    %2894 = vmatpush1.msra.mxu0 %v949
    %2895 = vmatprep.subr.mxu0 0.0
    %2896 = vmatpush1.msra.mxu0 0.0
    %2897 = vmatprep.subr.mxu0 0.0
    %2898 = vmatpush1.msra.mxu0 0.0
    %2899 = vmatprep.subr.mxu0 0.0
    %2900 = vmatpush1.msra.mxu0 0.0
    %2901 = vmatprep.subr.mxu0 0.0
    %2902 = vmatpush1.msra.mxu0 0.0
    %2903 = vmatprep.subr.mxu0 0.0
    %2904 = vmatpush1.msra.mxu0 0.0
    %2905 = vmatprep.subr.mxu0 0.0
    %2906 = vmatpush1.msra.mxu0 0.0
    %2907 = vmatprep.subr.mxu0 0.0
    %2908 = vmatpush1.msra.mxu0 0.0
    %2909 = vmatprep.subr.mxu0 0.0
    %2910 = vmatpush1.msra.mxu0 0.0
    %2911 = vmatprep.subr.mxu0 0.0
    %2912 = vmatpush1.msra.mxu0 0.0
    %2913 = vmatprep.subr.mxu0 0.0
    %2914 = vmatpush1.msra.mxu0 0.0
    %2915 = vmatprep.subr.mxu0 0.0
    %2916 = vmatpush1.msra.mxu0 0.0
    %2917 = vmatprep.subr.mxu0 0.0
    %2918 = vmatpush1.msra.mxu0 0.0
    %2919 = vmatprep.subr.mxu0 0.0
    %2920 = vmatpush1.msra.mxu0 0.0
    %2921 = vmatprep.subr.mxu0 0.0
    %2922 = vmatpush1.msra.mxu0 0.0
    %2923 = vmatprep.subr.mxu0 0.0
    %2924 = vmatpush1.msra.mxu0 0.0
    %2925 = vmatprep.subr.mxu0 0.0
    %2926 = vmatpush1.msra.mxu0 0.0
    %2927 = vmatprep.mubr.f32.mxu0 0.0
    %2928 = vmatmul.mubr.f32.gmra.mrb[0].mxu0 %v2758
    %v2929 = vpop.f32.mrb[0].mxu0
    %v2930 = vadd.f32 0.0, %v2929
    %v2931 = vpop.f32.mrb[0].mxu0
    %v2932 = vadd.f32 0.0, %v2931
    %2933 = vdwg.mxu0
    %v2934 = vadd.f32 %v2788, %v2859
    %v2935 = vadd.f32 %v2789, %v2861
    %v2936 = vadd.f32 %v2790, %v2930
    %v2937 = vadd.f32 %v2791, %v2932
    %s2938 = scalar_lea.vmem [#allocation3], 64
    %v2939 = vld [vmem:[%s2938] sm:$0xff]
    %v2940 = vld [vmem:[%s2938 + $0x8] sm:$0xff]
    %v2941 = vld [vmem:[%s2938 + $0x10] sm:$0xff]
    %v2942 = vld [vmem:[%s2938 + $0x18] sm:$0xff]
    %2943 = vmatprep.subr.mxu0 %v952
    %2944 = vmatpush1.msra.mxu0 %v951
    %2945 = vmatprep.subr.mxu0 %v956
    %2946 = vmatpush1.msra.mxu0 %v955
    %2947 = vmatprep.subr.mxu0 %v960
    %2948 = vmatpush1.msra.mxu0 %v959
    %2949 = vmatprep.subr.mxu0 %v964
    %2950 = vmatpush1.msra.mxu0 %v963
    %2951 = vmatprep.subr.mxu0 %v968
    %2952 = vmatpush1.msra.mxu0 %v967
    %2953 = vmatprep.subr.mxu0 %v972
    %2954 = vmatpush1.msra.mxu0 %v971
    %2955 = vmatprep.subr.mxu0 %v976
    %2956 = vmatpush1.msra.mxu0 %v975
    %2957 = vmatprep.subr.mxu0 %v980
    %2958 = vmatpush1.msra.mxu0 %v979
    %2959 = vmatprep.subr.mxu0 %v984
    %2960 = vmatpush1.msra.mxu0 %v983
    %2961 = vmatprep.subr.mxu0 %v988
    %2962 = vmatpush1.msra.mxu0 %v987
    %2963 = vmatprep.subr.mxu0 %v992
    %2964 = vmatpush1.msra.mxu0 %v991
    %2965 = vmatprep.subr.mxu0 %v996
    %2966 = vmatpush1.msra.mxu0 %v995
    %2967 = vmatprep.subr.mxu0 %v1000
    %2968 = vmatpush1.msra.mxu0 %v999
    %2969 = vmatprep.subr.mxu0 %v1004
    %2970 = vmatpush1.msra.mxu0 %v1003
    %2971 = vmatprep.subr.mxu0 %v1008
    %2972 = vmatpush1.msra.mxu0 %v1007
    %2973 = vmatprep.subr.mxu0 %v1012
    %2974 = vmatpush1.msra.mxu0 %v1011
    %2975 = vmatprep.subr.mxu0 0.0
    %2976 = vmatpush1.msra.mxu0 0.0
    %2977 = vmatprep.subr.mxu0 0.0
    %2978 = vmatpush1.msra.mxu0 0.0
    %2979 = vmatprep.subr.mxu0 0.0
    %2980 = vmatpush1.msra.mxu0 0.0
    %2981 = vmatprep.subr.mxu0 0.0
    %2982 = vmatpush1.msra.mxu0 0.0
    %2983 = vmatprep.subr.mxu0 0.0
    %2984 = vmatpush1.msra.mxu0 0.0
    %2985 = vmatprep.subr.mxu0 0.0
    %2986 = vmatpush1.msra.mxu0 0.0
    %2987 = vmatprep.subr.mxu0 0.0
    %2988 = vmatpush1.msra.mxu0 0.0
    %2989 = vmatprep.subr.mxu0 0.0
    %2990 = vmatpush1.msra.mxu0 0.0
    %2991 = vmatprep.subr.mxu0 0.0
    %2992 = vmatpush1.msra.mxu0 0.0
    %2993 = vmatprep.subr.mxu0 0.0
    %2994 = vmatpush1.msra.mxu0 0.0
    %2995 = vmatprep.subr.mxu0 0.0
    %2996 = vmatpush1.msra.mxu0 0.0
    %2997 = vmatprep.subr.mxu0 0.0
    %2998 = vmatpush1.msra.mxu0 0.0
    %2999 = vmatprep.subr.mxu0 0.0
    %3000 = vmatpush1.msra.mxu0 0.0
    %3001 = vmatprep.subr.mxu0 0.0
    %3002 = vmatpush1.msra.mxu0 0.0
    %3003 = vmatprep.subr.mxu0 0.0
    %3004 = vmatpush1.msra.mxu0 0.0
    %3005 = vmatprep.subr.mxu0 0.0
    %3006 = vmatpush1.msra.mxu0 0.0
    %3007 = vmatprep.mubr.f32.mxu0 0.0
    %3008 = vmatmul.mubr.f32.gmra.mrb[0].mxu0 %v2782
    %v3009 = vpop.f32.mrb[0].mxu0
    %v3010 = vadd.f32 0.0, %v3009
    %v3011 = vpop.f32.mrb[0].mxu0
    %v3012 = vadd.f32 0.0, %v3011
    %3013 = vdwg.mxu0
    %3014 = vmatprep.subr.mxu0 %v954
    %3015 = vmatpush1.msra.mxu0 %v953
    %3016 = vmatprep.subr.mxu0 %v958
    %3017 = vmatpush1.msra.mxu0 %v957
    %3018 = vmatprep.subr.mxu0 %v962
    %3019 = vmatpush1.msra.mxu0 %v961
    %3020 = vmatprep.subr.mxu0 %v966
    %3021 = vmatpush1.msra.mxu0 %v965
    %3022 = vmatprep.subr.mxu0 %v970
    %3023 = vmatpush1.msra.mxu0 %v969
    %3024 = vmatprep.subr.mxu0 %v974
    %3025 = vmatpush1.msra.mxu0 %v973
    %3026 = vmatprep.subr.mxu0 %v978
    %3027 = vmatpush1.msra.mxu0 %v977
    %3028 = vmatprep.subr.mxu0 %v982
    %3029 = vmatpush1.msra.mxu0 %v981
    %3030 = vmatprep.subr.mxu0 %v986
    %3031 = vmatpush1.msra.mxu0 %v985
    %3032 = vmatprep.subr.mxu0 %v990
    %3033 = vmatpush1.msra.mxu0 %v989
    %3034 = vmatprep.subr.mxu0 %v994
    %3035 = vmatpush1.msra.mxu0 %v993
    %3036 = vmatprep.subr.mxu0 %v998
    %3037 = vmatpush1.msra.mxu0 %v997
    %3038 = vmatprep.subr.mxu0 %v1002
    %3039 = vmatpush1.msra.mxu0 %v1001
    %3040 = vmatprep.subr.mxu0 %v1006
    %3041 = vmatpush1.msra.mxu0 %v1005
    %3042 = vmatprep.subr.mxu0 %v1010
    %3043 = vmatpush1.msra.mxu0 %v1009
    %3044 = vmatprep.subr.mxu0 %v1014
    %3045 = vmatpush1.msra.mxu0 %v1013
    %3046 = vmatprep.subr.mxu0 0.0
    %3047 = vmatpush1.msra.mxu0 0.0
    %3048 = vmatprep.subr.mxu0 0.0
    %3049 = vmatpush1.msra.mxu0 0.0
    %3050 = vmatprep.subr.mxu0 0.0
    %3051 = vmatpush1.msra.mxu0 0.0
    %3052 = vmatprep.subr.mxu0 0.0
    %3053 = vmatpush1.msra.mxu0 0.0
    %3054 = vmatprep.subr.mxu0 0.0
    %3055 = vmatpush1.msra.mxu0 0.0
    %3056 = vmatprep.subr.mxu0 0.0
    %3057 = vmatpush1.msra.mxu0 0.0
    %3058 = vmatprep.subr.mxu0 0.0
    %3059 = vmatpush1.msra.mxu0 0.0
    %3060 = vmatprep.subr.mxu0 0.0
    %3061 = vmatpush1.msra.mxu0 0.0
    %3062 = vmatprep.subr.mxu0 0.0
    %3063 = vmatpush1.msra.mxu0 0.0
    %3064 = vmatprep.subr.mxu0 0.0
    %3065 = vmatpush1.msra.mxu0 0.0
    %3066 = vmatprep.subr.mxu0 0.0
    %3067 = vmatpush1.msra.mxu0 0.0
    %3068 = vmatprep.subr.mxu0 0.0
    %3069 = vmatpush1.msra.mxu0 0.0
    %3070 = vmatprep.subr.mxu0 0.0
    %3071 = vmatpush1.msra.mxu0 0.0
    %3072 = vmatprep.subr.mxu0 0.0
    %3073 = vmatpush1.msra.mxu0 0.0
    %3074 = vmatprep.subr.mxu0 0.0
    %3075 = vmatpush1.msra.mxu0 0.0
    %3076 = vmatprep.subr.mxu0 0.0
    %3077 = vmatpush1.msra.mxu0 0.0
    %3078 = vmatprep.mubr.f32.mxu0 0.0
    %3079 = vmatmul.mubr.f32.gmra.mrb[0].mxu0 %v2782
    %v3080 = vpop.f32.mrb[0].mxu0
    %v3081 = vadd.f32 0.0, %v3080
    %v3082 = vpop.f32.mrb[0].mxu0
    %v3083 = vadd.f32 0.0, %v3082
    %3084 = vdwg.mxu0
    %v3085 = vadd.f32 %v2939, %v3010
    %v3086 = vadd.f32 %v2940, %v3012
    %v3087 = vadd.f32 %v2941, %v3081
    %v3088 = vadd.f32 %v2942, %v3083
    %v3089 = vxor.u32 %v2934, 2147483648
    %v3090 = vmul.f32 %v3089, 1.442695
    %v3091 = vpow.pop %v3090
    %v3092 = vadd.f32 %v3091, 1.0
    %v3093 = vrcp.pop %v3092
    %v3094 = vmul.f32 1.0, %v3093
    %v3095 = vxor.u32 %v2935, 2147483648
    %v3096 = vmul.f32 %v3095, 1.442695
    %v3097 = vpow.pop %v3096
    %v3098 = vadd.f32 %v3097, 1.0
    %v3099 = vrcp.pop %v3098
    %v3100 = vmul.f32 1.0, %v3099
    %v3101 = vtanh.pop %v2936
    %v3102 = vxor.u32 %v2937, 2147483648
    %v3103 = vmul.f32 %v3102, 1.442695
    %v3104 = vpow.pop %v3103
    %v3105 = vadd.f32 %v3104, 1.0
    %v3106 = vrcp.pop %v3105
    %v3107 = vmul.f32 1.0, %v3106
    %v3108 = vmul.f32 %v3100, %v2756
    %v3109 = vmul.f32 %v3094, %v3101
    %v3110 = vadd.f32 %v3108, %v3109
    %v3111 = vtanh.pop %v3110
    %v3112 = vmul.f32 %v3107, %v3111
    %v3113 = vxor.u32 %v3085, 2147483648
    %v3114 = vmul.f32 %v3113, 1.442695
    %v3115 = vpow.pop %v3114
    %v3116 = vadd.f32 %v3115, 1.0
    %v3117 = vrcp.pop %v3116
    %v3118 = vmul.f32 1.0, %v3117
    %v3119 = vxor.u32 %v3086, 2147483648
    %v3120 = vmul.f32 %v3119, 1.442695
    %v3121 = vpow.pop %v3120
    %v3122 = vadd.f32 %v3121, 1.0
    %v3123 = vrcp.pop %v3122
    %v3124 = vmul.f32 1.0, %v3123
    %v3125 = vtanh.pop %v3087
    %v3126 = vxor.u32 %v3088, 2147483648
    %v3127 = vmul.f32 %v3126, 1.442695
    %v3128 = vpow.pop %v3127
    %v3129 = vadd.f32 %v3128, 1.0
    %v3130 = vrcp.pop %v3129
    %v3131 = vmul.f32 1.0, %v3130
    %v3132 = vmul.f32 %v3124, %v2780
    %v3133 = vmul.f32 %v3118, %v3125
    %v3134 = vadd.f32 %v3132, %v3133
    %v3135 = vtanh.pop %v3134
    %v3136 = vmul.f32 %v3131, %v3135
    %s3137 = scalar_lea.vmem %s7, 40
    %3138 = vst [vmem:[%s3137] sm:$0xff] %v3112
    %s3139 = scalar_lea.vmem %s67, 16
    %3140 = vst [vmem:[%s3139] sm:$0xff] %v3136
    %s3141 = scalar_lea.vmem [#allocation2], 192
    %v3142 = vld [vmem:[%s3141] sm:$0xff]
    %v3143 = vld [vmem:[%s3141 + $0x8] sm:$0xff]
    %v3144 = vld [vmem:[%s3141 + $0x10] sm:$0xff]
    %v3145 = vld [vmem:[%s3141 + $0x18] sm:$0xff]
    %3146 = vmatprep.subr.mxu0 %v888
    %3147 = vmatpush1.msra.mxu0 %v887
    %3148 = vmatprep.subr.mxu0 %v892
    %3149 = vmatpush1.msra.mxu0 %v891
    %3150 = vmatprep.subr.mxu0 %v896
    %3151 = vmatpush1.msra.mxu0 %v895
    %3152 = vmatprep.subr.mxu0 %v900
    %3153 = vmatpush1.msra.mxu0 %v899
    %3154 = vmatprep.subr.mxu0 %v904
    %3155 = vmatpush1.msra.mxu0 %v903
    %3156 = vmatprep.subr.mxu0 %v908
    %3157 = vmatpush1.msra.mxu0 %v907
    %3158 = vmatprep.subr.mxu0 %v912
    %3159 = vmatpush1.msra.mxu0 %v911
    %3160 = vmatprep.subr.mxu0 %v916
    %3161 = vmatpush1.msra.mxu0 %v915
    %3162 = vmatprep.subr.mxu0 %v920
    %3163 = vmatpush1.msra.mxu0 %v919
    %3164 = vmatprep.subr.mxu0 %v924
    %3165 = vmatpush1.msra.mxu0 %v923
    %3166 = vmatprep.subr.mxu0 %v928
    %3167 = vmatpush1.msra.mxu0 %v927
    %3168 = vmatprep.subr.mxu0 %v932
    %3169 = vmatpush1.msra.mxu0 %v931
    %3170 = vmatprep.subr.mxu0 %v936
    %3171 = vmatpush1.msra.mxu0 %v935
    %3172 = vmatprep.subr.mxu0 %v940
    %3173 = vmatpush1.msra.mxu0 %v939
    %3174 = vmatprep.subr.mxu0 %v944
    %3175 = vmatpush1.msra.mxu0 %v943
    %3176 = vmatprep.subr.mxu0 %v948
    %3177 = vmatpush1.msra.mxu0 %v947
    %3178 = vmatprep.subr.mxu0 0.0
    %3179 = vmatpush1.msra.mxu0 0.0
    %3180 = vmatprep.subr.mxu0 0.0
    %3181 = vmatpush1.msra.mxu0 0.0
    %3182 = vmatprep.subr.mxu0 0.0
    %3183 = vmatpush1.msra.mxu0 0.0
    %3184 = vmatprep.subr.mxu0 0.0
    %3185 = vmatpush1.msra.mxu0 0.0
    %3186 = vmatprep.subr.mxu0 0.0
    %3187 = vmatpush1.msra.mxu0 0.0
    %3188 = vmatprep.subr.mxu0 0.0
    %3189 = vmatpush1.msra.mxu0 0.0
    %3190 = vmatprep.subr.mxu0 0.0
    %3191 = vmatpush1.msra.mxu0 0.0
    %3192 = vmatprep.subr.mxu0 0.0
    %3193 = vmatpush1.msra.mxu0 0.0
    %3194 = vmatprep.subr.mxu0 0.0
    %3195 = vmatpush1.msra.mxu0 0.0
    %3196 = vmatprep.subr.mxu0 0.0
    %3197 = vmatpush1.msra.mxu0 0.0
    %3198 = vmatprep.subr.mxu0 0.0
    %3199 = vmatpush1.msra.mxu0 0.0
    %3200 = vmatprep.subr.mxu0 0.0
    %3201 = vmatpush1.msra.mxu0 0.0
    %3202 = vmatprep.subr.mxu0 0.0
    %3203 = vmatpush1.msra.mxu0 0.0
    %3204 = vmatprep.subr.mxu0 0.0
    %3205 = vmatpush1.msra.mxu0 0.0
    %3206 = vmatprep.subr.mxu0 0.0
    %3207 = vmatpush1.msra.mxu0 0.0
    %3208 = vmatprep.subr.mxu0 0.0
    %3209 = vmatpush1.msra.mxu0 0.0
    %3210 = vmatprep.mubr.f32.mxu0 0.0
    %3211 = vmatmul.mubr.f32.gmra.mrb[0].mxu0 %v3112
    %v3212 = vpop.f32.mrb[0].mxu0
    %v3213 = vadd.f32 0.0, %v3212
    %v3214 = vpop.f32.mrb[0].mxu0
    %v3215 = vadd.f32 0.0, %v3214
    %3216 = vdwg.mxu0
    %3217 = vmatprep.subr.mxu0 %v890
    %3218 = vmatpush1.msra.mxu0 %v889
    %3219 = vmatprep.subr.mxu0 %v894
    %3220 = vmatpush1.msra.mxu0 %v893
    %3221 = vmatprep.subr.mxu0 %v898
    %3222 = vmatpush1.msra.mxu0 %v897
    %3223 = vmatprep.subr.mxu0 %v902
    %3224 = vmatpush1.msra.mxu0 %v901
    %3225 = vmatprep.subr.mxu0 %v906
    %3226 = vmatpush1.msra.mxu0 %v905
    %3227 = vmatprep.subr.mxu0 %v910
    %3228 = vmatpush1.msra.mxu0 %v909
    %3229 = vmatprep.subr.mxu0 %v914
    %3230 = vmatpush1.msra.mxu0 %v913
    %3231 = vmatprep.subr.mxu0 %v918
    %3232 = vmatpush1.msra.mxu0 %v917
    %3233 = vmatprep.subr.mxu0 %v922
    %3234 = vmatpush1.msra.mxu0 %v921
    %3235 = vmatprep.subr.mxu0 %v926
    %3236 = vmatpush1.msra.mxu0 %v925
    %3237 = vmatprep.subr.mxu0 %v930
    %3238 = vmatpush1.msra.mxu0 %v929
    %3239 = vmatprep.subr.mxu0 %v934
    %3240 = vmatpush1.msra.mxu0 %v933
    %3241 = vmatprep.subr.mxu0 %v938
    %3242 = vmatpush1.msra.mxu0 %v937
    %3243 = vmatprep.subr.mxu0 %v942
    %3244 = vmatpush1.msra.mxu0 %v941
    %3245 = vmatprep.subr.mxu0 %v946
    %3246 = vmatpush1.msra.mxu0 %v945
    %3247 = vmatprep.subr.mxu0 %v950
    %3248 = vmatpush1.msra.mxu0 %v949
    %3249 = vmatprep.subr.mxu0 0.0
    %3250 = vmatpush1.msra.mxu0 0.0
    %3251 = vmatprep.subr.mxu0 0.0
    %3252 = vmatpush1.msra.mxu0 0.0
    %3253 = vmatprep.subr.mxu0 0.0
    %3254 = vmatpush1.msra.mxu0 0.0
    %3255 = vmatprep.subr.mxu0 0.0
    %3256 = vmatpush1.msra.mxu0 0.0
    %3257 = vmatprep.subr.mxu0 0.0
    %3258 = vmatpush1.msra.mxu0 0.0
    %3259 = vmatprep.subr.mxu0 0.0
    %3260 = vmatpush1.msra.mxu0 0.0
    %3261 = vmatprep.subr.mxu0 0.0
    %3262 = vmatpush1.msra.mxu0 0.0
    %3263 = vmatprep.subr.mxu0 0.0
    %3264 = vmatpush1.msra.mxu0 0.0
    %3265 = vmatprep.subr.mxu0 0.0
    %3266 = vmatpush1.msra.mxu0 0.0
    %3267 = vmatprep.subr.mxu0 0.0
    %3268 = vmatpush1.msra.mxu0 0.0
    %3269 = vmatprep.subr.mxu0 0.0
    %3270 = vmatpush1.msra.mxu0 0.0
    %3271 = vmatprep.subr.mxu0 0.0
    %3272 = vmatpush1.msra.mxu0 0.0
    %3273 = vmatprep.subr.mxu0 0.0
    %3274 = vmatpush1.msra.mxu0 0.0
    %3275 = vmatprep.subr.mxu0 0.0
    %3276 = vmatpush1.msra.mxu0 0.0
    %3277 = vmatprep.subr.mxu0 0.0
    %3278 = vmatpush1.msra.mxu0 0.0
    %3279 = vmatprep.subr.mxu0 0.0
    %3280 = vmatpush1.msra.mxu0 0.0
    %3281 = vmatprep.mubr.f32.mxu0 0.0
    %3282 = vmatmul.mubr.f32.gmra.mrb[0].mxu0 %v3112
    %v3283 = vpop.f32.mrb[0].mxu0
    %v3284 = vadd.f32 0.0, %v3283
    %v3285 = vpop.f32.mrb[0].mxu0
    %v3286 = vadd.f32 0.0, %v3285
    %3287 = vdwg.mxu0
    %v3288 = vadd.f32 %v3142, %v3213
    %v3289 = vadd.f32 %v3143, %v3215
    %v3290 = vadd.f32 %v3144, %v3284
    %v3291 = vadd.f32 %v3145, %v3286
    %s3292 = scalar_lea.vmem [#allocation3], 32
    %v3293 = vld [vmem:[%s3292] sm:$0xff]
    %v3294 = vld [vmem:[%s3292 + $0x8] sm:$0xff]
    %v3295 = vld [vmem:[%s3292 + $0x10] sm:$0xff]
    %v3296 = vld [vmem:[%s3292 + $0x18] sm:$0xff]
    %3297 = vmatprep.subr.mxu0 %v952
    %3298 = vmatpush1.msra.mxu0 %v951
    %3299 = vmatprep.subr.mxu0 %v956
    %3300 = vmatpush1.msra.mxu0 %v955
    %3301 = vmatprep.subr.mxu0 %v960
    %3302 = vmatpush1.msra.mxu0 %v959
    %3303 = vmatprep.subr.mxu0 %v964
    %3304 = vmatpush1.msra.mxu0 %v963
    %3305 = vmatprep.subr.mxu0 %v968
    %3306 = vmatpush1.msra.mxu0 %v967
    %3307 = vmatprep.subr.mxu0 %v972
    %3308 = vmatpush1.msra.mxu0 %v971
    %3309 = vmatprep.subr.mxu0 %v976
    %3310 = vmatpush1.msra.mxu0 %v975
    %3311 = vmatprep.subr.mxu0 %v980
    %3312 = vmatpush1.msra.mxu0 %v979
    %3313 = vmatprep.subr.mxu0 %v984
    %3314 = vmatpush1.msra.mxu0 %v983
    %3315 = vmatprep.subr.mxu0 %v988
    %3316 = vmatpush1.msra.mxu0 %v987
    %3317 = vmatprep.subr.mxu0 %v992
    %3318 = vmatpush1.msra.mxu0 %v991
    %3319 = vmatprep.subr.mxu0 %v996
    %3320 = vmatpush1.msra.mxu0 %v995
    %3321 = vmatprep.subr.mxu0 %v1000
    %3322 = vmatpush1.msra.mxu0 %v999
    %3323 = vmatprep.subr.mxu0 %v1004
    %3324 = vmatpush1.msra.mxu0 %v1003
    %3325 = vmatprep.subr.mxu0 %v1008
    %3326 = vmatpush1.msra.mxu0 %v1007
    %3327 = vmatprep.subr.mxu0 %v1012
    %3328 = vmatpush1.msra.mxu0 %v1011
    %3329 = vmatprep.subr.mxu0 0.0
    %3330 = vmatpush1.msra.mxu0 0.0
    %3331 = vmatprep.subr.mxu0 0.0
    %3332 = vmatpush1.msra.mxu0 0.0
    %3333 = vmatprep.subr.mxu0 0.0
    %3334 = vmatpush1.msra.mxu0 0.0
    %3335 = vmatprep.subr.mxu0 0.0
    %3336 = vmatpush1.msra.mxu0 0.0
    %3337 = vmatprep.subr.mxu0 0.0
    %3338 = vmatpush1.msra.mxu0 0.0
    %3339 = vmatprep.subr.mxu0 0.0
    %3340 = vmatpush1.msra.mxu0 0.0
    %3341 = vmatprep.subr.mxu0 0.0
    %3342 = vmatpush1.msra.mxu0 0.0
    %3343 = vmatprep.subr.mxu0 0.0
    %3344 = vmatpush1.msra.mxu0 0.0
    %3345 = vmatprep.subr.mxu0 0.0
    %3346 = vmatpush1.msra.mxu0 0.0
    %3347 = vmatprep.subr.mxu0 0.0
    %3348 = vmatpush1.msra.mxu0 0.0
    %3349 = vmatprep.subr.mxu0 0.0
    %3350 = vmatpush1.msra.mxu0 0.0
    %3351 = vmatprep.subr.mxu0 0.0
    %3352 = vmatpush1.msra.mxu0 0.0
    %3353 = vmatprep.subr.mxu0 0.0
    %3354 = vmatpush1.msra.mxu0 0.0
    %3355 = vmatprep.subr.mxu0 0.0
    %3356 = vmatpush1.msra.mxu0 0.0
    %3357 = vmatprep.subr.mxu0 0.0
    %3358 = vmatpush1.msra.mxu0 0.0
    %3359 = vmatprep.subr.mxu0 0.0
    %3360 = vmatpush1.msra.mxu0 0.0
    %3361 = vmatprep.mubr.f32.mxu0 0.0
    %3362 = vmatmul.mubr.f32.gmra.mrb[0].mxu0 %v3136
    %v3363 = vpop.f32.mrb[0].mxu0
    %v3364 = vadd.f32 0.0, %v3363
    %v3365 = vpop.f32.mrb[0].mxu0
    %v3366 = vadd.f32 0.0, %v3365
    %3367 = vdwg.mxu0
    %3368 = vmatprep.subr.mxu0 %v954
    %3369 = vmatpush1.msra.mxu0 %v953
    %3370 = vmatprep.subr.mxu0 %v958
    %3371 = vmatpush1.msra.mxu0 %v957
    %3372 = vmatprep.subr.mxu0 %v962
    %3373 = vmatpush1.msra.mxu0 %v961
    %3374 = vmatprep.subr.mxu0 %v966
    %3375 = vmatpush1.msra.mxu0 %v965
    %3376 = vmatprep.subr.mxu0 %v970
    %3377 = vmatpush1.msra.mxu0 %v969
    %3378 = vmatprep.subr.mxu0 %v974
    %3379 = vmatpush1.msra.mxu0 %v973
    %3380 = vmatprep.subr.mxu0 %v978
    %3381 = vmatpush1.msra.mxu0 %v977
    %3382 = vmatprep.subr.mxu0 %v982
    %3383 = vmatpush1.msra.mxu0 %v981
    %3384 = vmatprep.subr.mxu0 %v986
    %3385 = vmatpush1.msra.mxu0 %v985
    %3386 = vmatprep.subr.mxu0 %v990
    %3387 = vmatpush1.msra.mxu0 %v989
    %3388 = vmatprep.subr.mxu0 %v994
    %3389 = vmatpush1.msra.mxu0 %v993
    %3390 = vmatprep.subr.mxu0 %v998
    %3391 = vmatpush1.msra.mxu0 %v997
    %3392 = vmatprep.subr.mxu0 %v1002
    %3393 = vmatpush1.msra.mxu0 %v1001
    %3394 = vmatprep.subr.mxu0 %v1006
    %3395 = vmatpush1.msra.mxu0 %v1005
    %3396 = vmatprep.subr.mxu0 %v1010
    %3397 = vmatpush1.msra.mxu0 %v1009
    %3398 = vmatprep.subr.mxu0 %v1014
    %3399 = vmatpush1.msra.mxu0 %v1013
    %3400 = vmatprep.subr.mxu0 0.0
    %3401 = vmatpush1.msra.mxu0 0.0
    %3402 = vmatprep.subr.mxu0 0.0
    %3403 = vmatpush1.msra.mxu0 0.0
    %3404 = vmatprep.subr.mxu0 0.0
    %3405 = vmatpush1.msra.mxu0 0.0
    %3406 = vmatprep.subr.mxu0 0.0
    %3407 = vmatpush1.msra.mxu0 0.0
    %3408 = vmatprep.subr.mxu0 0.0
    %3409 = vmatpush1.msra.mxu0 0.0
    %3410 = vmatprep.subr.mxu0 0.0
    %3411 = vmatpush1.msra.mxu0 0.0
    %3412 = vmatprep.subr.mxu0 0.0
    %3413 = vmatpush1.msra.mxu0 0.0
    %3414 = vmatprep.subr.mxu0 0.0
    %3415 = vmatpush1.msra.mxu0 0.0
    %3416 = vmatprep.subr.mxu0 0.0
    %3417 = vmatpush1.msra.mxu0 0.0
    %3418 = vmatprep.subr.mxu0 0.0
    %3419 = vmatpush1.msra.mxu0 0.0
    %3420 = vmatprep.subr.mxu0 0.0
    %3421 = vmatpush1.msra.mxu0 0.0
    %3422 = vmatprep.subr.mxu0 0.0
    %3423 = vmatpush1.msra.mxu0 0.0
    %3424 = vmatprep.subr.mxu0 0.0
    %3425 = vmatpush1.msra.mxu0 0.0
    %3426 = vmatprep.subr.mxu0 0.0
    %3427 = vmatpush1.msra.mxu0 0.0
    %3428 = vmatprep.subr.mxu0 0.0
    %3429 = vmatpush1.msra.mxu0 0.0
    %3430 = vmatprep.subr.mxu0 0.0
    %3431 = vmatpush1.msra.mxu0 0.0
    %3432 = vmatprep.mubr.f32.mxu0 0.0
    %3433 = vmatmul.mubr.f32.gmra.mrb[0].mxu0 %v3136
    %v3434 = vpop.f32.mrb[0].mxu0
    %v3435 = vadd.f32 0.0, %v3434
    %v3436 = vpop.f32.mrb[0].mxu0
    %v3437 = vadd.f32 0.0, %v3436
    %3438 = vdwg.mxu0
    %v3439 = vadd.f32 %v3293, %v3364
    %v3440 = vadd.f32 %v3294, %v3366
    %v3441 = vadd.f32 %v3295, %v3435
    %v3442 = vadd.f32 %v3296, %v3437
    %v3443 = vxor.u32 %v3288, 2147483648
    %v3444 = vmul.f32 %v3443, 1.442695
    %v3445 = vpow.pop %v3444
    %v3446 = vadd.f32 %v3445, 1.0
    %v3447 = vrcp.pop %v3446
    %v3448 = vmul.f32 1.0, %v3447
    %v3449 = vxor.u32 %v3289, 2147483648
    %v3450 = vmul.f32 %v3449, 1.442695
    %v3451 = vpow.pop %v3450
    %v3452 = vadd.f32 %v3451, 1.0
    %v3453 = vrcp.pop %v3452
    %v3454 = vmul.f32 1.0, %v3453
    %v3455 = vtanh.pop %v3290
    %v3456 = vxor.u32 %v3291, 2147483648
    %v3457 = vmul.f32 %v3456, 1.442695
    %v3458 = vpow.pop %v3457
    %v3459 = vadd.f32 %v3458, 1.0
    %v3460 = vrcp.pop %v3459
    %v3461 = vmul.f32 1.0, %v3460
    %v3462 = vmul.f32 %v3454, %v3110
    %v3463 = vmul.f32 %v3448, %v3455
    %v3464 = vadd.f32 %v3462, %v3463
    %v3465 = vtanh.pop %v3464
    %v3466 = vmul.f32 %v3461, %v3465
    %v3467 = vxor.u32 %v3439, 2147483648
    %v3468 = vmul.f32 %v3467, 1.442695
    %v3469 = vpow.pop %v3468
    %v3470 = vadd.f32 %v3469, 1.0
    %v3471 = vrcp.pop %v3470
    %v3472 = vmul.f32 1.0, %v3471
    %v3473 = vxor.u32 %v3440, 2147483648
    %v3474 = vmul.f32 %v3473, 1.442695
    %v3475 = vpow.pop %v3474
    %v3476 = vadd.f32 %v3475, 1.0
    %v3477 = vrcp.pop %v3476
    %v3478 = vmul.f32 1.0, %v3477
    %v3479 = vtanh.pop %v3441
    %v3480 = vxor.u32 %v3442, 2147483648
    %v3481 = vmul.f32 %v3480, 1.442695
    %v3482 = vpow.pop %v3481
    %v3483 = vadd.f32 %v3482, 1.0
    %v3484 = vrcp.pop %v3483
    %v3485 = vmul.f32 1.0, %v3484
    %v3486 = vmul.f32 %v3478, %v3134
    %v3487 = vmul.f32 %v3472, %v3479
    %v3488 = vadd.f32 %v3486, %v3487
    %v3489 = vtanh.pop %v3488
    %v3490 = vmul.f32 %v3485, %v3489
    %s3491 = scalar_lea.vmem %s7, 48
    %3492 = vst [vmem:[%s3491] sm:$0xff] %v3466
    %s3493 = scalar_lea.vmem %s67, 8
    %3494 = vst [vmem:[%s3493] sm:$0xff] %v3490
    %s3495 = scalar_lea.vmem [#allocation2], 224
    %v3496 = vld [vmem:[%s3495] sm:$0xff]
    %v3497 = vld [vmem:[%s3495 + $0x8] sm:$0xff]
    %v3498 = vld [vmem:[%s3495 + $0x10] sm:$0xff]
    %v3499 = vld [vmem:[%s3495 + $0x18] sm:$0xff]
    %3500 = vmatprep.subr.mxu0 %v888
    %3501 = vmatpush1.msra.mxu0 %v887
    %3502 = vmatprep.subr.mxu0 %v892
    %3503 = vmatpush1.msra.mxu0 %v891
    %3504 = vmatprep.subr.mxu0 %v896
    %3505 = vmatpush1.msra.mxu0 %v895
    %3506 = vmatprep.subr.mxu0 %v900
    %3507 = vmatpush1.msra.mxu0 %v899
    %3508 = vmatprep.subr.mxu0 %v904
    %3509 = vmatpush1.msra.mxu0 %v903
    %3510 = vmatprep.subr.mxu0 %v908
    %3511 = vmatpush1.msra.mxu0 %v907
    %3512 = vmatprep.subr.mxu0 %v912
    %3513 = vmatpush1.msra.mxu0 %v911
    %3514 = vmatprep.subr.mxu0 %v916
    %3515 = vmatpush1.msra.mxu0 %v915
    %3516 = vmatprep.subr.mxu0 %v920
    %3517 = vmatpush1.msra.mxu0 %v919
    %3518 = vmatprep.subr.mxu0 %v924
    %3519 = vmatpush1.msra.mxu0 %v923
    %3520 = vmatprep.subr.mxu0 %v928
    %3521 = vmatpush1.msra.mxu0 %v927
    %3522 = vmatprep.subr.mxu0 %v932
    %3523 = vmatpush1.msra.mxu0 %v931
    %3524 = vmatprep.subr.mxu0 %v936
    %3525 = vmatpush1.msra.mxu0 %v935
    %3526 = vmatprep.subr.mxu0 %v940
    %3527 = vmatpush1.msra.mxu0 %v939
    %3528 = vmatprep.subr.mxu0 %v944
    %3529 = vmatpush1.msra.mxu0 %v943
    %3530 = vmatprep.subr.mxu0 %v948
    %3531 = vmatpush1.msra.mxu0 %v947
    %3532 = vmatprep.subr.mxu0 0.0
    %3533 = vmatpush1.msra.mxu0 0.0
    %3534 = vmatprep.subr.mxu0 0.0
    %3535 = vmatpush1.msra.mxu0 0.0
    %3536 = vmatprep.subr.mxu0 0.0
    %3537 = vmatpush1.msra.mxu0 0.0
    %3538 = vmatprep.subr.mxu0 0.0
    %3539 = vmatpush1.msra.mxu0 0.0
    %3540 = vmatprep.subr.mxu0 0.0
    %3541 = vmatpush1.msra.mxu0 0.0
    %3542 = vmatprep.subr.mxu0 0.0
    %3543 = vmatpush1.msra.mxu0 0.0
    %3544 = vmatprep.subr.mxu0 0.0
    %3545 = vmatpush1.msra.mxu0 0.0
    %3546 = vmatprep.subr.mxu0 0.0
    %3547 = vmatpush1.msra.mxu0 0.0
    %3548 = vmatprep.subr.mxu0 0.0
    %3549 = vmatpush1.msra.mxu0 0.0
    %3550 = vmatprep.subr.mxu0 0.0
    %3551 = vmatpush1.msra.mxu0 0.0
    %3552 = vmatprep.subr.mxu0 0.0
    %3553 = vmatpush1.msra.mxu0 0.0
    %3554 = vmatprep.subr.mxu0 0.0
    %3555 = vmatpush1.msra.mxu0 0.0
    %3556 = vmatprep.subr.mxu0 0.0
    %3557 = vmatpush1.msra.mxu0 0.0
    %3558 = vmatprep.subr.mxu0 0.0
    %3559 = vmatpush1.msra.mxu0 0.0
    %3560 = vmatprep.subr.mxu0 0.0
    %3561 = vmatpush1.msra.mxu0 0.0
    %3562 = vmatprep.subr.mxu0 0.0
    %3563 = vmatpush1.msra.mxu0 0.0
    %3564 = vmatprep.mubr.f32.mxu0 0.0
    %3565 = vmatmul.mubr.f32.gmra.mrb[0].mxu0 %v3466
    %v3566 = vpop.f32.mrb[0].mxu0
    %v3567 = vadd.f32 0.0, %v3566
    %v3568 = vpop.f32.mrb[0].mxu0
    %v3569 = vadd.f32 0.0, %v3568
    %3570 = vdwg.mxu0
    %3571 = vmatprep.subr.mxu0 %v890
    %3572 = vmatpush1.msra.mxu0 %v889
    %3573 = vmatprep.subr.mxu0 %v894
    %3574 = vmatpush1.msra.mxu0 %v893
    %3575 = vmatprep.subr.mxu0 %v898
    %3576 = vmatpush1.msra.mxu0 %v897
    %3577 = vmatprep.subr.mxu0 %v902
    %3578 = vmatpush1.msra.mxu0 %v901
    %3579 = vmatprep.subr.mxu0 %v906
    %3580 = vmatpush1.msra.mxu0 %v905
    %3581 = vmatprep.subr.mxu0 %v910
    %3582 = vmatpush1.msra.mxu0 %v909
    %3583 = vmatprep.subr.mxu0 %v914
    %3584 = vmatpush1.msra.mxu0 %v913
    %3585 = vmatprep.subr.mxu0 %v918
    %3586 = vmatpush1.msra.mxu0 %v917
    %3587 = vmatprep.subr.mxu0 %v922
    %3588 = vmatpush1.msra.mxu0 %v921
    %3589 = vmatprep.subr.mxu0 %v926
    %3590 = vmatpush1.msra.mxu0 %v925
    %3591 = vmatprep.subr.mxu0 %v930
    %3592 = vmatpush1.msra.mxu0 %v929
    %3593 = vmatprep.subr.mxu0 %v934
    %3594 = vmatpush1.msra.mxu0 %v933
    %3595 = vmatprep.subr.mxu0 %v938
    %3596 = vmatpush1.msra.mxu0 %v937
    %3597 = vmatprep.subr.mxu0 %v942
    %3598 = vmatpush1.msra.mxu0 %v941
    %3599 = vmatprep.subr.mxu0 %v946
    %3600 = vmatpush1.msra.mxu0 %v945
    %3601 = vmatprep.subr.mxu0 %v950
    %3602 = vmatpush1.msra.mxu0 %v949
    %3603 = vmatprep.subr.mxu0 0.0
    %3604 = vmatpush1.msra.mxu0 0.0
    %3605 = vmatprep.subr.mxu0 0.0
    %3606 = vmatpush1.msra.mxu0 0.0
    %3607 = vmatprep.subr.mxu0 0.0
    %3608 = vmatpush1.msra.mxu0 0.0
    %3609 = vmatprep.subr.mxu0 0.0
    %3610 = vmatpush1.msra.mxu0 0.0
    %3611 = vmatprep.subr.mxu0 0.0
    %3612 = vmatpush1.msra.mxu0 0.0
    %3613 = vmatprep.subr.mxu0 0.0
    %3614 = vmatpush1.msra.mxu0 0.0
    %3615 = vmatprep.subr.mxu0 0.0
    %3616 = vmatpush1.msra.mxu0 0.0
    %3617 = vmatprep.subr.mxu0 0.0
    %3618 = vmatpush1.msra.mxu0 0.0
    %3619 = vmatprep.subr.mxu0 0.0
    %3620 = vmatpush1.msra.mxu0 0.0
    %3621 = vmatprep.subr.mxu0 0.0
    %3622 = vmatpush1.msra.mxu0 0.0
    %3623 = vmatprep.subr.mxu0 0.0
    %3624 = vmatpush1.msra.mxu0 0.0
    %3625 = vmatprep.subr.mxu0 0.0
    %3626 = vmatpush1.msra.mxu0 0.0
    %3627 = vmatprep.subr.mxu0 0.0
    %3628 = vmatpush1.msra.mxu0 0.0
    %3629 = vmatprep.subr.mxu0 0.0
    %3630 = vmatpush1.msra.mxu0 0.0
    %3631 = vmatprep.subr.mxu0 0.0
    %3632 = vmatpush1.msra.mxu0 0.0
    %3633 = vmatprep.subr.mxu0 0.0
    %3634 = vmatpush1.msra.mxu0 0.0
    %3635 = vmatprep.mubr.f32.mxu0 0.0
    %3636 = vmatmul.mubr.f32.gmra.mrb[0].mxu0 %v3466
    %v3637 = vpop.f32.mrb[0].mxu0
    %v3638 = vadd.f32 0.0, %v3637
    %v3639 = vpop.f32.mrb[0].mxu0
    %v3640 = vadd.f32 0.0, %v3639
    %3641 = vdwg.mxu0
    %v3642 = vadd.f32 %v3496, %v3567
    %v3643 = vadd.f32 %v3497, %v3569
    %v3644 = vadd.f32 %v3498, %v3638
    %v3645 = vadd.f32 %v3499, %v3640
    %v3646 = vld [vmem:[#allocation3] sm:$0xff]
    %v3647 = vld [vmem:[#allocation3 + $0x8] sm:$0xff]
    %v3648 = vld [vmem:[#allocation3 + $0x10] sm:$0xff]
    %v3649 = vld [vmem:[#allocation3 + $0x18] sm:$0xff]
    %3650 = vmatprep.subr.mxu0 %v952
    %3651 = vmatpush1.msra.mxu0 %v951
    %3652 = vmatprep.subr.mxu0 %v956
    %3653 = vmatpush1.msra.mxu0 %v955
    %3654 = vmatprep.subr.mxu0 %v960
    %3655 = vmatpush1.msra.mxu0 %v959
    %3656 = vmatprep.subr.mxu0 %v964
    %3657 = vmatpush1.msra.mxu0 %v963
    %3658 = vmatprep.subr.mxu0 %v968
    %3659 = vmatpush1.msra.mxu0 %v967
    %3660 = vmatprep.subr.mxu0 %v972
    %3661 = vmatpush1.msra.mxu0 %v971
    %3662 = vmatprep.subr.mxu0 %v976
    %3663 = vmatpush1.msra.mxu0 %v975
    %3664 = vmatprep.subr.mxu0 %v980
    %3665 = vmatpush1.msra.mxu0 %v979
    %3666 = vmatprep.subr.mxu0 %v984
    %3667 = vmatpush1.msra.mxu0 %v983
    %3668 = vmatprep.subr.mxu0 %v988
    %3669 = vmatpush1.msra.mxu0 %v987
    %3670 = vmatprep.subr.mxu0 %v992
    %3671 = vmatpush1.msra.mxu0 %v991
    %3672 = vmatprep.subr.mxu0 %v996
    %3673 = vmatpush1.msra.mxu0 %v995
    %3674 = vmatprep.subr.mxu0 %v1000
    %3675 = vmatpush1.msra.mxu0 %v999
    %3676 = vmatprep.subr.mxu0 %v1004
    %3677 = vmatpush1.msra.mxu0 %v1003
    %3678 = vmatprep.subr.mxu0 %v1008
    %3679 = vmatpush1.msra.mxu0 %v1007
    %3680 = vmatprep.subr.mxu0 %v1012
    %3681 = vmatpush1.msra.mxu0 %v1011
    %3682 = vmatprep.subr.mxu0 0.0
    %3683 = vmatpush1.msra.mxu0 0.0
    %3684 = vmatprep.subr.mxu0 0.0
    %3685 = vmatpush1.msra.mxu0 0.0
    %3686 = vmatprep.subr.mxu0 0.0
    %3687 = vmatpush1.msra.mxu0 0.0
    %3688 = vmatprep.subr.mxu0 0.0
    %3689 = vmatpush1.msra.mxu0 0.0
    %3690 = vmatprep.subr.mxu0 0.0
    %3691 = vmatpush1.msra.mxu0 0.0
    %3692 = vmatprep.subr.mxu0 0.0
    %3693 = vmatpush1.msra.mxu0 0.0
    %3694 = vmatprep.subr.mxu0 0.0
    %3695 = vmatpush1.msra.mxu0 0.0
    %3696 = vmatprep.subr.mxu0 0.0
    %3697 = vmatpush1.msra.mxu0 0.0
    %3698 = vmatprep.subr.mxu0 0.0
    %3699 = vmatpush1.msra.mxu0 0.0
    %3700 = vmatprep.subr.mxu0 0.0
    %3701 = vmatpush1.msra.mxu0 0.0
    %3702 = vmatprep.subr.mxu0 0.0
    %3703 = vmatpush1.msra.mxu0 0.0
    %3704 = vmatprep.subr.mxu0 0.0
    %3705 = vmatpush1.msra.mxu0 0.0
    %3706 = vmatprep.subr.mxu0 0.0
    %3707 = vmatpush1.msra.mxu0 0.0
    %3708 = vmatprep.subr.mxu0 0.0
    %3709 = vmatpush1.msra.mxu0 0.0
    %3710 = vmatprep.subr.mxu0 0.0
    %3711 = vmatpush1.msra.mxu0 0.0
    %3712 = vmatprep.subr.mxu0 0.0
    %3713 = vmatpush1.msra.mxu0 0.0
    %3714 = vmatprep.mubr.f32.mxu0 0.0
    %3715 = vmatmul.mubr.f32.gmra.mrb[0].mxu0 %v3490
    %v3716 = vpop.f32.mrb[0].mxu0
    %v3717 = vadd.f32 0.0, %v3716
    %v3718 = vpop.f32.mrb[0].mxu0
    %v3719 = vadd.f32 0.0, %v3718
    %3720 = vdwg.mxu0
    %3721 = vmatprep.subr.mxu0 %v954
    %3722 = vmatpush1.msra.mxu0 %v953
    %3723 = vmatprep.subr.mxu0 %v958
    %3724 = vmatpush1.msra.mxu0 %v957
    %3725 = vmatprep.subr.mxu0 %v962
    %3726 = vmatpush1.msra.mxu0 %v961
    %3727 = vmatprep.subr.mxu0 %v966
    %3728 = vmatpush1.msra.mxu0 %v965
    %3729 = vmatprep.subr.mxu0 %v970
    %3730 = vmatpush1.msra.mxu0 %v969
    %3731 = vmatprep.subr.mxu0 %v974
    %3732 = vmatpush1.msra.mxu0 %v973
    %3733 = vmatprep.subr.mxu0 %v978
    %3734 = vmatpush1.msra.mxu0 %v977
    %3735 = vmatprep.subr.mxu0 %v982
    %3736 = vmatpush1.msra.mxu0 %v981
    %3737 = vmatprep.subr.mxu0 %v986
    %3738 = vmatpush1.msra.mxu0 %v985
    %3739 = vmatprep.subr.mxu0 %v990
    %3740 = vmatpush1.msra.mxu0 %v989
    %3741 = vmatprep.subr.mxu0 %v994
    %3742 = vmatpush1.msra.mxu0 %v993
    %3743 = vmatprep.subr.mxu0 %v998
    %3744 = vmatpush1.msra.mxu0 %v997
    %3745 = vmatprep.subr.mxu0 %v1002
    %3746 = vmatpush1.msra.mxu0 %v1001
    %3747 = vmatprep.subr.mxu0 %v1006
    %3748 = vmatpush1.msra.mxu0 %v1005
    %3749 = vmatprep.subr.mxu0 %v1010
    %3750 = vmatpush1.msra.mxu0 %v1009
    %3751 = vmatprep.subr.mxu0 %v1014
    %3752 = vmatpush1.msra.mxu0 %v1013
    %3753 = vmatprep.subr.mxu0 0.0
    %3754 = vmatpush1.msra.mxu0 0.0
    %3755 = vmatprep.subr.mxu0 0.0
    %3756 = vmatpush1.msra.mxu0 0.0
    %3757 = vmatprep.subr.mxu0 0.0
    %3758 = vmatpush1.msra.mxu0 0.0
    %3759 = vmatprep.subr.mxu0 0.0
    %3760 = vmatpush1.msra.mxu0 0.0
    %3761 = vmatprep.subr.mxu0 0.0
    %3762 = vmatpush1.msra.mxu0 0.0
    %3763 = vmatprep.subr.mxu0 0.0
    %3764 = vmatpush1.msra.mxu0 0.0
    %3765 = vmatprep.subr.mxu0 0.0
    %3766 = vmatpush1.msra.mxu0 0.0
    %3767 = vmatprep.subr.mxu0 0.0
    %3768 = vmatpush1.msra.mxu0 0.0
    %3769 = vmatprep.subr.mxu0 0.0
    %3770 = vmatpush1.msra.mxu0 0.0
    %3771 = vmatprep.subr.mxu0 0.0
    %3772 = vmatpush1.msra.mxu0 0.0
    %3773 = vmatprep.subr.mxu0 0.0
    %3774 = vmatpush1.msra.mxu0 0.0
    %3775 = vmatprep.subr.mxu0 0.0
    %3776 = vmatpush1.msra.mxu0 0.0
    %3777 = vmatprep.subr.mxu0 0.0
    %3778 = vmatpush1.msra.mxu0 0.0
    %3779 = vmatprep.subr.mxu0 0.0
    %3780 = vmatpush1.msra.mxu0 0.0
    %3781 = vmatprep.subr.mxu0 0.0
    %3782 = vmatpush1.msra.mxu0 0.0
    %3783 = vmatprep.subr.mxu0 0.0
    %3784 = vmatpush1.msra.mxu0 0.0
    %3785 = vmatprep.mubr.f32.mxu0 0.0
    %3786 = vmatmul.mubr.f32.gmra.mrb[0].mxu0 %v3490
    %v3787 = vpop.f32.mrb[0].mxu0
    %v3788 = vadd.f32 0.0, %v3787
    %v3789 = vpop.f32.mrb[0].mxu0
    %v3790 = vadd.f32 0.0, %v3789
    %3791 = vdwg.mxu0
    %v3792 = vadd.f32 %v3646, %v3717
    %v3793 = vadd.f32 %v3647, %v3719
    %v3794 = vadd.f32 %v3648, %v3788
    %v3795 = vadd.f32 %v3649, %v3790
    %v3796 = vxor.u32 %v3642, 2147483648
    %v3797 = vmul.f32 %v3796, 1.442695
    %v3798 = vpow.pop %v3797
    %v3799 = vadd.f32 %v3798, 1.0
    %v3800 = vrcp.pop %v3799
    %v3801 = vmul.f32 1.0, %v3800
    %v3802 = vxor.u32 %v3643, 2147483648
    %v3803 = vmul.f32 %v3802, 1.442695
    %v3804 = vpow.pop %v3803
    %v3805 = vadd.f32 %v3804, 1.0
    %v3806 = vrcp.pop %v3805
    %v3807 = vmul.f32 1.0, %v3806
    %v3808 = vtanh.pop %v3644
    %v3809 = vxor.u32 %v3645, 2147483648
    %v3810 = vmul.f32 %v3809, 1.442695
    %v3811 = vpow.pop %v3810
    %v3812 = vadd.f32 %v3811, 1.0
    %v3813 = vrcp.pop %v3812
    %v3814 = vmul.f32 1.0, %v3813
    %v3815 = vmul.f32 %v3807, %v3464
    %v3816 = vmul.f32 %v3801, %v3808
    %v3817 = vadd.f32 %v3815, %v3816
    %v3818 = vtanh.pop %v3817
    %v3819 = vmul.f32 %v3814, %v3818
    %v3820 = vxor.u32 %v3792, 2147483648
    %v3821 = vmul.f32 %v3820, 1.442695
    %v3822 = vpow.pop %v3821
    %v3823 = vadd.f32 %v3822, 1.0
    %v3824 = vrcp.pop %v3823
    %v3825 = vmul.f32 1.0, %v3824
    %v3826 = vxor.u32 %v3793, 2147483648
    %v3827 = vmul.f32 %v3826, 1.442695
    %v3828 = vpow.pop %v3827
    %v3829 = vadd.f32 %v3828, 1.0
    %v3830 = vrcp.pop %v3829
    %v3831 = vmul.f32 1.0, %v3830
    %v3832 = vtanh.pop %v3794
    %v3833 = vxor.u32 %v3795, 2147483648
    %v3834 = vmul.f32 %v3833, 1.442695
    %v3835 = vpow.pop %v3834
    %v3836 = vadd.f32 %v3835, 1.0
    %v3837 = vrcp.pop %v3836
    %v3838 = vmul.f32 1.0, %v3837
    %v3839 = vmul.f32 %v3831, %v3488
    %v3840 = vmul.f32 %v3825, %v3832
    %v3841 = vadd.f32 %v3839, %v3840
    %v3842 = vtanh.pop %v3841
    %v3843 = vmul.f32 %v3838, %v3842
    %s3844 = scalar_lea.vmem %s7, 56
    %3845 = vst [vmem:[%s3844] sm:$0xff] %v3819
    %3846 = vst [vmem:[%s67] sm:$0xff] %v3843
    %3847 = vst [vmem:[#allocation4] sm:$0xff] %v3819
    %3848 = vst [vmem:[#allocation5] sm:$0xff] %v3817
    %3849 = vst [vmem:[#allocation6] sm:$0xff] %v3843
    %3850 = vst [vmem:[#allocation7] sm:$0xff] %v3841
    %s3851 = ssub.s32 0, 0
    %s3852 = smul.u32 8, %s3851
    %p3853 = scmp.lt.s32.totalorder %s3852, 7
    %s3854 = scalar_select %p3853, %s3852, 7
    %s3855 = smul.addr %s3854, 8
    %s3856 = scalar_lea.vmem %s8, %s3855
    // Predicated region
    $region42: #{torch_model_forward.2} parent=1 // pred_check
      _
    $region43: #{torch_model_forward.2} parent=1 // pred_check_branch
      %3858 = sbr.rel (0) target = $region45
    $region44: #{torch_model_forward.2} parent=1 // pred_region
      _
    $region45: #{torch_model_forward.2} parent=1 // pred_fallthru
      _
    // Predicated region
    $region46: #{torch_model_forward.2} parent=1 // pred_check
      _
    $region47: #{torch_model_forward.2} parent=1 // pred_check_branch
      %3860 = sbr.rel (0) target = $region49
    $region48: #{torch_model_forward.2} parent=1 // pred_region
      %s3861 = ssub.s32 0, 0
      %s3862 = smul.u32 8, %s3861
    $region49: #{torch_model_forward.2} parent=1 // pred_fallthru
      _
    // Predicated region
    $region50: #{torch_model_forward.2} parent=1 // pred_check
      _
    $region51: #{torch_model_forward.2} parent=1 // pred_check_branch
      %3864 = sbr.rel (0) target = $region53
    $region52: #{torch_model_forward.2} parent=1 // pred_region
      _
    $region53: #{torch_model_forward.2} parent=1 // pred_fallthru
      _
    // Predicated region
    $region54: #{torch_model_forward.2} parent=1 // pred_check
      _
    $region55: #{torch_model_forward.2} parent=1 // pred_check_branch
      %3866 = sbr.rel (0) target = $region57
    $region56: #{torch_model_forward.2} parent=1 // pred_region
      %s3867 = ssub.s32 0, 0
      %s3868 = smul.u32 8, %s3867
      %p3869 = scmp.lt.s32.totalorder %s3868, 7
      %s3870 = scalar_select %p3869, %s3868, 7
      %s3871 = smul.addr %s3870, 8
      %s3872 = scalar_lea.vmem %s8, %s3871
    $region57: #{torch_model_forward.2} parent=1 // pred_fallthru
      _
    %3873 = vsyncpa [#allocation9], 1
    %3874 = vsyncpa [#allocation11], 1

// kernel: torch_model_forward.3
$region0: #{torch_model_forward.3}
  #allocation0 [shape = 'u32[]', space=smem, size = 0x4, offset = 0x4, fixed_abs, tag = 'smem constant byte address 0x4 - core index']
  #allocation1 [shape = 'u32[144,128]{1,0:T(1,128)}', space=vmem, size = 0x12000, scoped, tag = 'internal scratch']
  #allocation2 [shape = 'f32[8,8,512]{2,1,0:T(8,128)}', space=vmem, size = 0x20000, scoped, tag = 'scratch operand']
  #allocation3 [shape = 'f32[8,8,512]{2,1,0:T(8,128)}', space=vmem, size = 0x20000, scoped, tag = 'scratch operand']
  #allocation4 [shape = 'f32[8,128]{1,0:T(8,128)}', space=vmem, size = 0x1000, scoped, tag = 'scratch operand']
  #allocation5 [shape = 'f32[8,128]{1,0:T(8,128)}', space=vmem, size = 0x1000, scoped, tag = 'scratch operand']
  #allocation6 [shape = 'f32[8,128]{1,0:T(8,128)}', space=vmem, size = 0x1000, scoped, tag = 'scratch operand']
  #allocation7 [shape = 'f32[8,128]{1,0:T(8,128)}', space=vmem, size = 0x1000, scoped, tag = 'scratch operand']
  #allocation8 [shape = 'f32[8,8,128]{2,1,0:T(8,128)}', space=vmem, size = 0x8000, scoped, tag = 'scratch operand']
  #allocation9 [shape = 'f32[8,8,128]{2,1,0:T(8,128)}', space=vmem, size = 0x8000, scoped, tag = 'scratch operand']
  %s0 = inlined_call_operand.vmem [shape: f32[8,8,128], index: 0, kind: input, shape index: {}]
  %s1 = inlined_call_operand.vmem [shape: f32[8,8,128], index: 1, kind: input, shape index: {}]
  %s2 = inlined_call_operand.vmem [shape: bf16[256,512], index: 2, kind: input, shape index: {}]
  %s3 = inlined_call_operand.vmem [shape: f32[128,512], index: 3, kind: input, shape index: {}]
  %s4 = inlined_call_operand.vmem [shape: f32[1,512], index: 4, kind: input, shape index: {}]
  %s5 = inlined_call_operand.vmem [shape: bf16[256,512], index: 5, kind: input, shape index: {}]
  %s6 = inlined_call_operand.hbm [shape: f32[128,512], index: 6, kind: input, shape index: {}]
  %s7 = inlined_call_operand.vmem [shape: f32[1,512], index: 7, kind: input, shape index: {}]
  %s8 = inlined_call_operand.hbm [shape: f32[128,128], index: 8, kind: input, shape index: {}]
  %s9 = inlined_call_operand.hbm [shape: f32[128,128], index: 9, kind: input, shape index: {}]
  %s10 = inlined_call_operand.vmem [shape: f32[1,128], index: 10, kind: input, shape index: {}]
  %s11 = inlined_call_operand.vmem [shape: f32[8,8,128], index: 11, kind: output, shape index: {}]
  %s12 = sld [smem:[#allocation0]]
  $region70: #{torch_model_forward.3} parent=0
    _
  %s14 = ssub.s32 1, %s12
  %s15 = scalar_select 0, %s14, %s12
  $region1: #{torch_model_forward.3} parent=0
    #allocation10 [shape = 'u8[262144]{0}', space=vmem, size = 0x40000, scoped, tag = 'input window, operand 6, single buffered']
    #allocation11 [shape = 's32[1]{0}', space=sflag, size = 0x4, scoped, tag = 'scoped memory for torch_model_forward.3']
    #allocation12 [shape = 'u8[65536]{0}', space=vmem, size = 0x10000, scoped, tag = 'input window, operand 8, single buffered']
    #allocation13 [shape = 's32[1]{0}', space=sflag, size = 0x4, scoped, tag = 'scoped memory for torch_model_forward.3']
    #allocation14 [shape = 'u8[65536]{0}', space=vmem, size = 0x10000, scoped, tag = 'input window, operand 9, single buffered']
    %16 = vsyncpa [#allocation11], 0
    %17 = vsyncpa [#allocation13], 0
    // Predicated region
    $region2: #{torch_model_forward.3} parent=1 // pred_check
      _
    $region3: #{torch_model_forward.3} parent=1 // pred_check_branch
      %19 = sbr.rel (0) target = $region5
    $region4: #{torch_model_forward.3} parent=1 // pred_region
      _
    $region5: #{torch_model_forward.3} parent=1 // pred_fallthru
      _
    // Predicated region
    $region6: #{torch_model_forward.3} parent=1 // pred_check
      _
    $region7: #{torch_model_forward.3} parent=1 // pred_check_branch
      %21 = sbr.rel (0) target = $region9
    $region8: #{torch_model_forward.3} parent=1 // pred_region
      _
    $region9: #{torch_model_forward.3} parent=1 // pred_fallthru
      _
    // Predicated region
    $region10: #{torch_model_forward.3} parent=1 // pred_check
      _
    $region11: #{torch_model_forward.3} parent=1 // pred_check_branch
      %23 = sbr.rel (0) target = $region13
    $region12: #{torch_model_forward.3} parent=1 // pred_region
      _
    $region13: #{torch_model_forward.3} parent=1 // pred_fallthru
      _
    // Predicated region
    $region14: #{torch_model_forward.3} parent=1 // pred_check
      _
    $region15: #{torch_model_forward.3} parent=1 // pred_check_branch
      %25 = sbr.rel (0) target = $region17
    $region16: #{torch_model_forward.3} parent=1 // pred_region
      _
    $region17: #{torch_model_forward.3} parent=1 // pred_fallthru
      _
    // Predicated region
    $region18: #{torch_model_forward.3} parent=1 // pred_check
      _
    $region19: #{torch_model_forward.3} parent=1 // pred_check_branch
      %27 = sbr.rel (0) target = $region21
    $region20: #{torch_model_forward.3} parent=1 // pred_region
      _
    $region21: #{torch_model_forward.3} parent=1 // pred_fallthru
      _
    // Predicated region
    $region22: #{torch_model_forward.3} parent=1 // pred_check
      _
    $region23: #{torch_model_forward.3} parent=1 // pred_check_branch
      %29 = sbr.rel (0) target = $region25
    $region24: #{torch_model_forward.3} parent=1 // pred_region
      _
    $region25: #{torch_model_forward.3} parent=1 // pred_fallthru
      _
    // Predicated region
    $region26: #{torch_model_forward.3} parent=1 // pred_check
      _
    $region27: #{torch_model_forward.3} parent=1 // pred_check_branch
      %31 = sbr.rel (0) target = $region29
    $region28: #{torch_model_forward.3} parent=1 // pred_region
      %s33 = ssub.s32 8192, 8192
      %34 = vsyncadd [#allocation11], %s33
      %s35 = sshll.u32 [#allocation10], 4
      %s36 = int_to_ptr.vmem [resolvable:$true] %s35
      %41 = dma.hbm_to_vmem [thread:$0]  %s6, 8192, %s36, [#allocation11], 512, 512, 32
    $region29: #{torch_model_forward.3} parent=1 // pred_fallthru
      _
    // Predicated region
    $region30: #{torch_model_forward.3} parent=1 // pred_check
      _
    $region31: #{torch_model_forward.3} parent=1 // pred_check_branch
      %43 = sbr.rel (0) target = $region33
    $region32: #{torch_model_forward.3} parent=1 // pred_region
      _
    $region33: #{torch_model_forward.3} parent=1 // pred_fallthru
      _
    // Predicated region
    $region34: #{torch_model_forward.3} parent=1 // pred_check
      _
    $region35: #{torch_model_forward.3} parent=1 // pred_check_branch
      %45 = sbr.rel (0) target = $region37
    $region36: #{torch_model_forward.3} parent=1 // pred_region
      %s47 = ssub.s32 2048, 2048
      %48 = vsyncadd [#allocation13], %s47
      %s49 = sshll.u32 [#allocation12], 4
      %s50 = int_to_ptr.vmem [resolvable:$true] %s49
      %55 = dma.hbm_to_vmem [thread:$0]  %s8, 2048, %s50, [#allocation13], 128, 128, 8
    $region37: #{torch_model_forward.3} parent=1 // pred_fallthru
      _
    // Predicated region
    $region38: #{torch_model_forward.3} parent=1 // pred_check
      _
    $region39: #{torch_model_forward.3} parent=1 // pred_check_branch
      %57 = sbr.rel (0) target = $region41
    $region40: #{torch_model_forward.3} parent=1 // pred_region
      %s59 = ssub.s32 2048, 2048
      %60 = vsyncadd [#allocation13], %s59
      %s61 = sshll.u32 [#allocation14], 4
      %s62 = int_to_ptr.vmem [resolvable:$true] %s61
      %67 = dma.hbm_to_vmem [thread:$0]  %s9, 2048, %s62, [#allocation13], 128, 128, 8
    $region41: #{torch_model_forward.3} parent=1 // pred_fallthru
      _
    // Predicated region
    $region42: #{torch_model_forward.3} parent=1 // pred_check
      _
    $region43: #{torch_model_forward.3} parent=1 // pred_check_branch
      %69 = sbr.rel (0) target = $region45
    $region44: #{torch_model_forward.3} parent=1 // pred_region
      _
    $region45: #{torch_model_forward.3} parent=1 // pred_fallthru
      _
    // Predicated region
    $region46: #{torch_model_forward.3} parent=1 // pred_check
      _
    $region47: #{torch_model_forward.3} parent=1 // pred_check_branch
      %71 = sbr.rel (0) target = $region49
    $region48: #{torch_model_forward.3} parent=1 // pred_region
      %72 = dma.done [#allocation11], 8192
    $region49: #{torch_model_forward.3} parent=1 // pred_fallthru
      _
    // Predicated region
    $region50: #{torch_model_forward.3} parent=1 // pred_check
      _
    $region51: #{torch_model_forward.3} parent=1 // pred_check_branch
      %74 = sbr.rel (0) target = $region53
    $region52: #{torch_model_forward.3} parent=1 // pred_region
      %75 = dma.done [#allocation13], 2048
    $region53: #{torch_model_forward.3} parent=1 // pred_fallthru
      _
    // Predicated region
    $region54: #{torch_model_forward.3} parent=1 // pred_check
      _
    $region55: #{torch_model_forward.3} parent=1 // pred_check_branch
      %77 = sbr.rel (0) target = $region57
    $region56: #{torch_model_forward.3} parent=1 // pred_region
      %78 = dma.done [#allocation13], 2048
    $region57: #{torch_model_forward.3} parent=1 // pred_fallthru
      _
    %p80 = scmp.eq.s32.totalorder 0, 0
    // Predicated region
    $region58: #{torch_model_forward.3} parent=1 // pred_check
      %p81 = pneg %p80
    $region59: #{torch_model_forward.3} parent=1 // pred_check_branch
      %83 = sbr.rel (%p81) target = $region61
    $region60: #{torch_model_forward.3} parent=1 // pred_region
      %84 = vst [vmem:[#allocation4] sm:$0xff] 0.0
      %85 = vst [vmem:[#allocation5] sm:$0xff] 0.0
      %86 = vst [vmem:[#allocation6] sm:$0xff] 0.0
      %87 = vst [vmem:[#allocation7] sm:$0xff] 0.0
    $region61: #{torch_model_forward.3} parent=1 // pred_fallthru
      _
    %v88 = vld [vmem:[%s0] sm:$0xff]
    %v89 = vld [vmem:[%s0 + $0x8] sm:$0xff]
    %v90 = vld [vmem:[%s0 + $0x10] sm:$0xff]
    %v91 = vld [vmem:[%s0 + $0x18] sm:$0xff]
    %v92 = vld [vmem:[%s0 + $0x20] sm:$0xff]
    %v93 = vld [vmem:[%s0 + $0x28] sm:$0xff]
    %v94 = vld [vmem:[%s0 + $0x30] sm:$0xff]
    %v95 = vld [vmem:[%s0 + $0x38] sm:$0xff]
    %v96 = vpack.c.bf16 %v89, %v88
    %v97 = vpack.c.bf16 %v91, %v90
    %v98 = vpack.c.bf16 %v93, %v92
    %v99 = vpack.c.bf16 %v95, %v94
    %v100 = vld [vmem:[%s2] sm:$0xff]
    %v101 = vld [vmem:[%s2 + $0x8] sm:$0xff]
    %v102 = vld [vmem:[%s2 + $0x10] sm:$0xff]
    %v103 = vld [vmem:[%s2 + $0x18] sm:$0xff]
    %v104 = vld [vmem:[%s2 + $0x20] sm:$0xff]
    %v105 = vld [vmem:[%s2 + $0x28] sm:$0xff]
    %v106 = vld [vmem:[%s2 + $0x30] sm:$0xff]
    %v107 = vld [vmem:[%s2 + $0x38] sm:$0xff]
    %v108 = vld [vmem:[%s2 + $0x40] sm:$0xff]
    %v109 = vld [vmem:[%s2 + $0x48] sm:$0xff]
    %v110 = vld [vmem:[%s2 + $0x50] sm:$0xff]
    %v111 = vld [vmem:[%s2 + $0x58] sm:$0xff]
    %v112 = vld [vmem:[%s2 + $0x60] sm:$0xff]
    %v113 = vld [vmem:[%s2 + $0x68] sm:$0xff]
    %v114 = vld [vmem:[%s2 + $0x70] sm:$0xff]
    %v115 = vld [vmem:[%s2 + $0x78] sm:$0xff]
    %v116 = vld [vmem:[%s2 + $0x80] sm:$0xff]
    %v117 = vld [vmem:[%s2 + $0x88] sm:$0xff]
    %v118 = vld [vmem:[%s2 + $0x90] sm:$0xff]
    %v119 = vld [vmem:[%s2 + $0x98] sm:$0xff]
    %v120 = vld [vmem:[%s2 + $0xa0] sm:$0xff]
    %v121 = vld [vmem:[%s2 + $0xa8] sm:$0xff]
    %v122 = vld [vmem:[%s2 + $0xb0] sm:$0xff]
    %v123 = vld [vmem:[%s2 + $0xb8] sm:$0xff]
    %v124 = vld [vmem:[%s2 + $0xc0] sm:$0xff]
    %v125 = vld [vmem:[%s2 + $0xc8] sm:$0xff]
    %v126 = vld [vmem:[%s2 + $0xd0] sm:$0xff]
    %v127 = vld [vmem:[%s2 + $0xd8] sm:$0xff]
    %v128 = vld [vmem:[%s2 + $0xe0] sm:$0xff]
    %v129 = vld [vmem:[%s2 + $0xe8] sm:$0xff]
    %v130 = vld [vmem:[%s2 + $0xf0] sm:$0xff]
    %v131 = vld [vmem:[%s2 + $0xf8] sm:$0xff]
    %v132 = vld [vmem:[%s2 + $0x100] sm:$0xff]
    %v133 = vld [vmem:[%s2 + $0x108] sm:$0xff]
    %v134 = vld [vmem:[%s2 + $0x110] sm:$0xff]
    %v135 = vld [vmem:[%s2 + $0x118] sm:$0xff]
    %v136 = vld [vmem:[%s2 + $0x120] sm:$0xff]
    %v137 = vld [vmem:[%s2 + $0x128] sm:$0xff]
    %v138 = vld [vmem:[%s2 + $0x130] sm:$0xff]
    %v139 = vld [vmem:[%s2 + $0x138] sm:$0xff]
    %v140 = vld [vmem:[%s2 + $0x140] sm:$0xff]
    %v141 = vld [vmem:[%s2 + $0x148] sm:$0xff]
    %v142 = vld [vmem:[%s2 + $0x150] sm:$0xff]
    %v143 = vld [vmem:[%s2 + $0x158] sm:$0xff]
    %v144 = vld [vmem:[%s2 + $0x160] sm:$0xff]
    %v145 = vld [vmem:[%s2 + $0x168] sm:$0xff]
    %v146 = vld [vmem:[%s2 + $0x170] sm:$0xff]
    %v147 = vld [vmem:[%s2 + $0x178] sm:$0xff]
    %v148 = vld [vmem:[%s2 + $0x180] sm:$0xff]
    %v149 = vld [vmem:[%s2 + $0x188] sm:$0xff]
    %v150 = vld [vmem:[%s2 + $0x190] sm:$0xff]
    %v151 = vld [vmem:[%s2 + $0x198] sm:$0xff]
    %v152 = vld [vmem:[%s2 + $0x1a0] sm:$0xff]
    %v153 = vld [vmem:[%s2 + $0x1a8] sm:$0xff]
    %v154 = vld [vmem:[%s2 + $0x1b0] sm:$0xff]
    %v155 = vld [vmem:[%s2 + $0x1b8] sm:$0xff]
    %v156 = vld [vmem:[%s2 + $0x1c0] sm:$0xff]
    %v157 = vld [vmem:[%s2 + $0x1c8] sm:$0xff]
    %v158 = vld [vmem:[%s2 + $0x1d0] sm:$0xff]
    %v159 = vld [vmem:[%s2 + $0x1d8] sm:$0xff]
    %v160 = vld [vmem:[%s2 + $0x1e0] sm:$0xff]
    %v161 = vld [vmem:[%s2 + $0x1e8] sm:$0xff]
    %v162 = vld [vmem:[%s2 + $0x1f0] sm:$0xff]
    %v163 = vld [vmem:[%s2 + $0x1f8] sm:$0xff]
    %v164 = vld [vmem:[%s1] sm:$0xff]
    %v165 = vld [vmem:[%s1 + $0x8] sm:$0xff]
    %v166 = vld [vmem:[%s1 + $0x10] sm:$0xff]
    %v167 = vld [vmem:[%s1 + $0x18] sm:$0xff]
    %v168 = vld [vmem:[%s1 + $0x20] sm:$0xff]
    %v169 = vld [vmem:[%s1 + $0x28] sm:$0xff]
    %v170 = vld [vmem:[%s1 + $0x30] sm:$0xff]
    %v171 = vld [vmem:[%s1 + $0x38] sm:$0xff]
    %v172 = vpack.c.bf16 %v165, %v164
    %v173 = vpack.c.bf16 %v167, %v166
    %v174 = vpack.c.bf16 %v169, %v168
    %v175 = vpack.c.bf16 %v171, %v170
    %v208 = vunpack.c.l.b16 %v132
    %v209 = vunpack.c.h.b16 %v132
    %v210 = vunpack.c.l.b16 %v133
    %v211 = vunpack.c.h.b16 %v133
    %v212 = vunpack.c.l.b16 %v134
    %v213 = vunpack.c.h.b16 %v134
    %v214 = vunpack.c.l.b16 %v135
    %v215 = vunpack.c.h.b16 %v135
    %v216 = vunpack.c.l.b16 %v136
    %v217 = vunpack.c.h.b16 %v136
    %v218 = vunpack.c.l.b16 %v137
    %v219 = vunpack.c.h.b16 %v137
    %v220 = vunpack.c.l.b16 %v138
    %v221 = vunpack.c.h.b16 %v138
    %v222 = vunpack.c.l.b16 %v139
    %v223 = vunpack.c.h.b16 %v139
    %v224 = vunpack.c.l.b16 %v140
    %v225 = vunpack.c.h.b16 %v140
    %v226 = vunpack.c.l.b16 %v141
    %v227 = vunpack.c.h.b16 %v141
    %v228 = vunpack.c.l.b16 %v142
    %v229 = vunpack.c.h.b16 %v142
    %v230 = vunpack.c.l.b16 %v143
    %v231 = vunpack.c.h.b16 %v143
    %v232 = vunpack.c.l.b16 %v144
    %v233 = vunpack.c.h.b16 %v144
    %v234 = vunpack.c.l.b16 %v145
    %v235 = vunpack.c.h.b16 %v145
    %v236 = vunpack.c.l.b16 %v146
    %v237 = vunpack.c.h.b16 %v146
    %v238 = vunpack.c.l.b16 %v147
    %v239 = vunpack.c.h.b16 %v147
    %v240 = vunpack.c.l.b16 %v148
    %v241 = vunpack.c.h.b16 %v148
    %v242 = vunpack.c.l.b16 %v149
    %v243 = vunpack.c.h.b16 %v149
    %v244 = vunpack.c.l.b16 %v150
    %v245 = vunpack.c.h.b16 %v150
    %v246 = vunpack.c.l.b16 %v151
    %v247 = vunpack.c.h.b16 %v151
    %v248 = vunpack.c.l.b16 %v152
    %v249 = vunpack.c.h.b16 %v152
    %v250 = vunpack.c.l.b16 %v153
    %v251 = vunpack.c.h.b16 %v153
    %v252 = vunpack.c.l.b16 %v154
    %v253 = vunpack.c.h.b16 %v154
    %v254 = vunpack.c.l.b16 %v155
    %v255 = vunpack.c.h.b16 %v155
    %v256 = vunpack.c.l.b16 %v156
    %v257 = vunpack.c.h.b16 %v156
    %v258 = vunpack.c.l.b16 %v157
    %v259 = vunpack.c.h.b16 %v157
    %v260 = vunpack.c.l.b16 %v158
    %v261 = vunpack.c.h.b16 %v158
    %v262 = vunpack.c.l.b16 %v159
    %v263 = vunpack.c.h.b16 %v159
    %v264 = vunpack.c.l.b16 %v160
    %v265 = vunpack.c.h.b16 %v160
    %v266 = vunpack.c.l.b16 %v161
    %v267 = vunpack.c.h.b16 %v161
    %v268 = vunpack.c.l.b16 %v162
    %v269 = vunpack.c.h.b16 %v162
    %v270 = vunpack.c.l.b16 %v163
    %v271 = vunpack.c.h.b16 %v163
    %v272 = vpack.c.b16 %v212, %v208
    %v273 = vpack.c.b16 %v213, %v209
    %v274 = vpack.c.b16 %v214, %v210
    %v275 = vpack.c.b16 %v215, %v211
    %v276 = vpack.c.b16 %v220, %v216
    %v277 = vpack.c.b16 %v221, %v217
    %v278 = vpack.c.b16 %v222, %v218
    %v279 = vpack.c.b16 %v223, %v219
    %v280 = vpack.c.b16 %v228, %v224
    %v281 = vpack.c.b16 %v229, %v225
    %v282 = vpack.c.b16 %v230, %v226
    %v283 = vpack.c.b16 %v231, %v227
    %v284 = vpack.c.b16 %v236, %v232
    %v285 = vpack.c.b16 %v237, %v233
    %v286 = vpack.c.b16 %v238, %v234
    %v287 = vpack.c.b16 %v239, %v235
    %v288 = vpack.c.b16 %v244, %v240
    %v289 = vpack.c.b16 %v245, %v241
    %v290 = vpack.c.b16 %v246, %v242
    %v291 = vpack.c.b16 %v247, %v243
    %v292 = vpack.c.b16 %v252, %v248
    %v293 = vpack.c.b16 %v253, %v249
    %v294 = vpack.c.b16 %v254, %v250
    %v295 = vpack.c.b16 %v255, %v251
    %v296 = vpack.c.b16 %v260, %v256
    %v297 = vpack.c.b16 %v261, %v257
    %v298 = vpack.c.b16 %v262, %v258
    %v299 = vpack.c.b16 %v263, %v259
    %v300 = vpack.c.b16 %v268, %v264
    %v301 = vpack.c.b16 %v269, %v265
    %v302 = vpack.c.b16 %v270, %v266
    %v303 = vpack.c.b16 %v271, %v267
    %336 = vmatprep.subr.bf16.mxu0 %v273
    %337 = vmatpush1.bf16.msra.mxu0 %v272
    %338 = vmatprep.subr.bf16.mxu0 %v277
    %339 = vmatpush1.bf16.msra.mxu0 %v276
    %340 = vmatprep.subr.bf16.mxu0 %v281
    %341 = vmatpush1.bf16.msra.mxu0 %v280
    %342 = vmatprep.subr.bf16.mxu0 %v285
    %343 = vmatpush1.bf16.msra.mxu0 %v284
    %344 = vmatprep.subr.bf16.mxu0 %v289
    %345 = vmatpush1.bf16.msra.mxu0 %v288
    %346 = vmatprep.subr.bf16.mxu0 %v293
    %347 = vmatpush1.bf16.msra.mxu0 %v292
    %348 = vmatprep.subr.bf16.mxu0 %v297
    %349 = vmatpush1.bf16.msra.mxu0 %v296
    %350 = vmatprep.subr.bf16.mxu0 %v301
    %351 = vmatpush1.bf16.msra.mxu0 %v300
    %352 = vmatprep.subr.bf16.mxu0 0
    %353 = vmatpush1.bf16.msra.mxu0 0
    %354 = vmatprep.subr.bf16.mxu0 0
    %355 = vmatpush1.bf16.msra.mxu0 0
    %356 = vmatprep.subr.bf16.mxu0 0
    %357 = vmatpush1.bf16.msra.mxu0 0
    %358 = vmatprep.subr.bf16.mxu0 0
    %359 = vmatpush1.bf16.msra.mxu0 0
    %360 = vmatprep.subr.bf16.mxu0 0
    %361 = vmatpush1.bf16.msra.mxu0 0
    %362 = vmatprep.subr.bf16.mxu0 0
    %363 = vmatpush1.bf16.msra.mxu0 0
    %364 = vmatprep.subr.bf16.mxu0 0
    %365 = vmatpush1.bf16.msra.mxu0 0
    %366 = vmatprep.subr.bf16.mxu0 0
    %367 = vmatpush1.bf16.msra.mxu0 0
    %368 = vmatprep.mubr.bf16.mxu0 0
    %369 = vmatmul.mubr.bf16.gmra.mrb[0].mxu0 %v172
    %v370 = vpop.f32.mrb[0].mxu0
    %v371 = vadd.f32 0.0, %v370
    %v372 = vpop.f32.mrb[0].mxu0
    %v373 = vadd.f32 0.0, %v372
    %v374 = vpop.f32.mrb[0].mxu0
    %v375 = vadd.f32 0.0, %v374
    %v376 = vpop.f32.mrb[0].mxu0
    %v377 = vadd.f32 0.0, %v376
    %378 = vmatprep.mubr.bf16.mxu0 0
    %379 = vmatmul.mubr.bf16.gmra.mrb[0].mxu0 %v173
    %v380 = vpop.f32.mrb[0].mxu0
    %v381 = vadd.f32 0.0, %v380
    %v382 = vpop.f32.mrb[0].mxu0
    %v383 = vadd.f32 0.0, %v382
    %v384 = vpop.f32.mrb[0].mxu0
    %v385 = vadd.f32 0.0, %v384
    %v386 = vpop.f32.mrb[0].mxu0
    %v387 = vadd.f32 0.0, %v386
    %388 = vmatprep.mubr.bf16.mxu0 0
    %389 = vmatmul.mubr.bf16.gmra.mrb[0].mxu0 %v174
    %v390 = vpop.f32.mrb[0].mxu0
    %v391 = vadd.f32 0.0, %v390
    %v392 = vpop.f32.mrb[0].mxu0
    %v393 = vadd.f32 0.0, %v392
    %v394 = vpop.f32.mrb[0].mxu0
    %v395 = vadd.f32 0.0, %v394
    %v396 = vpop.f32.mrb[0].mxu0
    %v397 = vadd.f32 0.0, %v396
    %398 = vmatprep.mubr.bf16.mxu0 0
    %399 = vmatmul.mubr.bf16.gmra.mrb[0].mxu0 %v175
    %v400 = vpop.f32.mrb[0].mxu0
    %v401 = vadd.f32 0.0, %v400
    %v402 = vpop.f32.mrb[0].mxu0
    %v403 = vadd.f32 0.0, %v402
    %v404 = vpop.f32.mrb[0].mxu0
    %v405 = vadd.f32 0.0, %v404
    %v406 = vpop.f32.mrb[0].mxu0
    %v407 = vadd.f32 0.0, %v406
    %408 = vdwg.mxu0
    %409 = vmatprep.subr.bf16.mxu0 %v275
    %410 = vmatpush1.bf16.msra.mxu0 %v274
    %411 = vmatprep.subr.bf16.mxu0 %v279
    %412 = vmatpush1.bf16.msra.mxu0 %v278
    %413 = vmatprep.subr.bf16.mxu0 %v283
    %414 = vmatpush1.bf16.msra.mxu0 %v282
    %415 = vmatprep.subr.bf16.mxu0 %v287
    %416 = vmatpush1.bf16.msra.mxu0 %v286
    %417 = vmatprep.subr.bf16.mxu0 %v291
    %418 = vmatpush1.bf16.msra.mxu0 %v290
    %419 = vmatprep.subr.bf16.mxu0 %v295
    %420 = vmatpush1.bf16.msra.mxu0 %v294
    %421 = vmatprep.subr.bf16.mxu0 %v299
    %422 = vmatpush1.bf16.msra.mxu0 %v298
    %423 = vmatprep.subr.bf16.mxu0 %v303
    %424 = vmatpush1.bf16.msra.mxu0 %v302
    %425 = vmatprep.subr.bf16.mxu0 0
    %426 = vmatpush1.bf16.msra.mxu0 0
    %427 = vmatprep.subr.bf16.mxu0 0
    %428 = vmatpush1.bf16.msra.mxu0 0
    %429 = vmatprep.subr.bf16.mxu0 0
    %430 = vmatpush1.bf16.msra.mxu0 0
    %431 = vmatprep.subr.bf16.mxu0 0
    %432 = vmatpush1.bf16.msra.mxu0 0
    %433 = vmatprep.subr.bf16.mxu0 0
    %434 = vmatpush1.bf16.msra.mxu0 0
    %435 = vmatprep.subr.bf16.mxu0 0
    %436 = vmatpush1.bf16.msra.mxu0 0
    %437 = vmatprep.subr.bf16.mxu0 0
    %438 = vmatpush1.bf16.msra.mxu0 0
    %439 = vmatprep.subr.bf16.mxu0 0
    %440 = vmatpush1.bf16.msra.mxu0 0
    %441 = vmatprep.mubr.bf16.mxu0 0
    %442 = vmatmul.mubr.bf16.gmra.mrb[0].mxu0 %v172
    %v443 = vpop.f32.mrb[0].mxu0
    %v444 = vadd.f32 0.0, %v443
    %v445 = vpop.f32.mrb[0].mxu0
    %v446 = vadd.f32 0.0, %v445
    %v447 = vpop.f32.mrb[0].mxu0
    %v448 = vadd.f32 0.0, %v447
    %v449 = vpop.f32.mrb[0].mxu0
    %v450 = vadd.f32 0.0, %v449
    %451 = vmatprep.mubr.bf16.mxu0 0
    %452 = vmatmul.mubr.bf16.gmra.mrb[0].mxu0 %v173
    %v453 = vpop.f32.mrb[0].mxu0
    %v454 = vadd.f32 0.0, %v453
    %v455 = vpop.f32.mrb[0].mxu0
    %v456 = vadd.f32 0.0, %v455
    %v457 = vpop.f32.mrb[0].mxu0
    %v458 = vadd.f32 0.0, %v457
    %v459 = vpop.f32.mrb[0].mxu0
    %v460 = vadd.f32 0.0, %v459
    %461 = vmatprep.mubr.bf16.mxu0 0
    %462 = vmatmul.mubr.bf16.gmra.mrb[0].mxu0 %v174
    %v463 = vpop.f32.mrb[0].mxu0
    %v464 = vadd.f32 0.0, %v463
    %v465 = vpop.f32.mrb[0].mxu0
    %v466 = vadd.f32 0.0, %v465
    %v467 = vpop.f32.mrb[0].mxu0
    %v468 = vadd.f32 0.0, %v467
    %v469 = vpop.f32.mrb[0].mxu0
    %v470 = vadd.f32 0.0, %v469
    %471 = vmatprep.mubr.bf16.mxu0 0
    %472 = vmatmul.mubr.bf16.gmra.mrb[0].mxu0 %v175
    %v473 = vpop.f32.mrb[0].mxu0
    %v474 = vadd.f32 0.0, %v473
    %v475 = vpop.f32.mrb[0].mxu0
    %v476 = vadd.f32 0.0, %v475
    %v477 = vpop.f32.mrb[0].mxu0
    %v478 = vadd.f32 0.0, %v477
    %v479 = vpop.f32.mrb[0].mxu0
    %v480 = vadd.f32 0.0, %v479
    %481 = vdwg.mxu0
    %v514 = vunpack.c.l.b16 %v100
    %v515 = vunpack.c.h.b16 %v100
    %v516 = vunpack.c.l.b16 %v101
    %v517 = vunpack.c.h.b16 %v101
    %v518 = vunpack.c.l.b16 %v102
    %v519 = vunpack.c.h.b16 %v102
    %v520 = vunpack.c.l.b16 %v103
    %v521 = vunpack.c.h.b16 %v103
    %v522 = vunpack.c.l.b16 %v104
    %v523 = vunpack.c.h.b16 %v104
    %v524 = vunpack.c.l.b16 %v105
    %v525 = vunpack.c.h.b16 %v105
    %v526 = vunpack.c.l.b16 %v106
    %v527 = vunpack.c.h.b16 %v106
    %v528 = vunpack.c.l.b16 %v107
    %v529 = vunpack.c.h.b16 %v107
    %v530 = vunpack.c.l.b16 %v108
    %v531 = vunpack.c.h.b16 %v108
    %v532 = vunpack.c.l.b16 %v109
    %v533 = vunpack.c.h.b16 %v109
    %v534 = vunpack.c.l.b16 %v110
    %v535 = vunpack.c.h.b16 %v110
    %v536 = vunpack.c.l.b16 %v111
    %v537 = vunpack.c.h.b16 %v111
    %v538 = vunpack.c.l.b16 %v112
    %v539 = vunpack.c.h.b16 %v112
    %v540 = vunpack.c.l.b16 %v113
    %v541 = vunpack.c.h.b16 %v113
    %v542 = vunpack.c.l.b16 %v114
    %v543 = vunpack.c.h.b16 %v114
    %v544 = vunpack.c.l.b16 %v115
    %v545 = vunpack.c.h.b16 %v115
    %v546 = vunpack.c.l.b16 %v116
    %v547 = vunpack.c.h.b16 %v116
    %v548 = vunpack.c.l.b16 %v117
    %v549 = vunpack.c.h.b16 %v117
    %v550 = vunpack.c.l.b16 %v118
    %v551 = vunpack.c.h.b16 %v118
    %v552 = vunpack.c.l.b16 %v119
    %v553 = vunpack.c.h.b16 %v119
    %v554 = vunpack.c.l.b16 %v120
    %v555 = vunpack.c.h.b16 %v120
    %v556 = vunpack.c.l.b16 %v121
    %v557 = vunpack.c.h.b16 %v121
    %v558 = vunpack.c.l.b16 %v122
    %v559 = vunpack.c.h.b16 %v122
    %v560 = vunpack.c.l.b16 %v123
    %v561 = vunpack.c.h.b16 %v123
    %v562 = vunpack.c.l.b16 %v124
    %v563 = vunpack.c.h.b16 %v124
    %v564 = vunpack.c.l.b16 %v125
    %v565 = vunpack.c.h.b16 %v125
    %v566 = vunpack.c.l.b16 %v126
    %v567 = vunpack.c.h.b16 %v126
    %v568 = vunpack.c.l.b16 %v127
    %v569 = vunpack.c.h.b16 %v127
    %v570 = vunpack.c.l.b16 %v128
    %v571 = vunpack.c.h.b16 %v128
    %v572 = vunpack.c.l.b16 %v129
    %v573 = vunpack.c.h.b16 %v129
    %v574 = vunpack.c.l.b16 %v130
    %v575 = vunpack.c.h.b16 %v130
    %v576 = vunpack.c.l.b16 %v131
    %v577 = vunpack.c.h.b16 %v131
    %v578 = vpack.c.b16 %v518, %v514
    %v579 = vpack.c.b16 %v519, %v515
    %v580 = vpack.c.b16 %v520, %v516
    %v581 = vpack.c.b16 %v521, %v517
    %v582 = vpack.c.b16 %v526, %v522
    %v583 = vpack.c.b16 %v527, %v523
    %v584 = vpack.c.b16 %v528, %v524
    %v585 = vpack.c.b16 %v529, %v525
    %v586 = vpack.c.b16 %v534, %v530
    %v587 = vpack.c.b16 %v535, %v531
    %v588 = vpack.c.b16 %v536, %v532
    %v589 = vpack.c.b16 %v537, %v533
    %v590 = vpack.c.b16 %v542, %v538
    %v591 = vpack.c.b16 %v543, %v539
    %v592 = vpack.c.b16 %v544, %v540
    %v593 = vpack.c.b16 %v545, %v541
    %v594 = vpack.c.b16 %v550, %v546
    %v595 = vpack.c.b16 %v551, %v547
    %v596 = vpack.c.b16 %v552, %v548
    %v597 = vpack.c.b16 %v553, %v549
    %v598 = vpack.c.b16 %v558, %v554
    %v599 = vpack.c.b16 %v559, %v555
    %v600 = vpack.c.b16 %v560, %v556
    %v601 = vpack.c.b16 %v561, %v557
    %v602 = vpack.c.b16 %v566, %v562
    %v603 = vpack.c.b16 %v567, %v563
    %v604 = vpack.c.b16 %v568, %v564
    %v605 = vpack.c.b16 %v569, %v565
    %v606 = vpack.c.b16 %v574, %v570
    %v607 = vpack.c.b16 %v575, %v571
    %v608 = vpack.c.b16 %v576, %v572
    %v609 = vpack.c.b16 %v577, %v573
    %642 = vmatprep.subr.bf16.mxu0 %v579
    %643 = vmatpush1.bf16.msra.mxu0 %v578
    %644 = vmatprep.subr.bf16.mxu0 %v583
    %645 = vmatpush1.bf16.msra.mxu0 %v582
    %646 = vmatprep.subr.bf16.mxu0 %v587
    %647 = vmatpush1.bf16.msra.mxu0 %v586
    %648 = vmatprep.subr.bf16.mxu0 %v591
    %649 = vmatpush1.bf16.msra.mxu0 %v590
    %650 = vmatprep.subr.bf16.mxu0 %v595
    %651 = vmatpush1.bf16.msra.mxu0 %v594
    %652 = vmatprep.subr.bf16.mxu0 %v599
    %653 = vmatpush1.bf16.msra.mxu0 %v598
    %654 = vmatprep.subr.bf16.mxu0 %v603
    %655 = vmatpush1.bf16.msra.mxu0 %v602
    %656 = vmatprep.subr.bf16.mxu0 %v607
    %657 = vmatpush1.bf16.msra.mxu0 %v606
    %658 = vmatprep.subr.bf16.mxu0 0
    %659 = vmatpush1.bf16.msra.mxu0 0
    %660 = vmatprep.subr.bf16.mxu0 0
    %661 = vmatpush1.bf16.msra.mxu0 0
    %662 = vmatprep.subr.bf16.mxu0 0
    %663 = vmatpush1.bf16.msra.mxu0 0
    %664 = vmatprep.subr.bf16.mxu0 0
    %665 = vmatpush1.bf16.msra.mxu0 0
    %666 = vmatprep.subr.bf16.mxu0 0
    %667 = vmatpush1.bf16.msra.mxu0 0
    %668 = vmatprep.subr.bf16.mxu0 0
    %669 = vmatpush1.bf16.msra.mxu0 0
    %670 = vmatprep.subr.bf16.mxu0 0
    %671 = vmatpush1.bf16.msra.mxu0 0
    %672 = vmatprep.subr.bf16.mxu0 0
    %673 = vmatpush1.bf16.msra.mxu0 0
    %674 = vmatprep.mubr.bf16.mxu0 0
    %675 = vmatmul.mubr.bf16.gmra.mrb[0].mxu0 %v96
    %v676 = vpop.f32.mrb[0].mxu0
    %v677 = vadd.f32 %v371, %v676
    %v678 = vpop.f32.mrb[0].mxu0
    %v679 = vadd.f32 %v373, %v678
    %v680 = vpop.f32.mrb[0].mxu0
    %v681 = vadd.f32 %v375, %v680
    %v682 = vpop.f32.mrb[0].mxu0
    %v683 = vadd.f32 %v377, %v682
    %684 = vmatprep.mubr.bf16.mxu0 0
    %685 = vmatmul.mubr.bf16.gmra.mrb[0].mxu0 %v97
    %v686 = vpop.f32.mrb[0].mxu0
    %v687 = vadd.f32 %v381, %v686
    %v688 = vpop.f32.mrb[0].mxu0
    %v689 = vadd.f32 %v383, %v688
    %v690 = vpop.f32.mrb[0].mxu0
    %v691 = vadd.f32 %v385, %v690
    %v692 = vpop.f32.mrb[0].mxu0
    %v693 = vadd.f32 %v387, %v692
    %694 = vmatprep.mubr.bf16.mxu0 0
    %695 = vmatmul.mubr.bf16.gmra.mrb[0].mxu0 %v98
    %v696 = vpop.f32.mrb[0].mxu0
    %v697 = vadd.f32 %v391, %v696
    %v698 = vpop.f32.mrb[0].mxu0
    %v699 = vadd.f32 %v393, %v698
    %v700 = vpop.f32.mrb[0].mxu0
    %v701 = vadd.f32 %v395, %v700
    %v702 = vpop.f32.mrb[0].mxu0
    %v703 = vadd.f32 %v397, %v702
    %704 = vmatprep.mubr.bf16.mxu0 0
    %705 = vmatmul.mubr.bf16.gmra.mrb[0].mxu0 %v99
    %v706 = vpop.f32.mrb[0].mxu0
    %v707 = vadd.f32 %v401, %v706
    %v708 = vpop.f32.mrb[0].mxu0
    %v709 = vadd.f32 %v403, %v708
    %v710 = vpop.f32.mrb[0].mxu0
    %v711 = vadd.f32 %v405, %v710
    %v712 = vpop.f32.mrb[0].mxu0
    %v713 = vadd.f32 %v407, %v712
    %714 = vdwg.mxu0
    %715 = vmatprep.subr.bf16.mxu0 %v581
    %716 = vmatpush1.bf16.msra.mxu0 %v580
    %717 = vmatprep.subr.bf16.mxu0 %v585
    %718 = vmatpush1.bf16.msra.mxu0 %v584
    %719 = vmatprep.subr.bf16.mxu0 %v589
    %720 = vmatpush1.bf16.msra.mxu0 %v588
    %721 = vmatprep.subr.bf16.mxu0 %v593
    %722 = vmatpush1.bf16.msra.mxu0 %v592
    %723 = vmatprep.subr.bf16.mxu0 %v597
    %724 = vmatpush1.bf16.msra.mxu0 %v596
    %725 = vmatprep.subr.bf16.mxu0 %v601
    %726 = vmatpush1.bf16.msra.mxu0 %v600
    %727 = vmatprep.subr.bf16.mxu0 %v605
    %728 = vmatpush1.bf16.msra.mxu0 %v604
    %729 = vmatprep.subr.bf16.mxu0 %v609
    %730 = vmatpush1.bf16.msra.mxu0 %v608
    %731 = vmatprep.subr.bf16.mxu0 0
    %732 = vmatpush1.bf16.msra.mxu0 0
    %733 = vmatprep.subr.bf16.mxu0 0
    %734 = vmatpush1.bf16.msra.mxu0 0
    %735 = vmatprep.subr.bf16.mxu0 0
    %736 = vmatpush1.bf16.msra.mxu0 0
    %737 = vmatprep.subr.bf16.mxu0 0
    %738 = vmatpush1.bf16.msra.mxu0 0
    %739 = vmatprep.subr.bf16.mxu0 0
    %740 = vmatpush1.bf16.msra.mxu0 0
    %741 = vmatprep.subr.bf16.mxu0 0
    %742 = vmatpush1.bf16.msra.mxu0 0
    %743 = vmatprep.subr.bf16.mxu0 0
    %744 = vmatpush1.bf16.msra.mxu0 0
    %745 = vmatprep.subr.bf16.mxu0 0
    %746 = vmatpush1.bf16.msra.mxu0 0
    %747 = vmatprep.mubr.bf16.mxu0 0
    %748 = vmatmul.mubr.bf16.gmra.mrb[0].mxu0 %v96
    %v749 = vpop.f32.mrb[0].mxu0
    %v750 = vadd.f32 %v444, %v749
    %v751 = vpop.f32.mrb[0].mxu0
    %v752 = vadd.f32 %v446, %v751
    %v753 = vpop.f32.mrb[0].mxu0
    %v754 = vadd.f32 %v448, %v753
    %v755 = vpop.f32.mrb[0].mxu0
    %v756 = vadd.f32 %v450, %v755
    %757 = vmatprep.mubr.bf16.mxu0 0
    %758 = vmatmul.mubr.bf16.gmra.mrb[0].mxu0 %v97
    %v759 = vpop.f32.mrb[0].mxu0
    %v760 = vadd.f32 %v454, %v759
    %v761 = vpop.f32.mrb[0].mxu0
    %v762 = vadd.f32 %v456, %v761
    %v763 = vpop.f32.mrb[0].mxu0
    %v764 = vadd.f32 %v458, %v763
    %v765 = vpop.f32.mrb[0].mxu0
    %v766 = vadd.f32 %v460, %v765
    %767 = vmatprep.mubr.bf16.mxu0 0
    %768 = vmatmul.mubr.bf16.gmra.mrb[0].mxu0 %v98
    %v769 = vpop.f32.mrb[0].mxu0
    %v770 = vadd.f32 %v464, %v769
    %v771 = vpop.f32.mrb[0].mxu0
    %v772 = vadd.f32 %v466, %v771
    %v773 = vpop.f32.mrb[0].mxu0
    %v774 = vadd.f32 %v468, %v773
    %v775 = vpop.f32.mrb[0].mxu0
    %v776 = vadd.f32 %v470, %v775
    %777 = vmatprep.mubr.bf16.mxu0 0
    %778 = vmatmul.mubr.bf16.gmra.mrb[0].mxu0 %v99
    %v779 = vpop.f32.mrb[0].mxu0
    %v780 = vadd.f32 %v474, %v779
    %v781 = vpop.f32.mrb[0].mxu0
    %v782 = vadd.f32 %v476, %v781
    %v783 = vpop.f32.mrb[0].mxu0
    %v784 = vadd.f32 %v478, %v783
    %v785 = vpop.f32.mrb[0].mxu0
    %v786 = vadd.f32 %v480, %v785
    %787 = vdwg.mxu0
    %v788 = vld [vmem:[%s4] sm:$0xf]
    %v790 = vlaneseq
    %v791 = vshrl.u32 %v790, 7
    %v792 = vsub.s32 0, %v791
    %v793 = vrot.slane %v788, %v792
    %v794 = vlaneseq
    %v795 = vshrl.u32 %v794, 7
    %v796 = vsub.s32 1, %v795
    %v797 = vrot.slane %v788, %v796
    %v798 = vlaneseq
    %v799 = vshrl.u32 %v798, 7
    %v800 = vsub.s32 2, %v799
    %v801 = vrot.slane %v788, %v800
    %v802 = vlaneseq
    %v803 = vshrl.u32 %v802, 7
    %v804 = vsub.s32 3, %v803
    %v805 = vrot.slane %v788, %v804
    %v810 = vadd.f32 %v677, %v793
    %v811 = vadd.f32 %v679, %v797
    %v812 = vadd.f32 %v750, %v801
    %v813 = vadd.f32 %v752, %v805
    %v814 = vadd.f32 %v681, %v793
    %v815 = vadd.f32 %v683, %v797
    %v816 = vadd.f32 %v754, %v801
    %v817 = vadd.f32 %v756, %v805
    %v818 = vadd.f32 %v687, %v793
    %v819 = vadd.f32 %v689, %v797
    %v820 = vadd.f32 %v760, %v801
    %v821 = vadd.f32 %v762, %v805
    %v822 = vadd.f32 %v691, %v793
    %v823 = vadd.f32 %v693, %v797
    %v824 = vadd.f32 %v764, %v801
    %v825 = vadd.f32 %v766, %v805
    %v826 = vadd.f32 %v697, %v793
    %v827 = vadd.f32 %v699, %v797
    %v828 = vadd.f32 %v770, %v801
    %v829 = vadd.f32 %v772, %v805
    %v830 = vadd.f32 %v701, %v793
    %v831 = vadd.f32 %v703, %v797
    %v832 = vadd.f32 %v774, %v801
    %v833 = vadd.f32 %v776, %v805
    %v834 = vadd.f32 %v707, %v793
    %v835 = vadd.f32 %v709, %v797
    %v836 = vadd.f32 %v780, %v801
    %v837 = vadd.f32 %v782, %v805
    %v838 = vadd.f32 %v711, %v793
    %v839 = vadd.f32 %v713, %v797
    %v840 = vadd.f32 %v784, %v801
    %v841 = vadd.f32 %v786, %v805
    %842 = vst [vmem:[#allocation2] sm:$0xff] %v810
    %843 = vst [vmem:[#allocation2 + $0x8] sm:$0xff] %v811
    %844 = vst [vmem:[#allocation2 + $0x10] sm:$0xff] %v812
    %845 = vst [vmem:[#allocation2 + $0x18] sm:$0xff] %v813
    %846 = vst [vmem:[#allocation2 + $0x20] sm:$0xff] %v814
    %847 = vst [vmem:[#allocation2 + $0x28] sm:$0xff] %v815
    %848 = vst [vmem:[#allocation2 + $0x30] sm:$0xff] %v816
    %849 = vst [vmem:[#allocation2 + $0x38] sm:$0xff] %v817
    %850 = vst [vmem:[#allocation2 + $0x40] sm:$0xff] %v818
    %851 = vst [vmem:[#allocation2 + $0x48] sm:$0xff] %v819
    %852 = vst [vmem:[#allocation2 + $0x50] sm:$0xff] %v820
    %853 = vst [vmem:[#allocation2 + $0x58] sm:$0xff] %v821
    %854 = vst [vmem:[#allocation2 + $0x60] sm:$0xff] %v822
    %855 = vst [vmem:[#allocation2 + $0x68] sm:$0xff] %v823
    %856 = vst [vmem:[#allocation2 + $0x70] sm:$0xff] %v824
    %857 = vst [vmem:[#allocation2 + $0x78] sm:$0xff] %v825
    %858 = vst [vmem:[#allocation2 + $0x80] sm:$0xff] %v826
    %859 = vst [vmem:[#allocation2 + $0x88] sm:$0xff] %v827
    %860 = vst [vmem:[#allocation2 + $0x90] sm:$0xff] %v828
    %861 = vst [vmem:[#allocation2 + $0x98] sm:$0xff] %v829
    %862 = vst [vmem:[#allocation2 + $0xa0] sm:$0xff] %v830
    %863 = vst [vmem:[#allocation2 + $0xa8] sm:$0xff] %v831
    %864 = vst [vmem:[#allocation2 + $0xb0] sm:$0xff] %v832
    %865 = vst [vmem:[#allocation2 + $0xb8] sm:$0xff] %v833
    %866 = vst [vmem:[#allocation2 + $0xc0] sm:$0xff] %v834
    %867 = vst [vmem:[#allocation2 + $0xc8] sm:$0xff] %v835
    %868 = vst [vmem:[#allocation2 + $0xd0] sm:$0xff] %v836
    %869 = vst [vmem:[#allocation2 + $0xd8] sm:$0xff] %v837
    %870 = vst [vmem:[#allocation2 + $0xe0] sm:$0xff] %v838
    %871 = vst [vmem:[#allocation2 + $0xe8] sm:$0xff] %v839
    %872 = vst [vmem:[#allocation2 + $0xf0] sm:$0xff] %v840
    %873 = vst [vmem:[#allocation2 + $0xf8] sm:$0xff] %v841
    %v874 = vld [vmem:[%s0] sm:$0xff]
    %v875 = vld [vmem:[%s0 + $0x8] sm:$0xff]
    %v876 = vld [vmem:[%s0 + $0x10] sm:$0xff]
    %v877 = vld [vmem:[%s0 + $0x18] sm:$0xff]
    %v878 = vld [vmem:[%s0 + $0x20] sm:$0xff]
    %v879 = vld [vmem:[%s0 + $0x28] sm:$0xff]
    %v880 = vld [vmem:[%s0 + $0x30] sm:$0xff]
    %v881 = vld [vmem:[%s0 + $0x38] sm:$0xff]
    %v882 = vpack.c.bf16 %v875, %v874
    %v883 = vpack.c.bf16 %v877, %v876
    %v884 = vpack.c.bf16 %v879, %v878
    %v885 = vpack.c.bf16 %v881, %v880
    %v886 = vld [vmem:[%s5] sm:$0xff]
    %v887 = vld [vmem:[%s5 + $0x8] sm:$0xff]
    %v888 = vld [vmem:[%s5 + $0x10] sm:$0xff]
    %v889 = vld [vmem:[%s5 + $0x18] sm:$0xff]
    %v890 = vld [vmem:[%s5 + $0x20] sm:$0xff]
    %v891 = vld [vmem:[%s5 + $0x28] sm:$0xff]
    %v892 = vld [vmem:[%s5 + $0x30] sm:$0xff]
    %v893 = vld [vmem:[%s5 + $0x38] sm:$0xff]
    %v894 = vld [vmem:[%s5 + $0x40] sm:$0xff]
    %v895 = vld [vmem:[%s5 + $0x48] sm:$0xff]
    %v896 = vld [vmem:[%s5 + $0x50] sm:$0xff]
    %v897 = vld [vmem:[%s5 + $0x58] sm:$0xff]
    %v898 = vld [vmem:[%s5 + $0x60] sm:$0xff]
    %v899 = vld [vmem:[%s5 + $0x68] sm:$0xff]
    %v900 = vld [vmem:[%s5 + $0x70] sm:$0xff]
    %v901 = vld [vmem:[%s5 + $0x78] sm:$0xff]
    %v902 = vld [vmem:[%s5 + $0x80] sm:$0xff]
    %v903 = vld [vmem:[%s5 + $0x88] sm:$0xff]
    %v904 = vld [vmem:[%s5 + $0x90] sm:$0xff]
    %v905 = vld [vmem:[%s5 + $0x98] sm:$0xff]
    %v906 = vld [vmem:[%s5 + $0xa0] sm:$0xff]
    %v907 = vld [vmem:[%s5 + $0xa8] sm:$0xff]
    %v908 = vld [vmem:[%s5 + $0xb0] sm:$0xff]
    %v909 = vld [vmem:[%s5 + $0xb8] sm:$0xff]
    %v910 = vld [vmem:[%s5 + $0xc0] sm:$0xff]
    %v911 = vld [vmem:[%s5 + $0xc8] sm:$0xff]
    %v912 = vld [vmem:[%s5 + $0xd0] sm:$0xff]
    %v913 = vld [vmem:[%s5 + $0xd8] sm:$0xff]
    %v914 = vld [vmem:[%s5 + $0xe0] sm:$0xff]
    %v915 = vld [vmem:[%s5 + $0xe8] sm:$0xff]
    %v916 = vld [vmem:[%s5 + $0xf0] sm:$0xff]
    %v917 = vld [vmem:[%s5 + $0xf8] sm:$0xff]
    %v918 = vld [vmem:[%s5 + $0x100] sm:$0xff]
    %v919 = vld [vmem:[%s5 + $0x108] sm:$0xff]
    %v920 = vld [vmem:[%s5 + $0x110] sm:$0xff]
    %v921 = vld [vmem:[%s5 + $0x118] sm:$0xff]
    %v922 = vld [vmem:[%s5 + $0x120] sm:$0xff]
    %v923 = vld [vmem:[%s5 + $0x128] sm:$0xff]
    %v924 = vld [vmem:[%s5 + $0x130] sm:$0xff]
    %v925 = vld [vmem:[%s5 + $0x138] sm:$0xff]
    %v926 = vld [vmem:[%s5 + $0x140] sm:$0xff]
    %v927 = vld [vmem:[%s5 + $0x148] sm:$0xff]
    %v928 = vld [vmem:[%s5 + $0x150] sm:$0xff]
    %v929 = vld [vmem:[%s5 + $0x158] sm:$0xff]
    %v930 = vld [vmem:[%s5 + $0x160] sm:$0xff]
    %v931 = vld [vmem:[%s5 + $0x168] sm:$0xff]
    %v932 = vld [vmem:[%s5 + $0x170] sm:$0xff]
    %v933 = vld [vmem:[%s5 + $0x178] sm:$0xff]
    %v934 = vld [vmem:[%s5 + $0x180] sm:$0xff]
    %v935 = vld [vmem:[%s5 + $0x188] sm:$0xff]
    %v936 = vld [vmem:[%s5 + $0x190] sm:$0xff]
    %v937 = vld [vmem:[%s5 + $0x198] sm:$0xff]
    %v938 = vld [vmem:[%s5 + $0x1a0] sm:$0xff]
    %v939 = vld [vmem:[%s5 + $0x1a8] sm:$0xff]
    %v940 = vld [vmem:[%s5 + $0x1b0] sm:$0xff]
    %v941 = vld [vmem:[%s5 + $0x1b8] sm:$0xff]
    %v942 = vld [vmem:[%s5 + $0x1c0] sm:$0xff]
    %v943 = vld [vmem:[%s5 + $0x1c8] sm:$0xff]
    %v944 = vld [vmem:[%s5 + $0x1d0] sm:$0xff]
    %v945 = vld [vmem:[%s5 + $0x1d8] sm:$0xff]
    %v946 = vld [vmem:[%s5 + $0x1e0] sm:$0xff]
    %v947 = vld [vmem:[%s5 + $0x1e8] sm:$0xff]
    %v948 = vld [vmem:[%s5 + $0x1f0] sm:$0xff]
    %v949 = vld [vmem:[%s5 + $0x1f8] sm:$0xff]
    %v950 = vld [vmem:[%s1] sm:$0xff]
    %v951 = vld [vmem:[%s1 + $0x8] sm:$0xff]
    %v952 = vld [vmem:[%s1 + $0x10] sm:$0xff]
    %v953 = vld [vmem:[%s1 + $0x18] sm:$0xff]
    %v954 = vld [vmem:[%s1 + $0x20] sm:$0xff]
    %v955 = vld [vmem:[%s1 + $0x28] sm:$0xff]
    %v956 = vld [vmem:[%s1 + $0x30] sm:$0xff]
    %v957 = vld [vmem:[%s1 + $0x38] sm:$0xff]
    %v958 = vpack.c.bf16 %v951, %v950
    %v959 = vpack.c.bf16 %v953, %v952
    %v960 = vpack.c.bf16 %v955, %v954
    %v961 = vpack.c.bf16 %v957, %v956
    %v994 = vunpack.c.l.b16 %v918
    %v995 = vunpack.c.h.b16 %v918
    %v996 = vunpack.c.l.b16 %v919
    %v997 = vunpack.c.h.b16 %v919
    %v998 = vunpack.c.l.b16 %v920
    %v999 = vunpack.c.h.b16 %v920
    %v1000 = vunpack.c.l.b16 %v921
    %v1001 = vunpack.c.h.b16 %v921
    %v1002 = vunpack.c.l.b16 %v922
    %v1003 = vunpack.c.h.b16 %v922
    %v1004 = vunpack.c.l.b16 %v923
    %v1005 = vunpack.c.h.b16 %v923
    %v1006 = vunpack.c.l.b16 %v924
    %v1007 = vunpack.c.h.b16 %v924
    %v1008 = vunpack.c.l.b16 %v925
    %v1009 = vunpack.c.h.b16 %v925
    %v1010 = vunpack.c.l.b16 %v926
    %v1011 = vunpack.c.h.b16 %v926
    %v1012 = vunpack.c.l.b16 %v927
    %v1013 = vunpack.c.h.b16 %v927
    %v1014 = vunpack.c.l.b16 %v928
    %v1015 = vunpack.c.h.b16 %v928
    %v1016 = vunpack.c.l.b16 %v929
    %v1017 = vunpack.c.h.b16 %v929
    %v1018 = vunpack.c.l.b16 %v930
    %v1019 = vunpack.c.h.b16 %v930
    %v1020 = vunpack.c.l.b16 %v931
    %v1021 = vunpack.c.h.b16 %v931
    %v1022 = vunpack.c.l.b16 %v932
    %v1023 = vunpack.c.h.b16 %v932
    %v1024 = vunpack.c.l.b16 %v933
    %v1025 = vunpack.c.h.b16 %v933
    %v1026 = vunpack.c.l.b16 %v934
    %v1027 = vunpack.c.h.b16 %v934
    %v1028 = vunpack.c.l.b16 %v935
    %v1029 = vunpack.c.h.b16 %v935
    %v1030 = vunpack.c.l.b16 %v936
    %v1031 = vunpack.c.h.b16 %v936
    %v1032 = vunpack.c.l.b16 %v937
    %v1033 = vunpack.c.h.b16 %v937
    %v1034 = vunpack.c.l.b16 %v938
    %v1035 = vunpack.c.h.b16 %v938
    %v1036 = vunpack.c.l.b16 %v939
    %v1037 = vunpack.c.h.b16 %v939
    %v1038 = vunpack.c.l.b16 %v940
    %v1039 = vunpack.c.h.b16 %v940
    %v1040 = vunpack.c.l.b16 %v941
    %v1041 = vunpack.c.h.b16 %v941
    %v1042 = vunpack.c.l.b16 %v942
    %v1043 = vunpack.c.h.b16 %v942
    %v1044 = vunpack.c.l.b16 %v943
    %v1045 = vunpack.c.h.b16 %v943
    %v1046 = vunpack.c.l.b16 %v944
    %v1047 = vunpack.c.h.b16 %v944
    %v1048 = vunpack.c.l.b16 %v945
    %v1049 = vunpack.c.h.b16 %v945
    %v1050 = vunpack.c.l.b16 %v946
    %v1051 = vunpack.c.h.b16 %v946
    %v1052 = vunpack.c.l.b16 %v947
    %v1053 = vunpack.c.h.b16 %v947
    %v1054 = vunpack.c.l.b16 %v948
    %v1055 = vunpack.c.h.b16 %v948
    %v1056 = vunpack.c.l.b16 %v949
    %v1057 = vunpack.c.h.b16 %v949
    %v1058 = vpack.c.b16 %v998, %v994
    %v1059 = vpack.c.b16 %v999, %v995
    %v1060 = vpack.c.b16 %v1000, %v996
    %v1061 = vpack.c.b16 %v1001, %v997
    %v1062 = vpack.c.b16 %v1006, %v1002
    %v1063 = vpack.c.b16 %v1007, %v1003
    %v1064 = vpack.c.b16 %v1008, %v1004
    %v1065 = vpack.c.b16 %v1009, %v1005
    %v1066 = vpack.c.b16 %v1014, %v1010
    %v1067 = vpack.c.b16 %v1015, %v1011
    %v1068 = vpack.c.b16 %v1016, %v1012
    %v1069 = vpack.c.b16 %v1017, %v1013
    %v1070 = vpack.c.b16 %v1022, %v1018
    %v1071 = vpack.c.b16 %v1023, %v1019
    %v1072 = vpack.c.b16 %v1024, %v1020
    %v1073 = vpack.c.b16 %v1025, %v1021
    %v1074 = vpack.c.b16 %v1030, %v1026
    %v1075 = vpack.c.b16 %v1031, %v1027
    %v1076 = vpack.c.b16 %v1032, %v1028
    %v1077 = vpack.c.b16 %v1033, %v1029
    %v1078 = vpack.c.b16 %v1038, %v1034
    %v1079 = vpack.c.b16 %v1039, %v1035
    %v1080 = vpack.c.b16 %v1040, %v1036
    %v1081 = vpack.c.b16 %v1041, %v1037
    %v1082 = vpack.c.b16 %v1046, %v1042
    %v1083 = vpack.c.b16 %v1047, %v1043
    %v1084 = vpack.c.b16 %v1048, %v1044
    %v1085 = vpack.c.b16 %v1049, %v1045
    %v1086 = vpack.c.b16 %v1054, %v1050
    %v1087 = vpack.c.b16 %v1055, %v1051
    %v1088 = vpack.c.b16 %v1056, %v1052
    %v1089 = vpack.c.b16 %v1057, %v1053
    %1122 = vmatprep.subr.bf16.mxu0 %v1059
    %1123 = vmatpush1.bf16.msra.mxu0 %v1058
    %1124 = vmatprep.subr.bf16.mxu0 %v1063
    %1125 = vmatpush1.bf16.msra.mxu0 %v1062
    %1126 = vmatprep.subr.bf16.mxu0 %v1067
    %1127 = vmatpush1.bf16.msra.mxu0 %v1066
    %1128 = vmatprep.subr.bf16.mxu0 %v1071
    %1129 = vmatpush1.bf16.msra.mxu0 %v1070
    %1130 = vmatprep.subr.bf16.mxu0 %v1075
    %1131 = vmatpush1.bf16.msra.mxu0 %v1074
    %1132 = vmatprep.subr.bf16.mxu0 %v1079
    %1133 = vmatpush1.bf16.msra.mxu0 %v1078
    %1134 = vmatprep.subr.bf16.mxu0 %v1083
    %1135 = vmatpush1.bf16.msra.mxu0 %v1082
    %1136 = vmatprep.subr.bf16.mxu0 %v1087
    %1137 = vmatpush1.bf16.msra.mxu0 %v1086
    %1138 = vmatprep.subr.bf16.mxu0 0
    %1139 = vmatpush1.bf16.msra.mxu0 0
    %1140 = vmatprep.subr.bf16.mxu0 0
    %1141 = vmatpush1.bf16.msra.mxu0 0
    %1142 = vmatprep.subr.bf16.mxu0 0
    %1143 = vmatpush1.bf16.msra.mxu0 0
    %1144 = vmatprep.subr.bf16.mxu0 0
    %1145 = vmatpush1.bf16.msra.mxu0 0
    %1146 = vmatprep.subr.bf16.mxu0 0
    %1147 = vmatpush1.bf16.msra.mxu0 0
    %1148 = vmatprep.subr.bf16.mxu0 0
    %1149 = vmatpush1.bf16.msra.mxu0 0
    %1150 = vmatprep.subr.bf16.mxu0 0
    %1151 = vmatpush1.bf16.msra.mxu0 0
    %1152 = vmatprep.subr.bf16.mxu0 0
    %1153 = vmatpush1.bf16.msra.mxu0 0
    %1154 = vmatprep.mubr.bf16.mxu0 0
    %1155 = vmatmul.mubr.bf16.gmra.mrb[0].mxu0 %v958
    %v1156 = vpop.f32.mrb[0].mxu0
    %v1157 = vadd.f32 0.0, %v1156
    %v1158 = vpop.f32.mrb[0].mxu0
    %v1159 = vadd.f32 0.0, %v1158
    %v1160 = vpop.f32.mrb[0].mxu0
    %v1161 = vadd.f32 0.0, %v1160
    %v1162 = vpop.f32.mrb[0].mxu0
    %v1163 = vadd.f32 0.0, %v1162
    %1164 = vmatprep.mubr.bf16.mxu0 0
    %1165 = vmatmul.mubr.bf16.gmra.mrb[0].mxu0 %v959
    %v1166 = vpop.f32.mrb[0].mxu0
    %v1167 = vadd.f32 0.0, %v1166
    %v1168 = vpop.f32.mrb[0].mxu0
    %v1169 = vadd.f32 0.0, %v1168
    %v1170 = vpop.f32.mrb[0].mxu0
    %v1171 = vadd.f32 0.0, %v1170
    %v1172 = vpop.f32.mrb[0].mxu0
    %v1173 = vadd.f32 0.0, %v1172
    %1174 = vmatprep.mubr.bf16.mxu0 0
    %1175 = vmatmul.mubr.bf16.gmra.mrb[0].mxu0 %v960
    %v1176 = vpop.f32.mrb[0].mxu0
    %v1177 = vadd.f32 0.0, %v1176
    %v1178 = vpop.f32.mrb[0].mxu0
    %v1179 = vadd.f32 0.0, %v1178
    %v1180 = vpop.f32.mrb[0].mxu0
    %v1181 = vadd.f32 0.0, %v1180
    %v1182 = vpop.f32.mrb[0].mxu0
    %v1183 = vadd.f32 0.0, %v1182
    %1184 = vmatprep.mubr.bf16.mxu0 0
    %1185 = vmatmul.mubr.bf16.gmra.mrb[0].mxu0 %v961
    %v1186 = vpop.f32.mrb[0].mxu0
    %v1187 = vadd.f32 0.0, %v1186
    %v1188 = vpop.f32.mrb[0].mxu0
    %v1189 = vadd.f32 0.0, %v1188
    %v1190 = vpop.f32.mrb[0].mxu0
    %v1191 = vadd.f32 0.0, %v1190
    %v1192 = vpop.f32.mrb[0].mxu0
    %v1193 = vadd.f32 0.0, %v1192
    %1194 = vdwg.mxu0
    %1195 = vmatprep.subr.bf16.mxu0 %v1061
    %1196 = vmatpush1.bf16.msra.mxu0 %v1060
    %1197 = vmatprep.subr.bf16.mxu0 %v1065
    %1198 = vmatpush1.bf16.msra.mxu0 %v1064
    %1199 = vmatprep.subr.bf16.mxu0 %v1069
    %1200 = vmatpush1.bf16.msra.mxu0 %v1068
    %1201 = vmatprep.subr.bf16.mxu0 %v1073
    %1202 = vmatpush1.bf16.msra.mxu0 %v1072
    %1203 = vmatprep.subr.bf16.mxu0 %v1077
    %1204 = vmatpush1.bf16.msra.mxu0 %v1076
    %1205 = vmatprep.subr.bf16.mxu0 %v1081
    %1206 = vmatpush1.bf16.msra.mxu0 %v1080
    %1207 = vmatprep.subr.bf16.mxu0 %v1085
    %1208 = vmatpush1.bf16.msra.mxu0 %v1084
    %1209 = vmatprep.subr.bf16.mxu0 %v1089
    %1210 = vmatpush1.bf16.msra.mxu0 %v1088
    %1211 = vmatprep.subr.bf16.mxu0 0
    %1212 = vmatpush1.bf16.msra.mxu0 0
    %1213 = vmatprep.subr.bf16.mxu0 0
    %1214 = vmatpush1.bf16.msra.mxu0 0
    %1215 = vmatprep.subr.bf16.mxu0 0
    %1216 = vmatpush1.bf16.msra.mxu0 0
    %1217 = vmatprep.subr.bf16.mxu0 0
    %1218 = vmatpush1.bf16.msra.mxu0 0
    %1219 = vmatprep.subr.bf16.mxu0 0
    %1220 = vmatpush1.bf16.msra.mxu0 0
    %1221 = vmatprep.subr.bf16.mxu0 0
    %1222 = vmatpush1.bf16.msra.mxu0 0
    %1223 = vmatprep.subr.bf16.mxu0 0
    %1224 = vmatpush1.bf16.msra.mxu0 0
    %1225 = vmatprep.subr.bf16.mxu0 0
    %1226 = vmatpush1.bf16.msra.mxu0 0
    %1227 = vmatprep.mubr.bf16.mxu0 0
    %1228 = vmatmul.mubr.bf16.gmra.mrb[0].mxu0 %v958
    %v1229 = vpop.f32.mrb[0].mxu0
    %v1230 = vadd.f32 0.0, %v1229
    %v1231 = vpop.f32.mrb[0].mxu0
    %v1232 = vadd.f32 0.0, %v1231
    %v1233 = vpop.f32.mrb[0].mxu0
    %v1234 = vadd.f32 0.0, %v1233
    %v1235 = vpop.f32.mrb[0].mxu0
    %v1236 = vadd.f32 0.0, %v1235
    %1237 = vmatprep.mubr.bf16.mxu0 0
    %1238 = vmatmul.mubr.bf16.gmra.mrb[0].mxu0 %v959
    %v1239 = vpop.f32.mrb[0].mxu0
    %v1240 = vadd.f32 0.0, %v1239
    %v1241 = vpop.f32.mrb[0].mxu0
    %v1242 = vadd.f32 0.0, %v1241
    %v1243 = vpop.f32.mrb[0].mxu0
    %v1244 = vadd.f32 0.0, %v1243
    %v1245 = vpop.f32.mrb[0].mxu0
    %v1246 = vadd.f32 0.0, %v1245
    %1247 = vmatprep.mubr.bf16.mxu0 0
    %1248 = vmatmul.mubr.bf16.gmra.mrb[0].mxu0 %v960
    %v1249 = vpop.f32.mrb[0].mxu0
    %v1250 = vadd.f32 0.0, %v1249
    %v1251 = vpop.f32.mrb[0].mxu0
    %v1252 = vadd.f32 0.0, %v1251
    %v1253 = vpop.f32.mrb[0].mxu0
    %v1254 = vadd.f32 0.0, %v1253
    %v1255 = vpop.f32.mrb[0].mxu0
    %v1256 = vadd.f32 0.0, %v1255
    %1257 = vmatprep.mubr.bf16.mxu0 0
    %1258 = vmatmul.mubr.bf16.gmra.mrb[0].mxu0 %v961
    %v1259 = vpop.f32.mrb[0].mxu0
    %v1260 = vadd.f32 0.0, %v1259
    %v1261 = vpop.f32.mrb[0].mxu0
    %v1262 = vadd.f32 0.0, %v1261
    %v1263 = vpop.f32.mrb[0].mxu0
    %v1264 = vadd.f32 0.0, %v1263
    %v1265 = vpop.f32.mrb[0].mxu0
    %v1266 = vadd.f32 0.0, %v1265
    %1267 = vdwg.mxu0
    %v1300 = vunpack.c.l.b16 %v886
    %v1301 = vunpack.c.h.b16 %v886
    %v1302 = vunpack.c.l.b16 %v887
    %v1303 = vunpack.c.h.b16 %v887
    %v1304 = vunpack.c.l.b16 %v888
    %v1305 = vunpack.c.h.b16 %v888
    %v1306 = vunpack.c.l.b16 %v889
    %v1307 = vunpack.c.h.b16 %v889
    %v1308 = vunpack.c.l.b16 %v890
    %v1309 = vunpack.c.h.b16 %v890
    %v1310 = vunpack.c.l.b16 %v891
    %v1311 = vunpack.c.h.b16 %v891
    %v1312 = vunpack.c.l.b16 %v892
    %v1313 = vunpack.c.h.b16 %v892
    %v1314 = vunpack.c.l.b16 %v893
    %v1315 = vunpack.c.h.b16 %v893
    %v1316 = vunpack.c.l.b16 %v894
    %v1317 = vunpack.c.h.b16 %v894
    %v1318 = vunpack.c.l.b16 %v895
    %v1319 = vunpack.c.h.b16 %v895
    %v1320 = vunpack.c.l.b16 %v896
    %v1321 = vunpack.c.h.b16 %v896
    %v1322 = vunpack.c.l.b16 %v897
    %v1323 = vunpack.c.h.b16 %v897
    %v1324 = vunpack.c.l.b16 %v898
    %v1325 = vunpack.c.h.b16 %v898
    %v1326 = vunpack.c.l.b16 %v899
    %v1327 = vunpack.c.h.b16 %v899
    %v1328 = vunpack.c.l.b16 %v900
    %v1329 = vunpack.c.h.b16 %v900
    %v1330 = vunpack.c.l.b16 %v901
    %v1331 = vunpack.c.h.b16 %v901
    %v1332 = vunpack.c.l.b16 %v902
    %v1333 = vunpack.c.h.b16 %v902
    %v1334 = vunpack.c.l.b16 %v903
    %v1335 = vunpack.c.h.b16 %v903
    %v1336 = vunpack.c.l.b16 %v904
    %v1337 = vunpack.c.h.b16 %v904
    %v1338 = vunpack.c.l.b16 %v905
    %v1339 = vunpack.c.h.b16 %v905
    %v1340 = vunpack.c.l.b16 %v906
    %v1341 = vunpack.c.h.b16 %v906
    %v1342 = vunpack.c.l.b16 %v907
    %v1343 = vunpack.c.h.b16 %v907
    %v1344 = vunpack.c.l.b16 %v908
    %v1345 = vunpack.c.h.b16 %v908
    %v1346 = vunpack.c.l.b16 %v909
    %v1347 = vunpack.c.h.b16 %v909
    %v1348 = vunpack.c.l.b16 %v910
    %v1349 = vunpack.c.h.b16 %v910
    %v1350 = vunpack.c.l.b16 %v911
    %v1351 = vunpack.c.h.b16 %v911
    %v1352 = vunpack.c.l.b16 %v912
    %v1353 = vunpack.c.h.b16 %v912
    %v1354 = vunpack.c.l.b16 %v913
    %v1355 = vunpack.c.h.b16 %v913
    %v1356 = vunpack.c.l.b16 %v914
    %v1357 = vunpack.c.h.b16 %v914
    %v1358 = vunpack.c.l.b16 %v915
    %v1359 = vunpack.c.h.b16 %v915
    %v1360 = vunpack.c.l.b16 %v916
    %v1361 = vunpack.c.h.b16 %v916
    %v1362 = vunpack.c.l.b16 %v917
    %v1363 = vunpack.c.h.b16 %v917
    %v1364 = vpack.c.b16 %v1304, %v1300
    %v1365 = vpack.c.b16 %v1305, %v1301
    %v1366 = vpack.c.b16 %v1306, %v1302
    %v1367 = vpack.c.b16 %v1307, %v1303
    %v1368 = vpack.c.b16 %v1312, %v1308
    %v1369 = vpack.c.b16 %v1313, %v1309
    %v1370 = vpack.c.b16 %v1314, %v1310
    %v1371 = vpack.c.b16 %v1315, %v1311
    %v1372 = vpack.c.b16 %v1320, %v1316
    %v1373 = vpack.c.b16 %v1321, %v1317
    %v1374 = vpack.c.b16 %v1322, %v1318
    %v1375 = vpack.c.b16 %v1323, %v1319
    %v1376 = vpack.c.b16 %v1328, %v1324
    %v1377 = vpack.c.b16 %v1329, %v1325
    %v1378 = vpack.c.b16 %v1330, %v1326
    %v1379 = vpack.c.b16 %v1331, %v1327
    %v1380 = vpack.c.b16 %v1336, %v1332
    %v1381 = vpack.c.b16 %v1337, %v1333
    %v1382 = vpack.c.b16 %v1338, %v1334
    %v1383 = vpack.c.b16 %v1339, %v1335
    %v1384 = vpack.c.b16 %v1344, %v1340
    %v1385 = vpack.c.b16 %v1345, %v1341
    %v1386 = vpack.c.b16 %v1346, %v1342
    %v1387 = vpack.c.b16 %v1347, %v1343
    %v1388 = vpack.c.b16 %v1352, %v1348
    %v1389 = vpack.c.b16 %v1353, %v1349
    %v1390 = vpack.c.b16 %v1354, %v1350
    %v1391 = vpack.c.b16 %v1355, %v1351
    %v1392 = vpack.c.b16 %v1360, %v1356
    %v1393 = vpack.c.b16 %v1361, %v1357
    %v1394 = vpack.c.b16 %v1362, %v1358
    %v1395 = vpack.c.b16 %v1363, %v1359
    %1428 = vmatprep.subr.bf16.mxu0 %v1365
    %1429 = vmatpush1.bf16.msra.mxu0 %v1364
    %1430 = vmatprep.subr.bf16.mxu0 %v1369
    %1431 = vmatpush1.bf16.msra.mxu0 %v1368
    %1432 = vmatprep.subr.bf16.mxu0 %v1373
    %1433 = vmatpush1.bf16.msra.mxu0 %v1372
    %1434 = vmatprep.subr.bf16.mxu0 %v1377
    %1435 = vmatpush1.bf16.msra.mxu0 %v1376
    %1436 = vmatprep.subr.bf16.mxu0 %v1381
    %1437 = vmatpush1.bf16.msra.mxu0 %v1380
    %1438 = vmatprep.subr.bf16.mxu0 %v1385
    %1439 = vmatpush1.bf16.msra.mxu0 %v1384
    %1440 = vmatprep.subr.bf16.mxu0 %v1389
    %1441 = vmatpush1.bf16.msra.mxu0 %v1388
    %1442 = vmatprep.subr.bf16.mxu0 %v1393
    %1443 = vmatpush1.bf16.msra.mxu0 %v1392
    %1444 = vmatprep.subr.bf16.mxu0 0
    %1445 = vmatpush1.bf16.msra.mxu0 0
    %1446 = vmatprep.subr.bf16.mxu0 0
    %1447 = vmatpush1.bf16.msra.mxu0 0
    %1448 = vmatprep.subr.bf16.mxu0 0
    %1449 = vmatpush1.bf16.msra.mxu0 0
    %1450 = vmatprep.subr.bf16.mxu0 0
    %1451 = vmatpush1.bf16.msra.mxu0 0
    %1452 = vmatprep.subr.bf16.mxu0 0
    %1453 = vmatpush1.bf16.msra.mxu0 0
    %1454 = vmatprep.subr.bf16.mxu0 0
    %1455 = vmatpush1.bf16.msra.mxu0 0
    %1456 = vmatprep.subr.bf16.mxu0 0
    %1457 = vmatpush1.bf16.msra.mxu0 0
    %1458 = vmatprep.subr.bf16.mxu0 0
    %1459 = vmatpush1.bf16.msra.mxu0 0
    %1460 = vmatprep.mubr.bf16.mxu0 0
    %1461 = vmatmul.mubr.bf16.gmra.mrb[0].mxu0 %v882
    %v1462 = vpop.f32.mrb[0].mxu0
    %v1463 = vadd.f32 %v1157, %v1462
    %v1464 = vpop.f32.mrb[0].mxu0
    %v1465 = vadd.f32 %v1159, %v1464
    %v1466 = vpop.f32.mrb[0].mxu0
    %v1467 = vadd.f32 %v1161, %v1466
    %v1468 = vpop.f32.mrb[0].mxu0
    %v1469 = vadd.f32 %v1163, %v1468
    %1470 = vmatprep.mubr.bf16.mxu0 0
    %1471 = vmatmul.mubr.bf16.gmra.mrb[0].mxu0 %v883
    %v1472 = vpop.f32.mrb[0].mxu0
    %v1473 = vadd.f32 %v1167, %v1472
    %v1474 = vpop.f32.mrb[0].mxu0
    %v1475 = vadd.f32 %v1169, %v1474
    %v1476 = vpop.f32.mrb[0].mxu0
    %v1477 = vadd.f32 %v1171, %v1476
    %v1478 = vpop.f32.mrb[0].mxu0
    %v1479 = vadd.f32 %v1173, %v1478
    %1480 = vmatprep.mubr.bf16.mxu0 0
    %1481 = vmatmul.mubr.bf16.gmra.mrb[0].mxu0 %v884
    %v1482 = vpop.f32.mrb[0].mxu0
    %v1483 = vadd.f32 %v1177, %v1482
    %v1484 = vpop.f32.mrb[0].mxu0
    %v1485 = vadd.f32 %v1179, %v1484
    %v1486 = vpop.f32.mrb[0].mxu0
    %v1487 = vadd.f32 %v1181, %v1486
    %v1488 = vpop.f32.mrb[0].mxu0
    %v1489 = vadd.f32 %v1183, %v1488
    %1490 = vmatprep.mubr.bf16.mxu0 0
    %1491 = vmatmul.mubr.bf16.gmra.mrb[0].mxu0 %v885
    %v1492 = vpop.f32.mrb[0].mxu0
    %v1493 = vadd.f32 %v1187, %v1492
    %v1494 = vpop.f32.mrb[0].mxu0
    %v1495 = vadd.f32 %v1189, %v1494
    %v1496 = vpop.f32.mrb[0].mxu0
    %v1497 = vadd.f32 %v1191, %v1496
    %v1498 = vpop.f32.mrb[0].mxu0
    %v1499 = vadd.f32 %v1193, %v1498
    %1500 = vdwg.mxu0
    %1501 = vmatprep.subr.bf16.mxu0 %v1367
    %1502 = vmatpush1.bf16.msra.mxu0 %v1366
    %1503 = vmatprep.subr.bf16.mxu0 %v1371
    %1504 = vmatpush1.bf16.msra.mxu0 %v1370
    %1505 = vmatprep.subr.bf16.mxu0 %v1375
    %1506 = vmatpush1.bf16.msra.mxu0 %v1374
    %1507 = vmatprep.subr.bf16.mxu0 %v1379
    %1508 = vmatpush1.bf16.msra.mxu0 %v1378
    %1509 = vmatprep.subr.bf16.mxu0 %v1383
    %1510 = vmatpush1.bf16.msra.mxu0 %v1382
    %1511 = vmatprep.subr.bf16.mxu0 %v1387
    %1512 = vmatpush1.bf16.msra.mxu0 %v1386
    %1513 = vmatprep.subr.bf16.mxu0 %v1391
    %1514 = vmatpush1.bf16.msra.mxu0 %v1390
    %1515 = vmatprep.subr.bf16.mxu0 %v1395
    %1516 = vmatpush1.bf16.msra.mxu0 %v1394
    %1517 = vmatprep.subr.bf16.mxu0 0
    %1518 = vmatpush1.bf16.msra.mxu0 0
    %1519 = vmatprep.subr.bf16.mxu0 0
    %1520 = vmatpush1.bf16.msra.mxu0 0
    %1521 = vmatprep.subr.bf16.mxu0 0
    %1522 = vmatpush1.bf16.msra.mxu0 0
    %1523 = vmatprep.subr.bf16.mxu0 0
    %1524 = vmatpush1.bf16.msra.mxu0 0
    %1525 = vmatprep.subr.bf16.mxu0 0
    %1526 = vmatpush1.bf16.msra.mxu0 0
    %1527 = vmatprep.subr.bf16.mxu0 0
    %1528 = vmatpush1.bf16.msra.mxu0 0
    %1529 = vmatprep.subr.bf16.mxu0 0
    %1530 = vmatpush1.bf16.msra.mxu0 0
    %1531 = vmatprep.subr.bf16.mxu0 0
    %1532 = vmatpush1.bf16.msra.mxu0 0
    %1533 = vmatprep.mubr.bf16.mxu0 0
    %1534 = vmatmul.mubr.bf16.gmra.mrb[0].mxu0 %v882
    %v1535 = vpop.f32.mrb[0].mxu0
    %v1536 = vadd.f32 %v1230, %v1535
    %v1537 = vpop.f32.mrb[0].mxu0
    %v1538 = vadd.f32 %v1232, %v1537
    %v1539 = vpop.f32.mrb[0].mxu0
    %v1540 = vadd.f32 %v1234, %v1539
    %v1541 = vpop.f32.mrb[0].mxu0
    %v1542 = vadd.f32 %v1236, %v1541
    %1543 = vmatprep.mubr.bf16.mxu0 0
    %1544 = vmatmul.mubr.bf16.gmra.mrb[0].mxu0 %v883
    %v1545 = vpop.f32.mrb[0].mxu0
    %v1546 = vadd.f32 %v1240, %v1545
    %v1547 = vpop.f32.mrb[0].mxu0
    %v1548 = vadd.f32 %v1242, %v1547
    %v1549 = vpop.f32.mrb[0].mxu0
    %v1550 = vadd.f32 %v1244, %v1549
    %v1551 = vpop.f32.mrb[0].mxu0
    %v1552 = vadd.f32 %v1246, %v1551
    %1553 = vmatprep.mubr.bf16.mxu0 0
    %1554 = vmatmul.mubr.bf16.gmra.mrb[0].mxu0 %v884
    %v1555 = vpop.f32.mrb[0].mxu0
    %v1556 = vadd.f32 %v1250, %v1555
    %v1557 = vpop.f32.mrb[0].mxu0
    %v1558 = vadd.f32 %v1252, %v1557
    %v1559 = vpop.f32.mrb[0].mxu0
    %v1560 = vadd.f32 %v1254, %v1559
    %v1561 = vpop.f32.mrb[0].mxu0
    %v1562 = vadd.f32 %v1256, %v1561
    %1563 = vmatprep.mubr.bf16.mxu0 0
    %1564 = vmatmul.mubr.bf16.gmra.mrb[0].mxu0 %v885
    %v1565 = vpop.f32.mrb[0].mxu0
    %v1566 = vadd.f32 %v1260, %v1565
    %v1567 = vpop.f32.mrb[0].mxu0
    %v1568 = vadd.f32 %v1262, %v1567
    %v1569 = vpop.f32.mrb[0].mxu0
    %v1570 = vadd.f32 %v1264, %v1569
    %v1571 = vpop.f32.mrb[0].mxu0
    %v1572 = vadd.f32 %v1266, %v1571
    %1573 = vdwg.mxu0
    %v1574 = vld [vmem:[%s7] sm:$0xf]
    %v1576 = vlaneseq
    %v1577 = vshrl.u32 %v1576, 7
    %v1578 = vsub.s32 0, %v1577
    %v1579 = vrot.slane %v1574, %v1578
    %v1580 = vlaneseq
    %v1581 = vshrl.u32 %v1580, 7
    %v1582 = vsub.s32 1, %v1581
    %v1583 = vrot.slane %v1574, %v1582
    %v1584 = vlaneseq
    %v1585 = vshrl.u32 %v1584, 7
    %v1586 = vsub.s32 2, %v1585
    %v1587 = vrot.slane %v1574, %v1586
    %v1588 = vlaneseq
    %v1589 = vshrl.u32 %v1588, 7
    %v1590 = vsub.s32 3, %v1589
    %v1591 = vrot.slane %v1574, %v1590
    %v1596 = vadd.f32 %v1463, %v1579
    %v1597 = vadd.f32 %v1465, %v1583
    %v1598 = vadd.f32 %v1536, %v1587
    %v1599 = vadd.f32 %v1538, %v1591
    %v1600 = vadd.f32 %v1467, %v1579
    %v1601 = vadd.f32 %v1469, %v1583
    %v1602 = vadd.f32 %v1540, %v1587
    %v1603 = vadd.f32 %v1542, %v1591
    %v1604 = vadd.f32 %v1473, %v1579
    %v1605 = vadd.f32 %v1475, %v1583
    %v1606 = vadd.f32 %v1546, %v1587
    %v1607 = vadd.f32 %v1548, %v1591
    %v1608 = vadd.f32 %v1477, %v1579
    %v1609 = vadd.f32 %v1479, %v1583
    %v1610 = vadd.f32 %v1550, %v1587
    %v1611 = vadd.f32 %v1552, %v1591
    %v1612 = vadd.f32 %v1483, %v1579
    %v1613 = vadd.f32 %v1485, %v1583
    %v1614 = vadd.f32 %v1556, %v1587
    %v1615 = vadd.f32 %v1558, %v1591
    %v1616 = vadd.f32 %v1487, %v1579
    %v1617 = vadd.f32 %v1489, %v1583
    %v1618 = vadd.f32 %v1560, %v1587
    %v1619 = vadd.f32 %v1562, %v1591
    %v1620 = vadd.f32 %v1493, %v1579
    %v1621 = vadd.f32 %v1495, %v1583
    %v1622 = vadd.f32 %v1566, %v1587
    %v1623 = vadd.f32 %v1568, %v1591
    %v1624 = vadd.f32 %v1497, %v1579
    %v1625 = vadd.f32 %v1499, %v1583
    %v1626 = vadd.f32 %v1570, %v1587
    %v1627 = vadd.f32 %v1572, %v1591
    %1628 = vst [vmem:[#allocation3] sm:$0xff] %v1596
    %1629 = vst [vmem:[#allocation3 + $0x8] sm:$0xff] %v1597
    %1630 = vst [vmem:[#allocation3 + $0x10] sm:$0xff] %v1598
    %1631 = vst [vmem:[#allocation3 + $0x18] sm:$0xff] %v1599
    %1632 = vst [vmem:[#allocation3 + $0x20] sm:$0xff] %v1600
    %1633 = vst [vmem:[#allocation3 + $0x28] sm:$0xff] %v1601
    %1634 = vst [vmem:[#allocation3 + $0x30] sm:$0xff] %v1602
    %1635 = vst [vmem:[#allocation3 + $0x38] sm:$0xff] %v1603
    %1636 = vst [vmem:[#allocation3 + $0x40] sm:$0xff] %v1604
    %1637 = vst [vmem:[#allocation3 + $0x48] sm:$0xff] %v1605
    %1638 = vst [vmem:[#allocation3 + $0x50] sm:$0xff] %v1606
    %1639 = vst [vmem:[#allocation3 + $0x58] sm:$0xff] %v1607
    %1640 = vst [vmem:[#allocation3 + $0x60] sm:$0xff] %v1608
    %1641 = vst [vmem:[#allocation3 + $0x68] sm:$0xff] %v1609
    %1642 = vst [vmem:[#allocation3 + $0x70] sm:$0xff] %v1610
    %1643 = vst [vmem:[#allocation3 + $0x78] sm:$0xff] %v1611
    %1644 = vst [vmem:[#allocation3 + $0x80] sm:$0xff] %v1612
    %1645 = vst [vmem:[#allocation3 + $0x88] sm:$0xff] %v1613
    %1646 = vst [vmem:[#allocation3 + $0x90] sm:$0xff] %v1614
    %1647 = vst [vmem:[#allocation3 + $0x98] sm:$0xff] %v1615
    %1648 = vst [vmem:[#allocation3 + $0xa0] sm:$0xff] %v1616
    %1649 = vst [vmem:[#allocation3 + $0xa8] sm:$0xff] %v1617
    %1650 = vst [vmem:[#allocation3 + $0xb0] sm:$0xff] %v1618
    %1651 = vst [vmem:[#allocation3 + $0xb8] sm:$0xff] %v1619
    %1652 = vst [vmem:[#allocation3 + $0xc0] sm:$0xff] %v1620
    %1653 = vst [vmem:[#allocation3 + $0xc8] sm:$0xff] %v1621
    %1654 = vst [vmem:[#allocation3 + $0xd0] sm:$0xff] %v1622
    %1655 = vst [vmem:[#allocation3 + $0xd8] sm:$0xff] %v1623
    %1656 = vst [vmem:[#allocation3 + $0xe0] sm:$0xff] %v1624
    %1657 = vst [vmem:[#allocation3 + $0xe8] sm:$0xff] %v1625
    %1658 = vst [vmem:[#allocation3 + $0xf0] sm:$0xff] %v1626
    %1659 = vst [vmem:[#allocation3 + $0xf8] sm:$0xff] %v1627
    %v1660 = vld [vmem:[%s3] sm:$0xff]
    %v1661 = vld [vmem:[%s3 + $0x8] sm:$0xff]
    %v1662 = vld [vmem:[%s3 + $0x10] sm:$0xff]
    %v1663 = vld [vmem:[%s3 + $0x18] sm:$0xff]
    %v1664 = vld [vmem:[%s3 + $0x20] sm:$0xff]
    %v1665 = vld [vmem:[%s3 + $0x28] sm:$0xff]
    %v1666 = vld [vmem:[%s3 + $0x30] sm:$0xff]
    %v1667 = vld [vmem:[%s3 + $0x38] sm:$0xff]
    %v1668 = vld [vmem:[%s3 + $0x40] sm:$0xff]
    %v1669 = vld [vmem:[%s3 + $0x48] sm:$0xff]
    %v1670 = vld [vmem:[%s3 + $0x50] sm:$0xff]
    %v1671 = vld [vmem:[%s3 + $0x58] sm:$0xff]
    %v1672 = vld [vmem:[%s3 + $0x60] sm:$0xff]
    %v1673 = vld [vmem:[%s3 + $0x68] sm:$0xff]
    %v1674 = vld [vmem:[%s3 + $0x70] sm:$0xff]
    %v1675 = vld [vmem:[%s3 + $0x78] sm:$0xff]
    %v1676 = vld [vmem:[%s3 + $0x80] sm:$0xff]
    %v1677 = vld [vmem:[%s3 + $0x88] sm:$0xff]
    %v1678 = vld [vmem:[%s3 + $0x90] sm:$0xff]
    %v1679 = vld [vmem:[%s3 + $0x98] sm:$0xff]
    %v1680 = vld [vmem:[%s3 + $0xa0] sm:$0xff]
    %v1681 = vld [vmem:[%s3 + $0xa8] sm:$0xff]
    %v1682 = vld [vmem:[%s3 + $0xb0] sm:$0xff]
    %v1683 = vld [vmem:[%s3 + $0xb8] sm:$0xff]
    %v1684 = vld [vmem:[%s3 + $0xc0] sm:$0xff]
    %v1685 = vld [vmem:[%s3 + $0xc8] sm:$0xff]
    %v1686 = vld [vmem:[%s3 + $0xd0] sm:$0xff]
    %v1687 = vld [vmem:[%s3 + $0xd8] sm:$0xff]
    %v1688 = vld [vmem:[%s3 + $0xe0] sm:$0xff]
    %v1689 = vld [vmem:[%s3 + $0xe8] sm:$0xff]
    %v1690 = vld [vmem:[%s3 + $0xf0] sm:$0xff]
    %v1691 = vld [vmem:[%s3 + $0xf8] sm:$0xff]
    %v1692 = vld [vmem:[%s3 + $0x100] sm:$0xff]
    %v1693 = vld [vmem:[%s3 + $0x108] sm:$0xff]
    %v1694 = vld [vmem:[%s3 + $0x110] sm:$0xff]
    %v1695 = vld [vmem:[%s3 + $0x118] sm:$0xff]
    %v1696 = vld [vmem:[%s3 + $0x120] sm:$0xff]
    %v1697 = vld [vmem:[%s3 + $0x128] sm:$0xff]
    %v1698 = vld [vmem:[%s3 + $0x130] sm:$0xff]
    %v1699 = vld [vmem:[%s3 + $0x138] sm:$0xff]
    %v1700 = vld [vmem:[%s3 + $0x140] sm:$0xff]
    %v1701 = vld [vmem:[%s3 + $0x148] sm:$0xff]
    %v1702 = vld [vmem:[%s3 + $0x150] sm:$0xff]
    %v1703 = vld [vmem:[%s3 + $0x158] sm:$0xff]
    %v1704 = vld [vmem:[%s3 + $0x160] sm:$0xff]
    %v1705 = vld [vmem:[%s3 + $0x168] sm:$0xff]
    %v1706 = vld [vmem:[%s3 + $0x170] sm:$0xff]
    %v1707 = vld [vmem:[%s3 + $0x178] sm:$0xff]
    %v1708 = vld [vmem:[%s3 + $0x180] sm:$0xff]
    %v1709 = vld [vmem:[%s3 + $0x188] sm:$0xff]
    %v1710 = vld [vmem:[%s3 + $0x190] sm:$0xff]
    %v1711 = vld [vmem:[%s3 + $0x198] sm:$0xff]
    %v1712 = vld [vmem:[%s3 + $0x1a0] sm:$0xff]
    %v1713 = vld [vmem:[%s3 + $0x1a8] sm:$0xff]
    %v1714 = vld [vmem:[%s3 + $0x1b0] sm:$0xff]
    %v1715 = vld [vmem:[%s3 + $0x1b8] sm:$0xff]
    %v1716 = vld [vmem:[%s3 + $0x1c0] sm:$0xff]
    %v1717 = vld [vmem:[%s3 + $0x1c8] sm:$0xff]
    %v1718 = vld [vmem:[%s3 + $0x1d0] sm:$0xff]
    %v1719 = vld [vmem:[%s3 + $0x1d8] sm:$0xff]
    %v1720 = vld [vmem:[%s3 + $0x1e0] sm:$0xff]
    %v1721 = vld [vmem:[%s3 + $0x1e8] sm:$0xff]
    %v1722 = vld [vmem:[%s3 + $0x1f0] sm:$0xff]
    %v1723 = vld [vmem:[%s3 + $0x1f8] sm:$0xff]
    %v1724 = vld [vmem:[#allocation10] sm:$0xff]
    %v1725 = vld [vmem:[#allocation10 + $0x8] sm:$0xff]
    %v1726 = vld [vmem:[#allocation10 + $0x10] sm:$0xff]
    %v1727 = vld [vmem:[#allocation10 + $0x18] sm:$0xff]
    %v1728 = vld [vmem:[#allocation10 + $0x20] sm:$0xff]
    %v1729 = vld [vmem:[#allocation10 + $0x28] sm:$0xff]
    %v1730 = vld [vmem:[#allocation10 + $0x30] sm:$0xff]
    %v1731 = vld [vmem:[#allocation10 + $0x38] sm:$0xff]
    %v1732 = vld [vmem:[#allocation10 + $0x40] sm:$0xff]
    %v1733 = vld [vmem:[#allocation10 + $0x48] sm:$0xff]
    %v1734 = vld [vmem:[#allocation10 + $0x50] sm:$0xff]
    %v1735 = vld [vmem:[#allocation10 + $0x58] sm:$0xff]
    %v1736 = vld [vmem:[#allocation10 + $0x60] sm:$0xff]
    %v1737 = vld [vmem:[#allocation10 + $0x68] sm:$0xff]
    %v1738 = vld [vmem:[#allocation10 + $0x70] sm:$0xff]
    %v1739 = vld [vmem:[#allocation10 + $0x78] sm:$0xff]
    %v1740 = vld [vmem:[#allocation10 + $0x80] sm:$0xff]
    %v1741 = vld [vmem:[#allocation10 + $0x88] sm:$0xff]
    %v1742 = vld [vmem:[#allocation10 + $0x90] sm:$0xff]
    %v1743 = vld [vmem:[#allocation10 + $0x98] sm:$0xff]
    %v1744 = vld [vmem:[#allocation10 + $0xa0] sm:$0xff]
    %v1745 = vld [vmem:[#allocation10 + $0xa8] sm:$0xff]
    %v1746 = vld [vmem:[#allocation10 + $0xb0] sm:$0xff]
    %v1747 = vld [vmem:[#allocation10 + $0xb8] sm:$0xff]
    %v1748 = vld [vmem:[#allocation10 + $0xc0] sm:$0xff]
    %v1749 = vld [vmem:[#allocation10 + $0xc8] sm:$0xff]
    %v1750 = vld [vmem:[#allocation10 + $0xd0] sm:$0xff]
    %v1751 = vld [vmem:[#allocation10 + $0xd8] sm:$0xff]
    %v1752 = vld [vmem:[#allocation10 + $0xe0] sm:$0xff]
    %v1753 = vld [vmem:[#allocation10 + $0xe8] sm:$0xff]
    %v1754 = vld [vmem:[#allocation10 + $0xf0] sm:$0xff]
    %v1755 = vld [vmem:[#allocation10 + $0xf8] sm:$0xff]
    %v1756 = vld [vmem:[#allocation10 + $0x100] sm:$0xff]
    %v1757 = vld [vmem:[#allocation10 + $0x108] sm:$0xff]
    %v1758 = vld [vmem:[#allocation10 + $0x110] sm:$0xff]
    %v1759 = vld [vmem:[#allocation10 + $0x118] sm:$0xff]
    %v1760 = vld [vmem:[#allocation10 + $0x120] sm:$0xff]
    %v1761 = vld [vmem:[#allocation10 + $0x128] sm:$0xff]
    %v1762 = vld [vmem:[#allocation10 + $0x130] sm:$0xff]
    %v1763 = vld [vmem:[#allocation10 + $0x138] sm:$0xff]
    %v1764 = vld [vmem:[#allocation10 + $0x140] sm:$0xff]
    %v1765 = vld [vmem:[#allocation10 + $0x148] sm:$0xff]
    %v1766 = vld [vmem:[#allocation10 + $0x150] sm:$0xff]
    %v1767 = vld [vmem:[#allocation10 + $0x158] sm:$0xff]
    %v1768 = vld [vmem:[#allocation10 + $0x160] sm:$0xff]
    %v1769 = vld [vmem:[#allocation10 + $0x168] sm:$0xff]
    %v1770 = vld [vmem:[#allocation10 + $0x170] sm:$0xff]
    %v1771 = vld [vmem:[#allocation10 + $0x178] sm:$0xff]
    %v1772 = vld [vmem:[#allocation10 + $0x180] sm:$0xff]
    %v1773 = vld [vmem:[#allocation10 + $0x188] sm:$0xff]
    %v1774 = vld [vmem:[#allocation10 + $0x190] sm:$0xff]
    %v1775 = vld [vmem:[#allocation10 + $0x198] sm:$0xff]
    %v1776 = vld [vmem:[#allocation10 + $0x1a0] sm:$0xff]
    %v1777 = vld [vmem:[#allocation10 + $0x1a8] sm:$0xff]
    %v1778 = vld [vmem:[#allocation10 + $0x1b0] sm:$0xff]
    %v1779 = vld [vmem:[#allocation10 + $0x1b8] sm:$0xff]
    %v1780 = vld [vmem:[#allocation10 + $0x1c0] sm:$0xff]
    %v1781 = vld [vmem:[#allocation10 + $0x1c8] sm:$0xff]
    %v1782 = vld [vmem:[#allocation10 + $0x1d0] sm:$0xff]
    %v1783 = vld [vmem:[#allocation10 + $0x1d8] sm:$0xff]
    %v1784 = vld [vmem:[#allocation10 + $0x1e0] sm:$0xff]
    %v1785 = vld [vmem:[#allocation10 + $0x1e8] sm:$0xff]
    %v1786 = vld [vmem:[#allocation10 + $0x1f0] sm:$0xff]
    %v1787 = vld [vmem:[#allocation10 + $0x1f8] sm:$0xff]
    %v1788 = vld [vmem:[#allocation4] sm:$0xff]
    %v1789 = vld [vmem:[#allocation5] sm:$0xff]
    %v1790 = vld [vmem:[#allocation6] sm:$0xff]
    %v1791 = vld [vmem:[#allocation7] sm:$0xff]
    %v1792 = vld [vmem:[#allocation2] sm:$0xff]
    %v1793 = vld [vmem:[#allocation2 + $0x8] sm:$0xff]
    %v1794 = vld [vmem:[#allocation2 + $0x10] sm:$0xff]
    %v1795 = vld [vmem:[#allocation2 + $0x18] sm:$0xff]
    %1796 = vmatprep.subr.mxu0 %v1661
    %1797 = vmatpush1.msra.mxu0 %v1660
    %1798 = vmatprep.subr.mxu0 %v1665
    %1799 = vmatpush1.msra.mxu0 %v1664
    %1800 = vmatprep.subr.mxu0 %v1669
    %1801 = vmatpush1.msra.mxu0 %v1668
    %1802 = vmatprep.subr.mxu0 %v1673
    %1803 = vmatpush1.msra.mxu0 %v1672
    %1804 = vmatprep.subr.mxu0 %v1677
    %1805 = vmatpush1.msra.mxu0 %v1676
    %1806 = vmatprep.subr.mxu0 %v1681
    %1807 = vmatpush1.msra.mxu0 %v1680
    %1808 = vmatprep.subr.mxu0 %v1685
    %1809 = vmatpush1.msra.mxu0 %v1684
    %1810 = vmatprep.subr.mxu0 %v1689
    %1811 = vmatpush1.msra.mxu0 %v1688
    %1812 = vmatprep.subr.mxu0 %v1693
    %1813 = vmatpush1.msra.mxu0 %v1692
    %1814 = vmatprep.subr.mxu0 %v1697
    %1815 = vmatpush1.msra.mxu0 %v1696
    %1816 = vmatprep.subr.mxu0 %v1701
    %1817 = vmatpush1.msra.mxu0 %v1700
    %1818 = vmatprep.subr.mxu0 %v1705
    %1819 = vmatpush1.msra.mxu0 %v1704
    %1820 = vmatprep.subr.mxu0 %v1709
    %1821 = vmatpush1.msra.mxu0 %v1708
    %1822 = vmatprep.subr.mxu0 %v1713
    %1823 = vmatpush1.msra.mxu0 %v1712
    %1824 = vmatprep.subr.mxu0 %v1717
    %1825 = vmatpush1.msra.mxu0 %v1716
    %1826 = vmatprep.subr.mxu0 %v1721
    %1827 = vmatpush1.msra.mxu0 %v1720
    %1828 = vmatprep.subr.mxu0 0.0
    %1829 = vmatpush1.msra.mxu0 0.0
    %1830 = vmatprep.subr.mxu0 0.0
    %1831 = vmatpush1.msra.mxu0 0.0
    %1832 = vmatprep.subr.mxu0 0.0
    %1833 = vmatpush1.msra.mxu0 0.0
    %1834 = vmatprep.subr.mxu0 0.0
    %1835 = vmatpush1.msra.mxu0 0.0
    %1836 = vmatprep.subr.mxu0 0.0
    %1837 = vmatpush1.msra.mxu0 0.0
    %1838 = vmatprep.subr.mxu0 0.0
    %1839 = vmatpush1.msra.mxu0 0.0
    %1840 = vmatprep.subr.mxu0 0.0
    %1841 = vmatpush1.msra.mxu0 0.0
    %1842 = vmatprep.subr.mxu0 0.0
    %1843 = vmatpush1.msra.mxu0 0.0
    %1844 = vmatprep.subr.mxu0 0.0
    %1845 = vmatpush1.msra.mxu0 0.0
    %1846 = vmatprep.subr.mxu0 0.0
    %1847 = vmatpush1.msra.mxu0 0.0
    %1848 = vmatprep.subr.mxu0 0.0
    %1849 = vmatpush1.msra.mxu0 0.0
    %1850 = vmatprep.subr.mxu0 0.0
    %1851 = vmatpush1.msra.mxu0 0.0
    %1852 = vmatprep.subr.mxu0 0.0
    %1853 = vmatpush1.msra.mxu0 0.0
    %1854 = vmatprep.subr.mxu0 0.0
    %1855 = vmatpush1.msra.mxu0 0.0
    %1856 = vmatprep.subr.mxu0 0.0
    %1857 = vmatpush1.msra.mxu0 0.0
    %1858 = vmatprep.subr.mxu0 0.0
    %1859 = vmatpush1.msra.mxu0 0.0
    %1860 = vmatprep.mubr.f32.mxu0 0.0
    %1861 = vmatmul.mubr.f32.gmra.mrb[0].mxu0 %v1788
    %v1862 = vpop.f32.mrb[0].mxu0
    %v1863 = vadd.f32 0.0, %v1862
    %v1864 = vpop.f32.mrb[0].mxu0
    %v1865 = vadd.f32 0.0, %v1864
    %1866 = vdwg.mxu0
    %1867 = vmatprep.subr.mxu0 %v1663
    %1868 = vmatpush1.msra.mxu0 %v1662
    %1869 = vmatprep.subr.mxu0 %v1667
    %1870 = vmatpush1.msra.mxu0 %v1666
    %1871 = vmatprep.subr.mxu0 %v1671
    %1872 = vmatpush1.msra.mxu0 %v1670
    %1873 = vmatprep.subr.mxu0 %v1675
    %1874 = vmatpush1.msra.mxu0 %v1674
    %1875 = vmatprep.subr.mxu0 %v1679
    %1876 = vmatpush1.msra.mxu0 %v1678
    %1877 = vmatprep.subr.mxu0 %v1683
    %1878 = vmatpush1.msra.mxu0 %v1682
    %1879 = vmatprep.subr.mxu0 %v1687
    %1880 = vmatpush1.msra.mxu0 %v1686
    %1881 = vmatprep.subr.mxu0 %v1691
    %1882 = vmatpush1.msra.mxu0 %v1690
    %1883 = vmatprep.subr.mxu0 %v1695
    %1884 = vmatpush1.msra.mxu0 %v1694
    %1885 = vmatprep.subr.mxu0 %v1699
    %1886 = vmatpush1.msra.mxu0 %v1698
    %1887 = vmatprep.subr.mxu0 %v1703
    %1888 = vmatpush1.msra.mxu0 %v1702
    %1889 = vmatprep.subr.mxu0 %v1707
    %1890 = vmatpush1.msra.mxu0 %v1706
    %1891 = vmatprep.subr.mxu0 %v1711
    %1892 = vmatpush1.msra.mxu0 %v1710
    %1893 = vmatprep.subr.mxu0 %v1715
    %1894 = vmatpush1.msra.mxu0 %v1714
    %1895 = vmatprep.subr.mxu0 %v1719
    %1896 = vmatpush1.msra.mxu0 %v1718
    %1897 = vmatprep.subr.mxu0 %v1723
    %1898 = vmatpush1.msra.mxu0 %v1722
    %1899 = vmatprep.subr.mxu0 0.0
    %1900 = vmatpush1.msra.mxu0 0.0
    %1901 = vmatprep.subr.mxu0 0.0
    %1902 = vmatpush1.msra.mxu0 0.0
    %1903 = vmatprep.subr.mxu0 0.0
    %1904 = vmatpush1.msra.mxu0 0.0
    %1905 = vmatprep.subr.mxu0 0.0
    %1906 = vmatpush1.msra.mxu0 0.0
    %1907 = vmatprep.subr.mxu0 0.0
    %1908 = vmatpush1.msra.mxu0 0.0
    %1909 = vmatprep.subr.mxu0 0.0
    %1910 = vmatpush1.msra.mxu0 0.0
    %1911 = vmatprep.subr.mxu0 0.0
    %1912 = vmatpush1.msra.mxu0 0.0
    %1913 = vmatprep.subr.mxu0 0.0
    %1914 = vmatpush1.msra.mxu0 0.0
    %1915 = vmatprep.subr.mxu0 0.0
    %1916 = vmatpush1.msra.mxu0 0.0
    %1917 = vmatprep.subr.mxu0 0.0
    %1918 = vmatpush1.msra.mxu0 0.0
    %1919 = vmatprep.subr.mxu0 0.0
    %1920 = vmatpush1.msra.mxu0 0.0
    %1921 = vmatprep.subr.mxu0 0.0
    %1922 = vmatpush1.msra.mxu0 0.0
    %1923 = vmatprep.subr.mxu0 0.0
    %1924 = vmatpush1.msra.mxu0 0.0
    %1925 = vmatprep.subr.mxu0 0.0
    %1926 = vmatpush1.msra.mxu0 0.0
    %1927 = vmatprep.subr.mxu0 0.0
    %1928 = vmatpush1.msra.mxu0 0.0
    %1929 = vmatprep.subr.mxu0 0.0
    %1930 = vmatpush1.msra.mxu0 0.0
    %1931 = vmatprep.mubr.f32.mxu0 0.0
    %1932 = vmatmul.mubr.f32.gmra.mrb[0].mxu0 %v1788
    %v1933 = vpop.f32.mrb[0].mxu0
    %v1934 = vadd.f32 0.0, %v1933
    %v1935 = vpop.f32.mrb[0].mxu0
    %v1936 = vadd.f32 0.0, %v1935
    %1937 = vdwg.mxu0
    %v1938 = vadd.f32 %v1792, %v1863
    %v1939 = vadd.f32 %v1793, %v1865
    %v1940 = vadd.f32 %v1794, %v1934
    %v1941 = vadd.f32 %v1795, %v1936
    %s1942 = scalar_lea.vmem [#allocation3], 224
    %v1943 = vld [vmem:[%s1942] sm:$0xff]
    %v1944 = vld [vmem:[%s1942 + $0x8] sm:$0xff]
    %v1945 = vld [vmem:[%s1942 + $0x10] sm:$0xff]
    %v1946 = vld [vmem:[%s1942 + $0x18] sm:$0xff]
    %1947 = vmatprep.subr.mxu0 %v1725
    %1948 = vmatpush1.msra.mxu0 %v1724
    %1949 = vmatprep.subr.mxu0 %v1729
    %1950 = vmatpush1.msra.mxu0 %v1728
    %1951 = vmatprep.subr.mxu0 %v1733
    %1952 = vmatpush1.msra.mxu0 %v1732
    %1953 = vmatprep.subr.mxu0 %v1737
    %1954 = vmatpush1.msra.mxu0 %v1736
    %1955 = vmatprep.subr.mxu0 %v1741
    %1956 = vmatpush1.msra.mxu0 %v1740
    %1957 = vmatprep.subr.mxu0 %v1745
    %1958 = vmatpush1.msra.mxu0 %v1744
    %1959 = vmatprep.subr.mxu0 %v1749
    %1960 = vmatpush1.msra.mxu0 %v1748
    %1961 = vmatprep.subr.mxu0 %v1753
    %1962 = vmatpush1.msra.mxu0 %v1752
    %1963 = vmatprep.subr.mxu0 %v1757
    %1964 = vmatpush1.msra.mxu0 %v1756
    %1965 = vmatprep.subr.mxu0 %v1761
    %1966 = vmatpush1.msra.mxu0 %v1760
    %1967 = vmatprep.subr.mxu0 %v1765
    %1968 = vmatpush1.msra.mxu0 %v1764
    %1969 = vmatprep.subr.mxu0 %v1769
    %1970 = vmatpush1.msra.mxu0 %v1768
    %1971 = vmatprep.subr.mxu0 %v1773
    %1972 = vmatpush1.msra.mxu0 %v1772
    %1973 = vmatprep.subr.mxu0 %v1777
    %1974 = vmatpush1.msra.mxu0 %v1776
    %1975 = vmatprep.subr.mxu0 %v1781
    %1976 = vmatpush1.msra.mxu0 %v1780
    %1977 = vmatprep.subr.mxu0 %v1785
    %1978 = vmatpush1.msra.mxu0 %v1784
    %1979 = vmatprep.subr.mxu0 0.0
    %1980 = vmatpush1.msra.mxu0 0.0
    %1981 = vmatprep.subr.mxu0 0.0
    %1982 = vmatpush1.msra.mxu0 0.0
    %1983 = vmatprep.subr.mxu0 0.0
    %1984 = vmatpush1.msra.mxu0 0.0
    %1985 = vmatprep.subr.mxu0 0.0
    %1986 = vmatpush1.msra.mxu0 0.0
    %1987 = vmatprep.subr.mxu0 0.0
    %1988 = vmatpush1.msra.mxu0 0.0
    %1989 = vmatprep.subr.mxu0 0.0
    %1990 = vmatpush1.msra.mxu0 0.0
    %1991 = vmatprep.subr.mxu0 0.0
    %1992 = vmatpush1.msra.mxu0 0.0
    %1993 = vmatprep.subr.mxu0 0.0
    %1994 = vmatpush1.msra.mxu0 0.0
    %1995 = vmatprep.subr.mxu0 0.0
    %1996 = vmatpush1.msra.mxu0 0.0
    %1997 = vmatprep.subr.mxu0 0.0
    %1998 = vmatpush1.msra.mxu0 0.0
    %1999 = vmatprep.subr.mxu0 0.0
    %2000 = vmatpush1.msra.mxu0 0.0
    %2001 = vmatprep.subr.mxu0 0.0
    %2002 = vmatpush1.msra.mxu0 0.0
    %2003 = vmatprep.subr.mxu0 0.0
    %2004 = vmatpush1.msra.mxu0 0.0
    %2005 = vmatprep.subr.mxu0 0.0
    %2006 = vmatpush1.msra.mxu0 0.0
    %2007 = vmatprep.subr.mxu0 0.0
    %2008 = vmatpush1.msra.mxu0 0.0
    %2009 = vmatprep.subr.mxu0 0.0
    %2010 = vmatpush1.msra.mxu0 0.0
    %2011 = vmatprep.mubr.f32.mxu0 0.0
    %2012 = vmatmul.mubr.f32.gmra.mrb[0].mxu0 %v1790
    %v2013 = vpop.f32.mrb[0].mxu0
    %v2014 = vadd.f32 0.0, %v2013
    %v2015 = vpop.f32.mrb[0].mxu0
    %v2016 = vadd.f32 0.0, %v2015
    %2017 = vdwg.mxu0
    %2018 = vmatprep.subr.mxu0 %v1727
    %2019 = vmatpush1.msra.mxu0 %v1726
    %2020 = vmatprep.subr.mxu0 %v1731
    %2021 = vmatpush1.msra.mxu0 %v1730
    %2022 = vmatprep.subr.mxu0 %v1735
    %2023 = vmatpush1.msra.mxu0 %v1734
    %2024 = vmatprep.subr.mxu0 %v1739
    %2025 = vmatpush1.msra.mxu0 %v1738
    %2026 = vmatprep.subr.mxu0 %v1743
    %2027 = vmatpush1.msra.mxu0 %v1742
    %2028 = vmatprep.subr.mxu0 %v1747
    %2029 = vmatpush1.msra.mxu0 %v1746
    %2030 = vmatprep.subr.mxu0 %v1751
    %2031 = vmatpush1.msra.mxu0 %v1750
    %2032 = vmatprep.subr.mxu0 %v1755
    %2033 = vmatpush1.msra.mxu0 %v1754
    %2034 = vmatprep.subr.mxu0 %v1759
    %2035 = vmatpush1.msra.mxu0 %v1758
    %2036 = vmatprep.subr.mxu0 %v1763
    %2037 = vmatpush1.msra.mxu0 %v1762
    %2038 = vmatprep.subr.mxu0 %v1767
    %2039 = vmatpush1.msra.mxu0 %v1766
    %2040 = vmatprep.subr.mxu0 %v1771
    %2041 = vmatpush1.msra.mxu0 %v1770
    %2042 = vmatprep.subr.mxu0 %v1775
    %2043 = vmatpush1.msra.mxu0 %v1774
    %2044 = vmatprep.subr.mxu0 %v1779
    %2045 = vmatpush1.msra.mxu0 %v1778
    %2046 = vmatprep.subr.mxu0 %v1783
    %2047 = vmatpush1.msra.mxu0 %v1782
    %2048 = vmatprep.subr.mxu0 %v1787
    %2049 = vmatpush1.msra.mxu0 %v1786
    %2050 = vmatprep.subr.mxu0 0.0
    %2051 = vmatpush1.msra.mxu0 0.0
    %2052 = vmatprep.subr.mxu0 0.0
    %2053 = vmatpush1.msra.mxu0 0.0
    %2054 = vmatprep.subr.mxu0 0.0
    %2055 = vmatpush1.msra.mxu0 0.0
    %2056 = vmatprep.subr.mxu0 0.0
    %2057 = vmatpush1.msra.mxu0 0.0
    %2058 = vmatprep.subr.mxu0 0.0
    %2059 = vmatpush1.msra.mxu0 0.0
    %2060 = vmatprep.subr.mxu0 0.0
    %2061 = vmatpush1.msra.mxu0 0.0
    %2062 = vmatprep.subr.mxu0 0.0
    %2063 = vmatpush1.msra.mxu0 0.0
    %2064 = vmatprep.subr.mxu0 0.0
    %2065 = vmatpush1.msra.mxu0 0.0
    %2066 = vmatprep.subr.mxu0 0.0
    %2067 = vmatpush1.msra.mxu0 0.0
    %2068 = vmatprep.subr.mxu0 0.0
    %2069 = vmatpush1.msra.mxu0 0.0
    %2070 = vmatprep.subr.mxu0 0.0
    %2071 = vmatpush1.msra.mxu0 0.0
    %2072 = vmatprep.subr.mxu0 0.0
    %2073 = vmatpush1.msra.mxu0 0.0
    %2074 = vmatprep.subr.mxu0 0.0
    %2075 = vmatpush1.msra.mxu0 0.0
    %2076 = vmatprep.subr.mxu0 0.0
    %2077 = vmatpush1.msra.mxu0 0.0
    %2078 = vmatprep.subr.mxu0 0.0
    %2079 = vmatpush1.msra.mxu0 0.0
    %2080 = vmatprep.subr.mxu0 0.0
    %2081 = vmatpush1.msra.mxu0 0.0
    %2082 = vmatprep.mubr.f32.mxu0 0.0
    %2083 = vmatmul.mubr.f32.gmra.mrb[0].mxu0 %v1790
    %v2084 = vpop.f32.mrb[0].mxu0
    %v2085 = vadd.f32 0.0, %v2084
    %v2086 = vpop.f32.mrb[0].mxu0
    %v2087 = vadd.f32 0.0, %v2086
    %2088 = vdwg.mxu0
    %v2089 = vadd.f32 %v1943, %v2014
    %v2090 = vadd.f32 %v1944, %v2016
    %v2091 = vadd.f32 %v1945, %v2085
    %v2092 = vadd.f32 %v1946, %v2087
    %v2093 = vxor.u32 %v1938, 2147483648
    %v2094 = vmul.f32 %v2093, 1.442695
    %v2095 = vpow.pop %v2094
    %v2096 = vadd.f32 %v2095, 1.0
    %v2097 = vrcp.pop %v2096
    %v2098 = vmul.f32 1.0, %v2097
    %v2099 = vxor.u32 %v1939, 2147483648
    %v2100 = vmul.f32 %v2099, 1.442695
    %v2101 = vpow.pop %v2100
    %v2102 = vadd.f32 %v2101, 1.0
    %v2103 = vrcp.pop %v2102
    %v2104 = vmul.f32 1.0, %v2103
    %v2105 = vtanh.pop %v1940
    %v2106 = vxor.u32 %v1941, 2147483648
    %v2107 = vmul.f32 %v2106, 1.442695
    %v2108 = vpow.pop %v2107
    %v2109 = vadd.f32 %v2108, 1.0
    %v2110 = vrcp.pop %v2109
    %v2111 = vmul.f32 1.0, %v2110
    %v2112 = vmul.f32 %v2104, %v1789
    %v2113 = vmul.f32 %v2098, %v2105
    %v2114 = vadd.f32 %v2112, %v2113
    %v2115 = vtanh.pop %v2114
    %v2116 = vmul.f32 %v2111, %v2115
    %v2117 = vxor.u32 %v2089, 2147483648
    %v2118 = vmul.f32 %v2117, 1.442695
    %v2119 = vpow.pop %v2118
    %v2120 = vadd.f32 %v2119, 1.0
    %v2121 = vrcp.pop %v2120
    %v2122 = vmul.f32 1.0, %v2121
    %v2123 = vxor.u32 %v2090, 2147483648
    %v2124 = vmul.f32 %v2123, 1.442695
    %v2125 = vpow.pop %v2124
    %v2126 = vadd.f32 %v2125, 1.0
    %v2127 = vrcp.pop %v2126
    %v2128 = vmul.f32 1.0, %v2127
    %v2129 = vtanh.pop %v2091
    %v2130 = vxor.u32 %v2092, 2147483648
    %v2131 = vmul.f32 %v2130, 1.442695
    %v2132 = vpow.pop %v2131
    %v2133 = vadd.f32 %v2132, 1.0
    %v2134 = vrcp.pop %v2133
    %v2135 = vmul.f32 1.0, %v2134
    %v2136 = vmul.f32 %v2128, %v1791
    %v2137 = vmul.f32 %v2122, %v2129
    %v2138 = vadd.f32 %v2136, %v2137
    %v2139 = vtanh.pop %v2138
    %v2140 = vmul.f32 %v2135, %v2139
    %2141 = vst [vmem:[#allocation8] sm:$0xff] %v2116
    %s2142 = scalar_lea.vmem [#allocation9], 56
    %2143 = vst [vmem:[%s2142] sm:$0xff] %v2140
    %s2144 = scalar_lea.vmem [#allocation2], 32
    %v2145 = vld [vmem:[%s2144] sm:$0xff]
    %v2146 = vld [vmem:[%s2144 + $0x8] sm:$0xff]
    %v2147 = vld [vmem:[%s2144 + $0x10] sm:$0xff]
    %v2148 = vld [vmem:[%s2144 + $0x18] sm:$0xff]
    %2149 = vmatprep.subr.mxu0 %v1661
    %2150 = vmatpush1.msra.mxu0 %v1660
    %2151 = vmatprep.subr.mxu0 %v1665
    %2152 = vmatpush1.msra.mxu0 %v1664
    %2153 = vmatprep.subr.mxu0 %v1669
    %2154 = vmatpush1.msra.mxu0 %v1668
    %2155 = vmatprep.subr.mxu0 %v1673
    %2156 = vmatpush1.msra.mxu0 %v1672
    %2157 = vmatprep.subr.mxu0 %v1677
    %2158 = vmatpush1.msra.mxu0 %v1676
    %2159 = vmatprep.subr.mxu0 %v1681
    %2160 = vmatpush1.msra.mxu0 %v1680
    %2161 = vmatprep.subr.mxu0 %v1685
    %2162 = vmatpush1.msra.mxu0 %v1684
    %2163 = vmatprep.subr.mxu0 %v1689
    %2164 = vmatpush1.msra.mxu0 %v1688
    %2165 = vmatprep.subr.mxu0 %v1693
    %2166 = vmatpush1.msra.mxu0 %v1692
    %2167 = vmatprep.subr.mxu0 %v1697
    %2168 = vmatpush1.msra.mxu0 %v1696
    %2169 = vmatprep.subr.mxu0 %v1701
    %2170 = vmatpush1.msra.mxu0 %v1700
    %2171 = vmatprep.subr.mxu0 %v1705
    %2172 = vmatpush1.msra.mxu0 %v1704
    %2173 = vmatprep.subr.mxu0 %v1709
    %2174 = vmatpush1.msra.mxu0 %v1708
    %2175 = vmatprep.subr.mxu0 %v1713
    %2176 = vmatpush1.msra.mxu0 %v1712
    %2177 = vmatprep.subr.mxu0 %v1717
    %2178 = vmatpush1.msra.mxu0 %v1716
    %2179 = vmatprep.subr.mxu0 %v1721
    %2180 = vmatpush1.msra.mxu0 %v1720
    %2181 = vmatprep.subr.mxu0 0.0
    %2182 = vmatpush1.msra.mxu0 0.0
    %2183 = vmatprep.subr.mxu0 0.0
    %2184 = vmatpush1.msra.mxu0 0.0
    %2185 = vmatprep.subr.mxu0 0.0
    %2186 = vmatpush1.msra.mxu0 0.0
    %2187 = vmatprep.subr.mxu0 0.0
    %2188 = vmatpush1.msra.mxu0 0.0
    %2189 = vmatprep.subr.mxu0 0.0
    %2190 = vmatpush1.msra.mxu0 0.0
    %2191 = vmatprep.subr.mxu0 0.0
    %2192 = vmatpush1.msra.mxu0 0.0
    %2193 = vmatprep.subr.mxu0 0.0
    %2194 = vmatpush1.msra.mxu0 0.0
    %2195 = vmatprep.subr.mxu0 0.0
    %2196 = vmatpush1.msra.mxu0 0.0
    %2197 = vmatprep.subr.mxu0 0.0
    %2198 = vmatpush1.msra.mxu0 0.0
    %2199 = vmatprep.subr.mxu0 0.0
    %2200 = vmatpush1.msra.mxu0 0.0
    %2201 = vmatprep.subr.mxu0 0.0
    %2202 = vmatpush1.msra.mxu0 0.0
    %2203 = vmatprep.subr.mxu0 0.0
    %2204 = vmatpush1.msra.mxu0 0.0
    %2205 = vmatprep.subr.mxu0 0.0
    %2206 = vmatpush1.msra.mxu0 0.0
    %2207 = vmatprep.subr.mxu0 0.0
    %2208 = vmatpush1.msra.mxu0 0.0
    %2209 = vmatprep.subr.mxu0 0.0
    %2210 = vmatpush1.msra.mxu0 0.0
    %2211 = vmatprep.subr.mxu0 0.0
    %2212 = vmatpush1.msra.mxu0 0.0
    %2213 = vmatprep.mubr.f32.mxu0 0.0
    %2214 = vmatmul.mubr.f32.gmra.mrb[0].mxu0 %v2116
    %v2215 = vpop.f32.mrb[0].mxu0
    %v2216 = vadd.f32 0.0, %v2215
    %v2217 = vpop.f32.mrb[0].mxu0
    %v2218 = vadd.f32 0.0, %v2217
    %2219 = vdwg.mxu0
    %2220 = vmatprep.subr.mxu0 %v1663
    %2221 = vmatpush1.msra.mxu0 %v1662
    %2222 = vmatprep.subr.mxu0 %v1667
    %2223 = vmatpush1.msra.mxu0 %v1666
    %2224 = vmatprep.subr.mxu0 %v1671
    %2225 = vmatpush1.msra.mxu0 %v1670
    %2226 = vmatprep.subr.mxu0 %v1675
    %2227 = vmatpush1.msra.mxu0 %v1674
    %2228 = vmatprep.subr.mxu0 %v1679
    %2229 = vmatpush1.msra.mxu0 %v1678
    %2230 = vmatprep.subr.mxu0 %v1683
    %2231 = vmatpush1.msra.mxu0 %v1682
    %2232 = vmatprep.subr.mxu0 %v1687
    %2233 = vmatpush1.msra.mxu0 %v1686
    %2234 = vmatprep.subr.mxu0 %v1691
    %2235 = vmatpush1.msra.mxu0 %v1690
    %2236 = vmatprep.subr.mxu0 %v1695
    %2237 = vmatpush1.msra.mxu0 %v1694
    %2238 = vmatprep.subr.mxu0 %v1699
    %2239 = vmatpush1.msra.mxu0 %v1698
    %2240 = vmatprep.subr.mxu0 %v1703
    %2241 = vmatpush1.msra.mxu0 %v1702
    %2242 = vmatprep.subr.mxu0 %v1707
    %2243 = vmatpush1.msra.mxu0 %v1706
    %2244 = vmatprep.subr.mxu0 %v1711
    %2245 = vmatpush1.msra.mxu0 %v1710
    %2246 = vmatprep.subr.mxu0 %v1715
    %2247 = vmatpush1.msra.mxu0 %v1714
    %2248 = vmatprep.subr.mxu0 %v1719
    %2249 = vmatpush1.msra.mxu0 %v1718
    %2250 = vmatprep.subr.mxu0 %v1723
    %2251 = vmatpush1.msra.mxu0 %v1722
    %2252 = vmatprep.subr.mxu0 0.0
    %2253 = vmatpush1.msra.mxu0 0.0
    %2254 = vmatprep.subr.mxu0 0.0
    %2255 = vmatpush1.msra.mxu0 0.0
    %2256 = vmatprep.subr.mxu0 0.0
    %2257 = vmatpush1.msra.mxu0 0.0
    %2258 = vmatprep.subr.mxu0 0.0
    %2259 = vmatpush1.msra.mxu0 0.0
    %2260 = vmatprep.subr.mxu0 0.0
    %2261 = vmatpush1.msra.mxu0 0.0
    %2262 = vmatprep.subr.mxu0 0.0
    %2263 = vmatpush1.msra.mxu0 0.0
    %2264 = vmatprep.subr.mxu0 0.0
    %2265 = vmatpush1.msra.mxu0 0.0
    %2266 = vmatprep.subr.mxu0 0.0
    %2267 = vmatpush1.msra.mxu0 0.0
    %2268 = vmatprep.subr.mxu0 0.0
    %2269 = vmatpush1.msra.mxu0 0.0
    %2270 = vmatprep.subr.mxu0 0.0
    %2271 = vmatpush1.msra.mxu0 0.0
    %2272 = vmatprep.subr.mxu0 0.0
    %2273 = vmatpush1.msra.mxu0 0.0
    %2274 = vmatprep.subr.mxu0 0.0
    %2275 = vmatpush1.msra.mxu0 0.0
    %2276 = vmatprep.subr.mxu0 0.0
    %2277 = vmatpush1.msra.mxu0 0.0
    %2278 = vmatprep.subr.mxu0 0.0
    %2279 = vmatpush1.msra.mxu0 0.0
    %2280 = vmatprep.subr.mxu0 0.0
    %2281 = vmatpush1.msra.mxu0 0.0
    %2282 = vmatprep.subr.mxu0 0.0
    %2283 = vmatpush1.msra.mxu0 0.0
    %2284 = vmatprep.mubr.f32.mxu0 0.0
    %2285 = vmatmul.mubr.f32.gmra.mrb[0].mxu0 %v2116
    %v2286 = vpop.f32.mrb[0].mxu0
    %v2287 = vadd.f32 0.0, %v2286
    %v2288 = vpop.f32.mrb[0].mxu0
    %v2289 = vadd.f32 0.0, %v2288
    %2290 = vdwg.mxu0
    %v2291 = vadd.f32 %v2145, %v2216
    %v2292 = vadd.f32 %v2146, %v2218
    %v2293 = vadd.f32 %v2147, %v2287
    %v2294 = vadd.f32 %v2148, %v2289
    %s2295 = scalar_lea.vmem [#allocation3], 192
    %v2296 = vld [vmem:[%s2295] sm:$0xff]
    %v2297 = vld [vmem:[%s2295 + $0x8] sm:$0xff]
    %v2298 = vld [vmem:[%s2295 + $0x10] sm:$0xff]
    %v2299 = vld [vmem:[%s2295 + $0x18] sm:$0xff]
    %2300 = vmatprep.subr.mxu0 %v1725
    %2301 = vmatpush1.msra.mxu0 %v1724
    %2302 = vmatprep.subr.mxu0 %v1729
    %2303 = vmatpush1.msra.mxu0 %v1728
    %2304 = vmatprep.subr.mxu0 %v1733
    %2305 = vmatpush1.msra.mxu0 %v1732
    %2306 = vmatprep.subr.mxu0 %v1737
    %2307 = vmatpush1.msra.mxu0 %v1736
    %2308 = vmatprep.subr.mxu0 %v1741
    %2309 = vmatpush1.msra.mxu0 %v1740
    %2310 = vmatprep.subr.mxu0 %v1745
    %2311 = vmatpush1.msra.mxu0 %v1744
    %2312 = vmatprep.subr.mxu0 %v1749
    %2313 = vmatpush1.msra.mxu0 %v1748
    %2314 = vmatprep.subr.mxu0 %v1753
    %2315 = vmatpush1.msra.mxu0 %v1752
    %2316 = vmatprep.subr.mxu0 %v1757
    %2317 = vmatpush1.msra.mxu0 %v1756
    %2318 = vmatprep.subr.mxu0 %v1761
    %2319 = vmatpush1.msra.mxu0 %v1760
    %2320 = vmatprep.subr.mxu0 %v1765
    %2321 = vmatpush1.msra.mxu0 %v1764
    %2322 = vmatprep.subr.mxu0 %v1769
    %2323 = vmatpush1.msra.mxu0 %v1768
    %2324 = vmatprep.subr.mxu0 %v1773
    %2325 = vmatpush1.msra.mxu0 %v1772
    %2326 = vmatprep.subr.mxu0 %v1777
    %2327 = vmatpush1.msra.mxu0 %v1776
    %2328 = vmatprep.subr.mxu0 %v1781
    %2329 = vmatpush1.msra.mxu0 %v1780
    %2330 = vmatprep.subr.mxu0 %v1785
    %2331 = vmatpush1.msra.mxu0 %v1784
    %2332 = vmatprep.subr.mxu0 0.0
    %2333 = vmatpush1.msra.mxu0 0.0
    %2334 = vmatprep.subr.mxu0 0.0
    %2335 = vmatpush1.msra.mxu0 0.0
    %2336 = vmatprep.subr.mxu0 0.0
    %2337 = vmatpush1.msra.mxu0 0.0
    %2338 = vmatprep.subr.mxu0 0.0
    %2339 = vmatpush1.msra.mxu0 0.0
    %2340 = vmatprep.subr.mxu0 0.0
    %2341 = vmatpush1.msra.mxu0 0.0
    %2342 = vmatprep.subr.mxu0 0.0
    %2343 = vmatpush1.msra.mxu0 0.0
    %2344 = vmatprep.subr.mxu0 0.0
    %2345 = vmatpush1.msra.mxu0 0.0
    %2346 = vmatprep.subr.mxu0 0.0
    %2347 = vmatpush1.msra.mxu0 0.0
    %2348 = vmatprep.subr.mxu0 0.0
    %2349 = vmatpush1.msra.mxu0 0.0
    %2350 = vmatprep.subr.mxu0 0.0
    %2351 = vmatpush1.msra.mxu0 0.0
    %2352 = vmatprep.subr.mxu0 0.0
    %2353 = vmatpush1.msra.mxu0 0.0
    %2354 = vmatprep.subr.mxu0 0.0
    %2355 = vmatpush1.msra.mxu0 0.0
    %2356 = vmatprep.subr.mxu0 0.0
    %2357 = vmatpush1.msra.mxu0 0.0
    %2358 = vmatprep.subr.mxu0 0.0
    %2359 = vmatpush1.msra.mxu0 0.0
    %2360 = vmatprep.subr.mxu0 0.0
    %2361 = vmatpush1.msra.mxu0 0.0
    %2362 = vmatprep.subr.mxu0 0.0
    %2363 = vmatpush1.msra.mxu0 0.0
    %2364 = vmatprep.mubr.f32.mxu0 0.0
    %2365 = vmatmul.mubr.f32.gmra.mrb[0].mxu0 %v2140
    %v2366 = vpop.f32.mrb[0].mxu0
    %v2367 = vadd.f32 0.0, %v2366
    %v2368 = vpop.f32.mrb[0].mxu0
    %v2369 = vadd.f32 0.0, %v2368
    %2370 = vdwg.mxu0
    %2371 = vmatprep.subr.mxu0 %v1727
    %2372 = vmatpush1.msra.mxu0 %v1726
    %2373 = vmatprep.subr.mxu0 %v1731
    %2374 = vmatpush1.msra.mxu0 %v1730
    %2375 = vmatprep.subr.mxu0 %v1735
    %2376 = vmatpush1.msra.mxu0 %v1734
    %2377 = vmatprep.subr.mxu0 %v1739
    %2378 = vmatpush1.msra.mxu0 %v1738
    %2379 = vmatprep.subr.mxu0 %v1743
    %2380 = vmatpush1.msra.mxu0 %v1742
    %2381 = vmatprep.subr.mxu0 %v1747
    %2382 = vmatpush1.msra.mxu0 %v1746
    %2383 = vmatprep.subr.mxu0 %v1751
    %2384 = vmatpush1.msra.mxu0 %v1750
    %2385 = vmatprep.subr.mxu0 %v1755
    %2386 = vmatpush1.msra.mxu0 %v1754
    %2387 = vmatprep.subr.mxu0 %v1759
    %2388 = vmatpush1.msra.mxu0 %v1758
    %2389 = vmatprep.subr.mxu0 %v1763
    %2390 = vmatpush1.msra.mxu0 %v1762
    %2391 = vmatprep.subr.mxu0 %v1767
    %2392 = vmatpush1.msra.mxu0 %v1766
    %2393 = vmatprep.subr.mxu0 %v1771
    %2394 = vmatpush1.msra.mxu0 %v1770
    %2395 = vmatprep.subr.mxu0 %v1775
    %2396 = vmatpush1.msra.mxu0 %v1774
    %2397 = vmatprep.subr.mxu0 %v1779
    %2398 = vmatpush1.msra.mxu0 %v1778
    %2399 = vmatprep.subr.mxu0 %v1783
    %2400 = vmatpush1.msra.mxu0 %v1782
    %2401 = vmatprep.subr.mxu0 %v1787
    %2402 = vmatpush1.msra.mxu0 %v1786
    %2403 = vmatprep.subr.mxu0 0.0
    %2404 = vmatpush1.msra.mxu0 0.0
    %2405 = vmatprep.subr.mxu0 0.0
    %2406 = vmatpush1.msra.mxu0 0.0
    %2407 = vmatprep.subr.mxu0 0.0
    %2408 = vmatpush1.msra.mxu0 0.0
    %2409 = vmatprep.subr.mxu0 0.0
    %2410 = vmatpush1.msra.mxu0 0.0
    %2411 = vmatprep.subr.mxu0 0.0
    %2412 = vmatpush1.msra.mxu0 0.0
    %2413 = vmatprep.subr.mxu0 0.0
    %2414 = vmatpush1.msra.mxu0 0.0
    %2415 = vmatprep.subr.mxu0 0.0
    %2416 = vmatpush1.msra.mxu0 0.0
    %2417 = vmatprep.subr.mxu0 0.0
    %2418 = vmatpush1.msra.mxu0 0.0
    %2419 = vmatprep.subr.mxu0 0.0
    %2420 = vmatpush1.msra.mxu0 0.0
    %2421 = vmatprep.subr.mxu0 0.0
    %2422 = vmatpush1.msra.mxu0 0.0
    %2423 = vmatprep.subr.mxu0 0.0
    %2424 = vmatpush1.msra.mxu0 0.0
    %2425 = vmatprep.subr.mxu0 0.0
    %2426 = vmatpush1.msra.mxu0 0.0
    %2427 = vmatprep.subr.mxu0 0.0
    %2428 = vmatpush1.msra.mxu0 0.0
    %2429 = vmatprep.subr.mxu0 0.0
    %2430 = vmatpush1.msra.mxu0 0.0
    %2431 = vmatprep.subr.mxu0 0.0
    %2432 = vmatpush1.msra.mxu0 0.0
    %2433 = vmatprep.subr.mxu0 0.0
    %2434 = vmatpush1.msra.mxu0 0.0
    %2435 = vmatprep.mubr.f32.mxu0 0.0
    %2436 = vmatmul.mubr.f32.gmra.mrb[0].mxu0 %v2140
    %v2437 = vpop.f32.mrb[0].mxu0
    %v2438 = vadd.f32 0.0, %v2437
    %v2439 = vpop.f32.mrb[0].mxu0
    %v2440 = vadd.f32 0.0, %v2439
    %2441 = vdwg.mxu0
    %v2442 = vadd.f32 %v2296, %v2367
    %v2443 = vadd.f32 %v2297, %v2369
    %v2444 = vadd.f32 %v2298, %v2438
    %v2445 = vadd.f32 %v2299, %v2440
    %v2446 = vxor.u32 %v2291, 2147483648
    %v2447 = vmul.f32 %v2446, 1.442695
    %v2448 = vpow.pop %v2447
    %v2449 = vadd.f32 %v2448, 1.0
    %v2450 = vrcp.pop %v2449
    %v2451 = vmul.f32 1.0, %v2450
    %v2452 = vxor.u32 %v2292, 2147483648
    %v2453 = vmul.f32 %v2452, 1.442695
    %v2454 = vpow.pop %v2453
    %v2455 = vadd.f32 %v2454, 1.0
    %v2456 = vrcp.pop %v2455
    %v2457 = vmul.f32 1.0, %v2456
    %v2458 = vtanh.pop %v2293
    %v2459 = vxor.u32 %v2294, 2147483648
    %v2460 = vmul.f32 %v2459, 1.442695
    %v2461 = vpow.pop %v2460
    %v2462 = vadd.f32 %v2461, 1.0
    %v2463 = vrcp.pop %v2462
    %v2464 = vmul.f32 1.0, %v2463
    %v2465 = vmul.f32 %v2457, %v2114
    %v2466 = vmul.f32 %v2451, %v2458
    %v2467 = vadd.f32 %v2465, %v2466
    %v2468 = vtanh.pop %v2467
    %v2469 = vmul.f32 %v2464, %v2468
    %v2470 = vxor.u32 %v2442, 2147483648
    %v2471 = vmul.f32 %v2470, 1.442695
    %v2472 = vpow.pop %v2471
    %v2473 = vadd.f32 %v2472, 1.0
    %v2474 = vrcp.pop %v2473
    %v2475 = vmul.f32 1.0, %v2474
    %v2476 = vxor.u32 %v2443, 2147483648
    %v2477 = vmul.f32 %v2476, 1.442695
    %v2478 = vpow.pop %v2477
    %v2479 = vadd.f32 %v2478, 1.0
    %v2480 = vrcp.pop %v2479
    %v2481 = vmul.f32 1.0, %v2480
    %v2482 = vtanh.pop %v2444
    %v2483 = vxor.u32 %v2445, 2147483648
    %v2484 = vmul.f32 %v2483, 1.442695
    %v2485 = vpow.pop %v2484
    %v2486 = vadd.f32 %v2485, 1.0
    %v2487 = vrcp.pop %v2486
    %v2488 = vmul.f32 1.0, %v2487
    %v2489 = vmul.f32 %v2481, %v2138
    %v2490 = vmul.f32 %v2475, %v2482
    %v2491 = vadd.f32 %v2489, %v2490
    %v2492 = vtanh.pop %v2491
    %v2493 = vmul.f32 %v2488, %v2492
    %s2494 = scalar_lea.vmem [#allocation8], 8
    %2495 = vst [vmem:[%s2494] sm:$0xff] %v2469
    %s2496 = scalar_lea.vmem [#allocation9], 48
    %2497 = vst [vmem:[%s2496] sm:$0xff] %v2493
    %s2498 = scalar_lea.vmem [#allocation2], 64
    %v2499 = vld [vmem:[%s2498] sm:$0xff]
    %v2500 = vld [vmem:[%s2498 + $0x8] sm:$0xff]
    %v2501 = vld [vmem:[%s2498 + $0x10] sm:$0xff]
    %v2502 = vld [vmem:[%s2498 + $0x18] sm:$0xff]
    %2503 = vmatprep.subr.mxu0 %v1661
    %2504 = vmatpush1.msra.mxu0 %v1660
    %2505 = vmatprep.subr.mxu0 %v1665
    %2506 = vmatpush1.msra.mxu0 %v1664
    %2507 = vmatprep.subr.mxu0 %v1669
    %2508 = vmatpush1.msra.mxu0 %v1668
    %2509 = vmatprep.subr.mxu0 %v1673
    %2510 = vmatpush1.msra.mxu0 %v1672
    %2511 = vmatprep.subr.mxu0 %v1677
    %2512 = vmatpush1.msra.mxu0 %v1676
    %2513 = vmatprep.subr.mxu0 %v1681
    %2514 = vmatpush1.msra.mxu0 %v1680
    %2515 = vmatprep.subr.mxu0 %v1685
    %2516 = vmatpush1.msra.mxu0 %v1684
    %2517 = vmatprep.subr.mxu0 %v1689
    %2518 = vmatpush1.msra.mxu0 %v1688
    %2519 = vmatprep.subr.mxu0 %v1693
    %2520 = vmatpush1.msra.mxu0 %v1692
    %2521 = vmatprep.subr.mxu0 %v1697
    %2522 = vmatpush1.msra.mxu0 %v1696
    %2523 = vmatprep.subr.mxu0 %v1701
    %2524 = vmatpush1.msra.mxu0 %v1700
    %2525 = vmatprep.subr.mxu0 %v1705
    %2526 = vmatpush1.msra.mxu0 %v1704
    %2527 = vmatprep.subr.mxu0 %v1709
    %2528 = vmatpush1.msra.mxu0 %v1708
    %2529 = vmatprep.subr.mxu0 %v1713
    %2530 = vmatpush1.msra.mxu0 %v1712
    %2531 = vmatprep.subr.mxu0 %v1717
    %2532 = vmatpush1.msra.mxu0 %v1716
    %2533 = vmatprep.subr.mxu0 %v1721
    %2534 = vmatpush1.msra.mxu0 %v1720
    %2535 = vmatprep.subr.mxu0 0.0
    %2536 = vmatpush1.msra.mxu0 0.0
    %2537 = vmatprep.subr.mxu0 0.0
    %2538 = vmatpush1.msra.mxu0 0.0
    %2539 = vmatprep.subr.mxu0 0.0
    %2540 = vmatpush1.msra.mxu0 0.0
    %2541 = vmatprep.subr.mxu0 0.0
    %2542 = vmatpush1.msra.mxu0 0.0
    %2543 = vmatprep.subr.mxu0 0.0
    %2544 = vmatpush1.msra.mxu0 0.0
    %2545 = vmatprep.subr.mxu0 0.0
    %2546 = vmatpush1.msra.mxu0 0.0
    %2547 = vmatprep.subr.mxu0 0.0
    %2548 = vmatpush1.msra.mxu0 0.0
    %2549 = vmatprep.subr.mxu0 0.0
    %2550 = vmatpush1.msra.mxu0 0.0
    %2551 = vmatprep.subr.mxu0 0.0
    %2552 = vmatpush1.msra.mxu0 0.0
    %2553 = vmatprep.subr.mxu0 0.0
    %2554 = vmatpush1.msra.mxu0 0.0
    %2555 = vmatprep.subr.mxu0 0.0
    %2556 = vmatpush1.msra.mxu0 0.0
    %2557 = vmatprep.subr.mxu0 0.0
    %2558 = vmatpush1.msra.mxu0 0.0
    %2559 = vmatprep.subr.mxu0 0.0
    %2560 = vmatpush1.msra.mxu0 0.0
    %2561 = vmatprep.subr.mxu0 0.0
    %2562 = vmatpush1.msra.mxu0 0.0
    %2563 = vmatprep.subr.mxu0 0.0
    %2564 = vmatpush1.msra.mxu0 0.0
    %2565 = vmatprep.subr.mxu0 0.0
    %2566 = vmatpush1.msra.mxu0 0.0
    %2567 = vmatprep.mubr.f32.mxu0 0.0
    %2568 = vmatmul.mubr.f32.gmra.mrb[0].mxu0 %v2469
    %v2569 = vpop.f32.mrb[0].mxu0
    %v2570 = vadd.f32 0.0, %v2569
    %v2571 = vpop.f32.mrb[0].mxu0
    %v2572 = vadd.f32 0.0, %v2571
    %2573 = vdwg.mxu0
    %2574 = vmatprep.subr.mxu0 %v1663
    %2575 = vmatpush1.msra.mxu0 %v1662
    %2576 = vmatprep.subr.mxu0 %v1667
    %2577 = vmatpush1.msra.mxu0 %v1666
    %2578 = vmatprep.subr.mxu0 %v1671
    %2579 = vmatpush1.msra.mxu0 %v1670
    %2580 = vmatprep.subr.mxu0 %v1675
    %2581 = vmatpush1.msra.mxu0 %v1674
    %2582 = vmatprep.subr.mxu0 %v1679
    %2583 = vmatpush1.msra.mxu0 %v1678
    %2584 = vmatprep.subr.mxu0 %v1683
    %2585 = vmatpush1.msra.mxu0 %v1682
    %2586 = vmatprep.subr.mxu0 %v1687
    %2587 = vmatpush1.msra.mxu0 %v1686
    %2588 = vmatprep.subr.mxu0 %v1691
    %2589 = vmatpush1.msra.mxu0 %v1690
    %2590 = vmatprep.subr.mxu0 %v1695
    %2591 = vmatpush1.msra.mxu0 %v1694
    %2592 = vmatprep.subr.mxu0 %v1699
    %2593 = vmatpush1.msra.mxu0 %v1698
    %2594 = vmatprep.subr.mxu0 %v1703
    %2595 = vmatpush1.msra.mxu0 %v1702
    %2596 = vmatprep.subr.mxu0 %v1707
    %2597 = vmatpush1.msra.mxu0 %v1706
    %2598 = vmatprep.subr.mxu0 %v1711
    %2599 = vmatpush1.msra.mxu0 %v1710
    %2600 = vmatprep.subr.mxu0 %v1715
    %2601 = vmatpush1.msra.mxu0 %v1714
    %2602 = vmatprep.subr.mxu0 %v1719
    %2603 = vmatpush1.msra.mxu0 %v1718
    %2604 = vmatprep.subr.mxu0 %v1723
    %2605 = vmatpush1.msra.mxu0 %v1722
    %2606 = vmatprep.subr.mxu0 0.0
    %2607 = vmatpush1.msra.mxu0 0.0
    %2608 = vmatprep.subr.mxu0 0.0
    %2609 = vmatpush1.msra.mxu0 0.0
    %2610 = vmatprep.subr.mxu0 0.0
    %2611 = vmatpush1.msra.mxu0 0.0
    %2612 = vmatprep.subr.mxu0 0.0
    %2613 = vmatpush1.msra.mxu0 0.0
    %2614 = vmatprep.subr.mxu0 0.0
    %2615 = vmatpush1.msra.mxu0 0.0
    %2616 = vmatprep.subr.mxu0 0.0
    %2617 = vmatpush1.msra.mxu0 0.0
    %2618 = vmatprep.subr.mxu0 0.0
    %2619 = vmatpush1.msra.mxu0 0.0
    %2620 = vmatprep.subr.mxu0 0.0
    %2621 = vmatpush1.msra.mxu0 0.0
    %2622 = vmatprep.subr.mxu0 0.0
    %2623 = vmatpush1.msra.mxu0 0.0
    %2624 = vmatprep.subr.mxu0 0.0
    %2625 = vmatpush1.msra.mxu0 0.0
    %2626 = vmatprep.subr.mxu0 0.0
    %2627 = vmatpush1.msra.mxu0 0.0
    %2628 = vmatprep.subr.mxu0 0.0
    %2629 = vmatpush1.msra.mxu0 0.0
    %2630 = vmatprep.subr.mxu0 0.0
    %2631 = vmatpush1.msra.mxu0 0.0
    %2632 = vmatprep.subr.mxu0 0.0
    %2633 = vmatpush1.msra.mxu0 0.0
    %2634 = vmatprep.subr.mxu0 0.0
    %2635 = vmatpush1.msra.mxu0 0.0
    %2636 = vmatprep.subr.mxu0 0.0
    %2637 = vmatpush1.msra.mxu0 0.0
    %2638 = vmatprep.mubr.f32.mxu0 0.0
    %2639 = vmatmul.mubr.f32.gmra.mrb[0].mxu0 %v2469
    %v2640 = vpop.f32.mrb[0].mxu0
    %v2641 = vadd.f32 0.0, %v2640
    %v2642 = vpop.f32.mrb[0].mxu0
    %v2643 = vadd.f32 0.0, %v2642
    %2644 = vdwg.mxu0
    %v2645 = vadd.f32 %v2499, %v2570
    %v2646 = vadd.f32 %v2500, %v2572
    %v2647 = vadd.f32 %v2501, %v2641
    %v2648 = vadd.f32 %v2502, %v2643
    %s2649 = scalar_lea.vmem [#allocation3], 160
    %v2650 = vld [vmem:[%s2649] sm:$0xff]
    %v2651 = vld [vmem:[%s2649 + $0x8] sm:$0xff]
    %v2652 = vld [vmem:[%s2649 + $0x10] sm:$0xff]
    %v2653 = vld [vmem:[%s2649 + $0x18] sm:$0xff]
    %2654 = vmatprep.subr.mxu0 %v1725
    %2655 = vmatpush1.msra.mxu0 %v1724
    %2656 = vmatprep.subr.mxu0 %v1729
    %2657 = vmatpush1.msra.mxu0 %v1728
    %2658 = vmatprep.subr.mxu0 %v1733
    %2659 = vmatpush1.msra.mxu0 %v1732
    %2660 = vmatprep.subr.mxu0 %v1737
    %2661 = vmatpush1.msra.mxu0 %v1736
    %2662 = vmatprep.subr.mxu0 %v1741
    %2663 = vmatpush1.msra.mxu0 %v1740
    %2664 = vmatprep.subr.mxu0 %v1745
    %2665 = vmatpush1.msra.mxu0 %v1744
    %2666 = vmatprep.subr.mxu0 %v1749
    %2667 = vmatpush1.msra.mxu0 %v1748
    %2668 = vmatprep.subr.mxu0 %v1753
    %2669 = vmatpush1.msra.mxu0 %v1752
    %2670 = vmatprep.subr.mxu0 %v1757
    %2671 = vmatpush1.msra.mxu0 %v1756
    %2672 = vmatprep.subr.mxu0 %v1761
    %2673 = vmatpush1.msra.mxu0 %v1760
    %2674 = vmatprep.subr.mxu0 %v1765
    %2675 = vmatpush1.msra.mxu0 %v1764
    %2676 = vmatprep.subr.mxu0 %v1769
    %2677 = vmatpush1.msra.mxu0 %v1768
    %2678 = vmatprep.subr.mxu0 %v1773
    %2679 = vmatpush1.msra.mxu0 %v1772
    %2680 = vmatprep.subr.mxu0 %v1777
    %2681 = vmatpush1.msra.mxu0 %v1776
    %2682 = vmatprep.subr.mxu0 %v1781
    %2683 = vmatpush1.msra.mxu0 %v1780
    %2684 = vmatprep.subr.mxu0 %v1785
    %2685 = vmatpush1.msra.mxu0 %v1784
    %2686 = vmatprep.subr.mxu0 0.0
    %2687 = vmatpush1.msra.mxu0 0.0
    %2688 = vmatprep.subr.mxu0 0.0
    %2689 = vmatpush1.msra.mxu0 0.0
    %2690 = vmatprep.subr.mxu0 0.0
    %2691 = vmatpush1.msra.mxu0 0.0
    %2692 = vmatprep.subr.mxu0 0.0
    %2693 = vmatpush1.msra.mxu0 0.0
    %2694 = vmatprep.subr.mxu0 0.0
    %2695 = vmatpush1.msra.mxu0 0.0
    %2696 = vmatprep.subr.mxu0 0.0
    %2697 = vmatpush1.msra.mxu0 0.0
    %2698 = vmatprep.subr.mxu0 0.0
    %2699 = vmatpush1.msra.mxu0 0.0
    %2700 = vmatprep.subr.mxu0 0.0
    %2701 = vmatpush1.msra.mxu0 0.0
    %2702 = vmatprep.subr.mxu0 0.0
    %2703 = vmatpush1.msra.mxu0 0.0
    %2704 = vmatprep.subr.mxu0 0.0
    %2705 = vmatpush1.msra.mxu0 0.0
    %2706 = vmatprep.subr.mxu0 0.0
    %2707 = vmatpush1.msra.mxu0 0.0
    %2708 = vmatprep.subr.mxu0 0.0
    %2709 = vmatpush1.msra.mxu0 0.0
    %2710 = vmatprep.subr.mxu0 0.0
    %2711 = vmatpush1.msra.mxu0 0.0
    %2712 = vmatprep.subr.mxu0 0.0
    %2713 = vmatpush1.msra.mxu0 0.0
    %2714 = vmatprep.subr.mxu0 0.0
    %2715 = vmatpush1.msra.mxu0 0.0
    %2716 = vmatprep.subr.mxu0 0.0
    %2717 = vmatpush1.msra.mxu0 0.0
    %2718 = vmatprep.mubr.f32.mxu0 0.0
    %2719 = vmatmul.mubr.f32.gmra.mrb[0].mxu0 %v2493
    %v2720 = vpop.f32.mrb[0].mxu0
    %v2721 = vadd.f32 0.0, %v2720
    %v2722 = vpop.f32.mrb[0].mxu0
    %v2723 = vadd.f32 0.0, %v2722
    %2724 = vdwg.mxu0
    %2725 = vmatprep.subr.mxu0 %v1727
    %2726 = vmatpush1.msra.mxu0 %v1726
    %2727 = vmatprep.subr.mxu0 %v1731
    %2728 = vmatpush1.msra.mxu0 %v1730
    %2729 = vmatprep.subr.mxu0 %v1735
    %2730 = vmatpush1.msra.mxu0 %v1734
    %2731 = vmatprep.subr.mxu0 %v1739
    %2732 = vmatpush1.msra.mxu0 %v1738
    %2733 = vmatprep.subr.mxu0 %v1743
    %2734 = vmatpush1.msra.mxu0 %v1742
    %2735 = vmatprep.subr.mxu0 %v1747
    %2736 = vmatpush1.msra.mxu0 %v1746
    %2737 = vmatprep.subr.mxu0 %v1751
    %2738 = vmatpush1.msra.mxu0 %v1750
    %2739 = vmatprep.subr.mxu0 %v1755
    %2740 = vmatpush1.msra.mxu0 %v1754
    %2741 = vmatprep.subr.mxu0 %v1759
    %2742 = vmatpush1.msra.mxu0 %v1758
    %2743 = vmatprep.subr.mxu0 %v1763
    %2744 = vmatpush1.msra.mxu0 %v1762
    %2745 = vmatprep.subr.mxu0 %v1767
    %2746 = vmatpush1.msra.mxu0 %v1766
    %2747 = vmatprep.subr.mxu0 %v1771
    %2748 = vmatpush1.msra.mxu0 %v1770
    %2749 = vmatprep.subr.mxu0 %v1775
    %2750 = vmatpush1.msra.mxu0 %v1774
    %2751 = vmatprep.subr.mxu0 %v1779
    %2752 = vmatpush1.msra.mxu0 %v1778
    %2753 = vmatprep.subr.mxu0 %v1783
    %2754 = vmatpush1.msra.mxu0 %v1782
    %2755 = vmatprep.subr.mxu0 %v1787
    %2756 = vmatpush1.msra.mxu0 %v1786
    %2757 = vmatprep.subr.mxu0 0.0
    %2758 = vmatpush1.msra.mxu0 0.0
    %2759 = vmatprep.subr.mxu0 0.0
    %2760 = vmatpush1.msra.mxu0 0.0
    %2761 = vmatprep.subr.mxu0 0.0
    %2762 = vmatpush1.msra.mxu0 0.0
    %2763 = vmatprep.subr.mxu0 0.0
    %2764 = vmatpush1.msra.mxu0 0.0
    %2765 = vmatprep.subr.mxu0 0.0
    %2766 = vmatpush1.msra.mxu0 0.0
    %2767 = vmatprep.subr.mxu0 0.0
    %2768 = vmatpush1.msra.mxu0 0.0
    %2769 = vmatprep.subr.mxu0 0.0
    %2770 = vmatpush1.msra.mxu0 0.0
    %2771 = vmatprep.subr.mxu0 0.0
    %2772 = vmatpush1.msra.mxu0 0.0
    %2773 = vmatprep.subr.mxu0 0.0
    %2774 = vmatpush1.msra.mxu0 0.0
    %2775 = vmatprep.subr.mxu0 0.0
    %2776 = vmatpush1.msra.mxu0 0.0
    %2777 = vmatprep.subr.mxu0 0.0
    %2778 = vmatpush1.msra.mxu0 0.0
    %2779 = vmatprep.subr.mxu0 0.0
    %2780 = vmatpush1.msra.mxu0 0.0
    %2781 = vmatprep.subr.mxu0 0.0
    %2782 = vmatpush1.msra.mxu0 0.0
    %2783 = vmatprep.subr.mxu0 0.0
    %2784 = vmatpush1.msra.mxu0 0.0
    %2785 = vmatprep.subr.mxu0 0.0
    %2786 = vmatpush1.msra.mxu0 0.0
    %2787 = vmatprep.subr.mxu0 0.0
    %2788 = vmatpush1.msra.mxu0 0.0
    %2789 = vmatprep.mubr.f32.mxu0 0.0
    %2790 = vmatmul.mubr.f32.gmra.mrb[0].mxu0 %v2493
    %v2791 = vpop.f32.mrb[0].mxu0
    %v2792 = vadd.f32 0.0, %v2791
    %v2793 = vpop.f32.mrb[0].mxu0
    %v2794 = vadd.f32 0.0, %v2793
    %2795 = vdwg.mxu0
    %v2796 = vadd.f32 %v2650, %v2721
    %v2797 = vadd.f32 %v2651, %v2723
    %v2798 = vadd.f32 %v2652, %v2792
    %v2799 = vadd.f32 %v2653, %v2794
    %v2800 = vxor.u32 %v2645, 2147483648
    %v2801 = vmul.f32 %v2800, 1.442695
    %v2802 = vpow.pop %v2801
    %v2803 = vadd.f32 %v2802, 1.0
    %v2804 = vrcp.pop %v2803
    %v2805 = vmul.f32 1.0, %v2804
    %v2806 = vxor.u32 %v2646, 2147483648
    %v2807 = vmul.f32 %v2806, 1.442695
    %v2808 = vpow.pop %v2807
    %v2809 = vadd.f32 %v2808, 1.0
    %v2810 = vrcp.pop %v2809
    %v2811 = vmul.f32 1.0, %v2810
    %v2812 = vtanh.pop %v2647
    %v2813 = vxor.u32 %v2648, 2147483648
    %v2814 = vmul.f32 %v2813, 1.442695
    %v2815 = vpow.pop %v2814
    %v2816 = vadd.f32 %v2815, 1.0
    %v2817 = vrcp.pop %v2816
    %v2818 = vmul.f32 1.0, %v2817
    %v2819 = vmul.f32 %v2811, %v2467
    %v2820 = vmul.f32 %v2805, %v2812
    %v2821 = vadd.f32 %v2819, %v2820
    %v2822 = vtanh.pop %v2821
    %v2823 = vmul.f32 %v2818, %v2822
    %v2824 = vxor.u32 %v2796, 2147483648
    %v2825 = vmul.f32 %v2824, 1.442695
    %v2826 = vpow.pop %v2825
    %v2827 = vadd.f32 %v2826, 1.0
    %v2828 = vrcp.pop %v2827
    %v2829 = vmul.f32 1.0, %v2828
    %v2830 = vxor.u32 %v2797, 2147483648
    %v2831 = vmul.f32 %v2830, 1.442695
    %v2832 = vpow.pop %v2831
    %v2833 = vadd.f32 %v2832, 1.0
    %v2834 = vrcp.pop %v2833
    %v2835 = vmul.f32 1.0, %v2834
    %v2836 = vtanh.pop %v2798
    %v2837 = vxor.u32 %v2799, 2147483648
    %v2838 = vmul.f32 %v2837, 1.442695
    %v2839 = vpow.pop %v2838
    %v2840 = vadd.f32 %v2839, 1.0
    %v2841 = vrcp.pop %v2840
    %v2842 = vmul.f32 1.0, %v2841
    %v2843 = vmul.f32 %v2835, %v2491
    %v2844 = vmul.f32 %v2829, %v2836
    %v2845 = vadd.f32 %v2843, %v2844
    %v2846 = vtanh.pop %v2845
    %v2847 = vmul.f32 %v2842, %v2846
    %s2848 = scalar_lea.vmem [#allocation8], 16
    %2849 = vst [vmem:[%s2848] sm:$0xff] %v2823
    %s2850 = scalar_lea.vmem [#allocation9], 40
    %2851 = vst [vmem:[%s2850] sm:$0xff] %v2847
    %s2852 = scalar_lea.vmem [#allocation2], 96
    %v2853 = vld [vmem:[%s2852] sm:$0xff]
    %v2854 = vld [vmem:[%s2852 + $0x8] sm:$0xff]
    %v2855 = vld [vmem:[%s2852 + $0x10] sm:$0xff]
    %v2856 = vld [vmem:[%s2852 + $0x18] sm:$0xff]
    %2857 = vmatprep.subr.mxu0 %v1661
    %2858 = vmatpush1.msra.mxu0 %v1660
    %2859 = vmatprep.subr.mxu0 %v1665
    %2860 = vmatpush1.msra.mxu0 %v1664
    %2861 = vmatprep.subr.mxu0 %v1669
    %2862 = vmatpush1.msra.mxu0 %v1668
    %2863 = vmatprep.subr.mxu0 %v1673
    %2864 = vmatpush1.msra.mxu0 %v1672
    %2865 = vmatprep.subr.mxu0 %v1677
    %2866 = vmatpush1.msra.mxu0 %v1676
    %2867 = vmatprep.subr.mxu0 %v1681
    %2868 = vmatpush1.msra.mxu0 %v1680
    %2869 = vmatprep.subr.mxu0 %v1685
    %2870 = vmatpush1.msra.mxu0 %v1684
    %2871 = vmatprep.subr.mxu0 %v1689
    %2872 = vmatpush1.msra.mxu0 %v1688
    %2873 = vmatprep.subr.mxu0 %v1693
    %2874 = vmatpush1.msra.mxu0 %v1692
    %2875 = vmatprep.subr.mxu0 %v1697
    %2876 = vmatpush1.msra.mxu0 %v1696
    %2877 = vmatprep.subr.mxu0 %v1701
    %2878 = vmatpush1.msra.mxu0 %v1700
    %2879 = vmatprep.subr.mxu0 %v1705
    %2880 = vmatpush1.msra.mxu0 %v1704
    %2881 = vmatprep.subr.mxu0 %v1709
    %2882 = vmatpush1.msra.mxu0 %v1708
    %2883 = vmatprep.subr.mxu0 %v1713
    %2884 = vmatpush1.msra.mxu0 %v1712
    %2885 = vmatprep.subr.mxu0 %v1717
    %2886 = vmatpush1.msra.mxu0 %v1716
    %2887 = vmatprep.subr.mxu0 %v1721
    %2888 = vmatpush1.msra.mxu0 %v1720
    %2889 = vmatprep.subr.mxu0 0.0
    %2890 = vmatpush1.msra.mxu0 0.0
    %2891 = vmatprep.subr.mxu0 0.0
    %2892 = vmatpush1.msra.mxu0 0.0
    %2893 = vmatprep.subr.mxu0 0.0
    %2894 = vmatpush1.msra.mxu0 0.0
    %2895 = vmatprep.subr.mxu0 0.0
    %2896 = vmatpush1.msra.mxu0 0.0
    %2897 = vmatprep.subr.mxu0 0.0
    %2898 = vmatpush1.msra.mxu0 0.0
    %2899 = vmatprep.subr.mxu0 0.0
    %2900 = vmatpush1.msra.mxu0 0.0
    %2901 = vmatprep.subr.mxu0 0.0
    %2902 = vmatpush1.msra.mxu0 0.0
    %2903 = vmatprep.subr.mxu0 0.0
    %2904 = vmatpush1.msra.mxu0 0.0
    %2905 = vmatprep.subr.mxu0 0.0
    %2906 = vmatpush1.msra.mxu0 0.0
    %2907 = vmatprep.subr.mxu0 0.0
    %2908 = vmatpush1.msra.mxu0 0.0
    %2909 = vmatprep.subr.mxu0 0.0
    %2910 = vmatpush1.msra.mxu0 0.0
    %2911 = vmatprep.subr.mxu0 0.0
    %2912 = vmatpush1.msra.mxu0 0.0
    %2913 = vmatprep.subr.mxu0 0.0
    %2914 = vmatpush1.msra.mxu0 0.0
    %2915 = vmatprep.subr.mxu0 0.0
    %2916 = vmatpush1.msra.mxu0 0.0
    %2917 = vmatprep.subr.mxu0 0.0
    %2918 = vmatpush1.msra.mxu0 0.0
    %2919 = vmatprep.subr.mxu0 0.0
    %2920 = vmatpush1.msra.mxu0 0.0
    %2921 = vmatprep.mubr.f32.mxu0 0.0
    %2922 = vmatmul.mubr.f32.gmra.mrb[0].mxu0 %v2823
    %v2923 = vpop.f32.mrb[0].mxu0
    %v2924 = vadd.f32 0.0, %v2923
    %v2925 = vpop.f32.mrb[0].mxu0
    %v2926 = vadd.f32 0.0, %v2925
    %2927 = vdwg.mxu0
    %2928 = vmatprep.subr.mxu0 %v1663
    %2929 = vmatpush1.msra.mxu0 %v1662
    %2930 = vmatprep.subr.mxu0 %v1667
    %2931 = vmatpush1.msra.mxu0 %v1666
    %2932 = vmatprep.subr.mxu0 %v1671
    %2933 = vmatpush1.msra.mxu0 %v1670
    %2934 = vmatprep.subr.mxu0 %v1675
    %2935 = vmatpush1.msra.mxu0 %v1674
    %2936 = vmatprep.subr.mxu0 %v1679
    %2937 = vmatpush1.msra.mxu0 %v1678
    %2938 = vmatprep.subr.mxu0 %v1683
    %2939 = vmatpush1.msra.mxu0 %v1682
    %2940 = vmatprep.subr.mxu0 %v1687
    %2941 = vmatpush1.msra.mxu0 %v1686
    %2942 = vmatprep.subr.mxu0 %v1691
    %2943 = vmatpush1.msra.mxu0 %v1690
    %2944 = vmatprep.subr.mxu0 %v1695
    %2945 = vmatpush1.msra.mxu0 %v1694
    %2946 = vmatprep.subr.mxu0 %v1699
    %2947 = vmatpush1.msra.mxu0 %v1698
    %2948 = vmatprep.subr.mxu0 %v1703
    %2949 = vmatpush1.msra.mxu0 %v1702
    %2950 = vmatprep.subr.mxu0 %v1707
    %2951 = vmatpush1.msra.mxu0 %v1706
    %2952 = vmatprep.subr.mxu0 %v1711
    %2953 = vmatpush1.msra.mxu0 %v1710
    %2954 = vmatprep.subr.mxu0 %v1715
    %2955 = vmatpush1.msra.mxu0 %v1714
    %2956 = vmatprep.subr.mxu0 %v1719
    %2957 = vmatpush1.msra.mxu0 %v1718
    %2958 = vmatprep.subr.mxu0 %v1723
    %2959 = vmatpush1.msra.mxu0 %v1722
    %2960 = vmatprep.subr.mxu0 0.0
    %2961 = vmatpush1.msra.mxu0 0.0
    %2962 = vmatprep.subr.mxu0 0.0
    %2963 = vmatpush1.msra.mxu0 0.0
    %2964 = vmatprep.subr.mxu0 0.0
    %2965 = vmatpush1.msra.mxu0 0.0
    %2966 = vmatprep.subr.mxu0 0.0
    %2967 = vmatpush1.msra.mxu0 0.0
    %2968 = vmatprep.subr.mxu0 0.0
    %2969 = vmatpush1.msra.mxu0 0.0
    %2970 = vmatprep.subr.mxu0 0.0
    %2971 = vmatpush1.msra.mxu0 0.0
    %2972 = vmatprep.subr.mxu0 0.0
    %2973 = vmatpush1.msra.mxu0 0.0
    %2974 = vmatprep.subr.mxu0 0.0
    %2975 = vmatpush1.msra.mxu0 0.0
    %2976 = vmatprep.subr.mxu0 0.0
    %2977 = vmatpush1.msra.mxu0 0.0
    %2978 = vmatprep.subr.mxu0 0.0
    %2979 = vmatpush1.msra.mxu0 0.0
    %2980 = vmatprep.subr.mxu0 0.0
    %2981 = vmatpush1.msra.mxu0 0.0
    %2982 = vmatprep.subr.mxu0 0.0
    %2983 = vmatpush1.msra.mxu0 0.0
    %2984 = vmatprep.subr.mxu0 0.0
    %2985 = vmatpush1.msra.mxu0 0.0
    %2986 = vmatprep.subr.mxu0 0.0
    %2987 = vmatpush1.msra.mxu0 0.0
    %2988 = vmatprep.subr.mxu0 0.0
    %2989 = vmatpush1.msra.mxu0 0.0
    %2990 = vmatprep.subr.mxu0 0.0
    %2991 = vmatpush1.msra.mxu0 0.0
    %2992 = vmatprep.mubr.f32.mxu0 0.0
    %2993 = vmatmul.mubr.f32.gmra.mrb[0].mxu0 %v2823
    %v2994 = vpop.f32.mrb[0].mxu0
    %v2995 = vadd.f32 0.0, %v2994
    %v2996 = vpop.f32.mrb[0].mxu0
    %v2997 = vadd.f32 0.0, %v2996
    %2998 = vdwg.mxu0
    %v2999 = vadd.f32 %v2853, %v2924
    %v3000 = vadd.f32 %v2854, %v2926
    %v3001 = vadd.f32 %v2855, %v2995
    %v3002 = vadd.f32 %v2856, %v2997
    %s3003 = scalar_lea.vmem [#allocation3], 128
    %v3004 = vld [vmem:[%s3003] sm:$0xff]
    %v3005 = vld [vmem:[%s3003 + $0x8] sm:$0xff]
    %v3006 = vld [vmem:[%s3003 + $0x10] sm:$0xff]
    %v3007 = vld [vmem:[%s3003 + $0x18] sm:$0xff]
    %3008 = vmatprep.subr.mxu0 %v1725
    %3009 = vmatpush1.msra.mxu0 %v1724
    %3010 = vmatprep.subr.mxu0 %v1729
    %3011 = vmatpush1.msra.mxu0 %v1728
    %3012 = vmatprep.subr.mxu0 %v1733
    %3013 = vmatpush1.msra.mxu0 %v1732
    %3014 = vmatprep.subr.mxu0 %v1737
    %3015 = vmatpush1.msra.mxu0 %v1736
    %3016 = vmatprep.subr.mxu0 %v1741
    %3017 = vmatpush1.msra.mxu0 %v1740
    %3018 = vmatprep.subr.mxu0 %v1745
    %3019 = vmatpush1.msra.mxu0 %v1744
    %3020 = vmatprep.subr.mxu0 %v1749
    %3021 = vmatpush1.msra.mxu0 %v1748
    %3022 = vmatprep.subr.mxu0 %v1753
    %3023 = vmatpush1.msra.mxu0 %v1752
    %3024 = vmatprep.subr.mxu0 %v1757
    %3025 = vmatpush1.msra.mxu0 %v1756
    %3026 = vmatprep.subr.mxu0 %v1761
    %3027 = vmatpush1.msra.mxu0 %v1760
    %3028 = vmatprep.subr.mxu0 %v1765
    %3029 = vmatpush1.msra.mxu0 %v1764
    %3030 = vmatprep.subr.mxu0 %v1769
    %3031 = vmatpush1.msra.mxu0 %v1768
    %3032 = vmatprep.subr.mxu0 %v1773
    %3033 = vmatpush1.msra.mxu0 %v1772
    %3034 = vmatprep.subr.mxu0 %v1777
    %3035 = vmatpush1.msra.mxu0 %v1776
    %3036 = vmatprep.subr.mxu0 %v1781
    %3037 = vmatpush1.msra.mxu0 %v1780
    %3038 = vmatprep.subr.mxu0 %v1785
    %3039 = vmatpush1.msra.mxu0 %v1784
    %3040 = vmatprep.subr.mxu0 0.0
    %3041 = vmatpush1.msra.mxu0 0.0
    %3042 = vmatprep.subr.mxu0 0.0
    %3043 = vmatpush1.msra.mxu0 0.0
    %3044 = vmatprep.subr.mxu0 0.0
    %3045 = vmatpush1.msra.mxu0 0.0
    %3046 = vmatprep.subr.mxu0 0.0
    %3047 = vmatpush1.msra.mxu0 0.0
    %3048 = vmatprep.subr.mxu0 0.0
    %3049 = vmatpush1.msra.mxu0 0.0
    %3050 = vmatprep.subr.mxu0 0.0
    %3051 = vmatpush1.msra.mxu0 0.0
    %3052 = vmatprep.subr.mxu0 0.0
    %3053 = vmatpush1.msra.mxu0 0.0
    %3054 = vmatprep.subr.mxu0 0.0
    %3055 = vmatpush1.msra.mxu0 0.0
    %3056 = vmatprep.subr.mxu0 0.0
    %3057 = vmatpush1.msra.mxu0 0.0
    %3058 = vmatprep.subr.mxu0 0.0
    %3059 = vmatpush1.msra.mxu0 0.0
    %3060 = vmatprep.subr.mxu0 0.0
    %3061 = vmatpush1.msra.mxu0 0.0
    %3062 = vmatprep.subr.mxu0 0.0
    %3063 = vmatpush1.msra.mxu0 0.0
    %3064 = vmatprep.subr.mxu0 0.0
    %3065 = vmatpush1.msra.mxu0 0.0
    %3066 = vmatprep.subr.mxu0 0.0
    %3067 = vmatpush1.msra.mxu0 0.0
    %3068 = vmatprep.subr.mxu0 0.0
    %3069 = vmatpush1.msra.mxu0 0.0
    %3070 = vmatprep.subr.mxu0 0.0
    %3071 = vmatpush1.msra.mxu0 0.0
    %3072 = vmatprep.mubr.f32.mxu0 0.0
    %3073 = vmatmul.mubr.f32.gmra.mrb[0].mxu0 %v2847
    %v3074 = vpop.f32.mrb[0].mxu0
    %v3075 = vadd.f32 0.0, %v3074
    %v3076 = vpop.f32.mrb[0].mxu0
    %v3077 = vadd.f32 0.0, %v3076
    %3078 = vdwg.mxu0
    %3079 = vmatprep.subr.mxu0 %v1727
    %3080 = vmatpush1.msra.mxu0 %v1726
    %3081 = vmatprep.subr.mxu0 %v1731
    %3082 = vmatpush1.msra.mxu0 %v1730
    %3083 = vmatprep.subr.mxu0 %v1735
    %3084 = vmatpush1.msra.mxu0 %v1734
    %3085 = vmatprep.subr.mxu0 %v1739
    %3086 = vmatpush1.msra.mxu0 %v1738
    %3087 = vmatprep.subr.mxu0 %v1743
    %3088 = vmatpush1.msra.mxu0 %v1742
    %3089 = vmatprep.subr.mxu0 %v1747
    %3090 = vmatpush1.msra.mxu0 %v1746
    %3091 = vmatprep.subr.mxu0 %v1751
    %3092 = vmatpush1.msra.mxu0 %v1750
    %3093 = vmatprep.subr.mxu0 %v1755
    %3094 = vmatpush1.msra.mxu0 %v1754
    %3095 = vmatprep.subr.mxu0 %v1759
    %3096 = vmatpush1.msra.mxu0 %v1758
    %3097 = vmatprep.subr.mxu0 %v1763
    %3098 = vmatpush1.msra.mxu0 %v1762
    %3099 = vmatprep.subr.mxu0 %v1767
    %3100 = vmatpush1.msra.mxu0 %v1766
    %3101 = vmatprep.subr.mxu0 %v1771
    %3102 = vmatpush1.msra.mxu0 %v1770
    %3103 = vmatprep.subr.mxu0 %v1775
    %3104 = vmatpush1.msra.mxu0 %v1774
    %3105 = vmatprep.subr.mxu0 %v1779
    %3106 = vmatpush1.msra.mxu0 %v1778
    %3107 = vmatprep.subr.mxu0 %v1783
    %3108 = vmatpush1.msra.mxu0 %v1782
    %3109 = vmatprep.subr.mxu0 %v1787
    %3110 = vmatpush1.msra.mxu0 %v1786
    %3111 = vmatprep.subr.mxu0 0.0
    %3112 = vmatpush1.msra.mxu0 0.0
    %3113 = vmatprep.subr.mxu0 0.0
    %3114 = vmatpush1.msra.mxu0 0.0
    %3115 = vmatprep.subr.mxu0 0.0
    %3116 = vmatpush1.msra.mxu0 0.0
    %3117 = vmatprep.subr.mxu0 0.0
    %3118 = vmatpush1.msra.mxu0 0.0
    %3119 = vmatprep.subr.mxu0 0.0
    %3120 = vmatpush1.msra.mxu0 0.0
    %3121 = vmatprep.subr.mxu0 0.0
    %3122 = vmatpush1.msra.mxu0 0.0
    %3123 = vmatprep.subr.mxu0 0.0
    %3124 = vmatpush1.msra.mxu0 0.0
    %3125 = vmatprep.subr.mxu0 0.0
    %3126 = vmatpush1.msra.mxu0 0.0
    %3127 = vmatprep.subr.mxu0 0.0
    %3128 = vmatpush1.msra.mxu0 0.0
    %3129 = vmatprep.subr.mxu0 0.0
    %3130 = vmatpush1.msra.mxu0 0.0
    %3131 = vmatprep.subr.mxu0 0.0
    %3132 = vmatpush1.msra.mxu0 0.0
    %3133 = vmatprep.subr.mxu0 0.0
    %3134 = vmatpush1.msra.mxu0 0.0
    %3135 = vmatprep.subr.mxu0 0.0
    %3136 = vmatpush1.msra.mxu0 0.0
    %3137 = vmatprep.subr.mxu0 0.0
    %3138 = vmatpush1.msra.mxu0 0.0
    %3139 = vmatprep.subr.mxu0 0.0
    %3140 = vmatpush1.msra.mxu0 0.0
    %3141 = vmatprep.subr.mxu0 0.0
    %3142 = vmatpush1.msra.mxu0 0.0
    %3143 = vmatprep.mubr.f32.mxu0 0.0
    %3144 = vmatmul.mubr.f32.gmra.mrb[0].mxu0 %v2847
    %v3145 = vpop.f32.mrb[0].mxu0
    %v3146 = vadd.f32 0.0, %v3145
    %v3147 = vpop.f32.mrb[0].mxu0
    %v3148 = vadd.f32 0.0, %v3147
    %3149 = vdwg.mxu0
    %v3150 = vadd.f32 %v3004, %v3075
    %v3151 = vadd.f32 %v3005, %v3077
    %v3152 = vadd.f32 %v3006, %v3146
    %v3153 = vadd.f32 %v3007, %v3148
    %v3154 = vxor.u32 %v2999, 2147483648
    %v3155 = vmul.f32 %v3154, 1.442695
    %v3156 = vpow.pop %v3155
    %v3157 = vadd.f32 %v3156, 1.0
    %v3158 = vrcp.pop %v3157
    %v3159 = vmul.f32 1.0, %v3158
    %v3160 = vxor.u32 %v3000, 2147483648
    %v3161 = vmul.f32 %v3160, 1.442695
    %v3162 = vpow.pop %v3161
    %v3163 = vadd.f32 %v3162, 1.0
    %v3164 = vrcp.pop %v3163
    %v3165 = vmul.f32 1.0, %v3164
    %v3166 = vtanh.pop %v3001
    %v3167 = vxor.u32 %v3002, 2147483648
    %v3168 = vmul.f32 %v3167, 1.442695
    %v3169 = vpow.pop %v3168
    %v3170 = vadd.f32 %v3169, 1.0
    %v3171 = vrcp.pop %v3170
    %v3172 = vmul.f32 1.0, %v3171
    %v3173 = vmul.f32 %v3165, %v2821
    %v3174 = vmul.f32 %v3159, %v3166
    %v3175 = vadd.f32 %v3173, %v3174
    %v3176 = vtanh.pop %v3175
    %v3177 = vmul.f32 %v3172, %v3176
    %v3178 = vxor.u32 %v3150, 2147483648
    %v3179 = vmul.f32 %v3178, 1.442695
    %v3180 = vpow.pop %v3179
    %v3181 = vadd.f32 %v3180, 1.0
    %v3182 = vrcp.pop %v3181
    %v3183 = vmul.f32 1.0, %v3182
    %v3184 = vxor.u32 %v3151, 2147483648
    %v3185 = vmul.f32 %v3184, 1.442695
    %v3186 = vpow.pop %v3185
    %v3187 = vadd.f32 %v3186, 1.0
    %v3188 = vrcp.pop %v3187
    %v3189 = vmul.f32 1.0, %v3188
    %v3190 = vtanh.pop %v3152
    %v3191 = vxor.u32 %v3153, 2147483648
    %v3192 = vmul.f32 %v3191, 1.442695
    %v3193 = vpow.pop %v3192
    %v3194 = vadd.f32 %v3193, 1.0
    %v3195 = vrcp.pop %v3194
    %v3196 = vmul.f32 1.0, %v3195
    %v3197 = vmul.f32 %v3189, %v2845
    %v3198 = vmul.f32 %v3183, %v3190
    %v3199 = vadd.f32 %v3197, %v3198
    %v3200 = vtanh.pop %v3199
    %v3201 = vmul.f32 %v3196, %v3200
    %s3202 = scalar_lea.vmem [#allocation8], 24
    %3203 = vst [vmem:[%s3202] sm:$0xff] %v3177
    %s3204 = scalar_lea.vmem [#allocation9], 32
    %3205 = vst [vmem:[%s3204] sm:$0xff] %v3201
    %s3206 = scalar_lea.vmem [#allocation2], 128
    %v3207 = vld [vmem:[%s3206] sm:$0xff]
    %v3208 = vld [vmem:[%s3206 + $0x8] sm:$0xff]
    %v3209 = vld [vmem:[%s3206 + $0x10] sm:$0xff]
    %v3210 = vld [vmem:[%s3206 + $0x18] sm:$0xff]
    %3211 = vmatprep.subr.mxu0 %v1661
    %3212 = vmatpush1.msra.mxu0 %v1660
    %3213 = vmatprep.subr.mxu0 %v1665
    %3214 = vmatpush1.msra.mxu0 %v1664
    %3215 = vmatprep.subr.mxu0 %v1669
    %3216 = vmatpush1.msra.mxu0 %v1668
    %3217 = vmatprep.subr.mxu0 %v1673
    %3218 = vmatpush1.msra.mxu0 %v1672
    %3219 = vmatprep.subr.mxu0 %v1677
    %3220 = vmatpush1.msra.mxu0 %v1676
    %3221 = vmatprep.subr.mxu0 %v1681
    %3222 = vmatpush1.msra.mxu0 %v1680
    %3223 = vmatprep.subr.mxu0 %v1685
    %3224 = vmatpush1.msra.mxu0 %v1684
    %3225 = vmatprep.subr.mxu0 %v1689
    %3226 = vmatpush1.msra.mxu0 %v1688
    %3227 = vmatprep.subr.mxu0 %v1693
    %3228 = vmatpush1.msra.mxu0 %v1692
    %3229 = vmatprep.subr.mxu0 %v1697
    %3230 = vmatpush1.msra.mxu0 %v1696
    %3231 = vmatprep.subr.mxu0 %v1701
    %3232 = vmatpush1.msra.mxu0 %v1700
    %3233 = vmatprep.subr.mxu0 %v1705
    %3234 = vmatpush1.msra.mxu0 %v1704
    %3235 = vmatprep.subr.mxu0 %v1709
    %3236 = vmatpush1.msra.mxu0 %v1708
    %3237 = vmatprep.subr.mxu0 %v1713
    %3238 = vmatpush1.msra.mxu0 %v1712
    %3239 = vmatprep.subr.mxu0 %v1717
    %3240 = vmatpush1.msra.mxu0 %v1716
    %3241 = vmatprep.subr.mxu0 %v1721
    %3242 = vmatpush1.msra.mxu0 %v1720
    %3243 = vmatprep.subr.mxu0 0.0
    %3244 = vmatpush1.msra.mxu0 0.0
    %3245 = vmatprep.subr.mxu0 0.0
    %3246 = vmatpush1.msra.mxu0 0.0
    %3247 = vmatprep.subr.mxu0 0.0
    %3248 = vmatpush1.msra.mxu0 0.0
    %3249 = vmatprep.subr.mxu0 0.0
    %3250 = vmatpush1.msra.mxu0 0.0
    %3251 = vmatprep.subr.mxu0 0.0
    %3252 = vmatpush1.msra.mxu0 0.0
    %3253 = vmatprep.subr.mxu0 0.0
    %3254 = vmatpush1.msra.mxu0 0.0
    %3255 = vmatprep.subr.mxu0 0.0
    %3256 = vmatpush1.msra.mxu0 0.0
    %3257 = vmatprep.subr.mxu0 0.0
    %3258 = vmatpush1.msra.mxu0 0.0
    %3259 = vmatprep.subr.mxu0 0.0
    %3260 = vmatpush1.msra.mxu0 0.0
    %3261 = vmatprep.subr.mxu0 0.0
    %3262 = vmatpush1.msra.mxu0 0.0
    %3263 = vmatprep.subr.mxu0 0.0
    %3264 = vmatpush1.msra.mxu0 0.0
    %3265 = vmatprep.subr.mxu0 0.0
    %3266 = vmatpush1.msra.mxu0 0.0
    %3267 = vmatprep.subr.mxu0 0.0
    %3268 = vmatpush1.msra.mxu0 0.0
    %3269 = vmatprep.subr.mxu0 0.0
    %3270 = vmatpush1.msra.mxu0 0.0
    %3271 = vmatprep.subr.mxu0 0.0
    %3272 = vmatpush1.msra.mxu0 0.0
    %3273 = vmatprep.subr.mxu0 0.0
    %3274 = vmatpush1.msra.mxu0 0.0
    %3275 = vmatprep.mubr.f32.mxu0 0.0
    %3276 = vmatmul.mubr.f32.gmra.mrb[0].mxu0 %v3177
    %v3277 = vpop.f32.mrb[0].mxu0
    %v3278 = vadd.f32 0.0, %v3277
    %v3279 = vpop.f32.mrb[0].mxu0
    %v3280 = vadd.f32 0.0, %v3279
    %3281 = vdwg.mxu0
    %3282 = vmatprep.subr.mxu0 %v1663
    %3283 = vmatpush1.msra.mxu0 %v1662
    %3284 = vmatprep.subr.mxu0 %v1667
    %3285 = vmatpush1.msra.mxu0 %v1666
    %3286 = vmatprep.subr.mxu0 %v1671
    %3287 = vmatpush1.msra.mxu0 %v1670
    %3288 = vmatprep.subr.mxu0 %v1675
    %3289 = vmatpush1.msra.mxu0 %v1674
    %3290 = vmatprep.subr.mxu0 %v1679
    %3291 = vmatpush1.msra.mxu0 %v1678
    %3292 = vmatprep.subr.mxu0 %v1683
    %3293 = vmatpush1.msra.mxu0 %v1682
    %3294 = vmatprep.subr.mxu0 %v1687
    %3295 = vmatpush1.msra.mxu0 %v1686
    %3296 = vmatprep.subr.mxu0 %v1691
    %3297 = vmatpush1.msra.mxu0 %v1690
    %3298 = vmatprep.subr.mxu0 %v1695
    %3299 = vmatpush1.msra.mxu0 %v1694
    %3300 = vmatprep.subr.mxu0 %v1699
    %3301 = vmatpush1.msra.mxu0 %v1698
    %3302 = vmatprep.subr.mxu0 %v1703
    %3303 = vmatpush1.msra.mxu0 %v1702
    %3304 = vmatprep.subr.mxu0 %v1707
    %3305 = vmatpush1.msra.mxu0 %v1706
    %3306 = vmatprep.subr.mxu0 %v1711
    %3307 = vmatpush1.msra.mxu0 %v1710
    %3308 = vmatprep.subr.mxu0 %v1715
    %3309 = vmatpush1.msra.mxu0 %v1714
    %3310 = vmatprep.subr.mxu0 %v1719
    %3311 = vmatpush1.msra.mxu0 %v1718
    %3312 = vmatprep.subr.mxu0 %v1723
    %3313 = vmatpush1.msra.mxu0 %v1722
    %3314 = vmatprep.subr.mxu0 0.0
    %3315 = vmatpush1.msra.mxu0 0.0
    %3316 = vmatprep.subr.mxu0 0.0
    %3317 = vmatpush1.msra.mxu0 0.0
    %3318 = vmatprep.subr.mxu0 0.0
    %3319 = vmatpush1.msra.mxu0 0.0
    %3320 = vmatprep.subr.mxu0 0.0
    %3321 = vmatpush1.msra.mxu0 0.0
    %3322 = vmatprep.subr.mxu0 0.0
    %3323 = vmatpush1.msra.mxu0 0.0
    %3324 = vmatprep.subr.mxu0 0.0
    %3325 = vmatpush1.msra.mxu0 0.0
    %3326 = vmatprep.subr.mxu0 0.0
    %3327 = vmatpush1.msra.mxu0 0.0
    %3328 = vmatprep.subr.mxu0 0.0
    %3329 = vmatpush1.msra.mxu0 0.0
    %3330 = vmatprep.subr.mxu0 0.0
    %3331 = vmatpush1.msra.mxu0 0.0
    %3332 = vmatprep.subr.mxu0 0.0
    %3333 = vmatpush1.msra.mxu0 0.0
    %3334 = vmatprep.subr.mxu0 0.0
    %3335 = vmatpush1.msra.mxu0 0.0
    %3336 = vmatprep.subr.mxu0 0.0
    %3337 = vmatpush1.msra.mxu0 0.0
    %3338 = vmatprep.subr.mxu0 0.0
    %3339 = vmatpush1.msra.mxu0 0.0
    %3340 = vmatprep.subr.mxu0 0.0
    %3341 = vmatpush1.msra.mxu0 0.0
    %3342 = vmatprep.subr.mxu0 0.0
    %3343 = vmatpush1.msra.mxu0 0.0
    %3344 = vmatprep.subr.mxu0 0.0
    %3345 = vmatpush1.msra.mxu0 0.0
    %3346 = vmatprep.mubr.f32.mxu0 0.0
    %3347 = vmatmul.mubr.f32.gmra.mrb[0].mxu0 %v3177
    %v3348 = vpop.f32.mrb[0].mxu0
    %v3349 = vadd.f32 0.0, %v3348
    %v3350 = vpop.f32.mrb[0].mxu0
    %v3351 = vadd.f32 0.0, %v3350
    %3352 = vdwg.mxu0
    %v3353 = vadd.f32 %v3207, %v3278
    %v3354 = vadd.f32 %v3208, %v3280
    %v3355 = vadd.f32 %v3209, %v3349
    %v3356 = vadd.f32 %v3210, %v3351
    %s3357 = scalar_lea.vmem [#allocation3], 96
    %v3358 = vld [vmem:[%s3357] sm:$0xff]
    %v3359 = vld [vmem:[%s3357 + $0x8] sm:$0xff]
    %v3360 = vld [vmem:[%s3357 + $0x10] sm:$0xff]
    %v3361 = vld [vmem:[%s3357 + $0x18] sm:$0xff]
    %3362 = vmatprep.subr.mxu0 %v1725
    %3363 = vmatpush1.msra.mxu0 %v1724
    %3364 = vmatprep.subr.mxu0 %v1729
    %3365 = vmatpush1.msra.mxu0 %v1728
    %3366 = vmatprep.subr.mxu0 %v1733
    %3367 = vmatpush1.msra.mxu0 %v1732
    %3368 = vmatprep.subr.mxu0 %v1737
    %3369 = vmatpush1.msra.mxu0 %v1736
    %3370 = vmatprep.subr.mxu0 %v1741
    %3371 = vmatpush1.msra.mxu0 %v1740
    %3372 = vmatprep.subr.mxu0 %v1745
    %3373 = vmatpush1.msra.mxu0 %v1744
    %3374 = vmatprep.subr.mxu0 %v1749
    %3375 = vmatpush1.msra.mxu0 %v1748
    %3376 = vmatprep.subr.mxu0 %v1753
    %3377 = vmatpush1.msra.mxu0 %v1752
    %3378 = vmatprep.subr.mxu0 %v1757
    %3379 = vmatpush1.msra.mxu0 %v1756
    %3380 = vmatprep.subr.mxu0 %v1761
    %3381 = vmatpush1.msra.mxu0 %v1760
    %3382 = vmatprep.subr.mxu0 %v1765
    %3383 = vmatpush1.msra.mxu0 %v1764
    %3384 = vmatprep.subr.mxu0 %v1769
    %3385 = vmatpush1.msra.mxu0 %v1768
    %3386 = vmatprep.subr.mxu0 %v1773
    %3387 = vmatpush1.msra.mxu0 %v1772
    %3388 = vmatprep.subr.mxu0 %v1777
    %3389 = vmatpush1.msra.mxu0 %v1776
    %3390 = vmatprep.subr.mxu0 %v1781
    %3391 = vmatpush1.msra.mxu0 %v1780
    %3392 = vmatprep.subr.mxu0 %v1785
    %3393 = vmatpush1.msra.mxu0 %v1784
    %3394 = vmatprep.subr.mxu0 0.0
    %3395 = vmatpush1.msra.mxu0 0.0
    %3396 = vmatprep.subr.mxu0 0.0
    %3397 = vmatpush1.msra.mxu0 0.0
    %3398 = vmatprep.subr.mxu0 0.0
    %3399 = vmatpush1.msra.mxu0 0.0
    %3400 = vmatprep.subr.mxu0 0.0
    %3401 = vmatpush1.msra.mxu0 0.0
    %3402 = vmatprep.subr.mxu0 0.0
    %3403 = vmatpush1.msra.mxu0 0.0
    %3404 = vmatprep.subr.mxu0 0.0
    %3405 = vmatpush1.msra.mxu0 0.0
    %3406 = vmatprep.subr.mxu0 0.0
    %3407 = vmatpush1.msra.mxu0 0.0
    %3408 = vmatprep.subr.mxu0 0.0
    %3409 = vmatpush1.msra.mxu0 0.0
    %3410 = vmatprep.subr.mxu0 0.0
    %3411 = vmatpush1.msra.mxu0 0.0
    %3412 = vmatprep.subr.mxu0 0.0
    %3413 = vmatpush1.msra.mxu0 0.0
    %3414 = vmatprep.subr.mxu0 0.0
    %3415 = vmatpush1.msra.mxu0 0.0
    %3416 = vmatprep.subr.mxu0 0.0
    %3417 = vmatpush1.msra.mxu0 0.0
    %3418 = vmatprep.subr.mxu0 0.0
    %3419 = vmatpush1.msra.mxu0 0.0
    %3420 = vmatprep.subr.mxu0 0.0
    %3421 = vmatpush1.msra.mxu0 0.0
    %3422 = vmatprep.subr.mxu0 0.0
    %3423 = vmatpush1.msra.mxu0 0.0
    %3424 = vmatprep.subr.mxu0 0.0
    %3425 = vmatpush1.msra.mxu0 0.0
    %3426 = vmatprep.mubr.f32.mxu0 0.0
    %3427 = vmatmul.mubr.f32.gmra.mrb[0].mxu0 %v3201
    %v3428 = vpop.f32.mrb[0].mxu0
    %v3429 = vadd.f32 0.0, %v3428
    %v3430 = vpop.f32.mrb[0].mxu0
    %v3431 = vadd.f32 0.0, %v3430
    %3432 = vdwg.mxu0
    %3433 = vmatprep.subr.mxu0 %v1727
    %3434 = vmatpush1.msra.mxu0 %v1726
    %3435 = vmatprep.subr.mxu0 %v1731
    %3436 = vmatpush1.msra.mxu0 %v1730
    %3437 = vmatprep.subr.mxu0 %v1735
    %3438 = vmatpush1.msra.mxu0 %v1734
    %3439 = vmatprep.subr.mxu0 %v1739
    %3440 = vmatpush1.msra.mxu0 %v1738
    %3441 = vmatprep.subr.mxu0 %v1743
    %3442 = vmatpush1.msra.mxu0 %v1742
    %3443 = vmatprep.subr.mxu0 %v1747
    %3444 = vmatpush1.msra.mxu0 %v1746
    %3445 = vmatprep.subr.mxu0 %v1751
    %3446 = vmatpush1.msra.mxu0 %v1750
    %3447 = vmatprep.subr.mxu0 %v1755
    %3448 = vmatpush1.msra.mxu0 %v1754
    %3449 = vmatprep.subr.mxu0 %v1759
    %3450 = vmatpush1.msra.mxu0 %v1758
    %3451 = vmatprep.subr.mxu0 %v1763
    %3452 = vmatpush1.msra.mxu0 %v1762
    %3453 = vmatprep.subr.mxu0 %v1767
    %3454 = vmatpush1.msra.mxu0 %v1766
    %3455 = vmatprep.subr.mxu0 %v1771
    %3456 = vmatpush1.msra.mxu0 %v1770
    %3457 = vmatprep.subr.mxu0 %v1775
    %3458 = vmatpush1.msra.mxu0 %v1774
    %3459 = vmatprep.subr.mxu0 %v1779
    %3460 = vmatpush1.msra.mxu0 %v1778
    %3461 = vmatprep.subr.mxu0 %v1783
    %3462 = vmatpush1.msra.mxu0 %v1782
    %3463 = vmatprep.subr.mxu0 %v1787
    %3464 = vmatpush1.msra.mxu0 %v1786
    %3465 = vmatprep.subr.mxu0 0.0
    %3466 = vmatpush1.msra.mxu0 0.0
    %3467 = vmatprep.subr.mxu0 0.0
    %3468 = vmatpush1.msra.mxu0 0.0
    %3469 = vmatprep.subr.mxu0 0.0
    %3470 = vmatpush1.msra.mxu0 0.0
    %3471 = vmatprep.subr.mxu0 0.0
    %3472 = vmatpush1.msra.mxu0 0.0
    %3473 = vmatprep.subr.mxu0 0.0
    %3474 = vmatpush1.msra.mxu0 0.0
    %3475 = vmatprep.subr.mxu0 0.0
    %3476 = vmatpush1.msra.mxu0 0.0
    %3477 = vmatprep.subr.mxu0 0.0
    %3478 = vmatpush1.msra.mxu0 0.0
    %3479 = vmatprep.subr.mxu0 0.0
    %3480 = vmatpush1.msra.mxu0 0.0
    %3481 = vmatprep.subr.mxu0 0.0
    %3482 = vmatpush1.msra.mxu0 0.0
    %3483 = vmatprep.subr.mxu0 0.0
    %3484 = vmatpush1.msra.mxu0 0.0
    %3485 = vmatprep.subr.mxu0 0.0
    %3486 = vmatpush1.msra.mxu0 0.0
    %3487 = vmatprep.subr.mxu0 0.0
    %3488 = vmatpush1.msra.mxu0 0.0
    %3489 = vmatprep.subr.mxu0 0.0
    %3490 = vmatpush1.msra.mxu0 0.0
    %3491 = vmatprep.subr.mxu0 0.0
    %3492 = vmatpush1.msra.mxu0 0.0
    %3493 = vmatprep.subr.mxu0 0.0
    %3494 = vmatpush1.msra.mxu0 0.0
    %3495 = vmatprep.subr.mxu0 0.0
    %3496 = vmatpush1.msra.mxu0 0.0
    %3497 = vmatprep.mubr.f32.mxu0 0.0
    %3498 = vmatmul.mubr.f32.gmra.mrb[0].mxu0 %v3201
    %v3499 = vpop.f32.mrb[0].mxu0
    %v3500 = vadd.f32 0.0, %v3499
    %v3501 = vpop.f32.mrb[0].mxu0
    %v3502 = vadd.f32 0.0, %v3501
    %3503 = vdwg.mxu0
    %v3504 = vadd.f32 %v3358, %v3429
    %v3505 = vadd.f32 %v3359, %v3431
    %v3506 = vadd.f32 %v3360, %v3500
    %v3507 = vadd.f32 %v3361, %v3502
    %v3508 = vxor.u32 %v3353, 2147483648
    %v3509 = vmul.f32 %v3508, 1.442695
    %v3510 = vpow.pop %v3509
    %v3511 = vadd.f32 %v3510, 1.0
    %v3512 = vrcp.pop %v3511
    %v3513 = vmul.f32 1.0, %v3512
    %v3514 = vxor.u32 %v3354, 2147483648
    %v3515 = vmul.f32 %v3514, 1.442695
    %v3516 = vpow.pop %v3515
    %v3517 = vadd.f32 %v3516, 1.0
    %v3518 = vrcp.pop %v3517
    %v3519 = vmul.f32 1.0, %v3518
    %v3520 = vtanh.pop %v3355
    %v3521 = vxor.u32 %v3356, 2147483648
    %v3522 = vmul.f32 %v3521, 1.442695
    %v3523 = vpow.pop %v3522
    %v3524 = vadd.f32 %v3523, 1.0
    %v3525 = vrcp.pop %v3524
    %v3526 = vmul.f32 1.0, %v3525
    %v3527 = vmul.f32 %v3519, %v3175
    %v3528 = vmul.f32 %v3513, %v3520
    %v3529 = vadd.f32 %v3527, %v3528
    %v3530 = vtanh.pop %v3529
    %v3531 = vmul.f32 %v3526, %v3530
    %v3532 = vxor.u32 %v3504, 2147483648
    %v3533 = vmul.f32 %v3532, 1.442695
    %v3534 = vpow.pop %v3533
    %v3535 = vadd.f32 %v3534, 1.0
    %v3536 = vrcp.pop %v3535
    %v3537 = vmul.f32 1.0, %v3536
    %v3538 = vxor.u32 %v3505, 2147483648
    %v3539 = vmul.f32 %v3538, 1.442695
    %v3540 = vpow.pop %v3539
    %v3541 = vadd.f32 %v3540, 1.0
    %v3542 = vrcp.pop %v3541
    %v3543 = vmul.f32 1.0, %v3542
    %v3544 = vtanh.pop %v3506
    %v3545 = vxor.u32 %v3507, 2147483648
    %v3546 = vmul.f32 %v3545, 1.442695
    %v3547 = vpow.pop %v3546
    %v3548 = vadd.f32 %v3547, 1.0
    %v3549 = vrcp.pop %v3548
    %v3550 = vmul.f32 1.0, %v3549
    %v3551 = vmul.f32 %v3543, %v3199
    %v3552 = vmul.f32 %v3537, %v3544
    %v3553 = vadd.f32 %v3551, %v3552
    %v3554 = vtanh.pop %v3553
    %v3555 = vmul.f32 %v3550, %v3554
    %s3556 = scalar_lea.vmem [#allocation8], 32
    %3557 = vst [vmem:[%s3556] sm:$0xff] %v3531
    %s3558 = scalar_lea.vmem [#allocation9], 24
    %3559 = vst [vmem:[%s3558] sm:$0xff] %v3555
    %s3560 = scalar_lea.vmem [#allocation2], 160
    %v3561 = vld [vmem:[%s3560] sm:$0xff]
    %v3562 = vld [vmem:[%s3560 + $0x8] sm:$0xff]
    %v3563 = vld [vmem:[%s3560 + $0x10] sm:$0xff]
    %v3564 = vld [vmem:[%s3560 + $0x18] sm:$0xff]
    %3565 = vmatprep.subr.mxu0 %v1661
    %3566 = vmatpush1.msra.mxu0 %v1660
    %3567 = vmatprep.subr.mxu0 %v1665
    %3568 = vmatpush1.msra.mxu0 %v1664
    %3569 = vmatprep.subr.mxu0 %v1669
    %3570 = vmatpush1.msra.mxu0 %v1668
    %3571 = vmatprep.subr.mxu0 %v1673
    %3572 = vmatpush1.msra.mxu0 %v1672
    %3573 = vmatprep.subr.mxu0 %v1677
    %3574 = vmatpush1.msra.mxu0 %v1676
    %3575 = vmatprep.subr.mxu0 %v1681
    %3576 = vmatpush1.msra.mxu0 %v1680
    %3577 = vmatprep.subr.mxu0 %v1685
    %3578 = vmatpush1.msra.mxu0 %v1684
    %3579 = vmatprep.subr.mxu0 %v1689
    %3580 = vmatpush1.msra.mxu0 %v1688
    %3581 = vmatprep.subr.mxu0 %v1693
    %3582 = vmatpush1.msra.mxu0 %v1692
    %3583 = vmatprep.subr.mxu0 %v1697
    %3584 = vmatpush1.msra.mxu0 %v1696
    %3585 = vmatprep.subr.mxu0 %v1701
    %3586 = vmatpush1.msra.mxu0 %v1700
    %3587 = vmatprep.subr.mxu0 %v1705
    %3588 = vmatpush1.msra.mxu0 %v1704
    %3589 = vmatprep.subr.mxu0 %v1709
    %3590 = vmatpush1.msra.mxu0 %v1708
    %3591 = vmatprep.subr.mxu0 %v1713
    %3592 = vmatpush1.msra.mxu0 %v1712
    %3593 = vmatprep.subr.mxu0 %v1717
    %3594 = vmatpush1.msra.mxu0 %v1716
    %3595 = vmatprep.subr.mxu0 %v1721
    %3596 = vmatpush1.msra.mxu0 %v1720
    %3597 = vmatprep.subr.mxu0 0.0
    %3598 = vmatpush1.msra.mxu0 0.0
    %3599 = vmatprep.subr.mxu0 0.0
    %3600 = vmatpush1.msra.mxu0 0.0
    %3601 = vmatprep.subr.mxu0 0.0
    %3602 = vmatpush1.msra.mxu0 0.0
    %3603 = vmatprep.subr.mxu0 0.0
    %3604 = vmatpush1.msra.mxu0 0.0
    %3605 = vmatprep.subr.mxu0 0.0
    %3606 = vmatpush1.msra.mxu0 0.0
    %3607 = vmatprep.subr.mxu0 0.0
    %3608 = vmatpush1.msra.mxu0 0.0
    %3609 = vmatprep.subr.mxu0 0.0
    %3610 = vmatpush1.msra.mxu0 0.0
    %3611 = vmatprep.subr.mxu0 0.0
    %3612 = vmatpush1.msra.mxu0 0.0
    %3613 = vmatprep.subr.mxu0 0.0
    %3614 = vmatpush1.msra.mxu0 0.0
    %3615 = vmatprep.subr.mxu0 0.0
    %3616 = vmatpush1.msra.mxu0 0.0
    %3617 = vmatprep.subr.mxu0 0.0
    %3618 = vmatpush1.msra.mxu0 0.0
    %3619 = vmatprep.subr.mxu0 0.0
    %3620 = vmatpush1.msra.mxu0 0.0
    %3621 = vmatprep.subr.mxu0 0.0
    %3622 = vmatpush1.msra.mxu0 0.0
    %3623 = vmatprep.subr.mxu0 0.0
    %3624 = vmatpush1.msra.mxu0 0.0
    %3625 = vmatprep.subr.mxu0 0.0
    %3626 = vmatpush1.msra.mxu0 0.0
    %3627 = vmatprep.subr.mxu0 0.0
    %3628 = vmatpush1.msra.mxu0 0.0
    %3629 = vmatprep.mubr.f32.mxu0 0.0
    %3630 = vmatmul.mubr.f32.gmra.mrb[0].mxu0 %v3531
    %v3631 = vpop.f32.mrb[0].mxu0
    %v3632 = vadd.f32 0.0, %v3631
    %v3633 = vpop.f32.mrb[0].mxu0
    %v3634 = vadd.f32 0.0, %v3633
    %3635 = vdwg.mxu0
    %3636 = vmatprep.subr.mxu0 %v1663
    %3637 = vmatpush1.msra.mxu0 %v1662
    %3638 = vmatprep.subr.mxu0 %v1667
    %3639 = vmatpush1.msra.mxu0 %v1666
    %3640 = vmatprep.subr.mxu0 %v1671
    %3641 = vmatpush1.msra.mxu0 %v1670
    %3642 = vmatprep.subr.mxu0 %v1675
    %3643 = vmatpush1.msra.mxu0 %v1674
    %3644 = vmatprep.subr.mxu0 %v1679
    %3645 = vmatpush1.msra.mxu0 %v1678
    %3646 = vmatprep.subr.mxu0 %v1683
    %3647 = vmatpush1.msra.mxu0 %v1682
    %3648 = vmatprep.subr.mxu0 %v1687
    %3649 = vmatpush1.msra.mxu0 %v1686
    %3650 = vmatprep.subr.mxu0 %v1691
    %3651 = vmatpush1.msra.mxu0 %v1690
    %3652 = vmatprep.subr.mxu0 %v1695
    %3653 = vmatpush1.msra.mxu0 %v1694
    %3654 = vmatprep.subr.mxu0 %v1699
    %3655 = vmatpush1.msra.mxu0 %v1698
    %3656 = vmatprep.subr.mxu0 %v1703
    %3657 = vmatpush1.msra.mxu0 %v1702
    %3658 = vmatprep.subr.mxu0 %v1707
    %3659 = vmatpush1.msra.mxu0 %v1706
    %3660 = vmatprep.subr.mxu0 %v1711
    %3661 = vmatpush1.msra.mxu0 %v1710
    %3662 = vmatprep.subr.mxu0 %v1715
    %3663 = vmatpush1.msra.mxu0 %v1714
    %3664 = vmatprep.subr.mxu0 %v1719
    %3665 = vmatpush1.msra.mxu0 %v1718
    %3666 = vmatprep.subr.mxu0 %v1723
    %3667 = vmatpush1.msra.mxu0 %v1722
    %3668 = vmatprep.subr.mxu0 0.0
    %3669 = vmatpush1.msra.mxu0 0.0
    %3670 = vmatprep.subr.mxu0 0.0
    %3671 = vmatpush1.msra.mxu0 0.0
    %3672 = vmatprep.subr.mxu0 0.0
    %3673 = vmatpush1.msra.mxu0 0.0
    %3674 = vmatprep.subr.mxu0 0.0
    %3675 = vmatpush1.msra.mxu0 0.0
    %3676 = vmatprep.subr.mxu0 0.0
    %3677 = vmatpush1.msra.mxu0 0.0
    %3678 = vmatprep.subr.mxu0 0.0
    %3679 = vmatpush1.msra.mxu0 0.0
    %3680 = vmatprep.subr.mxu0 0.0
    %3681 = vmatpush1.msra.mxu0 0.0
    %3682 = vmatprep.subr.mxu0 0.0
    %3683 = vmatpush1.msra.mxu0 0.0
    %3684 = vmatprep.subr.mxu0 0.0
    %3685 = vmatpush1.msra.mxu0 0.0
    %3686 = vmatprep.subr.mxu0 0.0
    %3687 = vmatpush1.msra.mxu0 0.0
    %3688 = vmatprep.subr.mxu0 0.0
    %3689 = vmatpush1.msra.mxu0 0.0
    %3690 = vmatprep.subr.mxu0 0.0
    %3691 = vmatpush1.msra.mxu0 0.0
    %3692 = vmatprep.subr.mxu0 0.0
    %3693 = vmatpush1.msra.mxu0 0.0
    %3694 = vmatprep.subr.mxu0 0.0
    %3695 = vmatpush1.msra.mxu0 0.0
    %3696 = vmatprep.subr.mxu0 0.0
    %3697 = vmatpush1.msra.mxu0 0.0
    %3698 = vmatprep.subr.mxu0 0.0
    %3699 = vmatpush1.msra.mxu0 0.0
    %3700 = vmatprep.mubr.f32.mxu0 0.0
    %3701 = vmatmul.mubr.f32.gmra.mrb[0].mxu0 %v3531
    %v3702 = vpop.f32.mrb[0].mxu0
    %v3703 = vadd.f32 0.0, %v3702
    %v3704 = vpop.f32.mrb[0].mxu0
    %v3705 = vadd.f32 0.0, %v3704
    %3706 = vdwg.mxu0
    %v3707 = vadd.f32 %v3561, %v3632
    %v3708 = vadd.f32 %v3562, %v3634
    %v3709 = vadd.f32 %v3563, %v3703
    %v3710 = vadd.f32 %v3564, %v3705
    %s3711 = scalar_lea.vmem [#allocation3], 64
    %v3712 = vld [vmem:[%s3711] sm:$0xff]
    %v3713 = vld [vmem:[%s3711 + $0x8] sm:$0xff]
    %v3714 = vld [vmem:[%s3711 + $0x10] sm:$0xff]
    %v3715 = vld [vmem:[%s3711 + $0x18] sm:$0xff]
    %3716 = vmatprep.subr.mxu0 %v1725
    %3717 = vmatpush1.msra.mxu0 %v1724
    %3718 = vmatprep.subr.mxu0 %v1729
    %3719 = vmatpush1.msra.mxu0 %v1728
    %3720 = vmatprep.subr.mxu0 %v1733
    %3721 = vmatpush1.msra.mxu0 %v1732
    %3722 = vmatprep.subr.mxu0 %v1737
    %3723 = vmatpush1.msra.mxu0 %v1736
    %3724 = vmatprep.subr.mxu0 %v1741
    %3725 = vmatpush1.msra.mxu0 %v1740
    %3726 = vmatprep.subr.mxu0 %v1745
    %3727 = vmatpush1.msra.mxu0 %v1744
    %3728 = vmatprep.subr.mxu0 %v1749
    %3729 = vmatpush1.msra.mxu0 %v1748
    %3730 = vmatprep.subr.mxu0 %v1753
    %3731 = vmatpush1.msra.mxu0 %v1752
    %3732 = vmatprep.subr.mxu0 %v1757
    %3733 = vmatpush1.msra.mxu0 %v1756
    %3734 = vmatprep.subr.mxu0 %v1761
    %3735 = vmatpush1.msra.mxu0 %v1760
    %3736 = vmatprep.subr.mxu0 %v1765
    %3737 = vmatpush1.msra.mxu0 %v1764
    %3738 = vmatprep.subr.mxu0 %v1769
    %3739 = vmatpush1.msra.mxu0 %v1768
    %3740 = vmatprep.subr.mxu0 %v1773
    %3741 = vmatpush1.msra.mxu0 %v1772
    %3742 = vmatprep.subr.mxu0 %v1777
    %3743 = vmatpush1.msra.mxu0 %v1776
    %3744 = vmatprep.subr.mxu0 %v1781
    %3745 = vmatpush1.msra.mxu0 %v1780
    %3746 = vmatprep.subr.mxu0 %v1785
    %3747 = vmatpush1.msra.mxu0 %v1784
    %3748 = vmatprep.subr.mxu0 0.0
    %3749 = vmatpush1.msra.mxu0 0.0
    %3750 = vmatprep.subr.mxu0 0.0
    %3751 = vmatpush1.msra.mxu0 0.0
    %3752 = vmatprep.subr.mxu0 0.0
    %3753 = vmatpush1.msra.mxu0 0.0
    %3754 = vmatprep.subr.mxu0 0.0
    %3755 = vmatpush1.msra.mxu0 0.0
    %3756 = vmatprep.subr.mxu0 0.0
    %3757 = vmatpush1.msra.mxu0 0.0
    %3758 = vmatprep.subr.mxu0 0.0
    %3759 = vmatpush1.msra.mxu0 0.0
    %3760 = vmatprep.subr.mxu0 0.0
    %3761 = vmatpush1.msra.mxu0 0.0
    %3762 = vmatprep.subr.mxu0 0.0
    %3763 = vmatpush1.msra.mxu0 0.0
    %3764 = vmatprep.subr.mxu0 0.0
    %3765 = vmatpush1.msra.mxu0 0.0
    %3766 = vmatprep.subr.mxu0 0.0
    %3767 = vmatpush1.msra.mxu0 0.0
    %3768 = vmatprep.subr.mxu0 0.0
    %3769 = vmatpush1.msra.mxu0 0.0
    %3770 = vmatprep.subr.mxu0 0.0
    %3771 = vmatpush1.msra.mxu0 0.0
    %3772 = vmatprep.subr.mxu0 0.0
    %3773 = vmatpush1.msra.mxu0 0.0
    %3774 = vmatprep.subr.mxu0 0.0
    %3775 = vmatpush1.msra.mxu0 0.0
    %3776 = vmatprep.subr.mxu0 0.0
    %3777 = vmatpush1.msra.mxu0 0.0
    %3778 = vmatprep.subr.mxu0 0.0
    %3779 = vmatpush1.msra.mxu0 0.0
    %3780 = vmatprep.mubr.f32.mxu0 0.0
    %3781 = vmatmul.mubr.f32.gmra.mrb[0].mxu0 %v3555
    %v3782 = vpop.f32.mrb[0].mxu0
    %v3783 = vadd.f32 0.0, %v3782
    %v3784 = vpop.f32.mrb[0].mxu0
    %v3785 = vadd.f32 0.0, %v3784
    %3786 = vdwg.mxu0
    %3787 = vmatprep.subr.mxu0 %v1727
    %3788 = vmatpush1.msra.mxu0 %v1726
    %3789 = vmatprep.subr.mxu0 %v1731
    %3790 = vmatpush1.msra.mxu0 %v1730
    %3791 = vmatprep.subr.mxu0 %v1735
    %3792 = vmatpush1.msra.mxu0 %v1734
    %3793 = vmatprep.subr.mxu0 %v1739
    %3794 = vmatpush1.msra.mxu0 %v1738
    %3795 = vmatprep.subr.mxu0 %v1743
    %3796 = vmatpush1.msra.mxu0 %v1742
    %3797 = vmatprep.subr.mxu0 %v1747
    %3798 = vmatpush1.msra.mxu0 %v1746
    %3799 = vmatprep.subr.mxu0 %v1751
    %3800 = vmatpush1.msra.mxu0 %v1750
    %3801 = vmatprep.subr.mxu0 %v1755
    %3802 = vmatpush1.msra.mxu0 %v1754
    %3803 = vmatprep.subr.mxu0 %v1759
    %3804 = vmatpush1.msra.mxu0 %v1758
    %3805 = vmatprep.subr.mxu0 %v1763
    %3806 = vmatpush1.msra.mxu0 %v1762
    %3807 = vmatprep.subr.mxu0 %v1767
    %3808 = vmatpush1.msra.mxu0 %v1766
    %3809 = vmatprep.subr.mxu0 %v1771
    %3810 = vmatpush1.msra.mxu0 %v1770
    %3811 = vmatprep.subr.mxu0 %v1775
    %3812 = vmatpush1.msra.mxu0 %v1774
    %3813 = vmatprep.subr.mxu0 %v1779
    %3814 = vmatpush1.msra.mxu0 %v1778
    %3815 = vmatprep.subr.mxu0 %v1783
    %3816 = vmatpush1.msra.mxu0 %v1782
    %3817 = vmatprep.subr.mxu0 %v1787
    %3818 = vmatpush1.msra.mxu0 %v1786
    %3819 = vmatprep.subr.mxu0 0.0
    %3820 = vmatpush1.msra.mxu0 0.0
    %3821 = vmatprep.subr.mxu0 0.0
    %3822 = vmatpush1.msra.mxu0 0.0
    %3823 = vmatprep.subr.mxu0 0.0
    %3824 = vmatpush1.msra.mxu0 0.0
    %3825 = vmatprep.subr.mxu0 0.0
    %3826 = vmatpush1.msra.mxu0 0.0
    %3827 = vmatprep.subr.mxu0 0.0
    %3828 = vmatpush1.msra.mxu0 0.0
    %3829 = vmatprep.subr.mxu0 0.0
    %3830 = vmatpush1.msra.mxu0 0.0
    %3831 = vmatprep.subr.mxu0 0.0
    %3832 = vmatpush1.msra.mxu0 0.0
    %3833 = vmatprep.subr.mxu0 0.0
    %3834 = vmatpush1.msra.mxu0 0.0
    %3835 = vmatprep.subr.mxu0 0.0
    %3836 = vmatpush1.msra.mxu0 0.0
    %3837 = vmatprep.subr.mxu0 0.0
    %3838 = vmatpush1.msra.mxu0 0.0
    %3839 = vmatprep.subr.mxu0 0.0
    %3840 = vmatpush1.msra.mxu0 0.0
    %3841 = vmatprep.subr.mxu0 0.0
    %3842 = vmatpush1.msra.mxu0 0.0
    %3843 = vmatprep.subr.mxu0 0.0
    %3844 = vmatpush1.msra.mxu0 0.0
    %3845 = vmatprep.subr.mxu0 0.0
    %3846 = vmatpush1.msra.mxu0 0.0
    %3847 = vmatprep.subr.mxu0 0.0
    %3848 = vmatpush1.msra.mxu0 0.0
    %3849 = vmatprep.subr.mxu0 0.0
    %3850 = vmatpush1.msra.mxu0 0.0
    %3851 = vmatprep.mubr.f32.mxu0 0.0
    %3852 = vmatmul.mubr.f32.gmra.mrb[0].mxu0 %v3555
    %v3853 = vpop.f32.mrb[0].mxu0
    %v3854 = vadd.f32 0.0, %v3853
    %v3855 = vpop.f32.mrb[0].mxu0
    %v3856 = vadd.f32 0.0, %v3855
    %3857 = vdwg.mxu0
    %v3858 = vadd.f32 %v3712, %v3783
    %v3859 = vadd.f32 %v3713, %v3785
    %v3860 = vadd.f32 %v3714, %v3854
    %v3861 = vadd.f32 %v3715, %v3856
    %v3862 = vxor.u32 %v3707, 2147483648
    %v3863 = vmul.f32 %v3862, 1.442695
    %v3864 = vpow.pop %v3863
    %v3865 = vadd.f32 %v3864, 1.0
    %v3866 = vrcp.pop %v3865
    %v3867 = vmul.f32 1.0, %v3866
    %v3868 = vxor.u32 %v3708, 2147483648
    %v3869 = vmul.f32 %v3868, 1.442695
    %v3870 = vpow.pop %v3869
    %v3871 = vadd.f32 %v3870, 1.0
    %v3872 = vrcp.pop %v3871
    %v3873 = vmul.f32 1.0, %v3872
    %v3874 = vtanh.pop %v3709
    %v3875 = vxor.u32 %v3710, 2147483648
    %v3876 = vmul.f32 %v3875, 1.442695
    %v3877 = vpow.pop %v3876
    %v3878 = vadd.f32 %v3877, 1.0
    %v3879 = vrcp.pop %v3878
    %v3880 = vmul.f32 1.0, %v3879
    %v3881 = vmul.f32 %v3873, %v3529
    %v3882 = vmul.f32 %v3867, %v3874
    %v3883 = vadd.f32 %v3881, %v3882
    %v3884 = vtanh.pop %v3883
    %v3885 = vmul.f32 %v3880, %v3884
    %v3886 = vxor.u32 %v3858, 2147483648
    %v3887 = vmul.f32 %v3886, 1.442695
    %v3888 = vpow.pop %v3887
    %v3889 = vadd.f32 %v3888, 1.0
    %v3890 = vrcp.pop %v3889
    %v3891 = vmul.f32 1.0, %v3890
    %v3892 = vxor.u32 %v3859, 2147483648
    %v3893 = vmul.f32 %v3892, 1.442695
    %v3894 = vpow.pop %v3893
    %v3895 = vadd.f32 %v3894, 1.0
    %v3896 = vrcp.pop %v3895
    %v3897 = vmul.f32 1.0, %v3896
    %v3898 = vtanh.pop %v3860
    %v3899 = vxor.u32 %v3861, 2147483648
    %v3900 = vmul.f32 %v3899, 1.442695
    %v3901 = vpow.pop %v3900
    %v3902 = vadd.f32 %v3901, 1.0
    %v3903 = vrcp.pop %v3902
    %v3904 = vmul.f32 1.0, %v3903
    %v3905 = vmul.f32 %v3897, %v3553
    %v3906 = vmul.f32 %v3891, %v3898
    %v3907 = vadd.f32 %v3905, %v3906
    %v3908 = vtanh.pop %v3907
    %v3909 = vmul.f32 %v3904, %v3908
    %s3910 = scalar_lea.vmem [#allocation8], 40
    %3911 = vst [vmem:[%s3910] sm:$0xff] %v3885
    %s3912 = scalar_lea.vmem [#allocation9], 16
    %3913 = vst [vmem:[%s3912] sm:$0xff] %v3909
    %s3914 = scalar_lea.vmem [#allocation2], 192
    %v3915 = vld [vmem:[%s3914] sm:$0xff]
    %v3916 = vld [vmem:[%s3914 + $0x8] sm:$0xff]
    %v3917 = vld [vmem:[%s3914 + $0x10] sm:$0xff]
    %v3918 = vld [vmem:[%s3914 + $0x18] sm:$0xff]
    %3919 = vmatprep.subr.mxu0 %v1661
    %3920 = vmatpush1.msra.mxu0 %v1660
    %3921 = vmatprep.subr.mxu0 %v1665
    %3922 = vmatpush1.msra.mxu0 %v1664
    %3923 = vmatprep.subr.mxu0 %v1669
    %3924 = vmatpush1.msra.mxu0 %v1668
    %3925 = vmatprep.subr.mxu0 %v1673
    %3926 = vmatpush1.msra.mxu0 %v1672
    %3927 = vmatprep.subr.mxu0 %v1677
    %3928 = vmatpush1.msra.mxu0 %v1676
    %3929 = vmatprep.subr.mxu0 %v1681
    %3930 = vmatpush1.msra.mxu0 %v1680
    %3931 = vmatprep.subr.mxu0 %v1685
    %3932 = vmatpush1.msra.mxu0 %v1684
    %3933 = vmatprep.subr.mxu0 %v1689
    %3934 = vmatpush1.msra.mxu0 %v1688
    %3935 = vmatprep.subr.mxu0 %v1693
    %3936 = vmatpush1.msra.mxu0 %v1692
    %3937 = vmatprep.subr.mxu0 %v1697
    %3938 = vmatpush1.msra.mxu0 %v1696
    %3939 = vmatprep.subr.mxu0 %v1701
    %3940 = vmatpush1.msra.mxu0 %v1700
    %3941 = vmatprep.subr.mxu0 %v1705
    %3942 = vmatpush1.msra.mxu0 %v1704
    %3943 = vmatprep.subr.mxu0 %v1709
    %3944 = vmatpush1.msra.mxu0 %v1708
    %3945 = vmatprep.subr.mxu0 %v1713
    %3946 = vmatpush1.msra.mxu0 %v1712
    %3947 = vmatprep.subr.mxu0 %v1717
    %3948 = vmatpush1.msra.mxu0 %v1716
    %3949 = vmatprep.subr.mxu0 %v1721
    %3950 = vmatpush1.msra.mxu0 %v1720
    %3951 = vmatprep.subr.mxu0 0.0
    %3952 = vmatpush1.msra.mxu0 0.0
    %3953 = vmatprep.subr.mxu0 0.0
    %3954 = vmatpush1.msra.mxu0 0.0
    %3955 = vmatprep.subr.mxu0 0.0
    %3956 = vmatpush1.msra.mxu0 0.0
    %3957 = vmatprep.subr.mxu0 0.0
    %3958 = vmatpush1.msra.mxu0 0.0
    %3959 = vmatprep.subr.mxu0 0.0
    %3960 = vmatpush1.msra.mxu0 0.0
    %3961 = vmatprep.subr.mxu0 0.0
    %3962 = vmatpush1.msra.mxu0 0.0
    %3963 = vmatprep.subr.mxu0 0.0
    %3964 = vmatpush1.msra.mxu0 0.0
    %3965 = vmatprep.subr.mxu0 0.0
    %3966 = vmatpush1.msra.mxu0 0.0
    %3967 = vmatprep.subr.mxu0 0.0
    %3968 = vmatpush1.msra.mxu0 0.0
    %3969 = vmatprep.subr.mxu0 0.0
    %3970 = vmatpush1.msra.mxu0 0.0
    %3971 = vmatprep.subr.mxu0 0.0
    %3972 = vmatpush1.msra.mxu0 0.0
    %3973 = vmatprep.subr.mxu0 0.0
    %3974 = vmatpush1.msra.mxu0 0.0
    %3975 = vmatprep.subr.mxu0 0.0
    %3976 = vmatpush1.msra.mxu0 0.0
    %3977 = vmatprep.subr.mxu0 0.0
    %3978 = vmatpush1.msra.mxu0 0.0
    %3979 = vmatprep.subr.mxu0 0.0
    %3980 = vmatpush1.msra.mxu0 0.0
    %3981 = vmatprep.subr.mxu0 0.0
    %3982 = vmatpush1.msra.mxu0 0.0
    %3983 = vmatprep.mubr.f32.mxu0 0.0
    %3984 = vmatmul.mubr.f32.gmra.mrb[0].mxu0 %v3885
    %v3985 = vpop.f32.mrb[0].mxu0
    %v3986 = vadd.f32 0.0, %v3985
    %v3987 = vpop.f32.mrb[0].mxu0
    %v3988 = vadd.f32 0.0, %v3987
    %3989 = vdwg.mxu0
    %3990 = vmatprep.subr.mxu0 %v1663
    %3991 = vmatpush1.msra.mxu0 %v1662
    %3992 = vmatprep.subr.mxu0 %v1667
    %3993 = vmatpush1.msra.mxu0 %v1666
    %3994 = vmatprep.subr.mxu0 %v1671
    %3995 = vmatpush1.msra.mxu0 %v1670
    %3996 = vmatprep.subr.mxu0 %v1675
    %3997 = vmatpush1.msra.mxu0 %v1674
    %3998 = vmatprep.subr.mxu0 %v1679
    %3999 = vmatpush1.msra.mxu0 %v1678
    %4000 = vmatprep.subr.mxu0 %v1683
    %4001 = vmatpush1.msra.mxu0 %v1682
    %4002 = vmatprep.subr.mxu0 %v1687
    %4003 = vmatpush1.msra.mxu0 %v1686
    %4004 = vmatprep.subr.mxu0 %v1691
    %4005 = vmatpush1.msra.mxu0 %v1690
    %4006 = vmatprep.subr.mxu0 %v1695
    %4007 = vmatpush1.msra.mxu0 %v1694
    %4008 = vmatprep.subr.mxu0 %v1699
    %4009 = vmatpush1.msra.mxu0 %v1698
    %4010 = vmatprep.subr.mxu0 %v1703
    %4011 = vmatpush1.msra.mxu0 %v1702
    %4012 = vmatprep.subr.mxu0 %v1707
    %4013 = vmatpush1.msra.mxu0 %v1706
    %4014 = vmatprep.subr.mxu0 %v1711
    %4015 = vmatpush1.msra.mxu0 %v1710
    %4016 = vmatprep.subr.mxu0 %v1715
    %4017 = vmatpush1.msra.mxu0 %v1714
    %4018 = vmatprep.subr.mxu0 %v1719
    %4019 = vmatpush1.msra.mxu0 %v1718
    %4020 = vmatprep.subr.mxu0 %v1723
    %4021 = vmatpush1.msra.mxu0 %v1722
    %4022 = vmatprep.subr.mxu0 0.0
    %4023 = vmatpush1.msra.mxu0 0.0
    %4024 = vmatprep.subr.mxu0 0.0
    %4025 = vmatpush1.msra.mxu0 0.0
    %4026 = vmatprep.subr.mxu0 0.0
    %4027 = vmatpush1.msra.mxu0 0.0
    %4028 = vmatprep.subr.mxu0 0.0
    %4029 = vmatpush1.msra.mxu0 0.0
    %4030 = vmatprep.subr.mxu0 0.0
    %4031 = vmatpush1.msra.mxu0 0.0
    %4032 = vmatprep.subr.mxu0 0.0
    %4033 = vmatpush1.msra.mxu0 0.0
    %4034 = vmatprep.subr.mxu0 0.0
    %4035 = vmatpush1.msra.mxu0 0.0
    %4036 = vmatprep.subr.mxu0 0.0
    %4037 = vmatpush1.msra.mxu0 0.0
    %4038 = vmatprep.subr.mxu0 0.0
    %4039 = vmatpush1.msra.mxu0 0.0
    %4040 = vmatprep.subr.mxu0 0.0
    %4041 = vmatpush1.msra.mxu0 0.0
    %4042 = vmatprep.subr.mxu0 0.0
    %4043 = vmatpush1.msra.mxu0 0.0
    %4044 = vmatprep.subr.mxu0 0.0
    %4045 = vmatpush1.msra.mxu0 0.0
    %4046 = vmatprep.subr.mxu0 0.0
    %4047 = vmatpush1.msra.mxu0 0.0
    %4048 = vmatprep.subr.mxu0 0.0
    %4049 = vmatpush1.msra.mxu0 0.0
    %4050 = vmatprep.subr.mxu0 0.0
    %4051 = vmatpush1.msra.mxu0 0.0
    %4052 = vmatprep.subr.mxu0 0.0
    %4053 = vmatpush1.msra.mxu0 0.0
    %4054 = vmatprep.mubr.f32.mxu0 0.0
    %4055 = vmatmul.mubr.f32.gmra.mrb[0].mxu0 %v3885
    %v4056 = vpop.f32.mrb[0].mxu0
    %v4057 = vadd.f32 0.0, %v4056
    %v4058 = vpop.f32.mrb[0].mxu0
    %v4059 = vadd.f32 0.0, %v4058
    %4060 = vdwg.mxu0
    %v4061 = vadd.f32 %v3915, %v3986
    %v4062 = vadd.f32 %v3916, %v3988
    %v4063 = vadd.f32 %v3917, %v4057
    %v4064 = vadd.f32 %v3918, %v4059
    %s4065 = scalar_lea.vmem [#allocation3], 32
    %v4066 = vld [vmem:[%s4065] sm:$0xff]
    %v4067 = vld [vmem:[%s4065 + $0x8] sm:$0xff]
    %v4068 = vld [vmem:[%s4065 + $0x10] sm:$0xff]
    %v4069 = vld [vmem:[%s4065 + $0x18] sm:$0xff]
    %4070 = vmatprep.subr.mxu0 %v1725
    %4071 = vmatpush1.msra.mxu0 %v1724
    %4072 = vmatprep.subr.mxu0 %v1729
    %4073 = vmatpush1.msra.mxu0 %v1728
    %4074 = vmatprep.subr.mxu0 %v1733
    %4075 = vmatpush1.msra.mxu0 %v1732
    %4076 = vmatprep.subr.mxu0 %v1737
    %4077 = vmatpush1.msra.mxu0 %v1736
    %4078 = vmatprep.subr.mxu0 %v1741
    %4079 = vmatpush1.msra.mxu0 %v1740
    %4080 = vmatprep.subr.mxu0 %v1745
    %4081 = vmatpush1.msra.mxu0 %v1744
    %4082 = vmatprep.subr.mxu0 %v1749
    %4083 = vmatpush1.msra.mxu0 %v1748
    %4084 = vmatprep.subr.mxu0 %v1753
    %4085 = vmatpush1.msra.mxu0 %v1752
    %4086 = vmatprep.subr.mxu0 %v1757
    %4087 = vmatpush1.msra.mxu0 %v1756
    %4088 = vmatprep.subr.mxu0 %v1761
    %4089 = vmatpush1.msra.mxu0 %v1760
    %4090 = vmatprep.subr.mxu0 %v1765
    %4091 = vmatpush1.msra.mxu0 %v1764
    %4092 = vmatprep.subr.mxu0 %v1769
    %4093 = vmatpush1.msra.mxu0 %v1768
    %4094 = vmatprep.subr.mxu0 %v1773
    %4095 = vmatpush1.msra.mxu0 %v1772
    %4096 = vmatprep.subr.mxu0 %v1777
    %4097 = vmatpush1.msra.mxu0 %v1776
    %4098 = vmatprep.subr.mxu0 %v1781
    %4099 = vmatpush1.msra.mxu0 %v1780
    %4100 = vmatprep.subr.mxu0 %v1785
    %4101 = vmatpush1.msra.mxu0 %v1784
    %4102 = vmatprep.subr.mxu0 0.0
    %4103 = vmatpush1.msra.mxu0 0.0
    %4104 = vmatprep.subr.mxu0 0.0
    %4105 = vmatpush1.msra.mxu0 0.0
    %4106 = vmatprep.subr.mxu0 0.0
    %4107 = vmatpush1.msra.mxu0 0.0
    %4108 = vmatprep.subr.mxu0 0.0
    %4109 = vmatpush1.msra.mxu0 0.0
    %4110 = vmatprep.subr.mxu0 0.0
    %4111 = vmatpush1.msra.mxu0 0.0
    %4112 = vmatprep.subr.mxu0 0.0
    %4113 = vmatpush1.msra.mxu0 0.0
    %4114 = vmatprep.subr.mxu0 0.0
    %4115 = vmatpush1.msra.mxu0 0.0
    %4116 = vmatprep.subr.mxu0 0.0
    %4117 = vmatpush1.msra.mxu0 0.0
    %4118 = vmatprep.subr.mxu0 0.0
    %4119 = vmatpush1.msra.mxu0 0.0
    %4120 = vmatprep.subr.mxu0 0.0
    %4121 = vmatpush1.msra.mxu0 0.0
    %4122 = vmatprep.subr.mxu0 0.0
    %4123 = vmatpush1.msra.mxu0 0.0
    %4124 = vmatprep.subr.mxu0 0.0
    %4125 = vmatpush1.msra.mxu0 0.0
    %4126 = vmatprep.subr.mxu0 0.0
    %4127 = vmatpush1.msra.mxu0 0.0
    %4128 = vmatprep.subr.mxu0 0.0
    %4129 = vmatpush1.msra.mxu0 0.0
    %4130 = vmatprep.subr.mxu0 0.0
    %4131 = vmatpush1.msra.mxu0 0.0
    %4132 = vmatprep.subr.mxu0 0.0
    %4133 = vmatpush1.msra.mxu0 0.0
    %4134 = vmatprep.mubr.f32.mxu0 0.0
    %4135 = vmatmul.mubr.f32.gmra.mrb[0].mxu0 %v3909
    %v4136 = vpop.f32.mrb[0].mxu0
    %v4137 = vadd.f32 0.0, %v4136
    %v4138 = vpop.f32.mrb[0].mxu0
    %v4139 = vadd.f32 0.0, %v4138
    %4140 = vdwg.mxu0
    %4141 = vmatprep.subr.mxu0 %v1727
    %4142 = vmatpush1.msra.mxu0 %v1726
    %4143 = vmatprep.subr.mxu0 %v1731
    %4144 = vmatpush1.msra.mxu0 %v1730
    %4145 = vmatprep.subr.mxu0 %v1735
    %4146 = vmatpush1.msra.mxu0 %v1734
    %4147 = vmatprep.subr.mxu0 %v1739
    %4148 = vmatpush1.msra.mxu0 %v1738
    %4149 = vmatprep.subr.mxu0 %v1743
    %4150 = vmatpush1.msra.mxu0 %v1742
    %4151 = vmatprep.subr.mxu0 %v1747
    %4152 = vmatpush1.msra.mxu0 %v1746
    %4153 = vmatprep.subr.mxu0 %v1751
    %4154 = vmatpush1.msra.mxu0 %v1750
    %4155 = vmatprep.subr.mxu0 %v1755
    %4156 = vmatpush1.msra.mxu0 %v1754
    %4157 = vmatprep.subr.mxu0 %v1759
    %4158 = vmatpush1.msra.mxu0 %v1758
    %4159 = vmatprep.subr.mxu0 %v1763
    %4160 = vmatpush1.msra.mxu0 %v1762
    %4161 = vmatprep.subr.mxu0 %v1767
    %4162 = vmatpush1.msra.mxu0 %v1766
    %4163 = vmatprep.subr.mxu0 %v1771
    %4164 = vmatpush1.msra.mxu0 %v1770
    %4165 = vmatprep.subr.mxu0 %v1775
    %4166 = vmatpush1.msra.mxu0 %v1774
    %4167 = vmatprep.subr.mxu0 %v1779
    %4168 = vmatpush1.msra.mxu0 %v1778
    %4169 = vmatprep.subr.mxu0 %v1783
    %4170 = vmatpush1.msra.mxu0 %v1782
    %4171 = vmatprep.subr.mxu0 %v1787
    %4172 = vmatpush1.msra.mxu0 %v1786
    %4173 = vmatprep.subr.mxu0 0.0
    %4174 = vmatpush1.msra.mxu0 0.0
    %4175 = vmatprep.subr.mxu0 0.0
    %4176 = vmatpush1.msra.mxu0 0.0
    %4177 = vmatprep.subr.mxu0 0.0
    %4178 = vmatpush1.msra.mxu0 0.0
    %4179 = vmatprep.subr.mxu0 0.0
    %4180 = vmatpush1.msra.mxu0 0.0
    %4181 = vmatprep.subr.mxu0 0.0
    %4182 = vmatpush1.msra.mxu0 0.0
    %4183 = vmatprep.subr.mxu0 0.0
    %4184 = vmatpush1.msra.mxu0 0.0
    %4185 = vmatprep.subr.mxu0 0.0
    %4186 = vmatpush1.msra.mxu0 0.0
    %4187 = vmatprep.subr.mxu0 0.0
    %4188 = vmatpush1.msra.mxu0 0.0
    %4189 = vmatprep.subr.mxu0 0.0
    %4190 = vmatpush1.msra.mxu0 0.0
    %4191 = vmatprep.subr.mxu0 0.0
    %4192 = vmatpush1.msra.mxu0 0.0
    %4193 = vmatprep.subr.mxu0 0.0
    %4194 = vmatpush1.msra.mxu0 0.0
    %4195 = vmatprep.subr.mxu0 0.0
    %4196 = vmatpush1.msra.mxu0 0.0
    %4197 = vmatprep.subr.mxu0 0.0
    %4198 = vmatpush1.msra.mxu0 0.0
    %4199 = vmatprep.subr.mxu0 0.0
    %4200 = vmatpush1.msra.mxu0 0.0
    %4201 = vmatprep.subr.mxu0 0.0
    %4202 = vmatpush1.msra.mxu0 0.0
    %4203 = vmatprep.subr.mxu0 0.0
    %4204 = vmatpush1.msra.mxu0 0.0
    %4205 = vmatprep.mubr.f32.mxu0 0.0
    %4206 = vmatmul.mubr.f32.gmra.mrb[0].mxu0 %v3909
    %v4207 = vpop.f32.mrb[0].mxu0
    %v4208 = vadd.f32 0.0, %v4207
    %v4209 = vpop.f32.mrb[0].mxu0
    %v4210 = vadd.f32 0.0, %v4209
    %4211 = vdwg.mxu0
    %v4212 = vadd.f32 %v4066, %v4137
    %v4213 = vadd.f32 %v4067, %v4139
    %v4214 = vadd.f32 %v4068, %v4208
    %v4215 = vadd.f32 %v4069, %v4210
    %v4216 = vxor.u32 %v4061, 2147483648
    %v4217 = vmul.f32 %v4216, 1.442695
    %v4218 = vpow.pop %v4217
    %v4219 = vadd.f32 %v4218, 1.0
    %v4220 = vrcp.pop %v4219
    %v4221 = vmul.f32 1.0, %v4220
    %v4222 = vxor.u32 %v4062, 2147483648
    %v4223 = vmul.f32 %v4222, 1.442695
    %v4224 = vpow.pop %v4223
    %v4225 = vadd.f32 %v4224, 1.0
    %v4226 = vrcp.pop %v4225
    %v4227 = vmul.f32 1.0, %v4226
    %v4228 = vtanh.pop %v4063
    %v4229 = vxor.u32 %v4064, 2147483648
    %v4230 = vmul.f32 %v4229, 1.442695
    %v4231 = vpow.pop %v4230
    %v4232 = vadd.f32 %v4231, 1.0
    %v4233 = vrcp.pop %v4232
    %v4234 = vmul.f32 1.0, %v4233
    %v4235 = vmul.f32 %v4227, %v3883
    %v4236 = vmul.f32 %v4221, %v4228
    %v4237 = vadd.f32 %v4235, %v4236
    %v4238 = vtanh.pop %v4237
    %v4239 = vmul.f32 %v4234, %v4238
    %v4240 = vxor.u32 %v4212, 2147483648
    %v4241 = vmul.f32 %v4240, 1.442695
    %v4242 = vpow.pop %v4241
    %v4243 = vadd.f32 %v4242, 1.0
    %v4244 = vrcp.pop %v4243
    %v4245 = vmul.f32 1.0, %v4244
    %v4246 = vxor.u32 %v4213, 2147483648
    %v4247 = vmul.f32 %v4246, 1.442695
    %v4248 = vpow.pop %v4247
    %v4249 = vadd.f32 %v4248, 1.0
    %v4250 = vrcp.pop %v4249
    %v4251 = vmul.f32 1.0, %v4250
    %v4252 = vtanh.pop %v4214
    %v4253 = vxor.u32 %v4215, 2147483648
    %v4254 = vmul.f32 %v4253, 1.442695
    %v4255 = vpow.pop %v4254
    %v4256 = vadd.f32 %v4255, 1.0
    %v4257 = vrcp.pop %v4256
    %v4258 = vmul.f32 1.0, %v4257
    %v4259 = vmul.f32 %v4251, %v3907
    %v4260 = vmul.f32 %v4245, %v4252
    %v4261 = vadd.f32 %v4259, %v4260
    %v4262 = vtanh.pop %v4261
    %v4263 = vmul.f32 %v4258, %v4262
    %s4264 = scalar_lea.vmem [#allocation8], 48
    %4265 = vst [vmem:[%s4264] sm:$0xff] %v4239
    %s4266 = scalar_lea.vmem [#allocation9], 8
    %4267 = vst [vmem:[%s4266] sm:$0xff] %v4263
    %s4268 = scalar_lea.vmem [#allocation2], 224
    %v4269 = vld [vmem:[%s4268] sm:$0xff]
    %v4270 = vld [vmem:[%s4268 + $0x8] sm:$0xff]
    %v4271 = vld [vmem:[%s4268 + $0x10] sm:$0xff]
    %v4272 = vld [vmem:[%s4268 + $0x18] sm:$0xff]
    %4273 = vmatprep.subr.mxu0 %v1661
    %4274 = vmatpush1.msra.mxu0 %v1660
    %4275 = vmatprep.subr.mxu0 %v1665
    %4276 = vmatpush1.msra.mxu0 %v1664
    %4277 = vmatprep.subr.mxu0 %v1669
    %4278 = vmatpush1.msra.mxu0 %v1668
    %4279 = vmatprep.subr.mxu0 %v1673
    %4280 = vmatpush1.msra.mxu0 %v1672
    %4281 = vmatprep.subr.mxu0 %v1677
    %4282 = vmatpush1.msra.mxu0 %v1676
    %4283 = vmatprep.subr.mxu0 %v1681
    %4284 = vmatpush1.msra.mxu0 %v1680
    %4285 = vmatprep.subr.mxu0 %v1685
    %4286 = vmatpush1.msra.mxu0 %v1684
    %4287 = vmatprep.subr.mxu0 %v1689
    %4288 = vmatpush1.msra.mxu0 %v1688
    %4289 = vmatprep.subr.mxu0 %v1693
    %4290 = vmatpush1.msra.mxu0 %v1692
    %4291 = vmatprep.subr.mxu0 %v1697
    %4292 = vmatpush1.msra.mxu0 %v1696
    %4293 = vmatprep.subr.mxu0 %v1701
    %4294 = vmatpush1.msra.mxu0 %v1700
    %4295 = vmatprep.subr.mxu0 %v1705
    %4296 = vmatpush1.msra.mxu0 %v1704
    %4297 = vmatprep.subr.mxu0 %v1709
    %4298 = vmatpush1.msra.mxu0 %v1708
    %4299 = vmatprep.subr.mxu0 %v1713
    %4300 = vmatpush1.msra.mxu0 %v1712
    %4301 = vmatprep.subr.mxu0 %v1717
    %4302 = vmatpush1.msra.mxu0 %v1716
    %4303 = vmatprep.subr.mxu0 %v1721
    %4304 = vmatpush1.msra.mxu0 %v1720
    %4305 = vmatprep.subr.mxu0 0.0
    %4306 = vmatpush1.msra.mxu0 0.0
    %4307 = vmatprep.subr.mxu0 0.0
    %4308 = vmatpush1.msra.mxu0 0.0
    %4309 = vmatprep.subr.mxu0 0.0
    %4310 = vmatpush1.msra.mxu0 0.0
    %4311 = vmatprep.subr.mxu0 0.0
    %4312 = vmatpush1.msra.mxu0 0.0
    %4313 = vmatprep.subr.mxu0 0.0
    %4314 = vmatpush1.msra.mxu0 0.0
    %4315 = vmatprep.subr.mxu0 0.0
    %4316 = vmatpush1.msra.mxu0 0.0
    %4317 = vmatprep.subr.mxu0 0.0
    %4318 = vmatpush1.msra.mxu0 0.0
    %4319 = vmatprep.subr.mxu0 0.0
    %4320 = vmatpush1.msra.mxu0 0.0
    %4321 = vmatprep.subr.mxu0 0.0
    %4322 = vmatpush1.msra.mxu0 0.0
    %4323 = vmatprep.subr.mxu0 0.0
    %4324 = vmatpush1.msra.mxu0 0.0
    %4325 = vmatprep.subr.mxu0 0.0
    %4326 = vmatpush1.msra.mxu0 0.0
    %4327 = vmatprep.subr.mxu0 0.0
    %4328 = vmatpush1.msra.mxu0 0.0
    %4329 = vmatprep.subr.mxu0 0.0
    %4330 = vmatpush1.msra.mxu0 0.0
    %4331 = vmatprep.subr.mxu0 0.0
    %4332 = vmatpush1.msra.mxu0 0.0
    %4333 = vmatprep.subr.mxu0 0.0
    %4334 = vmatpush1.msra.mxu0 0.0
    %4335 = vmatprep.subr.mxu0 0.0
    %4336 = vmatpush1.msra.mxu0 0.0
    %4337 = vmatprep.mubr.f32.mxu0 0.0
    %4338 = vmatmul.mubr.f32.gmra.mrb[0].mxu0 %v4239
    %v4339 = vpop.f32.mrb[0].mxu0
    %v4340 = vadd.f32 0.0, %v4339
    %v4341 = vpop.f32.mrb[0].mxu0
    %v4342 = vadd.f32 0.0, %v4341
    %4343 = vdwg.mxu0
    %4344 = vmatprep.subr.mxu0 %v1663
    %4345 = vmatpush1.msra.mxu0 %v1662
    %4346 = vmatprep.subr.mxu0 %v1667
    %4347 = vmatpush1.msra.mxu0 %v1666
    %4348 = vmatprep.subr.mxu0 %v1671
    %4349 = vmatpush1.msra.mxu0 %v1670
    %4350 = vmatprep.subr.mxu0 %v1675
    %4351 = vmatpush1.msra.mxu0 %v1674
    %4352 = vmatprep.subr.mxu0 %v1679
    %4353 = vmatpush1.msra.mxu0 %v1678
    %4354 = vmatprep.subr.mxu0 %v1683
    %4355 = vmatpush1.msra.mxu0 %v1682
    %4356 = vmatprep.subr.mxu0 %v1687
    %4357 = vmatpush1.msra.mxu0 %v1686
    %4358 = vmatprep.subr.mxu0 %v1691
    %4359 = vmatpush1.msra.mxu0 %v1690
    %4360 = vmatprep.subr.mxu0 %v1695
    %4361 = vmatpush1.msra.mxu0 %v1694
    %4362 = vmatprep.subr.mxu0 %v1699
    %4363 = vmatpush1.msra.mxu0 %v1698
    %4364 = vmatprep.subr.mxu0 %v1703
    %4365 = vmatpush1.msra.mxu0 %v1702
    %4366 = vmatprep.subr.mxu0 %v1707
    %4367 = vmatpush1.msra.mxu0 %v1706
    %4368 = vmatprep.subr.mxu0 %v1711
    %4369 = vmatpush1.msra.mxu0 %v1710
    %4370 = vmatprep.subr.mxu0 %v1715
    %4371 = vmatpush1.msra.mxu0 %v1714
    %4372 = vmatprep.subr.mxu0 %v1719
    %4373 = vmatpush1.msra.mxu0 %v1718
    %4374 = vmatprep.subr.mxu0 %v1723
    %4375 = vmatpush1.msra.mxu0 %v1722
    %4376 = vmatprep.subr.mxu0 0.0
    %4377 = vmatpush1.msra.mxu0 0.0
    %4378 = vmatprep.subr.mxu0 0.0
    %4379 = vmatpush1.msra.mxu0 0.0
    %4380 = vmatprep.subr.mxu0 0.0
    %4381 = vmatpush1.msra.mxu0 0.0
    %4382 = vmatprep.subr.mxu0 0.0
    %4383 = vmatpush1.msra.mxu0 0.0
    %4384 = vmatprep.subr.mxu0 0.0
    %4385 = vmatpush1.msra.mxu0 0.0
    %4386 = vmatprep.subr.mxu0 0.0
    %4387 = vmatpush1.msra.mxu0 0.0
    %4388 = vmatprep.subr.mxu0 0.0
    %4389 = vmatpush1.msra.mxu0 0.0
    %4390 = vmatprep.subr.mxu0 0.0
    %4391 = vmatpush1.msra.mxu0 0.0
    %4392 = vmatprep.subr.mxu0 0.0
    %4393 = vmatpush1.msra.mxu0 0.0
    %4394 = vmatprep.subr.mxu0 0.0
    %4395 = vmatpush1.msra.mxu0 0.0
    %4396 = vmatprep.subr.mxu0 0.0
    %4397 = vmatpush1.msra.mxu0 0.0
    %4398 = vmatprep.subr.mxu0 0.0
    %4399 = vmatpush1.msra.mxu0 0.0
    %4400 = vmatprep.subr.mxu0 0.0
    %4401 = vmatpush1.msra.mxu0 0.0
    %4402 = vmatprep.subr.mxu0 0.0
    %4403 = vmatpush1.msra.mxu0 0.0
    %4404 = vmatprep.subr.mxu0 0.0
    %4405 = vmatpush1.msra.mxu0 0.0
    %4406 = vmatprep.subr.mxu0 0.0
    %4407 = vmatpush1.msra.mxu0 0.0
    %4408 = vmatprep.mubr.f32.mxu0 0.0
    %4409 = vmatmul.mubr.f32.gmra.mrb[0].mxu0 %v4239
    %v4410 = vpop.f32.mrb[0].mxu0
    %v4411 = vadd.f32 0.0, %v4410
    %v4412 = vpop.f32.mrb[0].mxu0
    %v4413 = vadd.f32 0.0, %v4412
    %4414 = vdwg.mxu0
    %v4415 = vadd.f32 %v4269, %v4340
    %v4416 = vadd.f32 %v4270, %v4342
    %v4417 = vadd.f32 %v4271, %v4411
    %v4418 = vadd.f32 %v4272, %v4413
    %v4419 = vld [vmem:[#allocation3] sm:$0xff]
    %v4420 = vld [vmem:[#allocation3 + $0x8] sm:$0xff]
    %v4421 = vld [vmem:[#allocation3 + $0x10] sm:$0xff]
    %v4422 = vld [vmem:[#allocation3 + $0x18] sm:$0xff]
    %4423 = vmatprep.subr.mxu0 %v1725
    %4424 = vmatpush1.msra.mxu0 %v1724
    %4425 = vmatprep.subr.mxu0 %v1729
    %4426 = vmatpush1.msra.mxu0 %v1728
    %4427 = vmatprep.subr.mxu0 %v1733
    %4428 = vmatpush1.msra.mxu0 %v1732
    %4429 = vmatprep.subr.mxu0 %v1737
    %4430 = vmatpush1.msra.mxu0 %v1736
    %4431 = vmatprep.subr.mxu0 %v1741
    %4432 = vmatpush1.msra.mxu0 %v1740
    %4433 = vmatprep.subr.mxu0 %v1745
    %4434 = vmatpush1.msra.mxu0 %v1744
    %4435 = vmatprep.subr.mxu0 %v1749
    %4436 = vmatpush1.msra.mxu0 %v1748
    %4437 = vmatprep.subr.mxu0 %v1753
    %4438 = vmatpush1.msra.mxu0 %v1752
    %4439 = vmatprep.subr.mxu0 %v1757
    %4440 = vmatpush1.msra.mxu0 %v1756
    %4441 = vmatprep.subr.mxu0 %v1761
    %4442 = vmatpush1.msra.mxu0 %v1760
    %4443 = vmatprep.subr.mxu0 %v1765
    %4444 = vmatpush1.msra.mxu0 %v1764
    %4445 = vmatprep.subr.mxu0 %v1769
    %4446 = vmatpush1.msra.mxu0 %v1768
    %4447 = vmatprep.subr.mxu0 %v1773
    %4448 = vmatpush1.msra.mxu0 %v1772
    %4449 = vmatprep.subr.mxu0 %v1777
    %4450 = vmatpush1.msra.mxu0 %v1776
    %4451 = vmatprep.subr.mxu0 %v1781
    %4452 = vmatpush1.msra.mxu0 %v1780
    %4453 = vmatprep.subr.mxu0 %v1785
    %4454 = vmatpush1.msra.mxu0 %v1784
    %4455 = vmatprep.subr.mxu0 0.0
    %4456 = vmatpush1.msra.mxu0 0.0
    %4457 = vmatprep.subr.mxu0 0.0
    %4458 = vmatpush1.msra.mxu0 0.0
    %4459 = vmatprep.subr.mxu0 0.0
    %4460 = vmatpush1.msra.mxu0 0.0
    %4461 = vmatprep.subr.mxu0 0.0
    %4462 = vmatpush1.msra.mxu0 0.0
    %4463 = vmatprep.subr.mxu0 0.0
    %4464 = vmatpush1.msra.mxu0 0.0
    %4465 = vmatprep.subr.mxu0 0.0
    %4466 = vmatpush1.msra.mxu0 0.0
    %4467 = vmatprep.subr.mxu0 0.0
    %4468 = vmatpush1.msra.mxu0 0.0
    %4469 = vmatprep.subr.mxu0 0.0
    %4470 = vmatpush1.msra.mxu0 0.0
    %4471 = vmatprep.subr.mxu0 0.0
    %4472 = vmatpush1.msra.mxu0 0.0
    %4473 = vmatprep.subr.mxu0 0.0
    %4474 = vmatpush1.msra.mxu0 0.0
    %4475 = vmatprep.subr.mxu0 0.0
    %4476 = vmatpush1.msra.mxu0 0.0
    %4477 = vmatprep.subr.mxu0 0.0
    %4478 = vmatpush1.msra.mxu0 0.0
    %4479 = vmatprep.subr.mxu0 0.0
    %4480 = vmatpush1.msra.mxu0 0.0
    %4481 = vmatprep.subr.mxu0 0.0
    %4482 = vmatpush1.msra.mxu0 0.0
    %4483 = vmatprep.subr.mxu0 0.0
    %4484 = vmatpush1.msra.mxu0 0.0
    %4485 = vmatprep.subr.mxu0 0.0
    %4486 = vmatpush1.msra.mxu0 0.0
    %4487 = vmatprep.mubr.f32.mxu0 0.0
    %4488 = vmatmul.mubr.f32.gmra.mrb[0].mxu0 %v4263
    %v4489 = vpop.f32.mrb[0].mxu0
    %v4490 = vadd.f32 0.0, %v4489
    %v4491 = vpop.f32.mrb[0].mxu0
    %v4492 = vadd.f32 0.0, %v4491
    %4493 = vdwg.mxu0
    %4494 = vmatprep.subr.mxu0 %v1727
    %4495 = vmatpush1.msra.mxu0 %v1726
    %4496 = vmatprep.subr.mxu0 %v1731
    %4497 = vmatpush1.msra.mxu0 %v1730
    %4498 = vmatprep.subr.mxu0 %v1735
    %4499 = vmatpush1.msra.mxu0 %v1734
    %4500 = vmatprep.subr.mxu0 %v1739
    %4501 = vmatpush1.msra.mxu0 %v1738
    %4502 = vmatprep.subr.mxu0 %v1743
    %4503 = vmatpush1.msra.mxu0 %v1742
    %4504 = vmatprep.subr.mxu0 %v1747
    %4505 = vmatpush1.msra.mxu0 %v1746
    %4506 = vmatprep.subr.mxu0 %v1751
    %4507 = vmatpush1.msra.mxu0 %v1750
    %4508 = vmatprep.subr.mxu0 %v1755
    %4509 = vmatpush1.msra.mxu0 %v1754
    %4510 = vmatprep.subr.mxu0 %v1759
    %4511 = vmatpush1.msra.mxu0 %v1758
    %4512 = vmatprep.subr.mxu0 %v1763
    %4513 = vmatpush1.msra.mxu0 %v1762
    %4514 = vmatprep.subr.mxu0 %v1767
    %4515 = vmatpush1.msra.mxu0 %v1766
    %4516 = vmatprep.subr.mxu0 %v1771
    %4517 = vmatpush1.msra.mxu0 %v1770
    %4518 = vmatprep.subr.mxu0 %v1775
    %4519 = vmatpush1.msra.mxu0 %v1774
    %4520 = vmatprep.subr.mxu0 %v1779
    %4521 = vmatpush1.msra.mxu0 %v1778
    %4522 = vmatprep.subr.mxu0 %v1783
    %4523 = vmatpush1.msra.mxu0 %v1782
    %4524 = vmatprep.subr.mxu0 %v1787
    %4525 = vmatpush1.msra.mxu0 %v1786
    %4526 = vmatprep.subr.mxu0 0.0
    %4527 = vmatpush1.msra.mxu0 0.0
    %4528 = vmatprep.subr.mxu0 0.0
    %4529 = vmatpush1.msra.mxu0 0.0
    %4530 = vmatprep.subr.mxu0 0.0
    %4531 = vmatpush1.msra.mxu0 0.0
    %4532 = vmatprep.subr.mxu0 0.0
    %4533 = vmatpush1.msra.mxu0 0.0
    %4534 = vmatprep.subr.mxu0 0.0
    %4535 = vmatpush1.msra.mxu0 0.0
    %4536 = vmatprep.subr.mxu0 0.0
    %4537 = vmatpush1.msra.mxu0 0.0
    %4538 = vmatprep.subr.mxu0 0.0
    %4539 = vmatpush1.msra.mxu0 0.0
    %4540 = vmatprep.subr.mxu0 0.0
    %4541 = vmatpush1.msra.mxu0 0.0
    %4542 = vmatprep.subr.mxu0 0.0
    %4543 = vmatpush1.msra.mxu0 0.0
    %4544 = vmatprep.subr.mxu0 0.0
    %4545 = vmatpush1.msra.mxu0 0.0
    %4546 = vmatprep.subr.mxu0 0.0
    %4547 = vmatpush1.msra.mxu0 0.0
    %4548 = vmatprep.subr.mxu0 0.0
    %4549 = vmatpush1.msra.mxu0 0.0
    %4550 = vmatprep.subr.mxu0 0.0
    %4551 = vmatpush1.msra.mxu0 0.0
    %4552 = vmatprep.subr.mxu0 0.0
    %4553 = vmatpush1.msra.mxu0 0.0
    %4554 = vmatprep.subr.mxu0 0.0
    %4555 = vmatpush1.msra.mxu0 0.0
    %4556 = vmatprep.subr.mxu0 0.0
    %4557 = vmatpush1.msra.mxu0 0.0
    %4558 = vmatprep.mubr.f32.mxu0 0.0
    %4559 = vmatmul.mubr.f32.gmra.mrb[0].mxu0 %v4263
    %v4560 = vpop.f32.mrb[0].mxu0
    %v4561 = vadd.f32 0.0, %v4560
    %v4562 = vpop.f32.mrb[0].mxu0
    %v4563 = vadd.f32 0.0, %v4562
    %4564 = vdwg.mxu0
    %v4565 = vadd.f32 %v4419, %v4490
    %v4566 = vadd.f32 %v4420, %v4492
    %v4567 = vadd.f32 %v4421, %v4561
    %v4568 = vadd.f32 %v4422, %v4563
    %v4569 = vxor.u32 %v4415, 2147483648
    %v4570 = vmul.f32 %v4569, 1.442695
    %v4571 = vpow.pop %v4570
    %v4572 = vadd.f32 %v4571, 1.0
    %v4573 = vrcp.pop %v4572
    %v4574 = vmul.f32 1.0, %v4573
    %v4575 = vxor.u32 %v4416, 2147483648
    %v4576 = vmul.f32 %v4575, 1.442695
    %v4577 = vpow.pop %v4576
    %v4578 = vadd.f32 %v4577, 1.0
    %v4579 = vrcp.pop %v4578
    %v4580 = vmul.f32 1.0, %v4579
    %v4581 = vtanh.pop %v4417
    %v4582 = vxor.u32 %v4418, 2147483648
    %v4583 = vmul.f32 %v4582, 1.442695
    %v4584 = vpow.pop %v4583
    %v4585 = vadd.f32 %v4584, 1.0
    %v4586 = vrcp.pop %v4585
    %v4587 = vmul.f32 1.0, %v4586
    %v4588 = vmul.f32 %v4580, %v4237
    %v4589 = vmul.f32 %v4574, %v4581
    %v4590 = vadd.f32 %v4588, %v4589
    %v4591 = vtanh.pop %v4590
    %v4592 = vmul.f32 %v4587, %v4591
    %v4593 = vxor.u32 %v4565, 2147483648
    %v4594 = vmul.f32 %v4593, 1.442695
    %v4595 = vpow.pop %v4594
    %v4596 = vadd.f32 %v4595, 1.0
    %v4597 = vrcp.pop %v4596
    %v4598 = vmul.f32 1.0, %v4597
    %v4599 = vxor.u32 %v4566, 2147483648
    %v4600 = vmul.f32 %v4599, 1.442695
    %v4601 = vpow.pop %v4600
    %v4602 = vadd.f32 %v4601, 1.0
    %v4603 = vrcp.pop %v4602
    %v4604 = vmul.f32 1.0, %v4603
    %v4605 = vtanh.pop %v4567
    %v4606 = vxor.u32 %v4568, 2147483648
    %v4607 = vmul.f32 %v4606, 1.442695
    %v4608 = vpow.pop %v4607
    %v4609 = vadd.f32 %v4608, 1.0
    %v4610 = vrcp.pop %v4609
    %v4611 = vmul.f32 1.0, %v4610
    %v4612 = vmul.f32 %v4604, %v4261
    %v4613 = vmul.f32 %v4598, %v4605
    %v4614 = vadd.f32 %v4612, %v4613
    %v4615 = vtanh.pop %v4614
    %v4616 = vmul.f32 %v4611, %v4615
    %s4617 = scalar_lea.vmem [#allocation8], 56
    %4618 = vst [vmem:[%s4617] sm:$0xff] %v4592
    %4619 = vst [vmem:[#allocation9] sm:$0xff] %v4616
    %4620 = vst [vmem:[#allocation4] sm:$0xff] %v4592
    %4621 = vst [vmem:[#allocation5] sm:$0xff] %v4590
    %4622 = vst [vmem:[#allocation6] sm:$0xff] %v4616
    %4623 = vst [vmem:[#allocation7] sm:$0xff] %v4614
    %v4624 = vld [vmem:[#allocation8] sm:$0xff]
    %v4625 = vld [vmem:[#allocation8 + $0x8] sm:$0xff]
    %v4626 = vld [vmem:[#allocation8 + $0x10] sm:$0xff]
    %v4627 = vld [vmem:[#allocation8 + $0x18] sm:$0xff]
    %v4628 = vld [vmem:[#allocation8 + $0x20] sm:$0xff]
    %v4629 = vld [vmem:[#allocation8 + $0x28] sm:$0xff]
    %v4630 = vld [vmem:[#allocation8 + $0x30] sm:$0xff]
    %v4631 = vld [vmem:[#allocation8 + $0x38] sm:$0xff]
    %v4632 = vld [vmem:[#allocation9] sm:$0xff]
    %v4633 = vld [vmem:[#allocation9 + $0x8] sm:$0xff]
    %v4634 = vld [vmem:[#allocation9 + $0x10] sm:$0xff]
    %v4635 = vld [vmem:[#allocation9 + $0x18] sm:$0xff]
    %v4636 = vld [vmem:[#allocation9 + $0x20] sm:$0xff]
    %v4637 = vld [vmem:[#allocation9 + $0x28] sm:$0xff]
    %v4638 = vld [vmem:[#allocation9 + $0x30] sm:$0xff]
    %v4639 = vld [vmem:[#allocation9 + $0x38] sm:$0xff]
    %v4640 = vld [vmem:[#allocation12] sm:$0xff]
    %v4641 = vld [vmem:[#allocation12 + $0x8] sm:$0xff]
    %v4642 = vld [vmem:[#allocation12 + $0x10] sm:$0xff]
    %v4643 = vld [vmem:[#allocation12 + $0x18] sm:$0xff]
    %v4644 = vld [vmem:[#allocation12 + $0x20] sm:$0xff]
    %v4645 = vld [vmem:[#allocation12 + $0x28] sm:$0xff]
    %v4646 = vld [vmem:[#allocation12 + $0x30] sm:$0xff]
    %v4647 = vld [vmem:[#allocation12 + $0x38] sm:$0xff]
    %v4648 = vld [vmem:[#allocation12 + $0x40] sm:$0xff]
    %v4649 = vld [vmem:[#allocation12 + $0x48] sm:$0xff]
    %v4650 = vld [vmem:[#allocation12 + $0x50] sm:$0xff]
    %v4651 = vld [vmem:[#allocation12 + $0x58] sm:$0xff]
    %v4652 = vld [vmem:[#allocation12 + $0x60] sm:$0xff]
    %v4653 = vld [vmem:[#allocation12 + $0x68] sm:$0xff]
    %v4654 = vld [vmem:[#allocation12 + $0x70] sm:$0xff]
    %v4655 = vld [vmem:[#allocation12 + $0x78] sm:$0xff]
    %v4656 = vld [vmem:[#allocation14] sm:$0xff]
    %v4657 = vld [vmem:[#allocation14 + $0x8] sm:$0xff]
    %v4658 = vld [vmem:[#allocation14 + $0x10] sm:$0xff]
    %v4659 = vld [vmem:[#allocation14 + $0x18] sm:$0xff]
    %v4660 = vld [vmem:[#allocation14 + $0x20] sm:$0xff]
    %v4661 = vld [vmem:[#allocation14 + $0x28] sm:$0xff]
    %v4662 = vld [vmem:[#allocation14 + $0x30] sm:$0xff]
    %v4663 = vld [vmem:[#allocation14 + $0x38] sm:$0xff]
    %v4664 = vld [vmem:[#allocation14 + $0x40] sm:$0xff]
    %v4665 = vld [vmem:[#allocation14 + $0x48] sm:$0xff]
    %v4666 = vld [vmem:[#allocation14 + $0x50] sm:$0xff]
    %v4667 = vld [vmem:[#allocation14 + $0x58] sm:$0xff]
    %v4668 = vld [vmem:[#allocation14 + $0x60] sm:$0xff]
    %v4669 = vld [vmem:[#allocation14 + $0x68] sm:$0xff]
    %v4670 = vld [vmem:[#allocation14 + $0x70] sm:$0xff]
    %v4671 = vld [vmem:[#allocation14 + $0x78] sm:$0xff]
    %4672 = vmatprep.subr.mxu0 0.0
    %4673 = vmatpush1.msra.mxu0 %v4656
    %4674 = vmatprep.subr.mxu0 0.0
    %4675 = vmatpush1.msra.mxu0 %v4657
    %4676 = vmatprep.subr.mxu0 0.0
    %4677 = vmatpush1.msra.mxu0 %v4658
    %4678 = vmatprep.subr.mxu0 0.0
    %4679 = vmatpush1.msra.mxu0 %v4659
    %4680 = vmatprep.subr.mxu0 0.0
    %4681 = vmatpush1.msra.mxu0 %v4660
    %4682 = vmatprep.subr.mxu0 0.0
    %4683 = vmatpush1.msra.mxu0 %v4661
    %4684 = vmatprep.subr.mxu0 0.0
    %4685 = vmatpush1.msra.mxu0 %v4662
    %4686 = vmatprep.subr.mxu0 0.0
    %4687 = vmatpush1.msra.mxu0 %v4663
    %4688 = vmatprep.subr.mxu0 0.0
    %4689 = vmatpush1.msra.mxu0 %v4664
    %4690 = vmatprep.subr.mxu0 0.0
    %4691 = vmatpush1.msra.mxu0 %v4665
    %4692 = vmatprep.subr.mxu0 0.0
    %4693 = vmatpush1.msra.mxu0 %v4666
    %4694 = vmatprep.subr.mxu0 0.0
    %4695 = vmatpush1.msra.mxu0 %v4667
    %4696 = vmatprep.subr.mxu0 0.0
    %4697 = vmatpush1.msra.mxu0 %v4668
    %4698 = vmatprep.subr.mxu0 0.0
    %4699 = vmatpush1.msra.mxu0 %v4669
    %4700 = vmatprep.subr.mxu0 0.0
    %4701 = vmatpush1.msra.mxu0 %v4670
    %4702 = vmatprep.subr.mxu0 0.0
    %4703 = vmatpush1.msra.mxu0 %v4671
    %4704 = vmatprep.subr.mxu0 0.0
    %4705 = vmatpush1.msra.mxu0 0.0
    %4706 = vmatprep.subr.mxu0 0.0
    %4707 = vmatpush1.msra.mxu0 0.0
    %4708 = vmatprep.subr.mxu0 0.0
    %4709 = vmatpush1.msra.mxu0 0.0
    %4710 = vmatprep.subr.mxu0 0.0
    %4711 = vmatpush1.msra.mxu0 0.0
    %4712 = vmatprep.subr.mxu0 0.0
    %4713 = vmatpush1.msra.mxu0 0.0
    %4714 = vmatprep.subr.mxu0 0.0
    %4715 = vmatpush1.msra.mxu0 0.0
    %4716 = vmatprep.subr.mxu0 0.0
    %4717 = vmatpush1.msra.mxu0 0.0
    %4718 = vmatprep.subr.mxu0 0.0
    %4719 = vmatpush1.msra.mxu0 0.0
    %4720 = vmatprep.subr.mxu0 0.0
    %4721 = vmatpush1.msra.mxu0 0.0
    %4722 = vmatprep.subr.mxu0 0.0
    %4723 = vmatpush1.msra.mxu0 0.0
    %4724 = vmatprep.subr.mxu0 0.0
    %4725 = vmatpush1.msra.mxu0 0.0
    %4726 = vmatprep.subr.mxu0 0.0
    %4727 = vmatpush1.msra.mxu0 0.0
    %4728 = vmatprep.subr.mxu0 0.0
    %4729 = vmatpush1.msra.mxu0 0.0
    %4730 = vmatprep.subr.mxu0 0.0
    %4731 = vmatpush1.msra.mxu0 0.0
    %4732 = vmatprep.subr.mxu0 0.0
    %4733 = vmatpush1.msra.mxu0 0.0
    %4734 = vmatprep.subr.mxu0 0.0
    %4735 = vmatpush1.msra.mxu0 0.0
    %4736 = vmatprep.mubr.f32.mxu0 0.0
    %4737 = vmatmul.mubr.f32.gmra.mrb[0].mxu0 %v4632
    %v4738 = vpop.f32.mrb[0].mxu0
    %v4739 = vadd.f32 0.0, %v4738
    %v4740 = vpop.f32.mrb[0].mxu0
    %4741 = vmatprep.mubr.f32.mxu0 0.0
    %4742 = vmatmul.mubr.f32.gmra.mrb[0].mxu0 %v4633
    %v4743 = vpop.f32.mrb[0].mxu0
    %v4744 = vadd.f32 0.0, %v4743
    %v4745 = vpop.f32.mrb[0].mxu0
    %4746 = vmatprep.mubr.f32.mxu0 0.0
    %4747 = vmatmul.mubr.f32.gmra.mrb[0].mxu0 %v4634
    %v4748 = vpop.f32.mrb[0].mxu0
    %v4749 = vadd.f32 0.0, %v4748
    %v4750 = vpop.f32.mrb[0].mxu0
    %4751 = vmatprep.mubr.f32.mxu0 0.0
    %4752 = vmatmul.mubr.f32.gmra.mrb[0].mxu0 %v4635
    %v4753 = vpop.f32.mrb[0].mxu0
    %v4754 = vadd.f32 0.0, %v4753
    %v4755 = vpop.f32.mrb[0].mxu0
    %4756 = vmatprep.mubr.f32.mxu0 0.0
    %4757 = vmatmul.mubr.f32.gmra.mrb[0].mxu0 %v4636
    %v4758 = vpop.f32.mrb[0].mxu0
    %v4759 = vadd.f32 0.0, %v4758
    %v4760 = vpop.f32.mrb[0].mxu0
    %4761 = vmatprep.mubr.f32.mxu0 0.0
    %4762 = vmatmul.mubr.f32.gmra.mrb[0].mxu0 %v4637
    %v4763 = vpop.f32.mrb[0].mxu0
    %v4764 = vadd.f32 0.0, %v4763
    %v4765 = vpop.f32.mrb[0].mxu0
    %4766 = vmatprep.mubr.f32.mxu0 0.0
    %4767 = vmatmul.mubr.f32.gmra.mrb[0].mxu0 %v4638
    %v4768 = vpop.f32.mrb[0].mxu0
    %v4769 = vadd.f32 0.0, %v4768
    %v4770 = vpop.f32.mrb[0].mxu0
    %4771 = vmatprep.mubr.f32.mxu0 0.0
    %4772 = vmatmul.mubr.f32.gmra.mrb[0].mxu0 %v4639
    %v4773 = vpop.f32.mrb[0].mxu0
    %v4774 = vadd.f32 0.0, %v4773
    %v4775 = vpop.f32.mrb[0].mxu0
    %4776 = vdwg.mxu0
    %4777 = vmatprep.subr.mxu0 0.0
    %4778 = vmatpush1.msra.mxu0 %v4640
    %4779 = vmatprep.subr.mxu0 0.0
    %4780 = vmatpush1.msra.mxu0 %v4641
    %4781 = vmatprep.subr.mxu0 0.0
    %4782 = vmatpush1.msra.mxu0 %v4642
    %4783 = vmatprep.subr.mxu0 0.0
    %4784 = vmatpush1.msra.mxu0 %v4643
    %4785 = vmatprep.subr.mxu0 0.0
    %4786 = vmatpush1.msra.mxu0 %v4644
    %4787 = vmatprep.subr.mxu0 0.0
    %4788 = vmatpush1.msra.mxu0 %v4645
    %4789 = vmatprep.subr.mxu0 0.0
    %4790 = vmatpush1.msra.mxu0 %v4646
    %4791 = vmatprep.subr.mxu0 0.0
    %4792 = vmatpush1.msra.mxu0 %v4647
    %4793 = vmatprep.subr.mxu0 0.0
    %4794 = vmatpush1.msra.mxu0 %v4648
    %4795 = vmatprep.subr.mxu0 0.0
    %4796 = vmatpush1.msra.mxu0 %v4649
    %4797 = vmatprep.subr.mxu0 0.0
    %4798 = vmatpush1.msra.mxu0 %v4650
    %4799 = vmatprep.subr.mxu0 0.0
    %4800 = vmatpush1.msra.mxu0 %v4651
    %4801 = vmatprep.subr.mxu0 0.0
    %4802 = vmatpush1.msra.mxu0 %v4652
    %4803 = vmatprep.subr.mxu0 0.0
    %4804 = vmatpush1.msra.mxu0 %v4653
    %4805 = vmatprep.subr.mxu0 0.0
    %4806 = vmatpush1.msra.mxu0 %v4654
    %4807 = vmatprep.subr.mxu0 0.0
    %4808 = vmatpush1.msra.mxu0 %v4655
    %4809 = vmatprep.subr.mxu0 0.0
    %4810 = vmatpush1.msra.mxu0 0.0
    %4811 = vmatprep.subr.mxu0 0.0
    %4812 = vmatpush1.msra.mxu0 0.0
    %4813 = vmatprep.subr.mxu0 0.0
    %4814 = vmatpush1.msra.mxu0 0.0
    %4815 = vmatprep.subr.mxu0 0.0
    %4816 = vmatpush1.msra.mxu0 0.0
    %4817 = vmatprep.subr.mxu0 0.0
    %4818 = vmatpush1.msra.mxu0 0.0
    %4819 = vmatprep.subr.mxu0 0.0
    %4820 = vmatpush1.msra.mxu0 0.0
    %4821 = vmatprep.subr.mxu0 0.0
    %4822 = vmatpush1.msra.mxu0 0.0
    %4823 = vmatprep.subr.mxu0 0.0
    %4824 = vmatpush1.msra.mxu0 0.0
    %4825 = vmatprep.subr.mxu0 0.0
    %4826 = vmatpush1.msra.mxu0 0.0
    %4827 = vmatprep.subr.mxu0 0.0
    %4828 = vmatpush1.msra.mxu0 0.0
    %4829 = vmatprep.subr.mxu0 0.0
    %4830 = vmatpush1.msra.mxu0 0.0
    %4831 = vmatprep.subr.mxu0 0.0
    %4832 = vmatpush1.msra.mxu0 0.0
    %4833 = vmatprep.subr.mxu0 0.0
    %4834 = vmatpush1.msra.mxu0 0.0
    %4835 = vmatprep.subr.mxu0 0.0
    %4836 = vmatpush1.msra.mxu0 0.0
    %4837 = vmatprep.subr.mxu0 0.0
    %4838 = vmatpush1.msra.mxu0 0.0
    %4839 = vmatprep.subr.mxu0 0.0
    %4840 = vmatpush1.msra.mxu0 0.0
    %4841 = vmatprep.mubr.f32.mxu0 0.0
    %4842 = vmatmul.mubr.f32.gmra.mrb[0].mxu0 %v4624
    %v4843 = vpop.f32.mrb[0].mxu0
    %v4844 = vadd.f32 %v4739, %v4843
    %v4845 = vpop.f32.mrb[0].mxu0
    %4846 = vmatprep.mubr.f32.mxu0 0.0
    %4847 = vmatmul.mubr.f32.gmra.mrb[0].mxu0 %v4625
    %v4848 = vpop.f32.mrb[0].mxu0
    %v4849 = vadd.f32 %v4744, %v4848
    %v4850 = vpop.f32.mrb[0].mxu0
    %4851 = vmatprep.mubr.f32.mxu0 0.0
    %4852 = vmatmul.mubr.f32.gmra.mrb[0].mxu0 %v4626
    %v4853 = vpop.f32.mrb[0].mxu0
    %v4854 = vadd.f32 %v4749, %v4853
    %v4855 = vpop.f32.mrb[0].mxu0
    %4856 = vmatprep.mubr.f32.mxu0 0.0
    %4857 = vmatmul.mubr.f32.gmra.mrb[0].mxu0 %v4627
    %v4858 = vpop.f32.mrb[0].mxu0
    %v4859 = vadd.f32 %v4754, %v4858
    %v4860 = vpop.f32.mrb[0].mxu0
    %4861 = vmatprep.mubr.f32.mxu0 0.0
    %4862 = vmatmul.mubr.f32.gmra.mrb[0].mxu0 %v4628
    %v4863 = vpop.f32.mrb[0].mxu0
    %v4864 = vadd.f32 %v4759, %v4863
    %v4865 = vpop.f32.mrb[0].mxu0
    %4866 = vmatprep.mubr.f32.mxu0 0.0
    %4867 = vmatmul.mubr.f32.gmra.mrb[0].mxu0 %v4629
    %v4868 = vpop.f32.mrb[0].mxu0
    %v4869 = vadd.f32 %v4764, %v4868
    %v4870 = vpop.f32.mrb[0].mxu0
    %4871 = vmatprep.mubr.f32.mxu0 0.0
    %4872 = vmatmul.mubr.f32.gmra.mrb[0].mxu0 %v4630
    %v4873 = vpop.f32.mrb[0].mxu0
    %v4874 = vadd.f32 %v4769, %v4873
    %v4875 = vpop.f32.mrb[0].mxu0
    %4876 = vmatprep.mubr.f32.mxu0 0.0
    %4877 = vmatmul.mubr.f32.gmra.mrb[0].mxu0 %v4631
    %v4878 = vpop.f32.mrb[0].mxu0
    %v4879 = vadd.f32 %v4774, %v4878
    %v4880 = vpop.f32.mrb[0].mxu0
    %4881 = vdwg.mxu0
    %v4882 = vld [vmem:[%s10] sm:$0x1]
    %v4884 = vlaneseq
    %v4885 = vshrl.u32 %v4884, 7
    %v4886 = vsub.s32 0, %v4885
    %v4887 = vrot.slane %v4882, %v4886
    %v4889 = vadd.f32 %v4844, %v4887
    %v4890 = vadd.f32 %v4849, %v4887
    %v4891 = vadd.f32 %v4854, %v4887
    %v4892 = vadd.f32 %v4859, %v4887
    %v4893 = vadd.f32 %v4864, %v4887
    %v4894 = vadd.f32 %v4869, %v4887
    %v4895 = vadd.f32 %v4874, %v4887
    %v4896 = vadd.f32 %v4879, %v4887
    %4897 = vst [vmem:[%s11] sm:$0xff] %v4889
    %4898 = vst [vmem:[%s11 + $0x8] sm:$0xff] %v4890
    %4899 = vst [vmem:[%s11 + $0x10] sm:$0xff] %v4891
    %4900 = vst [vmem:[%s11 + $0x18] sm:$0xff] %v4892
    %4901 = vst [vmem:[%s11 + $0x20] sm:$0xff] %v4893
    %4902 = vst [vmem:[%s11 + $0x28] sm:$0xff] %v4894
    %4903 = vst [vmem:[%s11 + $0x30] sm:$0xff] %v4895
    %4904 = vst [vmem:[%s11 + $0x38] sm:$0xff] %v4896
    // Predicated region
    $region62: #{torch_model_forward.3} parent=1 // pred_check
      _
    $region63: #{torch_model_forward.3} parent=1 // pred_check_branch
      %4906 = sbr.rel (0) target = $region65
    $region64: #{torch_model_forward.3} parent=1 // pred_region
      _
    $region65: #{torch_model_forward.3} parent=1 // pred_fallthru
      _
    // Predicated region
    $region66: #{torch_model_forward.3} parent=1 // pred_check
      _
    $region67: #{torch_model_forward.3} parent=1 // pred_check_branch
      %4908 = sbr.rel (0) target = $region69
    $region68: #{torch_model_forward.3} parent=1 // pred_region
      _
    $region69: #{torch_model_forward.3} parent=1 // pred_fallthru
      _
    %4909 = vsyncpa [#allocation11], 1
    %4910 = vsyncpa [#allocation13], 1

</llo_original>
